<compile_context>
chip_gen: v5e
topology: v5e:2x2
jax: 0.10.0
libtpu: 0.0.40
codegen_flags: <defaults>
</compile_context>

<pallas_src>
import functools

import jax
import jax.numpy as jnp
from jax.experimental import pallas as pl
from jax.experimental.pallas import tpu as pltpu

IMG = 16                    # small stand-in for img_size = 400
N_BATCH = 2
H = W = IMG
HP, WP = H + 3, W + 2       # zero padding: 1 top / 2 bottom, 1 left / 1 right
LP = HP * WP                # flattened padded spatial length
LC = H * WP                 # "core" span containing every valid output position
CO = WP + 1                 # flat offset of output position (h=0, w=0)
H2, W2 = H // 2, W // 2
E1 = 16 * H2 * W2           # np.prod(dense_dim)
E2 = 1024

assert H % 8 == 0 and H % 2 == 0 and W % 2 == 0


# ----------------------------------------------------------------------------
# Fused-im2col 3x3 conv (padding=1), channel-major padded-flat layout.
# Also used for ConvTranspose2d(8,3,3,s=1,p=1) via flipped/swapped weights.
# ----------------------------------------------------------------------------
def _conv3x3_kernel(x_ref, w_ref, b_ref, m_ref, o_ref, *, act):
    # x_ref: (1, cin, LP)   padded-flat input
    # w_ref: (9, cout, cin) tap-major weights ; b_ref: (cout, 1) ; m_ref: (1, LC)
    # o_ref: (1, cout, LP)  padded-flat output (zero borders), ready for next conv
    cout = w_ref.shape[1]
    acc = jnp.zeros((cout, LC), jnp.float32)
    for t in range(9):                       # fused im2col: 9 shifted lane slices
        dy, dx = t // 3, t % 3
        start = CO + (dy - 1) * WP + (dx - 1)
        acc = acc + jnp.dot(w_ref[t], x_ref[0, :, pl.ds(start, LC)],
                            preferred_element_type=jnp.float32)
    y = acc + b_ref[...]
    if act == "relu":
        y = jnp.maximum(y, 0.0)
    elif act == "tanh":
        y = jnp.tanh(y)
    y = y * m_ref[...]                       # zero the wrap-around / junk columns
    o_ref[...] = jnp.zeros_like(o_ref)       # zero padding borders
    o_ref[0, :, pl.ds(CO, LC)] = y.astype(o_ref.dtype)


def conv3x3(xp, w9, b, mask, act):
    n, cin, _ = xp.shape
    cout = w9.shape[1]
    # TODO(synk): at real scale (img_size=400) add a spatial (L) grid axis so the
    # per-image blocks stay well under the v7x 64 MiB VMEM; N-only grid is fine here.
    return pl.pallas_call(
        functools.partial(_conv3x3_kernel, act=act),
        out_shape=jax.ShapeDtypeStruct((n, cout, LP), jnp.float32),
        grid_spec=pltpu.PrefetchScalarGridSpec(
            num_scalar_prefetch=0,
            grid=(n,),
            in_specs=[
                pl.BlockSpec((1, cin, LP), lambda i: (i, 0, 0)),
                pl.BlockSpec((9, cout, cin), lambda i: (0, 0, 0)),
                pl.BlockSpec((cout, 1), lambda i: (0, 0)),
                pl.BlockSpec((1, LC), lambda i: (0, 0)),
            ],
            out_specs=pl.BlockSpec((1, cout, LP), lambda i: (i, 0, 0)),
        ),
        compiler_params=pltpu.CompilerParams(dimension_semantics=("parallel",)),
    )(xp, w9, b, mask)


# ----------------------------------------------------------------------------
# MaxPool2d(2, 2): single kernel, reads conv2 output once.
#   row pairs : reshape (C,H,WP) -> (C,H2,2,WP) and max over the pair axis
#   col pairs : two tiny selector matmuls (pick padded cols 2j+1 / 2j+2) + max
# ----------------------------------------------------------------------------
def _maxpool_kernel(x_ref, sa_ref, sb_ref, o_ref):
    # x_ref: (1, C, HP, WP) padded ; sa/sb: (WP, W2) column selectors
    # o_ref: (1, C, H2, W2)
    c = x_ref.shape[1]
    sub = x_ref[0, :, 1:1 + H, :]                               # real rows 0..H-1
    rmax = jnp.max(sub.reshape(c, H2, 2, WP), axis=2)           # row-pair max
    rm2 = rmax.reshape(c * H2, WP)
    pooled = jnp.maximum(
        jnp.dot(rm2, sa_ref[...], preferred_element_type=jnp.float32),
        jnp.dot(rm2, sb_ref[...], preferred_element_type=jnp.float32),
    )                                                           # (C*H2, W2)
    o_ref[0] = pooled.reshape(c, H2, W2).astype(o_ref.dtype)


def maxpool_2x2(x4):
    n, c = x4.shape[0], x4.shape[1]
    lanes = jnp.arange(WP)[:, None]
    cols = jnp.arange(W2)[None, :]
    sel_a = (lanes == 2 * cols + 1).astype(jnp.float32)   # padded col 2j+1 = real 2j
    sel_b = (lanes == 2 * cols + 2).astype(jnp.float32)   # padded col 2j+2 = real 2j+1
    return pl.pallas_call(
        _maxpool_kernel,
        out_shape=jax.ShapeDtypeStruct((n, c, H2, W2), jnp.float32),
        grid_spec=pltpu.PrefetchScalarGridSpec(
            num_scalar_prefetch=0,
            grid=(n,),
            in_specs=[
                pl.BlockSpec((1, c, HP, WP), lambda i: (i, 0, 0, 0)),
                pl.BlockSpec((WP, W2), lambda i: (0, 0)),
                pl.BlockSpec((WP, W2), lambda i: (0, 0)),
            ],
            out_specs=pl.BlockSpec((1, c, H2, W2), lambda i: (i, 0, 0, 0)),
        ),
        compiler_params=pltpu.CompilerParams(dimension_semantics=("parallel",)),
    )(x4, sel_a, sel_b)


# ----------------------------------------------------------------------------
# Tiled Linear: grid (M, N, K), f32 VMEM accumulator, bf16 weight streaming.
# ----------------------------------------------------------------------------
def _fc_kernel(x_ref, w_ref, b_ref, o_ref, acc_ref, *, act):
    @pl.when(pl.program_id(2) == 0)
    def _():
        acc_ref[...] = jnp.zeros_like(acc_ref)

    acc_ref[...] += jnp.dot(x_ref[...], w_ref[...], preferred_element_type=jnp.float32)

    @pl.when(pl.program_id(2) == pl.num_programs(2) - 1)
    def _():
        y = acc_ref[...] + b_ref[...]
        if act == "relu":
            y = jnp.maximum(y, 0.0)
        o_ref[...] = y.astype(o_ref.dtype)


def linear(x, w_bf16, b, act, *, tk=512, tn=512):
    m, k = x.shape
    k2, n = w_bf16.shape
    assert k == k2
    tk = tk if k % tk == 0 else k
    tn = tn if n % tn == 0 else n
    return pl.pallas_call(
        functools.partial(_fc_kernel, act=act),
        out_shape=jax.ShapeDtypeStruct((m, n), jnp.float32),
        grid_spec=pltpu.PrefetchScalarGridSpec(
            num_scalar_prefetch=0,
            grid=(1, n // tn, k // tk),                 # K last, accumulated
            in_specs=[
                pl.BlockSpec((m, tk), lambda i, j, kk: (i, kk)),
                pl.BlockSpec((tk, tn), lambda i, j, kk: (kk, j)),
                pl.BlockSpec((1, tn), lambda i, j, kk: (0, j)),
            ],
            out_specs=pl.BlockSpec((m, tn), lambda i, j, kk: (i, j)),
            scratch_shapes=[pltpu.VMEM((m, tn), jnp.float32)],
        ),
        compiler_params=pltpu.CompilerParams(
            dimension_semantics=("parallel", "parallel", "arbitrary")),
    )(x.astype(jnp.bfloat16), w_bf16, b)


# ----------------------------------------------------------------------------
# ConvTranspose2d(16, 8, kernel_size=2, stride=2) + ReLU: 4 lane-dense tap matmuls.
# ----------------------------------------------------------------------------
def _convt1_kernel(x_ref, w_ref, b_ref, o_ref):
    # x_ref: (1, 16, H2*W2) ; w_ref: (4, 8, 16) ; b_ref: (8, 1)
    # o_ref: (1, 2, 2, 8, H2*W2)  -- per-(dy,dx)-tap, lane-dense
    for t in range(4):
        v = jnp.dot(w_ref[t], x_ref[0], preferred_element_type=jnp.float32) + b_ref[...]
        o_ref[0, t // 2, t % 2] = jnp.maximum(v, 0.0).astype(o_ref.dtype)


def conv_transpose_2x2_s2(x, w4, b):
    n, _, lc2 = x.shape
    return pl.pallas_call(
        _convt1_kernel,
        out_shape=jax.ShapeDtypeStruct((n, 2, 2, 8, lc2), jnp.float32),
        grid_spec=pltpu.PrefetchScalarGridSpec(
            num_scalar_prefetch=0,
            grid=(n,),
            in_specs=[
                pl.BlockSpec((1, 16, lc2), lambda i: (i, 0, 0)),
                pl.BlockSpec((4, 8, 16), lambda i: (0, 0, 0)),
                pl.BlockSpec((8, 1), lambda i: (0, 0)),
            ],
            out_specs=pl.BlockSpec((1, 2, 2, 8, lc2), lambda i: (i, 0, 0, 0, 0)),
        ),
        compiler_params=pltpu.CompilerParams(dimension_semantics=("parallel",)),
    )(x, w4, b)


# ----------------------------------------------------------------------------
# Parameters: torch-layout init, converted ONCE into kernel-friendly layouts.
# ----------------------------------------------------------------------------
def init_torch_params(key):
    ks = jax.random.split(key, 12)

    def u(k, shape, fan_in):
        bound = (1.0 / fan_in) ** 0.5
        return jax.random.uniform(k, shape, jnp.float32, -bound, bound)

    return {
        "enc_conv1_w": u(ks[0], (8, 3, 3, 3), 3 * 9),
        "enc_conv1_b": u(ks[1], (8,), 3 * 9),
        "enc_conv2_w": u(ks[2], (16, 8, 3, 3), 8 * 9),
        "enc_conv2_b": u(ks[3], (16,), 8 * 9),
        "enc_fc_w":    u(ks[4], (E2, E1), E1),        # torch Linear: (out, in)
        "enc_fc_b":    u(ks[5], (E2,), E1),
        "dec_fc_w":    u(ks[6], (E1, E2), E2),
        "dec_fc_b":    u(ks[7], (E1,), E2),
        "dec_convt1_w": u(ks[8], (16, 8, 2, 2), 16 * 4),
        "dec_convt1_b": u(ks[9], (8,), 16 * 4),
        "dec_convt2_w": u(ks[10], (8, 3, 3, 3), 8 * 9),
        "dec_convt2_b": u(ks[11], (3,), 8 * 9),
    }


def prepare_params(p):
    """One-time layout conversion (pre-transpose at init, not per forward)."""
    mask = (jnp.arange(LC) % WP < W).astype(jnp.float32).reshape(1, LC)
    return {
        # 3x3 convs -> (9, cout, cin) tap-major
        "w1": p["enc_conv1_w"].transpose(2, 3, 0, 1).reshape(9, 8, 3),
        "b1": p["enc_conv1_b"].reshape(8, 1),
        "w2": p["enc_conv2_w"].transpose(2, 3, 0, 1).reshape(9, 16, 8),
        "b2": p["enc_conv2_b"].reshape(16, 1),
        # ConvTranspose2d(8,3,3,s=1,p=1) == 3x3 conv with flipped kernel, swapped io
        "w3": jnp.flip(p["dec_convt2_w"], axis=(2, 3)).transpose(2, 3, 1, 0).reshape(9, 3, 8),
        "b3": p["dec_convt2_b"].reshape(3, 1),
        # FC weights pre-transposed to (in, out), streamed as bf16 (f32 accumulate)
        "fw1": p["enc_fc_w"].T.astype(jnp.bfloat16),
        "fb1": p["enc_fc_b"].reshape(1, E2),
        "fw2": p["dec_fc_w"].T.astype(jnp.bfloat16),
        "fb2": p["dec_fc_b"].reshape(1, E1),
        # ConvTranspose2d(16,8,2,2) -> (4, cout, cin) tap-major
        "tw1": p["dec_convt1_w"].transpose(2, 3, 1, 0).reshape(4, 8, 16),
        "tb1": p["dec_convt1_b"].reshape(8, 1),
        "mask": mask,
    }


# ----------------------------------------------------------------------------
# Forward pass (matches the PyTorch module semantics)
# ----------------------------------------------------------------------------
@jax.jit
def autoencoder_forward(prep, x_nchw):
    n = x_nchw.shape[0]
    # NCHW -> channel-major padded-flat layout (free metadata reshape after one pad)
    xp = jnp.pad(x_nchw, ((0, 0), (0, 0), (1, 2), (1, 1))).reshape(n, 3, LP)
    # --- encoder ---
    a1 = conv3x3(xp, prep["w1"], prep["b1"], prep["mask"], "relu")      # (n, 8, LP)
    a2 = conv3x3(a1, prep["w2"], prep["b2"], prep["mask"], "relu")      # (n, 16, LP)
    pooled = maxpool_2x2(a2.reshape(n, 16, HP, WP))                     # (n, 16, H2, W2)
    z = linear(pooled.reshape(n, E1), prep["fw1"], prep["fb1"], act=None)   # (n, E2)
    # --- decoder ---   (Linear -> View -> ReLU fused; ConvT1 + ReLU; ConvT2 + Tanh)
    h = linear(z, prep["fw2"], prep["fb2"], act="relu")                 # (n, E1)
    v = conv_transpose_2x2_s2(h.reshape(n, 16, H2 * W2),
                              prep["tw1"], prep["tb1"])                 # (n, 2, 2, 8, H2*W2)
    # TODO(synk): fold this stride-2 pixel interleave + re-pad into the following
    # conv kernel (sub-pixel decomposition); it is the one remaining JAX-side copy.
    u = v.reshape(n, 2, 2, 8, H2, W2).transpose(0, 3, 4, 1, 5, 2).reshape(n, 8, H, W)
    up = jnp.pad(u, ((0, 0), (0, 0), (1, 2), (1, 1))).reshape(n, 8, LP)
    y = conv3x3(up, prep["w3"], prep["b3"], prep["mask"], "tanh")       # (n, 3, LP)
    return y.reshape(n, 3, HP, WP)[:, :, 1:1 + H, 1:1 + W]              # NCHW output


if __name__ == "__main__":
    key = jax.random.PRNGKey(0)
    pkey, xkey = jax.random.split(key)
    prep = prepare_params(init_torch_params(pkey))
    x = jax.random.normal(xkey, (N_BATCH, 3, IMG, IMG), jnp.float32)

    out = autoencoder_forward(prep, x)
    jax.block_until_ready(out)

    assert out.shape == (N_BATCH, 3, IMG, IMG), out.shape
    assert out.dtype == jnp.float32
    print("KERNEL_OK")
</pallas_src>

<mosaic_0001>
module attributes {stable_mosaic.version = 11 : i64} {
  func.func @_conv3x3_kernel(%arg0: i32, %arg1: memref<1x8x342xf32, #tpu.memory_space<vmem>>, %arg2: memref<9x16x8xf32, #tpu.memory_space<vmem>>, %arg3: memref<16x1xf32, #tpu.memory_space<vmem>>, %arg4: memref<1x288xf32, #tpu.memory_space<vmem>>, %arg5: memref<1x16x342xf32, #tpu.memory_space<vmem>>) attributes {dimension_semantics = [#tpu.dimension_semantics<parallel>], iteration_bounds = array<i64: 2>, scalar_prefetch = 0 : i64, scratch_operands = 0 : i64, tpu.core_type = #tpu.core_type<tc>, window_params = [{transform_indices = @transform_0, window_bounds = array<i64: 1, 8, 342>}, {pipeline_mode = #tpu.pipeline_mode<synchronous>, transform_indices = @transform_1, window_bounds = array<i64: 9, 16, 8>}, {pipeline_mode = #tpu.pipeline_mode<synchronous>, transform_indices = @transform_2, window_bounds = array<i64: 16, 1>}, {pipeline_mode = #tpu.pipeline_mode<synchronous>, transform_indices = @transform_3, window_bounds = array<i64: 1, 288>}, {transform_indices = @transform_4, window_bounds = array<i64: 1, 16, 342>}]} {
    %cst = arith.constant 0.000000e+00 : f32
    %0 = vector.broadcast %cst : f32 to vector<16x288xf32>
    %c0 = arith.constant 0 : index
    %c0_0 = arith.constant 0 : index
    %c0_1 = arith.constant 0 : index
    %1 = vector.load %arg2[%c0, %c0_0, %c0_1] : memref<9x16x8xf32, #tpu.memory_space<vmem>>, vector<1x16x8xf32>
    %2 = vector.shape_cast %1 : vector<1x16x8xf32> to vector<16x8xf32>
    %c0_2 = arith.constant 0 : index
    %c0_3 = arith.constant 0 : index
    %c0_4 = arith.constant 0 : index
    %3 = vector.load %arg1[%c0_2, %c0_3, %c0_4] : memref<1x8x342xf32, #tpu.memory_space<vmem>>, vector<1x8x288xf32>
    %4 = vector.shape_cast %3 : vector<1x8x288xf32> to vector<8x288xf32>
    %cst_5 = arith.constant dense<0.000000e+00> : vector<16x288xf32>
    %5 = tpu.matmul %2, %4, %cst_5 {dimension_numbers = #tpu.dot_dimension_numbers<[1], [0], [0], [1], [0, 0, 1, 1], [], []>} : vector<16x8xf32>, vector<8x288xf32>, vector<16x288xf32> -> vector<16x288xf32>
    %6 = arith.addf %0, %5 : vector<16x288xf32>
    %c1 = arith.constant 1 : index
    %c0_6 = arith.constant 0 : index
    %c0_7 = arith.constant 0 : index
    %7 = vector.load %arg2[%c1, %c0_6, %c0_7] : memref<9x16x8xf32, #tpu.memory_space<vmem>>, vector<1x16x8xf32>
    %8 = vector.shape_cast %7 : vector<1x16x8xf32> to vector<16x8xf32>
    %c0_8 = arith.constant 0 : index
    %c0_9 = arith.constant 0 : index
    %c1_10 = arith.constant 1 : index
    %9 = vector.load %arg1[%c0_8, %c0_9, %c1_10] : memref<1x8x342xf32, #tpu.memory_space<vmem>>, vector<1x8x288xf32>
    %10 = vector.shape_cast %9 : vector<1x8x288xf32> to vector<8x288xf32>
    %cst_11 = arith.constant dense<0.000000e+00> : vector<16x288xf32>
    %11 = tpu.matmul %8, %10, %cst_11 {dimension_numbers = #tpu.dot_dimension_numbers<[1], [0], [0], [1], [0, 0, 1, 1], [], []>} : vector<16x8xf32>, vector<8x288xf32>, vector<16x288xf32> -> vector<16x288xf32>
    %12 = arith.addf %6, %11 : vector<16x288xf32>
    %c2 = arith.constant 2 : index
    %c0_12 = arith.constant 0 : index
    %c0_13 = arith.constant 0 : index
    %13 = vector.load %arg2[%c2, %c0_12, %c0_13] : memref<9x16x8xf32, #tpu.memory_space<vmem>>, vector<1x16x8xf32>
    %14 = vector.shape_cast %13 : vector<1x16x8xf32> to vector<16x8xf32>
    %c0_14 = arith.constant 0 : index
    %c0_15 = arith.constant 0 : index
    %c2_16 = arith.constant 2 : index
    %15 = vector.load %arg1[%c0_14, %c0_15, %c2_16] : memref<1x8x342xf32, #tpu.memory_space<vmem>>, vector<1x8x288xf32>
    %16 = vector.shape_cast %15 : vector<1x8x288xf32> to vector<8x288xf32>
    %cst_17 = arith.constant dense<0.000000e+00> : vector<16x288xf32>
    %17 = tpu.matmul %14, %16, %cst_17 {dimension_numbers = #tpu.dot_dimension_numbers<[1], [0], [0], [1], [0, 0, 1, 1], [], []>} : vector<16x8xf32>, vector<8x288xf32>, vector<16x288xf32> -> vector<16x288xf32>
    %18 = arith.addf %12, %17 : vector<16x288xf32>
    %c3 = arith.constant 3 : index
    %c0_18 = arith.constant 0 : index
    %c0_19 = arith.constant 0 : index
    %19 = vector.load %arg2[%c3, %c0_18, %c0_19] : memref<9x16x8xf32, #tpu.memory_space<vmem>>, vector<1x16x8xf32>
    %20 = vector.shape_cast %19 : vector<1x16x8xf32> to vector<16x8xf32>
    %c0_20 = arith.constant 0 : index
    %c0_21 = arith.constant 0 : index
    %c18 = arith.constant 18 : index
    %21 = vector.load %arg1[%c0_20, %c0_21, %c18] : memref<1x8x342xf32, #tpu.memory_space<vmem>>, vector<1x8x288xf32>
    %22 = vector.shape_cast %21 : vector<1x8x288xf32> to vector<8x288xf32>
    %cst_22 = arith.constant dense<0.000000e+00> : vector<16x288xf32>
    %23 = tpu.matmul %20, %22, %cst_22 {dimension_numbers = #tpu.dot_dimension_numbers<[1], [0], [0], [1], [0, 0, 1, 1], [], []>} : vector<16x8xf32>, vector<8x288xf32>, vector<16x288xf32> -> vector<16x288xf32>
    %24 = arith.addf %18, %23 : vector<16x288xf32>
    %c4 = arith.constant 4 : index
    %c0_23 = arith.constant 0 : index
    %c0_24 = arith.constant 0 : index
    %25 = vector.load %arg2[%c4, %c0_23, %c0_24] : memref<9x16x8xf32, #tpu.memory_space<vmem>>, vector<1x16x8xf32>
    %26 = vector.shape_cast %25 : vector<1x16x8xf32> to vector<16x8xf32>
    %c0_25 = arith.constant 0 : index
    %c0_26 = arith.constant 0 : index
    %c19 = arith.constant 19 : index
    %27 = vector.load %arg1[%c0_25, %c0_26, %c19] : memref<1x8x342xf32, #tpu.memory_space<vmem>>, vector<1x8x288xf32>
    %28 = vector.shape_cast %27 : vector<1x8x288xf32> to vector<8x288xf32>
    %cst_27 = arith.constant dense<0.000000e+00> : vector<16x288xf32>
    %29 = tpu.matmul %26, %28, %cst_27 {dimension_numbers = #tpu.dot_dimension_numbers<[1], [0], [0], [1], [0, 0, 1, 1], [], []>} : vector<16x8xf32>, vector<8x288xf32>, vector<16x288xf32> -> vector<16x288xf32>
    %30 = arith.addf %24, %29 : vector<16x288xf32>
    %c5 = arith.constant 5 : index
    %c0_28 = arith.constant 0 : index
    %c0_29 = arith.constant 0 : index
    %31 = vector.load %arg2[%c5, %c0_28, %c0_29] : memref<9x16x8xf32, #tpu.memory_space<vmem>>, vector<1x16x8xf32>
    %32 = vector.shape_cast %31 : vector<1x16x8xf32> to vector<16x8xf32>
    %c0_30 = arith.constant 0 : index
    %c0_31 = arith.constant 0 : index
    %c20 = arith.constant 20 : index
    %33 = vector.load %arg1[%c0_30, %c0_31, %c20] : memref<1x8x342xf32, #tpu.memory_space<vmem>>, vector<1x8x288xf32>
    %34 = vector.shape_cast %33 : vector<1x8x288xf32> to vector<8x288xf32>
    %cst_32 = arith.constant dense<0.000000e+00> : vector<16x288xf32>
    %35 = tpu.matmul %32, %34, %cst_32 {dimension_numbers = #tpu.dot_dimension_numbers<[1], [0], [0], [1], [0, 0, 1, 1], [], []>} : vector<16x8xf32>, vector<8x288xf32>, vector<16x288xf32> -> vector<16x288xf32>
    %36 = arith.addf %30, %35 : vector<16x288xf32>
    %c6 = arith.constant 6 : index
    %c0_33 = arith.constant 0 : index
    %c0_34 = arith.constant 0 : index
    %37 = vector.load %arg2[%c6, %c0_33, %c0_34] : memref<9x16x8xf32, #tpu.memory_space<vmem>>, vector<1x16x8xf32>
    %38 = vector.shape_cast %37 : vector<1x16x8xf32> to vector<16x8xf32>
    %c0_35 = arith.constant 0 : index
    %c0_36 = arith.constant 0 : index
    %c36 = arith.constant 36 : index
    %39 = vector.load %arg1[%c0_35, %c0_36, %c36] : memref<1x8x342xf32, #tpu.memory_space<vmem>>, vector<1x8x288xf32>
    %40 = vector.shape_cast %39 : vector<1x8x288xf32> to vector<8x288xf32>
    %cst_37 = arith.constant dense<0.000000e+00> : vector<16x288xf32>
    %41 = tpu.matmul %38, %40, %cst_37 {dimension_numbers = #tpu.dot_dimension_numbers<[1], [0], [0], [1], [0, 0, 1, 1], [], []>} : vector<16x8xf32>, vector<8x288xf32>, vector<16x288xf32> -> vector<16x288xf32>
    %42 = arith.addf %36, %41 : vector<16x288xf32>
    %c7 = arith.constant 7 : index
    %c0_38 = arith.constant 0 : index
    %c0_39 = arith.constant 0 : index
    %43 = vector.load %arg2[%c7, %c0_38, %c0_39] : memref<9x16x8xf32, #tpu.memory_space<vmem>>, vector<1x16x8xf32>
    %44 = vector.shape_cast %43 : vector<1x16x8xf32> to vector<16x8xf32>
    %c0_40 = arith.constant 0 : index
    %c0_41 = arith.constant 0 : index
    %c37 = arith.constant 37 : index
    %45 = vector.load %arg1[%c0_40, %c0_41, %c37] : memref<1x8x342xf32, #tpu.memory_space<vmem>>, vector<1x8x288xf32>
    %46 = vector.shape_cast %45 : vector<1x8x288xf32> to vector<8x288xf32>
    %cst_42 = arith.constant dense<0.000000e+00> : vector<16x288xf32>
    %47 = tpu.matmul %44, %46, %cst_42 {dimension_numbers = #tpu.dot_dimension_numbers<[1], [0], [0], [1], [0, 0, 1, 1], [], []>} : vector<16x8xf32>, vector<8x288xf32>, vector<16x288xf32> -> vector<16x288xf32>
    %48 = arith.addf %42, %47 : vector<16x288xf32>
    %c8 = arith.constant 8 : index
    %c0_43 = arith.constant 0 : index
    %c0_44 = arith.constant 0 : index
    %49 = vector.load %arg2[%c8, %c0_43, %c0_44] : memref<9x16x8xf32, #tpu.memory_space<vmem>>, vector<1x16x8xf32>
    %50 = vector.shape_cast %49 : vector<1x16x8xf32> to vector<16x8xf32>
    %c0_45 = arith.constant 0 : index
    %c0_46 = arith.constant 0 : index
    %c38 = arith.constant 38 : index
    %51 = vector.load %arg1[%c0_45, %c0_46, %c38] : memref<1x8x342xf32, #tpu.memory_space<vmem>>, vector<1x8x288xf32>
    %52 = vector.shape_cast %51 : vector<1x8x288xf32> to vector<8x288xf32>
    %cst_47 = arith.constant dense<0.000000e+00> : vector<16x288xf32>
    %53 = tpu.matmul %50, %52, %cst_47 {dimension_numbers = #tpu.dot_dimension_numbers<[1], [0], [0], [1], [0, 0, 1, 1], [], []>} : vector<16x8xf32>, vector<8x288xf32>, vector<16x288xf32> -> vector<16x288xf32>
    %54 = arith.addf %48, %53 : vector<16x288xf32>
    %c0_48 = arith.constant 0 : index
    %c0_49 = arith.constant 0 : index
    %55 = vector.load %arg3[%c0_48, %c0_49] : memref<16x1xf32, #tpu.memory_space<vmem>>, vector<16x1xf32>
    %56 = vector.broadcast %55 : vector<16x1xf32> to vector<16x288xf32>
    %57 = arith.addf %54, %56 : vector<16x288xf32>
    %cst_50 = arith.constant 0.000000e+00 : f32
    %58 = vector.broadcast %cst_50 : f32 to vector<16x288xf32>
    %59 = arith.maximumf %57, %58 : vector<16x288xf32>
    %c0_51 = arith.constant 0 : index
    %c0_52 = arith.constant 0 : index
    %60 = vector.load %arg4[%c0_51, %c0_52] : memref<1x288xf32, #tpu.memory_space<vmem>>, vector<1x288xf32>
    %61 = vector.broadcast %60 : vector<1x288xf32> to vector<16x288xf32>
    %62 = arith.mulf %59, %61 : vector<16x288xf32>
    %cst_53 = arith.constant 0.000000e+00 : f32
    %63 = vector.broadcast %cst_53 : f32 to vector<1x16x342xf32>
    %c0_54 = arith.constant 0 : index
    %c0_55 = arith.constant 0 : index
    %c0_56 = arith.constant 0 : index
    %64 = vector.load %arg5[%c0_54, %c0_55, %c0_56] : memref<1x16x342xf32, #tpu.memory_space<vmem>>, vector<1x16x342xf32>
    tpu.vector_store %arg5[%c0_54, %c0_55, %c0_56], %63 {strides = array<i32>} : memref<1x16x342xf32, #tpu.memory_space<vmem>>, vector<1x16x342xf32>,
    %c0_57 = arith.constant 0 : index
    %c0_58 = arith.constant 0 : index
    %c19_59 = arith.constant 19 : index
    %65 = vector.load %arg5[%c0_57, %c0_58, %c19_59] : memref<1x16x342xf32, #tpu.memory_space<vmem>>, vector<1x16x288xf32>
    %66 = vector.shape_cast %65 : vector<1x16x288xf32> to vector<16x288xf32>
    %67 = vector.shape_cast %62 : vector<16x288xf32> to vector<1x16x288xf32>
    tpu.vector_store %arg5[%c0_57, %c0_58, %c19_59], %67 {strides = array<i32>} : memref<1x16x342xf32, #tpu.memory_space<vmem>>, vector<1x16x288xf32>,
    return
  }
  func.func @transform_0(%arg0: i32) -> (i32, i32, i32) {
    %c0_i32 = arith.constant 0 : i32
    %c0_i32_0 = arith.constant 0 : i32
    %c0_i32_1 = arith.constant 0 : i32
    return %arg0, %c0_i32, %c0_i32_0 : i32, i32, i32
  }
  func.func @transform_1(%arg0: i32) -> (i32, i32, i32) {
    %c0_i32 = arith.constant 0 : i32
    %c0_i32_0 = arith.constant 0 : i32
    %c0_i32_1 = arith.constant 0 : i32
    %c0_i32_2 = arith.constant 0 : i32
    return %c0_i32, %c0_i32_0, %c0_i32_1 : i32, i32, i32
  }
  func.func @transform_2(%arg0: i32) -> (i32, i32) {
    %c0_i32 = arith.constant 0 : i32
    %c0_i32_0 = arith.constant 0 : i32
    %c0_i32_1 = arith.constant 0 : i32
    return %c0_i32, %c0_i32_0 : i32, i32
  }
  func.func @transform_3(%arg0: i32) -> (i32, i32) {
    %c0_i32 = arith.constant 0 : i32
    %c0_i32_0 = arith.constant 0 : i32
    %c0_i32_1 = arith.constant 0 : i32
    return %c0_i32, %c0_i32_0 : i32, i32
  }
  func.func @transform_4(%arg0: i32) -> (i32, i32, i32) {
    %c0_i32 = arith.constant 0 : i32
    %c0_i32_0 = arith.constant 0 : i32
    %c0_i32_1 = arith.constant 0 : i32
    return %arg0, %c0_i32, %c0_i32_0 : i32, i32, i32
  }
}

module attributes {stable_mosaic.version = 11 : i64} {
  func.func @_conv3x3_kernel(%arg0: i32, %arg1: memref<1x3x342xf32, #tpu.memory_space<vmem>>, %arg2: memref<9x8x3xf32, #tpu.memory_space<vmem>>, %arg3: memref<8x1xf32, #tpu.memory_space<vmem>>, %arg4: memref<1x288xf32, #tpu.memory_space<vmem>>, %arg5: memref<1x8x342xf32, #tpu.memory_space<vmem>>) attributes {dimension_semantics = [#tpu.dimension_semantics<parallel>], iteration_bounds = array<i64: 2>, scalar_prefetch = 0 : i64, scratch_operands = 0 : i64, tpu.core_type = #tpu.core_type<tc>, window_params = [{transform_indices = @transform_0, window_bounds = array<i64: 1, 3, 342>}, {pipeline_mode = #tpu.pipeline_mode<synchronous>, transform_indices = @transform_1, window_bounds = array<i64: 9, 8, 3>}, {pipeline_mode = #tpu.pipeline_mode<synchronous>, transform_indices = @transform_2, window_bounds = array<i64: 8, 1>}, {pipeline_mode = #tpu.pipeline_mode<synchronous>, transform_indices = @transform_3, window_bounds = array<i64: 1, 288>}, {transform_indices = @transform_4, window_bounds = array<i64: 1, 8, 342>}]} {
    %cst = arith.constant 0.000000e+00 : f32
    %0 = vector.broadcast %cst : f32 to vector<8x288xf32>
    %c0 = arith.constant 0 : index
    %c0_0 = arith.constant 0 : index
    %c0_1 = arith.constant 0 : index
    %1 = vector.load %arg2[%c0, %c0_0, %c0_1] : memref<9x8x3xf32, #tpu.memory_space<vmem>>, vector<1x8x3xf32>
    %2 = vector.shape_cast %1 : vector<1x8x3xf32> to vector<8x3xf32>
    %c0_2 = arith.constant 0 : index
    %c0_3 = arith.constant 0 : index
    %c0_4 = arith.constant 0 : index
    %3 = vector.load %arg1[%c0_2, %c0_3, %c0_4] : memref<1x3x342xf32, #tpu.memory_space<vmem>>, vector<1x3x288xf32>
    %4 = vector.shape_cast %3 : vector<1x3x288xf32> to vector<3x288xf32>
    %cst_5 = arith.constant dense<0.000000e+00> : vector<8x288xf32>
    %5 = tpu.matmul %2, %4, %cst_5 {dimension_numbers = #tpu.dot_dimension_numbers<[1], [0], [0], [1], [0, 0, 1, 1], [], []>} : vector<8x3xf32>, vector<3x288xf32>, vector<8x288xf32> -> vector<8x288xf32>
    %6 = arith.addf %0, %5 : vector<8x288xf32>
    %c1 = arith.constant 1 : index
    %c0_6 = arith.constant 0 : index
    %c0_7 = arith.constant 0 : index
    %7 = vector.load %arg2[%c1, %c0_6, %c0_7] : memref<9x8x3xf32, #tpu.memory_space<vmem>>, vector<1x8x3xf32>
    %8 = vector.shape_cast %7 : vector<1x8x3xf32> to vector<8x3xf32>
    %c0_8 = arith.constant 0 : index
    %c0_9 = arith.constant 0 : index
    %c1_10 = arith.constant 1 : index
    %9 = vector.load %arg1[%c0_8, %c0_9, %c1_10] : memref<1x3x342xf32, #tpu.memory_space<vmem>>, vector<1x3x288xf32>
    %10 = vector.shape_cast %9 : vector<1x3x288xf32> to vector<3x288xf32>
    %cst_11 = arith.constant dense<0.000000e+00> : vector<8x288xf32>
    %11 = tpu.matmul %8, %10, %cst_11 {dimension_numbers = #tpu.dot_dimension_numbers<[1], [0], [0], [1], [0, 0, 1, 1], [], []>} : vector<8x3xf32>, vector<3x288xf32>, vector<8x288xf32> -> vector<8x288xf32>
    %12 = arith.addf %6, %11 : vector<8x288xf32>
    %c2 = arith.constant 2 : index
    %c0_12 = arith.constant 0 : index
    %c0_13 = arith.constant 0 : index
    %13 = vector.load %arg2[%c2, %c0_12, %c0_13] : memref<9x8x3xf32, #tpu.memory_space<vmem>>, vector<1x8x3xf32>
    %14 = vector.shape_cast %13 : vector<1x8x3xf32> to vector<8x3xf32>
    %c0_14 = arith.constant 0 : index
    %c0_15 = arith.constant 0 : index
    %c2_16 = arith.constant 2 : index
    %15 = vector.load %arg1[%c0_14, %c0_15, %c2_16] : memref<1x3x342xf32, #tpu.memory_space<vmem>>, vector<1x3x288xf32>
    %16 = vector.shape_cast %15 : vector<1x3x288xf32> to vector<3x288xf32>
    %cst_17 = arith.constant dense<0.000000e+00> : vector<8x288xf32>
    %17 = tpu.matmul %14, %16, %cst_17 {dimension_numbers = #tpu.dot_dimension_numbers<[1], [0], [0], [1], [0, 0, 1, 1], [], []>} : vector<8x3xf32>, vector<3x288xf32>, vector<8x288xf32> -> vector<8x288xf32>
    %18 = arith.addf %12, %17 : vector<8x288xf32>
    %c3 = arith.constant 3 : index
    %c0_18 = arith.constant 0 : index
    %c0_19 = arith.constant 0 : index
    %19 = vector.load %arg2[%c3, %c0_18, %c0_19] : memref<9x8x3xf32, #tpu.memory_space<vmem>>, vector<1x8x3xf32>
    %20 = vector.shape_cast %19 : vector<1x8x3xf32> to vector<8x3xf32>
    %c0_20 = arith.constant 0 : index
    %c0_21 = arith.constant 0 : index
    %c18 = arith.constant 18 : index
    %21 = vector.load %arg1[%c0_20, %c0_21, %c18] : memref<1x3x342xf32, #tpu.memory_space<vmem>>, vector<1x3x288xf32>
    %22 = vector.shape_cast %21 : vector<1x3x288xf32> to vector<3x288xf32>
    %cst_22 = arith.constant dense<0.000000e+00> : vector<8x288xf32>
    %23 = tpu.matmul %20, %22, %cst_22 {dimension_numbers = #tpu.dot_dimension_numbers<[1], [0], [0], [1], [0, 0, 1, 1], [], []>} : vector<8x3xf32>, vector<3x288xf32>, vector<8x288xf32> -> vector<8x288xf32>
    %24 = arith.addf %18, %23 : vector<8x288xf32>
    %c4 = arith.constant 4 : index
    %c0_23 = arith.constant 0 : index
    %c0_24 = arith.constant 0 : index
    %25 = vector.load %arg2[%c4, %c0_23, %c0_24] : memref<9x8x3xf32, #tpu.memory_space<vmem>>, vector<1x8x3xf32>
    %26 = vector.shape_cast %25 : vector<1x8x3xf32> to vector<8x3xf32>
    %c0_25 = arith.constant 0 : index
    %c0_26 = arith.constant 0 : index
    %c19 = arith.constant 19 : index
    %27 = vector.load %arg1[%c0_25, %c0_26, %c19] : memref<1x3x342xf32, #tpu.memory_space<vmem>>, vector<1x3x288xf32>
    %28 = vector.shape_cast %27 : vector<1x3x288xf32> to vector<3x288xf32>
    %cst_27 = arith.constant dense<0.000000e+00> : vector<8x288xf32>
    %29 = tpu.matmul %26, %28, %cst_27 {dimension_numbers = #tpu.dot_dimension_numbers<[1], [0], [0], [1], [0, 0, 1, 1], [], []>} : vector<8x3xf32>, vector<3x288xf32>, vector<8x288xf32> -> vector<8x288xf32>
    %30 = arith.addf %24, %29 : vector<8x288xf32>
    %c5 = arith.constant 5 : index
    %c0_28 = arith.constant 0 : index
    %c0_29 = arith.constant 0 : index
    %31 = vector.load %arg2[%c5, %c0_28, %c0_29] : memref<9x8x3xf32, #tpu.memory_space<vmem>>, vector<1x8x3xf32>
    %32 = vector.shape_cast %31 : vector<1x8x3xf32> to vector<8x3xf32>
    %c0_30 = arith.constant 0 : index
    %c0_31 = arith.constant 0 : index
    %c20 = arith.constant 20 : index
    %33 = vector.load %arg1[%c0_30, %c0_31, %c20] : memref<1x3x342xf32, #tpu.memory_space<vmem>>, vector<1x3x288xf32>
    %34 = vector.shape_cast %33 : vector<1x3x288xf32> to vector<3x288xf32>
    %cst_32 = arith.constant dense<0.000000e+00> : vector<8x288xf32>
    %35 = tpu.matmul %32, %34, %cst_32 {dimension_numbers = #tpu.dot_dimension_numbers<[1], [0], [0], [1], [0, 0, 1, 1], [], []>} : vector<8x3xf32>, vector<3x288xf32>, vector<8x288xf32> -> vector<8x288xf32>
    %36 = arith.addf %30, %35 : vector<8x288xf32>
    %c6 = arith.constant 6 : index
    %c0_33 = arith.constant 0 : index
    %c0_34 = arith.constant 0 : index
    %37 = vector.load %arg2[%c6, %c0_33, %c0_34] : memref<9x8x3xf32, #tpu.memory_space<vmem>>, vector<1x8x3xf32>
    %38 = vector.shape_cast %37 : vector<1x8x3xf32> to vector<8x3xf32>
    %c0_35 = arith.constant 0 : index
    %c0_36 = arith.constant 0 : index
    %c36 = arith.constant 36 : index
    %39 = vector.load %arg1[%c0_35, %c0_36, %c36] : memref<1x3x342xf32, #tpu.memory_space<vmem>>, vector<1x3x288xf32>
    %40 = vector.shape_cast %39 : vector<1x3x288xf32> to vector<3x288xf32>
    %cst_37 = arith.constant dense<0.000000e+00> : vector<8x288xf32>
    %41 = tpu.matmul %38, %40, %cst_37 {dimension_numbers = #tpu.dot_dimension_numbers<[1], [0], [0], [1], [0, 0, 1, 1], [], []>} : vector<8x3xf32>, vector<3x288xf32>, vector<8x288xf32> -> vector<8x288xf32>
    %42 = arith.addf %36, %41 : vector<8x288xf32>
    %c7 = arith.constant 7 : index
    %c0_38 = arith.constant 0 : index
    %c0_39 = arith.constant 0 : index
    %43 = vector.load %arg2[%c7, %c0_38, %c0_39] : memref<9x8x3xf32, #tpu.memory_space<vmem>>, vector<1x8x3xf32>
    %44 = vector.shape_cast %43 : vector<1x8x3xf32> to vector<8x3xf32>
    %c0_40 = arith.constant 0 : index
    %c0_41 = arith.constant 0 : index
    %c37 = arith.constant 37 : index
    %45 = vector.load %arg1[%c0_40, %c0_41, %c37] : memref<1x3x342xf32, #tpu.memory_space<vmem>>, vector<1x3x288xf32>
    %46 = vector.shape_cast %45 : vector<1x3x288xf32> to vector<3x288xf32>
    %cst_42 = arith.constant dense<0.000000e+00> : vector<8x288xf32>
    %47 = tpu.matmul %44, %46, %cst_42 {dimension_numbers = #tpu.dot_dimension_numbers<[1], [0], [0], [1], [0, 0, 1, 1], [], []>} : vector<8x3xf32>, vector<3x288xf32>, vector<8x288xf32> -> vector<8x288xf32>
    %48 = arith.addf %42, %47 : vector<8x288xf32>
    %c8 = arith.constant 8 : index
    %c0_43 = arith.constant 0 : index
    %c0_44 = arith.constant 0 : index
    %49 = vector.load %arg2[%c8, %c0_43, %c0_44] : memref<9x8x3xf32, #tpu.memory_space<vmem>>, vector<1x8x3xf32>
    %50 = vector.shape_cast %49 : vector<1x8x3xf32> to vector<8x3xf32>
    %c0_45 = arith.constant 0 : index
    %c0_46 = arith.constant 0 : index
    %c38 = arith.constant 38 : index
    %51 = vector.load %arg1[%c0_45, %c0_46, %c38] : memref<1x3x342xf32, #tpu.memory_space<vmem>>, vector<1x3x288xf32>
    %52 = vector.shape_cast %51 : vector<1x3x288xf32> to vector<3x288xf32>
    %cst_47 = arith.constant dense<0.000000e+00> : vector<8x288xf32>
    %53 = tpu.matmul %50, %52, %cst_47 {dimension_numbers = #tpu.dot_dimension_numbers<[1], [0], [0], [1], [0, 0, 1, 1], [], []>} : vector<8x3xf32>, vector<3x288xf32>, vector<8x288xf32> -> vector<8x288xf32>
    %54 = arith.addf %48, %53 : vector<8x288xf32>
    %c0_48 = arith.constant 0 : index
    %c0_49 = arith.constant 0 : index
    %55 = vector.load %arg3[%c0_48, %c0_49] : memref<8x1xf32, #tpu.memory_space<vmem>>, vector<8x1xf32>
    %56 = vector.broadcast %55 : vector<8x1xf32> to vector<8x288xf32>
    %57 = arith.addf %54, %56 : vector<8x288xf32>
    %cst_50 = arith.constant 0.000000e+00 : f32
    %58 = vector.broadcast %cst_50 : f32 to vector<8x288xf32>
    %59 = arith.maximumf %57, %58 : vector<8x288xf32>
    %c0_51 = arith.constant 0 : index
    %c0_52 = arith.constant 0 : index
    %60 = vector.load %arg4[%c0_51, %c0_52] : memref<1x288xf32, #tpu.memory_space<vmem>>, vector<1x288xf32>
    %61 = vector.broadcast %60 : vector<1x288xf32> to vector<8x288xf32>
    %62 = arith.mulf %59, %61 : vector<8x288xf32>
    %cst_53 = arith.constant 0.000000e+00 : f32
    %63 = vector.broadcast %cst_53 : f32 to vector<1x8x342xf32>
    %c0_54 = arith.constant 0 : index
    %c0_55 = arith.constant 0 : index
    %c0_56 = arith.constant 0 : index
    %64 = vector.load %arg5[%c0_54, %c0_55, %c0_56] : memref<1x8x342xf32, #tpu.memory_space<vmem>>, vector<1x8x342xf32>
    tpu.vector_store %arg5[%c0_54, %c0_55, %c0_56], %63 {strides = array<i32>} : memref<1x8x342xf32, #tpu.memory_space<vmem>>, vector<1x8x342xf32>,
    %c0_57 = arith.constant 0 : index
    %c0_58 = arith.constant 0 : index
    %c19_59 = arith.constant 19 : index
    %65 = vector.load %arg5[%c0_57, %c0_58, %c19_59] : memref<1x8x342xf32, #tpu.memory_space<vmem>>, vector<1x8x288xf32>
    %66 = vector.shape_cast %65 : vector<1x8x288xf32> to vector<8x288xf32>
    %67 = vector.shape_cast %62 : vector<8x288xf32> to vector<1x8x288xf32>
    tpu.vector_store %arg5[%c0_57, %c0_58, %c19_59], %67 {strides = array<i32>} : memref<1x8x342xf32, #tpu.memory_space<vmem>>, vector<1x8x288xf32>,
    return
  }
  func.func @transform_0(%arg0: i32) -> (i32, i32, i32) {
    %c0_i32 = arith.constant 0 : i32
    %c0_i32_0 = arith.constant 0 : i32
    %c0_i32_1 = arith.constant 0 : i32
    return %arg0, %c0_i32, %c0_i32_0 : i32, i32, i32
  }
  func.func @transform_1(%arg0: i32) -> (i32, i32, i32) {
    %c0_i32 = arith.constant 0 : i32
    %c0_i32_0 = arith.constant 0 : i32
    %c0_i32_1 = arith.constant 0 : i32
    %c0_i32_2 = arith.constant 0 : i32
    return %c0_i32, %c0_i32_0, %c0_i32_1 : i32, i32, i32
  }
  func.func @transform_2(%arg0: i32) -> (i32, i32) {
    %c0_i32 = arith.constant 0 : i32
    %c0_i32_0 = arith.constant 0 : i32
    %c0_i32_1 = arith.constant 0 : i32
    return %c0_i32, %c0_i32_0 : i32, i32
  }
  func.func @transform_3(%arg0: i32) -> (i32, i32) {
    %c0_i32 = arith.constant 0 : i32
    %c0_i32_0 = arith.constant 0 : i32
    %c0_i32_1 = arith.constant 0 : i32
    return %c0_i32, %c0_i32_0 : i32, i32
  }
  func.func @transform_4(%arg0: i32) -> (i32, i32, i32) {
    %c0_i32 = arith.constant 0 : i32
    %c0_i32_0 = arith.constant 0 : i32
    %c0_i32_1 = arith.constant 0 : i32
    return %arg0, %c0_i32, %c0_i32_0 : i32, i32, i32
  }
}

module attributes {stable_mosaic.version = 11 : i64} {
  func.func @_maxpool_kernel(%arg0: i32, %arg1: memref<1x16x19x18xf32, #tpu.memory_space<vmem>>, %arg2: memref<18x8xf32, #tpu.memory_space<vmem>>, %arg3: memref<18x8xf32, #tpu.memory_space<vmem>>, %arg4: memref<1x16x8x8xf32, #tpu.memory_space<vmem>>) attributes {dimension_semantics = [#tpu.dimension_semantics<parallel>], iteration_bounds = array<i64: 2>, scalar_prefetch = 0 : i64, scratch_operands = 0 : i64, tpu.core_type = #tpu.core_type<tc>, window_params = [{transform_indices = @transform_0, window_bounds = array<i64: 1, 16, 19, 18>}, {pipeline_mode = #tpu.pipeline_mode<synchronous>, transform_indices = @transform_1, window_bounds = array<i64: 18, 8>}, {pipeline_mode = #tpu.pipeline_mode<synchronous>, transform_indices = @transform_2, window_bounds = array<i64: 18, 8>}, {transform_indices = @transform_3, window_bounds = array<i64: 1, 16, 8, 8>}]} {
    %c0 = arith.constant 0 : index
    %c0_0 = arith.constant 0 : index
    %c1 = arith.constant 1 : index
    %c0_1 = arith.constant 0 : index
    %0 = vector.load %arg1[%c0, %c0_0, %c1, %c0_1] : memref<1x16x19x18xf32, #tpu.memory_space<vmem>>, vector<1x16x16x18xf32>
    %1 = vector.shape_cast %0 : vector<1x16x16x18xf32> to vector<16x16x18xf32>
    %2 = vector.shape_cast %1 : vector<16x16x18xf32> to vector<16x8x2x18xf32>
    %cst = arith.constant dense<0xFF800000> : vector<16x8x18xf32>
    %3 = vector.multi_reduction <maximumf>, %2, %cst [2] : vector<16x8x2x18xf32> to vector<16x8x18xf32>
    %4 = vector.shape_cast %3 : vector<16x8x18xf32> to vector<128x18xf32>
    %c0_2 = arith.constant 0 : index
    %c0_3 = arith.constant 0 : index
    %5 = vector.load %arg2[%c0_2, %c0_3] : memref<18x8xf32, #tpu.memory_space<vmem>>, vector<18x8xf32>
    %cst_4 = arith.constant dense<0.000000e+00> : vector<128x8xf32>
    %6 = tpu.matmul %4, %5, %cst_4 {dimension_numbers = #tpu.dot_dimension_numbers<[1], [0], [0], [1], [0, 0, 1, 1], [], []>} : vector<128x18xf32>, vector<18x8xf32>, vector<128x8xf32> -> vector<128x8xf32>
    %c0_5 = arith.constant 0 : index
    %c0_6 = arith.constant 0 : index
    %7 = vector.load %arg3[%c0_5, %c0_6] : memref<18x8xf32, #tpu.memory_space<vmem>>, vector<18x8xf32>
    %cst_7 = arith.constant dense<0.000000e+00> : vector<128x8xf32>
    %8 = tpu.matmul %4, %7, %cst_7 {dimension_numbers = #tpu.dot_dimension_numbers<[1], [0], [0], [1], [0, 0, 1, 1], [], []>} : vector<128x18xf32>, vector<18x8xf32>, vector<128x8xf32> -> vector<128x8xf32>
    %9 = arith.maximumf %6, %8 : vector<128x8xf32>
    %10 = vector.shape_cast %9 : vector<128x8xf32> to vector<16x8x8xf32>
    %c0_8 = arith.constant 0 : index
    %c0_9 = arith.constant 0 : index
    %c0_10 = arith.constant 0 : index
    %c0_11 = arith.constant 0 : index
    %11 = vector.load %arg4[%c0_8, %c0_9, %c0_10, %c0_11] : memref<1x16x8x8xf32, #tpu.memory_space<vmem>>, vector<1x16x8x8xf32>
    %12 = vector.shape_cast %11 : vector<1x16x8x8xf32> to vector<16x8x8xf32>
    %13 = vector.shape_cast %10 : vector<16x8x8xf32> to vector<1x16x8x8xf32>
    tpu.vector_store %arg4[%c0_8, %c0_9, %c0_10, %c0_11], %13 {strides = array<i32>} : memref<1x16x8x8xf32, #tpu.memory_space<vmem>>, vector<1x16x8x8xf32>,
    return
  }
  func.func @transform_0(%arg0: i32) -> (i32, i32, i32, i32) {
    %c0_i32 = arith.constant 0 : i32
    %c0_i32_0 = arith.constant 0 : i32
    %c0_i32_1 = arith.constant 0 : i32
    %c0_i32_2 = arith.constant 0 : i32
    return %arg0, %c0_i32, %c0_i32_0, %c0_i32_1 : i32, i32, i32, i32
  }
  func.func @transform_1(%arg0: i32) -> (i32, i32) {
    %c0_i32 = arith.constant 0 : i32
    %c0_i32_0 = arith.constant 0 : i32
    %c0_i32_1 = arith.constant 0 : i32
    return %c0_i32, %c0_i32_0 : i32, i32
  }
  func.func @transform_2(%arg0: i32) -> (i32, i32) {
    %c0_i32 = arith.constant 0 : i32
    %c0_i32_0 = arith.constant 0 : i32
    %c0_i32_1 = arith.constant 0 : i32
    return %c0_i32, %c0_i32_0 : i32, i32
  }
  func.func @transform_3(%arg0: i32) -> (i32, i32, i32, i32) {
    %c0_i32 = arith.constant 0 : i32
    %c0_i32_0 = arith.constant 0 : i32
    %c0_i32_1 = arith.constant 0 : i32
    %c0_i32_2 = arith.constant 0 : i32
    return %arg0, %c0_i32, %c0_i32_0, %c0_i32_1 : i32, i32, i32, i32
  }
}

module attributes {stable_mosaic.version = 11 : i64} {
  func.func @_fc_kernel(%arg0: i32, %arg1: i32, %arg2: i32, %arg3: memref<2x512xbf16, #tpu.memory_space<vmem>>, %arg4: memref<512x512xbf16, #tpu.memory_space<vmem>>, %arg5: memref<1x512xf32, #tpu.memory_space<vmem>>, %arg6: memref<2x512xf32, #tpu.memory_space<vmem>>, %arg7: memref<2x512xf32, #tpu.memory_space<vmem>>) attributes {dimension_semantics = [#tpu.dimension_semantics<parallel>, #tpu.dimension_semantics<parallel>, #tpu.dimension_semantics<arbitrary>], iteration_bounds = array<i64: 1, 2, 2>, scalar_prefetch = 0 : i64, scratch_operands = 1 : i64, tpu.core_type = #tpu.core_type<tc>, window_params = [{transform_indices = @transform_0, window_bounds = array<i64: 2, 512>}, {transform_indices = @transform_1, window_bounds = array<i64: 512, 512>}, {transform_indices = @transform_2, window_bounds = array<i64: 1, 512>}, {transform_indices = @transform_3, window_bounds = array<i64: 2, 512>}]} {
    %c0_i32 = arith.constant 0 : i32
    %0 = arith.cmpi eq, %arg2, %c0_i32 : i32
    %1 = arith.extui %0 : i1 to i32
    %c0_i32_0 = arith.constant 0 : i32
    %2 = arith.cmpi ne, %1, %c0_i32_0 : i32
    scf.if %2 {
      %cst_9 = arith.constant 0.000000e+00 : f32
      %12 = vector.broadcast %cst_9 : f32 to vector<2x512xf32>
      %c0_10 = arith.constant 0 : index
      %c0_11 = arith.constant 0 : index
      %13 = vector.load %arg7[%c0_10, %c0_11] : memref<2x512xf32, #tpu.memory_space<vmem>>, vector<2x512xf32>
      tpu.vector_store %arg7[%c0_10, %c0_11], %12 {strides = array<i32>} : memref<2x512xf32, #tpu.memory_space<vmem>>, vector<2x512xf32>,
    } else {
    }
    %c0 = arith.constant 0 : index
    %c0_1 = arith.constant 0 : index
    %3 = vector.load %arg7[%c0, %c0_1] : memref<2x512xf32, #tpu.memory_space<vmem>>, vector<2x512xf32>
    %c0_2 = arith.constant 0 : index
    %c0_3 = arith.constant 0 : index
    %4 = vector.load %arg3[%c0_2, %c0_3] : memref<2x512xbf16, #tpu.memory_space<vmem>>, vector<2x512xbf16>
    %c0_4 = arith.constant 0 : index
    %c0_5 = arith.constant 0 : index
    %5 = vector.load %arg4[%c0_4, %c0_5] : memref<512x512xbf16, #tpu.memory_space<vmem>>, vector<512x512xbf16>
    %cst = arith.constant dense<0.000000e+00> : vector<2x512xf32>
    %6 = tpu.matmul %4, %5, %cst {dimension_numbers = #tpu.dot_dimension_numbers<[1], [0], [0], [1], [0, 0, 1, 1], [], []>} : vector<2x512xbf16>, vector<512x512xbf16>, vector<2x512xf32> -> vector<2x512xf32>
    %7 = arith.addf %3, %6 : vector<2x512xf32>
    %c0_6 = arith.constant 0 : index
    %c0_7 = arith.constant 0 : index
    %8 = vector.load %arg7[%c0_6, %c0_7] : memref<2x512xf32, #tpu.memory_space<vmem>>, vector<2x512xf32>
    tpu.vector_store %arg7[%c0_6, %c0_7], %7 {strides = array<i32>} : memref<2x512xf32, #tpu.memory_space<vmem>>, vector<2x512xf32>,
    %c1_i32 = arith.constant 1 : i32
    %9 = arith.cmpi eq, %arg2, %c1_i32 : i32
    %10 = arith.extui %9 : i1 to i32
    %c0_i32_8 = arith.constant 0 : i32
    %11 = arith.cmpi ne, %10, %c0_i32_8 : i32
    scf.if %11 {
      %c0_9 = arith.constant 0 : index
      %c0_10 = arith.constant 0 : index
      %12 = vector.load %arg7[%c0_9, %c0_10] : memref<2x512xf32, #tpu.memory_space<vmem>>, vector<2x512xf32>
      %c0_11 = arith.constant 0 : index
      %c0_12 = arith.constant 0 : index
      %13 = vector.load %arg5[%c0_11, %c0_12] : memref<1x512xf32, #tpu.memory_space<vmem>>, vector<1x512xf32>
      %14 = vector.broadcast %13 : vector<1x512xf32> to vector<2x512xf32>
      %15 = arith.addf %12, %14 : vector<2x512xf32>
      %c0_13 = arith.constant 0 : index
      %c0_14 = arith.constant 0 : index
      %16 = vector.load %arg6[%c0_13, %c0_14] : memref<2x512xf32, #tpu.memory_space<vmem>>, vector<2x512xf32>
      tpu.vector_store %arg6[%c0_13, %c0_14], %15 {strides = array<i32>} : memref<2x512xf32, #tpu.memory_space<vmem>>, vector<2x512xf32>,
    } else {
    }
    return
  }
  func.func @transform_0(%arg0: i32, %arg1: i32, %arg2: i32) -> (i32, i32) {
    %c0_i32 = arith.constant 0 : i32
    return %arg0, %arg2 : i32, i32
  }
  func.func @transform_1(%arg0: i32, %arg1: i32, %arg2: i32) -> (i32, i32) {
    %c0_i32 = arith.constant 0 : i32
    return %arg2, %arg1 : i32, i32
  }
  func.func @transform_2(%arg0: i32, %arg1: i32, %arg2: i32) -> (i32, i32) {
    %c0_i32 = arith.constant 0 : i32
    %c0_i32_0 = arith.constant 0 : i32
    return %c0_i32, %arg1 : i32, i32
  }
  func.func @transform_3(%arg0: i32, %arg1: i32, %arg2: i32) -> (i32, i32) {
    %c0_i32 = arith.constant 0 : i32
    return %arg0, %arg1 : i32, i32
  }
}

module attributes {stable_mosaic.version = 11 : i64} {
  func.func @_fc_kernel(%arg0: i32, %arg1: i32, %arg2: i32, %arg3: memref<2x512xbf16, #tpu.memory_space<vmem>>, %arg4: memref<512x512xbf16, #tpu.memory_space<vmem>>, %arg5: memref<1x512xf32, #tpu.memory_space<vmem>>, %arg6: memref<2x512xf32, #tpu.memory_space<vmem>>, %arg7: memref<2x512xf32, #tpu.memory_space<vmem>>) attributes {dimension_semantics = [#tpu.dimension_semantics<parallel>, #tpu.dimension_semantics<parallel>, #tpu.dimension_semantics<arbitrary>], iteration_bounds = array<i64: 1, 2, 2>, scalar_prefetch = 0 : i64, scratch_operands = 1 : i64, tpu.core_type = #tpu.core_type<tc>, window_params = [{transform_indices = @transform_0, window_bounds = array<i64: 2, 512>}, {transform_indices = @transform_1, window_bounds = array<i64: 512, 512>}, {transform_indices = @transform_2, window_bounds = array<i64: 1, 512>}, {transform_indices = @transform_3, window_bounds = array<i64: 2, 512>}]} {
    %c0_i32 = arith.constant 0 : i32
    %0 = arith.cmpi eq, %arg2, %c0_i32 : i32
    %1 = arith.extui %0 : i1 to i32
    %c0_i32_0 = arith.constant 0 : i32
    %2 = arith.cmpi ne, %1, %c0_i32_0 : i32
    scf.if %2 {
      %cst_9 = arith.constant 0.000000e+00 : f32
      %12 = vector.broadcast %cst_9 : f32 to vector<2x512xf32>
      %c0_10 = arith.constant 0 : index
      %c0_11 = arith.constant 0 : index
      %13 = vector.load %arg7[%c0_10, %c0_11] : memref<2x512xf32, #tpu.memory_space<vmem>>, vector<2x512xf32>
      tpu.vector_store %arg7[%c0_10, %c0_11], %12 {strides = array<i32>} : memref<2x512xf32, #tpu.memory_space<vmem>>, vector<2x512xf32>,
    } else {
    }
    %c0 = arith.constant 0 : index
    %c0_1 = arith.constant 0 : index
    %3 = vector.load %arg7[%c0, %c0_1] : memref<2x512xf32, #tpu.memory_space<vmem>>, vector<2x512xf32>
    %c0_2 = arith.constant 0 : index
    %c0_3 = arith.constant 0 : index
    %4 = vector.load %arg3[%c0_2, %c0_3] : memref<2x512xbf16, #tpu.memory_space<vmem>>, vector<2x512xbf16>
    %c0_4 = arith.constant 0 : index
    %c0_5 = arith.constant 0 : index
    %5 = vector.load %arg4[%c0_4, %c0_5] : memref<512x512xbf16, #tpu.memory_space<vmem>>, vector<512x512xbf16>
    %cst = arith.constant dense<0.000000e+00> : vector<2x512xf32>
    %6 = tpu.matmul %4, %5, %cst {dimension_numbers = #tpu.dot_dimension_numbers<[1], [0], [0], [1], [0, 0, 1, 1], [], []>} : vector<2x512xbf16>, vector<512x512xbf16>, vector<2x512xf32> -> vector<2x512xf32>
    %7 = arith.addf %3, %6 : vector<2x512xf32>
    %c0_6 = arith.constant 0 : index
    %c0_7 = arith.constant 0 : index
    %8 = vector.load %arg7[%c0_6, %c0_7] : memref<2x512xf32, #tpu.memory_space<vmem>>, vector<2x512xf32>
    tpu.vector_store %arg7[%c0_6, %c0_7], %7 {strides = array<i32>} : memref<2x512xf32, #tpu.memory_space<vmem>>, vector<2x512xf32>,
    %c1_i32 = arith.constant 1 : i32
    %9 = arith.cmpi eq, %arg2, %c1_i32 : i32
    %10 = arith.extui %9 : i1 to i32
    %c0_i32_8 = arith.constant 0 : i32
    %11 = arith.cmpi ne, %10, %c0_i32_8 : i32
    scf.if %11 {
      %c0_9 = arith.constant 0 : index
      %c0_10 = arith.constant 0 : index
      %12 = vector.load %arg7[%c0_9, %c0_10] : memref<2x512xf32, #tpu.memory_space<vmem>>, vector<2x512xf32>
      %c0_11 = arith.constant 0 : index
      %c0_12 = arith.constant 0 : index
      %13 = vector.load %arg5[%c0_11, %c0_12] : memref<1x512xf32, #tpu.memory_space<vmem>>, vector<1x512xf32>
      %14 = vector.broadcast %13 : vector<1x512xf32> to vector<2x512xf32>
      %15 = arith.addf %12, %14 : vector<2x512xf32>
      %cst_13 = arith.constant 0.000000e+00 : f32
      %16 = vector.broadcast %cst_13 : f32 to vector<2x512xf32>
      %17 = arith.maximumf %15, %16 : vector<2x512xf32>
      %c0_14 = arith.constant 0 : index
      %c0_15 = arith.constant 0 : index
      %18 = vector.load %arg6[%c0_14, %c0_15] : memref<2x512xf32, #tpu.memory_space<vmem>>, vector<2x512xf32>
      tpu.vector_store %arg6[%c0_14, %c0_15], %17 {strides = array<i32>} : memref<2x512xf32, #tpu.memory_space<vmem>>, vector<2x512xf32>,
    } else {
    }
    return
  }
  func.func @transform_0(%arg0: i32, %arg1: i32, %arg2: i32) -> (i32, i32) {
    %c0_i32 = arith.constant 0 : i32
    return %arg0, %arg2 : i32, i32
  }
  func.func @transform_1(%arg0: i32, %arg1: i32, %arg2: i32) -> (i32, i32) {
    %c0_i32 = arith.constant 0 : i32
    return %arg2, %arg1 : i32, i32
  }
  func.func @transform_2(%arg0: i32, %arg1: i32, %arg2: i32) -> (i32, i32) {
    %c0_i32 = arith.constant 0 : i32
    %c0_i32_0 = arith.constant 0 : i32
    return %c0_i32, %arg1 : i32, i32
  }
  func.func @transform_3(%arg0: i32, %arg1: i32, %arg2: i32) -> (i32, i32) {
    %c0_i32 = arith.constant 0 : i32
    return %arg0, %arg1 : i32, i32
  }
}

module attributes {stable_mosaic.version = 11 : i64} {
  func.func @_convt1_kernel(%arg0: i32, %arg1: memref<1x16x64xf32, #tpu.memory_space<vmem>>, %arg2: memref<4x8x16xf32, #tpu.memory_space<vmem>>, %arg3: memref<8x1xf32, #tpu.memory_space<vmem>>, %arg4: memref<1x2x2x8x64xf32, #tpu.memory_space<vmem>>) attributes {dimension_semantics = [#tpu.dimension_semantics<parallel>], iteration_bounds = array<i64: 2>, scalar_prefetch = 0 : i64, scratch_operands = 0 : i64, tpu.core_type = #tpu.core_type<tc>, window_params = [{transform_indices = @transform_0, window_bounds = array<i64: 1, 16, 64>}, {pipeline_mode = #tpu.pipeline_mode<synchronous>, transform_indices = @transform_1, window_bounds = array<i64: 4, 8, 16>}, {pipeline_mode = #tpu.pipeline_mode<synchronous>, transform_indices = @transform_2, window_bounds = array<i64: 8, 1>}, {transform_indices = @transform_3, window_bounds = array<i64: 1, 2, 2, 8, 64>}]} {
    %c0 = arith.constant 0 : index
    %c0_0 = arith.constant 0 : index
    %c0_1 = arith.constant 0 : index
    %0 = vector.load %arg2[%c0, %c0_0, %c0_1] : memref<4x8x16xf32, #tpu.memory_space<vmem>>, vector<1x8x16xf32>
    %1 = vector.shape_cast %0 : vector<1x8x16xf32> to vector<8x16xf32>
    %c0_2 = arith.constant 0 : index
    %c0_3 = arith.constant 0 : index
    %c0_4 = arith.constant 0 : index
    %2 = vector.load %arg1[%c0_2, %c0_3, %c0_4] : memref<1x16x64xf32, #tpu.memory_space<vmem>>, vector<1x16x64xf32>
    %3 = vector.shape_cast %2 : vector<1x16x64xf32> to vector<16x64xf32>
    %cst = arith.constant dense<0.000000e+00> : vector<8x64xf32>
    %4 = tpu.matmul %1, %3, %cst {dimension_numbers = #tpu.dot_dimension_numbers<[1], [0], [0], [1], [0, 0, 1, 1], [], []>} : vector<8x16xf32>, vector<16x64xf32>, vector<8x64xf32> -> vector<8x64xf32>
    %c0_5 = arith.constant 0 : index
    %c0_6 = arith.constant 0 : index
    %5 = vector.load %arg3[%c0_5, %c0_6] : memref<8x1xf32, #tpu.memory_space<vmem>>, vector<8x1xf32>
    %6 = vector.broadcast %5 : vector<8x1xf32> to vector<8x64xf32>
    %7 = arith.addf %4, %6 : vector<8x64xf32>
    %cst_7 = arith.constant 0.000000e+00 : f32
    %8 = vector.broadcast %cst_7 : f32 to vector<8x64xf32>
    %9 = arith.maximumf %7, %8 : vector<8x64xf32>
    %c0_8 = arith.constant 0 : index
    %c0_9 = arith.constant 0 : index
    %c0_10 = arith.constant 0 : index
    %c0_11 = arith.constant 0 : index
    %c0_12 = arith.constant 0 : index
    %10 = vector.load %arg4[%c0_8, %c0_9, %c0_10, %c0_11, %c0_12] : memref<1x2x2x8x64xf32, #tpu.memory_space<vmem>>, vector<1x1x1x8x64xf32>
    %11 = vector.shape_cast %10 : vector<1x1x1x8x64xf32> to vector<8x64xf32>
    %12 = vector.shape_cast %9 : vector<8x64xf32> to vector<1x1x1x8x64xf32>
    tpu.vector_store %arg4[%c0_8, %c0_9, %c0_10, %c0_11, %c0_12], %12 {strides = array<i32>} : memref<1x2x2x8x64xf32, #tpu.memory_space<vmem>>, vector<1x1x1x8x64xf32>,
    %c1 = arith.constant 1 : index
    %c0_13 = arith.constant 0 : index
    %c0_14 = arith.constant 0 : index
    %13 = vector.load %arg2[%c1, %c0_13, %c0_14] : memref<4x8x16xf32, #tpu.memory_space<vmem>>, vector<1x8x16xf32>
    %14 = vector.shape_cast %13 : vector<1x8x16xf32> to vector<8x16xf32>
    %c0_15 = arith.constant 0 : index
    %c0_16 = arith.constant 0 : index
    %c0_17 = arith.constant 0 : index
    %15 = vector.load %arg1[%c0_15, %c0_16, %c0_17] : memref<1x16x64xf32, #tpu.memory_space<vmem>>, vector<1x16x64xf32>
    %16 = vector.shape_cast %15 : vector<1x16x64xf32> to vector<16x64xf32>
    %cst_18 = arith.constant dense<0.000000e+00> : vector<8x64xf32>
    %17 = tpu.matmul %14, %16, %cst_18 {dimension_numbers = #tpu.dot_dimension_numbers<[1], [0], [0], [1], [0, 0, 1, 1], [], []>} : vector<8x16xf32>, vector<16x64xf32>, vector<8x64xf32> -> vector<8x64xf32>
    %c0_19 = arith.constant 0 : index
    %c0_20 = arith.constant 0 : index
    %18 = vector.load %arg3[%c0_19, %c0_20] : memref<8x1xf32, #tpu.memory_space<vmem>>, vector<8x1xf32>
    %19 = vector.broadcast %18 : vector<8x1xf32> to vector<8x64xf32>
    %20 = arith.addf %17, %19 : vector<8x64xf32>
    %cst_21 = arith.constant 0.000000e+00 : f32
    %21 = vector.broadcast %cst_21 : f32 to vector<8x64xf32>
    %22 = arith.maximumf %20, %21 : vector<8x64xf32>
    %c0_22 = arith.constant 0 : index
    %c0_23 = arith.constant 0 : index
    %c1_24 = arith.constant 1 : index
    %c0_25 = arith.constant 0 : index
    %c0_26 = arith.constant 0 : index
    %23 = vector.load %arg4[%c0_22, %c0_23, %c1_24, %c0_25, %c0_26] : memref<1x2x2x8x64xf32, #tpu.memory_space<vmem>>, vector<1x1x1x8x64xf32>
    %24 = vector.shape_cast %23 : vector<1x1x1x8x64xf32> to vector<8x64xf32>
    %25 = vector.shape_cast %22 : vector<8x64xf32> to vector<1x1x1x8x64xf32>
    tpu.vector_store %arg4[%c0_22, %c0_23, %c1_24, %c0_25, %c0_26], %25 {strides = array<i32>} : memref<1x2x2x8x64xf32, #tpu.memory_space<vmem>>, vector<1x1x1x8x64xf32>,
    %c2 = arith.constant 2 : index
    %c0_27 = arith.constant 0 : index
    %c0_28 = arith.constant 0 : index
    %26 = vector.load %arg2[%c2, %c0_27, %c0_28] : memref<4x8x16xf32, #tpu.memory_space<vmem>>, vector<1x8x16xf32>
    %27 = vector.shape_cast %26 : vector<1x8x16xf32> to vector<8x16xf32>
    %c0_29 = arith.constant 0 : index
    %c0_30 = arith.constant 0 : index
    %c0_31 = arith.constant 0 : index
    %28 = vector.load %arg1[%c0_29, %c0_30, %c0_31] : memref<1x16x64xf32, #tpu.memory_space<vmem>>, vector<1x16x64xf32>
    %29 = vector.shape_cast %28 : vector<1x16x64xf32> to vector<16x64xf32>
    %cst_32 = arith.constant dense<0.000000e+00> : vector<8x64xf32>
    %30 = tpu.matmul %27, %29, %cst_32 {dimension_numbers = #tpu.dot_dimension_numbers<[1], [0], [0], [1], [0, 0, 1, 1], [], []>} : vector<8x16xf32>, vector<16x64xf32>, vector<8x64xf32> -> vector<8x64xf32>
    %c0_33 = arith.constant 0 : index
    %c0_34 = arith.constant 0 : index
    %31 = vector.load %arg3[%c0_33, %c0_34] : memref<8x1xf32, #tpu.memory_space<vmem>>, vector<8x1xf32>
    %32 = vector.broadcast %31 : vector<8x1xf32> to vector<8x64xf32>
    %33 = arith.addf %30, %32 : vector<8x64xf32>
    %cst_35 = arith.constant 0.000000e+00 : f32
    %34 = vector.broadcast %cst_35 : f32 to vector<8x64xf32>
    %35 = arith.maximumf %33, %34 : vector<8x64xf32>
    %c0_36 = arith.constant 0 : index
    %c1_37 = arith.constant 1 : index
    %c0_38 = arith.constant 0 : index
    %c0_39 = arith.constant 0 : index
    %c0_40 = arith.constant 0 : index
    %36 = vector.load %arg4[%c0_36, %c1_37, %c0_38, %c0_39, %c0_40] : memref<1x2x2x8x64xf32, #tpu.memory_space<vmem>>, vector<1x1x1x8x64xf32>
    %37 = vector.shape_cast %36 : vector<1x1x1x8x64xf32> to vector<8x64xf32>
    %38 = vector.shape_cast %35 : vector<8x64xf32> to vector<1x1x1x8x64xf32>
    tpu.vector_store %arg4[%c0_36, %c1_37, %c0_38, %c0_39, %c0_40], %38 {strides = array<i32>} : memref<1x2x2x8x64xf32, #tpu.memory_space<vmem>>, vector<1x1x1x8x64xf32>,
    %c3 = arith.constant 3 : index
    %c0_41 = arith.constant 0 : index
    %c0_42 = arith.constant 0 : index
    %39 = vector.load %arg2[%c3, %c0_41, %c0_42] : memref<4x8x16xf32, #tpu.memory_space<vmem>>, vector<1x8x16xf32>
    %40 = vector.shape_cast %39 : vector<1x8x16xf32> to vector<8x16xf32>
    %c0_43 = arith.constant 0 : index
    %c0_44 = arith.constant 0 : index
    %c0_45 = arith.constant 0 : index
    %41 = vector.load %arg1[%c0_43, %c0_44, %c0_45] : memref<1x16x64xf32, #tpu.memory_space<vmem>>, vector<1x16x64xf32>
    %42 = vector.shape_cast %41 : vector<1x16x64xf32> to vector<16x64xf32>
    %cst_46 = arith.constant dense<0.000000e+00> : vector<8x64xf32>
    %43 = tpu.matmul %40, %42, %cst_46 {dimension_numbers = #tpu.dot_dimension_numbers<[1], [0], [0], [1], [0, 0, 1, 1], [], []>} : vector<8x16xf32>, vector<16x64xf32>, vector<8x64xf32> -> vector<8x64xf32>
    %c0_47 = arith.constant 0 : index
    %c0_48 = arith.constant 0 : index
    %44 = vector.load %arg3[%c0_47, %c0_48] : memref<8x1xf32, #tpu.memory_space<vmem>>, vector<8x1xf32>
    %45 = vector.broadcast %44 : vector<8x1xf32> to vector<8x64xf32>
    %46 = arith.addf %43, %45 : vector<8x64xf32>
    %cst_49 = arith.constant 0.000000e+00 : f32
    %47 = vector.broadcast %cst_49 : f32 to vector<8x64xf32>
    %48 = arith.maximumf %46, %47 : vector<8x64xf32>
    %c0_50 = arith.constant 0 : index
    %c1_51 = arith.constant 1 : index
    %c1_52 = arith.constant 1 : index
    %c0_53 = arith.constant 0 : index
    %c0_54 = arith.constant 0 : index
    %49 = vector.load %arg4[%c0_50, %c1_51, %c1_52, %c0_53, %c0_54] : memref<1x2x2x8x64xf32, #tpu.memory_space<vmem>>, vector<1x1x1x8x64xf32>
    %50 = vector.shape_cast %49 : vector<1x1x1x8x64xf32> to vector<8x64xf32>
    %51 = vector.shape_cast %48 : vector<8x64xf32> to vector<1x1x1x8x64xf32>
    tpu.vector_store %arg4[%c0_50, %c1_51, %c1_52, %c0_53, %c0_54], %51 {strides = array<i32>} : memref<1x2x2x8x64xf32, #tpu.memory_space<vmem>>, vector<1x1x1x8x64xf32>,
    return
  }
  func.func @transform_0(%arg0: i32) -> (i32, i32, i32) {
    %c0_i32 = arith.constant 0 : i32
    %c0_i32_0 = arith.constant 0 : i32
    %c0_i32_1 = arith.constant 0 : i32
    return %arg0, %c0_i32, %c0_i32_0 : i32, i32, i32
  }
  func.func @transform_1(%arg0: i32) -> (i32, i32, i32) {
    %c0_i32 = arith.constant 0 : i32
    %c0_i32_0 = arith.constant 0 : i32
    %c0_i32_1 = arith.constant 0 : i32
    %c0_i32_2 = arith.constant 0 : i32
    return %c0_i32, %c0_i32_0, %c0_i32_1 : i32, i32, i32
  }
  func.func @transform_2(%arg0: i32) -> (i32, i32) {
    %c0_i32 = arith.constant 0 : i32
    %c0_i32_0 = arith.constant 0 : i32
    %c0_i32_1 = arith.constant 0 : i32
    return %c0_i32, %c0_i32_0 : i32, i32
  }
  func.func @transform_3(%arg0: i32) -> (i32, i32, i32, i32, i32) {
    %c0_i32 = arith.constant 0 : i32
    %c0_i32_0 = arith.constant 0 : i32
    %c0_i32_1 = arith.constant 0 : i32
    %c0_i32_2 = arith.constant 0 : i32
    %c0_i32_3 = arith.constant 0 : i32
    return %arg0, %c0_i32, %c0_i32_0, %c0_i32_1, %c0_i32_2 : i32, i32, i32, i32, i32
  }
}

module attributes {stable_mosaic.version = 11 : i64} {
  func.func @_conv3x3_kernel(%arg0: i32, %arg1: memref<1x8x342xf32, #tpu.memory_space<vmem>>, %arg2: memref<9x3x8xf32, #tpu.memory_space<vmem>>, %arg3: memref<3x1xf32, #tpu.memory_space<vmem>>, %arg4: memref<1x288xf32, #tpu.memory_space<vmem>>, %arg5: memref<1x3x342xf32, #tpu.memory_space<vmem>>) attributes {dimension_semantics = [#tpu.dimension_semantics<parallel>], iteration_bounds = array<i64: 2>, scalar_prefetch = 0 : i64, scratch_operands = 0 : i64, tpu.core_type = #tpu.core_type<tc>, window_params = [{transform_indices = @transform_0, window_bounds = array<i64: 1, 8, 342>}, {pipeline_mode = #tpu.pipeline_mode<synchronous>, transform_indices = @transform_1, window_bounds = array<i64: 9, 3, 8>}, {pipeline_mode = #tpu.pipeline_mode<synchronous>, transform_indices = @transform_2, window_bounds = array<i64: 3, 1>}, {pipeline_mode = #tpu.pipeline_mode<synchronous>, transform_indices = @transform_3, window_bounds = array<i64: 1, 288>}, {transform_indices = @transform_4, window_bounds = array<i64: 1, 3, 342>}]} {
    %cst = arith.constant 0.000000e+00 : f32
    %0 = vector.broadcast %cst : f32 to vector<3x288xf32>
    %c0 = arith.constant 0 : index
    %c0_0 = arith.constant 0 : index
    %c0_1 = arith.constant 0 : index
    %1 = vector.load %arg2[%c0, %c0_0, %c0_1] : memref<9x3x8xf32, #tpu.memory_space<vmem>>, vector<1x3x8xf32>
    %2 = vector.shape_cast %1 : vector<1x3x8xf32> to vector<3x8xf32>
    %c0_2 = arith.constant 0 : index
    %c0_3 = arith.constant 0 : index
    %c0_4 = arith.constant 0 : index
    %3 = vector.load %arg1[%c0_2, %c0_3, %c0_4] : memref<1x8x342xf32, #tpu.memory_space<vmem>>, vector<1x8x288xf32>
    %4 = vector.shape_cast %3 : vector<1x8x288xf32> to vector<8x288xf32>
    %cst_5 = arith.constant dense<0.000000e+00> : vector<3x288xf32>
    %5 = tpu.matmul %2, %4, %cst_5 {dimension_numbers = #tpu.dot_dimension_numbers<[1], [0], [0], [1], [0, 0, 1, 1], [], []>} : vector<3x8xf32>, vector<8x288xf32>, vector<3x288xf32> -> vector<3x288xf32>
    %6 = arith.addf %0, %5 : vector<3x288xf32>
    %c1 = arith.constant 1 : index
    %c0_6 = arith.constant 0 : index
    %c0_7 = arith.constant 0 : index
    %7 = vector.load %arg2[%c1, %c0_6, %c0_7] : memref<9x3x8xf32, #tpu.memory_space<vmem>>, vector<1x3x8xf32>
    %8 = vector.shape_cast %7 : vector<1x3x8xf32> to vector<3x8xf32>
    %c0_8 = arith.constant 0 : index
    %c0_9 = arith.constant 0 : index
    %c1_10 = arith.constant 1 : index
    %9 = vector.load %arg1[%c0_8, %c0_9, %c1_10] : memref<1x8x342xf32, #tpu.memory_space<vmem>>, vector<1x8x288xf32>
    %10 = vector.shape_cast %9 : vector<1x8x288xf32> to vector<8x288xf32>
    %cst_11 = arith.constant dense<0.000000e+00> : vector<3x288xf32>
    %11 = tpu.matmul %8, %10, %cst_11 {dimension_numbers = #tpu.dot_dimension_numbers<[1], [0], [0], [1], [0, 0, 1, 1], [], []>} : vector<3x8xf32>, vector<8x288xf32>, vector<3x288xf32> -> vector<3x288xf32>
    %12 = arith.addf %6, %11 : vector<3x288xf32>
    %c2 = arith.constant 2 : index
    %c0_12 = arith.constant 0 : index
    %c0_13 = arith.constant 0 : index
    %13 = vector.load %arg2[%c2, %c0_12, %c0_13] : memref<9x3x8xf32, #tpu.memory_space<vmem>>, vector<1x3x8xf32>
    %14 = vector.shape_cast %13 : vector<1x3x8xf32> to vector<3x8xf32>
    %c0_14 = arith.constant 0 : index
    %c0_15 = arith.constant 0 : index
    %c2_16 = arith.constant 2 : index
    %15 = vector.load %arg1[%c0_14, %c0_15, %c2_16] : memref<1x8x342xf32, #tpu.memory_space<vmem>>, vector<1x8x288xf32>
    %16 = vector.shape_cast %15 : vector<1x8x288xf32> to vector<8x288xf32>
    %cst_17 = arith.constant dense<0.000000e+00> : vector<3x288xf32>
    %17 = tpu.matmul %14, %16, %cst_17 {dimension_numbers = #tpu.dot_dimension_numbers<[1], [0], [0], [1], [0, 0, 1, 1], [], []>} : vector<3x8xf32>, vector<8x288xf32>, vector<3x288xf32> -> vector<3x288xf32>
    %18 = arith.addf %12, %17 : vector<3x288xf32>
    %c3 = arith.constant 3 : index
    %c0_18 = arith.constant 0 : index
    %c0_19 = arith.constant 0 : index
    %19 = vector.load %arg2[%c3, %c0_18, %c0_19] : memref<9x3x8xf32, #tpu.memory_space<vmem>>, vector<1x3x8xf32>
    %20 = vector.shape_cast %19 : vector<1x3x8xf32> to vector<3x8xf32>
    %c0_20 = arith.constant 0 : index
    %c0_21 = arith.constant 0 : index
    %c18 = arith.constant 18 : index
    %21 = vector.load %arg1[%c0_20, %c0_21, %c18] : memref<1x8x342xf32, #tpu.memory_space<vmem>>, vector<1x8x288xf32>
    %22 = vector.shape_cast %21 : vector<1x8x288xf32> to vector<8x288xf32>
    %cst_22 = arith.constant dense<0.000000e+00> : vector<3x288xf32>
    %23 = tpu.matmul %20, %22, %cst_22 {dimension_numbers = #tpu.dot_dimension_numbers<[1], [0], [0], [1], [0, 0, 1, 1], [], []>} : vector<3x8xf32>, vector<8x288xf32>, vector<3x288xf32> -> vector<3x288xf32>
    %24 = arith.addf %18, %23 : vector<3x288xf32>
    %c4 = arith.constant 4 : index
    %c0_23 = arith.constant 0 : index
    %c0_24 = arith.constant 0 : index
    %25 = vector.load %arg2[%c4, %c0_23, %c0_24] : memref<9x3x8xf32, #tpu.memory_space<vmem>>, vector<1x3x8xf32>
    %26 = vector.shape_cast %25 : vector<1x3x8xf32> to vector<3x8xf32>
    %c0_25 = arith.constant 0 : index
    %c0_26 = arith.constant 0 : index
    %c19 = arith.constant 19 : index
    %27 = vector.load %arg1[%c0_25, %c0_26, %c19] : memref<1x8x342xf32, #tpu.memory_space<vmem>>, vector<1x8x288xf32>
    %28 = vector.shape_cast %27 : vector<1x8x288xf32> to vector<8x288xf32>
    %cst_27 = arith.constant dense<0.000000e+00> : vector<3x288xf32>
    %29 = tpu.matmul %26, %28, %cst_27 {dimension_numbers = #tpu.dot_dimension_numbers<[1], [0], [0], [1], [0, 0, 1, 1], [], []>} : vector<3x8xf32>, vector<8x288xf32>, vector<3x288xf32> -> vector<3x288xf32>
    %30 = arith.addf %24, %29 : vector<3x288xf32>
    %c5 = arith.constant 5 : index
    %c0_28 = arith.constant 0 : index
    %c0_29 = arith.constant 0 : index
    %31 = vector.load %arg2[%c5, %c0_28, %c0_29] : memref<9x3x8xf32, #tpu.memory_space<vmem>>, vector<1x3x8xf32>
    %32 = vector.shape_cast %31 : vector<1x3x8xf32> to vector<3x8xf32>
    %c0_30 = arith.constant 0 : index
    %c0_31 = arith.constant 0 : index
    %c20 = arith.constant 20 : index
    %33 = vector.load %arg1[%c0_30, %c0_31, %c20] : memref<1x8x342xf32, #tpu.memory_space<vmem>>, vector<1x8x288xf32>
    %34 = vector.shape_cast %33 : vector<1x8x288xf32> to vector<8x288xf32>
    %cst_32 = arith.constant dense<0.000000e+00> : vector<3x288xf32>
    %35 = tpu.matmul %32, %34, %cst_32 {dimension_numbers = #tpu.dot_dimension_numbers<[1], [0], [0], [1], [0, 0, 1, 1], [], []>} : vector<3x8xf32>, vector<8x288xf32>, vector<3x288xf32> -> vector<3x288xf32>
    %36 = arith.addf %30, %35 : vector<3x288xf32>
    %c6 = arith.constant 6 : index
    %c0_33 = arith.constant 0 : index
    %c0_34 = arith.constant 0 : index
    %37 = vector.load %arg2[%c6, %c0_33, %c0_34] : memref<9x3x8xf32, #tpu.memory_space<vmem>>, vector<1x3x8xf32>
    %38 = vector.shape_cast %37 : vector<1x3x8xf32> to vector<3x8xf32>
    %c0_35 = arith.constant 0 : index
    %c0_36 = arith.constant 0 : index
    %c36 = arith.constant 36 : index
    %39 = vector.load %arg1[%c0_35, %c0_36, %c36] : memref<1x8x342xf32, #tpu.memory_space<vmem>>, vector<1x8x288xf32>
    %40 = vector.shape_cast %39 : vector<1x8x288xf32> to vector<8x288xf32>
    %cst_37 = arith.constant dense<0.000000e+00> : vector<3x288xf32>
    %41 = tpu.matmul %38, %40, %cst_37 {dimension_numbers = #tpu.dot_dimension_numbers<[1], [0], [0], [1], [0, 0, 1, 1], [], []>} : vector<3x8xf32>, vector<8x288xf32>, vector<3x288xf32> -> vector<3x288xf32>
    %42 = arith.addf %36, %41 : vector<3x288xf32>
    %c7 = arith.constant 7 : index
    %c0_38 = arith.constant 0 : index
    %c0_39 = arith.constant 0 : index
    %43 = vector.load %arg2[%c7, %c0_38, %c0_39] : memref<9x3x8xf32, #tpu.memory_space<vmem>>, vector<1x3x8xf32>
    %44 = vector.shape_cast %43 : vector<1x3x8xf32> to vector<3x8xf32>
    %c0_40 = arith.constant 0 : index
    %c0_41 = arith.constant 0 : index
    %c37 = arith.constant 37 : index
    %45 = vector.load %arg1[%c0_40, %c0_41, %c37] : memref<1x8x342xf32, #tpu.memory_space<vmem>>, vector<1x8x288xf32>
    %46 = vector.shape_cast %45 : vector<1x8x288xf32> to vector<8x288xf32>
    %cst_42 = arith.constant dense<0.000000e+00> : vector<3x288xf32>
    %47 = tpu.matmul %44, %46, %cst_42 {dimension_numbers = #tpu.dot_dimension_numbers<[1], [0], [0], [1], [0, 0, 1, 1], [], []>} : vector<3x8xf32>, vector<8x288xf32>, vector<3x288xf32> -> vector<3x288xf32>
    %48 = arith.addf %42, %47 : vector<3x288xf32>
    %c8 = arith.constant 8 : index
    %c0_43 = arith.constant 0 : index
    %c0_44 = arith.constant 0 : index
    %49 = vector.load %arg2[%c8, %c0_43, %c0_44] : memref<9x3x8xf32, #tpu.memory_space<vmem>>, vector<1x3x8xf32>
    %50 = vector.shape_cast %49 : vector<1x3x8xf32> to vector<3x8xf32>
    %c0_45 = arith.constant 0 : index
    %c0_46 = arith.constant 0 : index
    %c38 = arith.constant 38 : index
    %51 = vector.load %arg1[%c0_45, %c0_46, %c38] : memref<1x8x342xf32, #tpu.memory_space<vmem>>, vector<1x8x288xf32>
    %52 = vector.shape_cast %51 : vector<1x8x288xf32> to vector<8x288xf32>
    %cst_47 = arith.constant dense<0.000000e+00> : vector<3x288xf32>
    %53 = tpu.matmul %50, %52, %cst_47 {dimension_numbers = #tpu.dot_dimension_numbers<[1], [0], [0], [1], [0, 0, 1, 1], [], []>} : vector<3x8xf32>, vector<8x288xf32>, vector<3x288xf32> -> vector<3x288xf32>
    %54 = arith.addf %48, %53 : vector<3x288xf32>
    %c0_48 = arith.constant 0 : index
    %c0_49 = arith.constant 0 : index
    %55 = vector.load %arg3[%c0_48, %c0_49] : memref<3x1xf32, #tpu.memory_space<vmem>>, vector<3x1xf32>
    %56 = vector.broadcast %55 : vector<3x1xf32> to vector<3x288xf32>
    %57 = arith.addf %54, %56 : vector<3x288xf32>
    %58 = math.tanh %57 : vector<3x288xf32>
    %c0_50 = arith.constant 0 : index
    %c0_51 = arith.constant 0 : index
    %59 = vector.load %arg4[%c0_50, %c0_51] : memref<1x288xf32, #tpu.memory_space<vmem>>, vector<1x288xf32>
    %60 = vector.broadcast %59 : vector<1x288xf32> to vector<3x288xf32>
    %61 = arith.mulf %58, %60 : vector<3x288xf32>
    %cst_52 = arith.constant 0.000000e+00 : f32
    %62 = vector.broadcast %cst_52 : f32 to vector<1x3x342xf32>
    %c0_53 = arith.constant 0 : index
    %c0_54 = arith.constant 0 : index
    %c0_55 = arith.constant 0 : index
    %63 = vector.load %arg5[%c0_53, %c0_54, %c0_55] : memref<1x3x342xf32, #tpu.memory_space<vmem>>, vector<1x3x342xf32>
    tpu.vector_store %arg5[%c0_53, %c0_54, %c0_55], %62 {strides = array<i32>} : memref<1x3x342xf32, #tpu.memory_space<vmem>>, vector<1x3x342xf32>,
    %c0_56 = arith.constant 0 : index
    %c0_57 = arith.constant 0 : index
    %c19_58 = arith.constant 19 : index
    %64 = vector.load %arg5[%c0_56, %c0_57, %c19_58] : memref<1x3x342xf32, #tpu.memory_space<vmem>>, vector<1x3x288xf32>
    %65 = vector.shape_cast %64 : vector<1x3x288xf32> to vector<3x288xf32>
    %66 = vector.shape_cast %61 : vector<3x288xf32> to vector<1x3x288xf32>
    tpu.vector_store %arg5[%c0_56, %c0_57, %c19_58], %66 {strides = array<i32>} : memref<1x3x342xf32, #tpu.memory_space<vmem>>, vector<1x3x288xf32>,
    return
  }
  func.func @transform_0(%arg0: i32) -> (i32, i32, i32) {
    %c0_i32 = arith.constant 0 : i32
    %c0_i32_0 = arith.constant 0 : i32
    %c0_i32_1 = arith.constant 0 : i32
    return %arg0, %c0_i32, %c0_i32_0 : i32, i32, i32
  }
  func.func @transform_1(%arg0: i32) -> (i32, i32, i32) {
    %c0_i32 = arith.constant 0 : i32
    %c0_i32_0 = arith.constant 0 : i32
    %c0_i32_1 = arith.constant 0 : i32
    %c0_i32_2 = arith.constant 0 : i32
    return %c0_i32, %c0_i32_0, %c0_i32_1 : i32, i32, i32
  }
  func.func @transform_2(%arg0: i32) -> (i32, i32) {
    %c0_i32 = arith.constant 0 : i32
    %c0_i32_0 = arith.constant 0 : i32
    %c0_i32_1 = arith.constant 0 : i32
    return %c0_i32, %c0_i32_0 : i32, i32
  }
  func.func @transform_3(%arg0: i32) -> (i32, i32) {
    %c0_i32 = arith.constant 0 : i32
    %c0_i32_0 = arith.constant 0 : i32
    %c0_i32_1 = arith.constant 0 : i32
    return %c0_i32, %c0_i32_0 : i32, i32
  }
  func.func @transform_4(%arg0: i32) -> (i32, i32, i32) {
    %c0_i32 = arith.constant 0 : i32
    %c0_i32_0 = arith.constant 0 : i32
    %c0_i32_1 = arith.constant 0 : i32
    return %arg0, %c0_i32, %c0_i32_0 : i32, i32, i32
  }
}

</mosaic_0001>

<llo_original>
// kernel: autoencoder_forward.8
$region0: #{autoencoder_forward.8}
  #allocation0 [shape = 'u32[]', space=smem, size = 0x4, offset = 0x4, fixed_abs, tag = 'smem constant byte address 0x4 - core index']
  #allocation1 [shape = 'u32[72,128]{1,0:T(1,128)}', space=vmem, size = 0x9000, scoped, tag = 'internal scratch']
  %s0 = inlined_call_operand.vmem [shape: f32[2,8,342], index: 0, kind: input, shape index: {}]
  %s1 = inlined_call_operand.vmem [shape: f32[9,16,8], index: 1, kind: input, shape index: {}]
  %s2 = inlined_call_operand.vmem [shape: f32[16,1], index: 2, kind: input, shape index: {}]
  %s3 = inlined_call_operand.hbm [shape: f32[1,288], index: 3, kind: input, shape index: {}]
  %s4 = inlined_call_operand.vmem [shape: f32[2,16,342], index: 4, kind: output, shape index: {}]
  %s5 = sld [smem:[#allocation0]]
  $region53: #{autoencoder_forward.8} parent=0
    _
  %s7 = ssub.s32 1, %s5
  %s8 = scalar_select 0, %s7, %s5
  $region1: #{autoencoder_forward.8} parent=0
    #allocation2 [shape = 'u8[1536]{0}', space=vmem, size = 0x800, scoped, tag = 'input window, operand 3, single buffered']
    #allocation3 [shape = 's32[2]{0}', space=sflag, size = 0x8, scoped, tag = 'scoped memory for autoencoder_forward.8']
    %9 = vsyncpa [#allocation3], 0
    loop: start=0, step=1, limit=4
    $region2: #{autoencoder_forward.8} parent=1 // loop_pre_header
      _
    $region3: #{autoencoder_forward.8} parent=1 // loop_header
      %s11 = sphi 0, %s15
      %p12 = scmp.ge.s32.totalorder %s11, 4
      %s21 = sphi 0, %s23
      %s24 = sphi 0, %s21
      %s25 = sphi 0, %s24
      %s41 = sphi 0, %s25
      %s45 = sphi 0, %s45
      %s47 = sphi 0, %s45
      %s48 = sphi 0, %s47
      %s62 = sphi 0, %s48
      %s66 = sphi 0, %s66
      %s68 = sphi 0, %s66
      %s69 = sphi 0, %s68
      %s83 = sphi 0, %s69
      %s87 = sphi 0, %s87
      %s89 = sphi 0, %s87
      %s90 = sphi 0, %s89
      %s104 = sphi 0, %s90
      %s110 = sphi 0, %s112
      %s113 = sphi 0, %s110
      %s114 = sphi 0, %s113
      %s130 = sphi 0, %s114
    $region4: #{autoencoder_forward.8} parent=1 // loop_header_branch
      %14 = sbr.rel (%p12) target = $region8
    $region5: #{autoencoder_forward.8} parent=1 // loop_body
      %s16 = ssub.s32 %s11, 1
      %s17 = ssub.s32 %s11, 2
      %s18 = sadd.s32 %s11, 1
      %s19 = ssub.s32 %s11, %s18
      %p20 = scmp.eq.s32.totalorder %s19, 0
      %s22 = sadd.s32 %s21, 1
      %s23 = scalar_select %p20, %s21, %s22
      %p26 = pneg %p20
      %p27 = scmp.eq.s32.totalorder %s11, 1
      %p28 = por %p26, %p27
      %p29 = scmp.ne.s32.totalorder %s21, %s24
      %p30 = scmp.eq.s32.totalorder %s11, 0
      %p31 = por %p29, %p30
      %p32 = scmp.ne.s32.totalorder %s21, %s24
      %p33 = scmp.eq.s32.totalorder %s16, 1
      %p34 = por %p32, %p33
      %p35 = scmp.ne.s32.totalorder %s24, %s25
      %p36 = scmp.eq.s32.totalorder %s16, 0
      %p37 = por %p35, %p36
      %p38 = scmp.ne.s32.totalorder %s24, %s25
      %p39 = scmp.eq.s32.totalorder %s17, 1
      %p40 = por %p38, %p39
      %p42 = scmp.ne.s32.totalorder %s25, %s41
      %p43 = scmp.eq.s32.totalorder %s17, 0
      %p44 = por %p42, %p43
      %s46 = sadd.s32 %s45, 1
      %p49 = scmp.eq.s32.totalorder %s11, 1
      %p50 = scmp.ne.s32.totalorder %s45, %s47
      %p51 = scmp.eq.s32.totalorder %s11, 0
      %p52 = por %p50, %p51
      %p53 = scmp.ne.s32.totalorder %s45, %s47
      %p54 = scmp.eq.s32.totalorder %s16, 1
      %p55 = por %p53, %p54
      %p56 = scmp.ne.s32.totalorder %s47, %s48
      %p57 = scmp.eq.s32.totalorder %s16, 0
      %p58 = por %p56, %p57
      %p59 = scmp.ne.s32.totalorder %s47, %s48
      %p60 = scmp.eq.s32.totalorder %s17, 1
      %p61 = por %p59, %p60
      %p63 = scmp.ne.s32.totalorder %s48, %s62
      %p64 = scmp.eq.s32.totalorder %s17, 0
      %p65 = por %p63, %p64
      %s67 = sadd.s32 %s66, 1
      %p70 = scmp.eq.s32.totalorder %s11, 1
      %p71 = scmp.ne.s32.totalorder %s66, %s68
      %p72 = scmp.eq.s32.totalorder %s11, 0
      %p73 = por %p71, %p72
      %p74 = scmp.ne.s32.totalorder %s66, %s68
      %p75 = scmp.eq.s32.totalorder %s16, 1
      %p76 = por %p74, %p75
      %p77 = scmp.ne.s32.totalorder %s68, %s69
      %p78 = scmp.eq.s32.totalorder %s16, 0
      %p79 = por %p77, %p78
      %p80 = scmp.ne.s32.totalorder %s68, %s69
      %p81 = scmp.eq.s32.totalorder %s17, 1
      %p82 = por %p80, %p81
      %p84 = scmp.ne.s32.totalorder %s69, %s83
      %p85 = scmp.eq.s32.totalorder %s17, 0
      %p86 = por %p84, %p85
      %s88 = sadd.s32 %s87, 1
      %p91 = scmp.eq.s32.totalorder %s11, 1
      %p92 = scmp.ne.s32.totalorder %s87, %s89
      %p93 = scmp.eq.s32.totalorder %s11, 0
      %p94 = por %p92, %p93
      %p95 = scmp.ne.s32.totalorder %s87, %s89
      %p96 = scmp.eq.s32.totalorder %s16, 1
      %p97 = por %p95, %p96
      %p98 = scmp.ne.s32.totalorder %s89, %s90
      %p99 = scmp.eq.s32.totalorder %s16, 0
      %p100 = por %p98, %p99
      %p101 = scmp.ne.s32.totalorder %s89, %s90
      %p102 = scmp.eq.s32.totalorder %s17, 1
      %p103 = por %p101, %p102
      %p105 = scmp.ne.s32.totalorder %s90, %s104
      %p106 = scmp.eq.s32.totalorder %s17, 0
      %p107 = por %p105, %p106
      %s108 = ssub.s32 %s11, %s18
      %p109 = scmp.eq.s32.totalorder %s108, 0
      %s111 = sadd.s32 %s110, 1
      %s112 = scalar_select %p109, %s110, %s111
      %p115 = pneg %p109
      %p116 = scmp.eq.s32.totalorder %s11, 1
      %p117 = por %p115, %p116
      %p118 = scmp.ne.s32.totalorder %s110, %s113
      %p119 = scmp.eq.s32.totalorder %s11, 0
      %p120 = por %p118, %p119
      %p121 = scmp.ne.s32.totalorder %s110, %s113
      %p122 = scmp.eq.s32.totalorder %s16, 1
      %p123 = por %p121, %p122
      %p124 = scmp.ne.s32.totalorder %s113, %s114
      %p125 = scmp.eq.s32.totalorder %s16, 0
      %p126 = por %p124, %p125
      %p127 = scmp.ne.s32.totalorder %s113, %s114
      %p128 = scmp.eq.s32.totalorder %s17, 1
      %p129 = por %p127, %p128
      %p131 = scmp.ne.s32.totalorder %s114, %s130
      %p132 = scmp.eq.s32.totalorder %s17, 0
      %p133 = por %p131, %p132
      %p134 = scmp.le.s32.totalorder 1, %s11
      %p135 = scmp.lt.s32.totalorder %s11, 3
      %p136 = pnand %p134, %p135
      %p137 = pneg %p136
      // Predicated region
      $region9: #{autoencoder_forward.8} parent=5 // pred_check
        _
      $region10: #{autoencoder_forward.8} parent=5 // pred_check_branch
        %139 = sbr.rel (%p136) target = $region12
      $region11: #{autoencoder_forward.8} parent=5 // pred_region
        %s140 = ssub.s32 %s11, 1
        // Predicated region
        $region13: #{autoencoder_forward.8} parent=11 // pred_check
          %p141 = pneg %p58
        $region14: #{autoencoder_forward.8} parent=11 // pred_check_branch
          %143 = sbr.rel (%p141) target = $region16
        $region15: #{autoencoder_forward.8} parent=11 // pred_region
          _
        $region16: #{autoencoder_forward.8} parent=11 // pred_fallthru
          _
        // Predicated region
        $region17: #{autoencoder_forward.8} parent=11 // pred_check
          %p144 = pneg %p79
        $region18: #{autoencoder_forward.8} parent=11 // pred_check_branch
          %146 = sbr.rel (%p144) target = $region20
        $region19: #{autoencoder_forward.8} parent=11 // pred_region
          _
        $region20: #{autoencoder_forward.8} parent=11 // pred_fallthru
          _
        // Predicated region
        $region21: #{autoencoder_forward.8} parent=11 // pred_check
          %p147 = pneg %p100
        $region22: #{autoencoder_forward.8} parent=11 // pred_check_branch
          %149 = sbr.rel (%p147) target = $region24
        $region23: #{autoencoder_forward.8} parent=11 // pred_region
          %151 = vsyncadd [#allocation3], 0
          %s153 = sshll.u32 %s3, 4
          %s154 = int_to_ptr.hbm [resolvable:$true] %s153
          %s155 = sshll.u32 [#allocation2], 4
          %s156 = int_to_ptr.vmem [resolvable:$true] %s155
          %158 = dma.hbm_to_vmem [thread:$0]  %s154, 48, %s156, [#allocation3]
        $region24: #{autoencoder_forward.8} parent=11 // pred_fallthru
          _
      $region12: #{autoencoder_forward.8} parent=5 // pred_fallthru
        _
      %p159 = scmp.lt.s32.totalorder %s11, 2
      // Predicated region
      $region25: #{autoencoder_forward.8} parent=5 // pred_check
        %p160 = pneg %p159
      $region26: #{autoencoder_forward.8} parent=5 // pred_check_branch
        %162 = sbr.rel (%p160) target = $region28
      $region27: #{autoencoder_forward.8} parent=5 // pred_region
        // Predicated region
        $region29: #{autoencoder_forward.8} parent=27 // pred_check
          %p163 = pneg %p31
        $region30: #{autoencoder_forward.8} parent=27 // pred_check_branch
          %165 = sbr.rel (%p163) target = $region32
        $region31: #{autoencoder_forward.8} parent=27 // pred_region
          %p166 = scmp.lt.s32.totalorder %s11, 1
          %s167 = scalar_select %p166, %s11, 1
          %s168 = smul.addr %s167, 3
          %s169 = smul.addr %s168, 8
          %s170 = scalar_lea.vmem %s0, %s169
        $region32: #{autoencoder_forward.8} parent=27 // pred_fallthru
          _
      $region28: #{autoencoder_forward.8} parent=5 // pred_fallthru
        _
      %p171 = scmp.le.s32.totalorder 1, %s11
      %p172 = scmp.lt.s32.totalorder %s11, 3
      %p173 = pnand %p171, %p172
      %p174 = pneg %p173
      // Predicated region
      $region33: #{autoencoder_forward.8} parent=5 // pred_check
        _
      $region34: #{autoencoder_forward.8} parent=5 // pred_check_branch
        %176 = sbr.rel (%p173) target = $region36
      $region35: #{autoencoder_forward.8} parent=5 // pred_region
        %s177 = ssub.s32 %s11, 1
        // Predicated region
        $region37: #{autoencoder_forward.8} parent=35 // pred_check
          %p178 = pneg %p100
        $region38: #{autoencoder_forward.8} parent=35 // pred_check_branch
          %180 = sbr.rel (%p178) target = $region40
        $region39: #{autoencoder_forward.8} parent=35 // pred_region
          %182 = dma.done [#allocation3], 48
        $region40: #{autoencoder_forward.8} parent=35 // pred_fallthru
          _
        %p183 = scmp.lt.s32.totalorder %s16, 1
        %s184 = scalar_select %p183, %s16, 1
        %s185 = smul.addr %s184, 3
        %s186 = smul.addr %s185, 8
        %s187 = scalar_lea.vmem %s0, %s186
        %p188 = pneg %p37
        %p189 = pneg %p34
        %p190 = pneg %p58
        %p191 = pneg %p55
        %p192 = pneg %p79
        %p193 = pneg %p76
        %p194 = pneg %p100
        %p195 = pneg %p97
        %p196 = pneg %p126
        %p197 = pneg %p123
        %p198 = scmp.lt.s32.totalorder %s16, 1
        %s199 = scalar_select %p198, %s16, 1
        %s200 = smul.addr %s199, 6
        %s201 = smul.addr %s200, 8
        %s202 = scalar_lea.vmem %s4, %s201
        %p203 = scmp.lt.s32.totalorder %s16, 1
        %s204 = scalar_select %p203, %s16, 1
        %s205 = smul.addr %s204, 3
        %s206 = smul.addr %s205, 8
        %s207 = scalar_lea.vmem %s0, %s206
        %p208 = scmp.lt.s32.totalorder %s16, 1
        %s209 = scalar_select %p208, %s16, 1
        %s210 = smul.addr %s209, 6
        %s211 = smul.addr %s210, 8
        %s212 = scalar_lea.vmem %s4, %s211
        %v213 = vld [vmem:[%s1] sm:$0xff]
        %v214 = vld [vmem:[%s1 + $0x8] sm:$0xff]
        %v215 = vld [vmem:[%s207] sm:$0xff]
        %v216 = vld [vmem:[%s207 + $0x8] sm:$0xff]
        %v217 = vld [vmem:[%s207 + $0x10] sm:$0xff]
        %s218 = scalar_lea.vmem %s1, 16
        %v219 = vld [vmem:[%s218] sm:$0xff]
        %v220 = vld [vmem:[%s218 + $0x8] sm:$0xff]
        %224 = vrot.lane.b32.xlu0 %v215, 127
        %v225 = vpop.permute.xlu0 %224
        %226 = vrot.lane.b32.xlu0 %v216, 127
        %v227 = vpop.permute.xlu0 %226
        %228 = vrot.lane.b32.xlu0 %v217, 127
        %v229 = vpop.permute.xlu0 %228
        %vm230 = vcmask 1039360
        %v231 = vsel %vm230, %v225, %v227
        %v232 = vsel %vm230, %v227, %v229
        %vm236 = vcmask 64512
        %v238 = vsel %vm236, %v219, 0
        %v241 = vsel %vm236, %v220, 0
        %243 = vmatpush.msra.mxu0 0.0
        %244 = vmatpush.msra.mxu0 0.0
        %245 = vmatpush.msra.mxu0 0.0
        %246 = vmatpush.msra.mxu0 0.0
        %247 = vmatpush.msra.mxu0 0.0
        %248 = vmatpush.msra.mxu0 0.0
        %249 = vmatpush.msra.mxu0 0.0
        %250 = vmatpush.msra.mxu0 0.0
        %251 = vmatpush.msra.mxu0 0.0
        %252 = vmatpush.msra.mxu0 0.0
        %253 = vmatpush.msra.mxu0 0.0
        %254 = vmatpush.msra.mxu0 0.0
        %255 = vmatpush.msra.mxu0 0.0
        %256 = vmatpush.msra.mxu0 0.0
        %257 = vmatpush.msra.mxu0 0.0
        %258 = vmatpush.msra.mxu0 %v231
        %259 = vmatmul.f32.gmra.mxu0 %v238
        %v260 = vpop.f32.mrf.mxu0
        %v261 = vadd.f32 0.0, %v260
        %262 = vmatmul.f32.gmra.mxu0 %v241
        %v263 = vpop.f32.mrf.mxu0
        %v264 = vadd.f32 0.0, %v263
        %265 = vdwg.mxu0
        %266 = vmatpush.msra.mxu0 0.0
        %267 = vmatpush.msra.mxu0 0.0
        %268 = vmatpush.msra.mxu0 0.0
        %269 = vmatpush.msra.mxu0 0.0
        %270 = vmatpush.msra.mxu0 0.0
        %271 = vmatpush.msra.mxu0 0.0
        %272 = vmatpush.msra.mxu0 0.0
        %273 = vmatpush.msra.mxu0 0.0
        %274 = vmatpush.msra.mxu0 0.0
        %275 = vmatpush.msra.mxu0 0.0
        %276 = vmatpush.msra.mxu0 0.0
        %277 = vmatpush.msra.mxu0 0.0
        %278 = vmatpush.msra.mxu0 0.0
        %279 = vmatpush.msra.mxu0 0.0
        %280 = vmatpush.msra.mxu0 0.0
        %281 = vmatpush.msra.mxu0 %v232
        %282 = vmatmul.f32.gmra.mxu0 %v238
        %v283 = vpop.f32.mrf.mxu0
        %v284 = vadd.f32 0.0, %v283
        %285 = vmatmul.f32.gmra.mxu0 %v241
        %v286 = vpop.f32.mrf.mxu0
        %v287 = vadd.f32 0.0, %v286
        %288 = vdwg.mxu0
        %289 = vmatpush.msra.mxu0 0.0
        %290 = vmatpush.msra.mxu0 0.0
        %291 = vmatpush.msra.mxu0 0.0
        %292 = vmatpush.msra.mxu0 0.0
        %293 = vmatpush.msra.mxu0 0.0
        %294 = vmatpush.msra.mxu0 0.0
        %295 = vmatpush.msra.mxu0 0.0
        %296 = vmatpush.msra.mxu0 0.0
        %297 = vmatpush.msra.mxu0 0.0
        %298 = vmatpush.msra.mxu0 0.0
        %299 = vmatpush.msra.mxu0 0.0
        %300 = vmatpush.msra.mxu0 0.0
        %301 = vmatpush.msra.mxu0 0.0
        %302 = vmatpush.msra.mxu0 0.0
        %303 = vmatpush.msra.mxu0 0.0
        %304 = vmatpush.msra.mxu0 %v229
        %305 = vmatmul.f32.gmra.mxu0 %v238
        %v306 = vpop.f32.mrf.mxu0
        %v307 = vadd.f32 0.0, %v306
        %308 = vmatmul.f32.gmra.mxu0 %v241
        %v309 = vpop.f32.mrf.mxu0
        %v310 = vadd.f32 0.0, %v309
        %311 = vdwg.mxu0
        %v313 = vsel %vm236, %v213, 0
        %v316 = vsel %vm236, %v214, 0
        %318 = vmatpush.msra.mxu0 0.0
        %319 = vmatpush.msra.mxu0 0.0
        %320 = vmatpush.msra.mxu0 0.0
        %321 = vmatpush.msra.mxu0 0.0
        %322 = vmatpush.msra.mxu0 0.0
        %323 = vmatpush.msra.mxu0 0.0
        %324 = vmatpush.msra.mxu0 0.0
        %325 = vmatpush.msra.mxu0 0.0
        %326 = vmatpush.msra.mxu0 0.0
        %327 = vmatpush.msra.mxu0 0.0
        %328 = vmatpush.msra.mxu0 0.0
        %329 = vmatpush.msra.mxu0 0.0
        %330 = vmatpush.msra.mxu0 0.0
        %331 = vmatpush.msra.mxu0 0.0
        %332 = vmatpush.msra.mxu0 0.0
        %333 = vmatpush.msra.mxu0 %v215
        %334 = vmatmul.f32.gmra.mxu0 %v313
        %v335 = vpop.f32.mrf.mxu0
        %v336 = vadd.f32 %v261, %v335
        %337 = vmatmul.f32.gmra.mxu0 %v316
        %v338 = vpop.f32.mrf.mxu0
        %v339 = vadd.f32 %v264, %v338
        %340 = vdwg.mxu0
        %341 = vmatpush.msra.mxu0 0.0
        %342 = vmatpush.msra.mxu0 0.0
        %343 = vmatpush.msra.mxu0 0.0
        %344 = vmatpush.msra.mxu0 0.0
        %345 = vmatpush.msra.mxu0 0.0
        %346 = vmatpush.msra.mxu0 0.0
        %347 = vmatpush.msra.mxu0 0.0
        %348 = vmatpush.msra.mxu0 0.0
        %349 = vmatpush.msra.mxu0 0.0
        %350 = vmatpush.msra.mxu0 0.0
        %351 = vmatpush.msra.mxu0 0.0
        %352 = vmatpush.msra.mxu0 0.0
        %353 = vmatpush.msra.mxu0 0.0
        %354 = vmatpush.msra.mxu0 0.0
        %355 = vmatpush.msra.mxu0 0.0
        %356 = vmatpush.msra.mxu0 %v216
        %357 = vmatmul.f32.gmra.mxu0 %v313
        %v358 = vpop.f32.mrf.mxu0
        %v359 = vadd.f32 %v284, %v358
        %360 = vmatmul.f32.gmra.mxu0 %v316
        %v361 = vpop.f32.mrf.mxu0
        %v362 = vadd.f32 %v287, %v361
        %363 = vdwg.mxu0
        %364 = vmatpush.msra.mxu0 0.0
        %365 = vmatpush.msra.mxu0 0.0
        %366 = vmatpush.msra.mxu0 0.0
        %367 = vmatpush.msra.mxu0 0.0
        %368 = vmatpush.msra.mxu0 0.0
        %369 = vmatpush.msra.mxu0 0.0
        %370 = vmatpush.msra.mxu0 0.0
        %371 = vmatpush.msra.mxu0 0.0
        %372 = vmatpush.msra.mxu0 0.0
        %373 = vmatpush.msra.mxu0 0.0
        %374 = vmatpush.msra.mxu0 0.0
        %375 = vmatpush.msra.mxu0 0.0
        %376 = vmatpush.msra.mxu0 0.0
        %377 = vmatpush.msra.mxu0 0.0
        %378 = vmatpush.msra.mxu0 0.0
        %379 = vmatpush.msra.mxu0 %v217
        %380 = vmatmul.f32.gmra.mxu0 %v313
        %v381 = vpop.f32.mrf.mxu0
        %v382 = vadd.f32 %v307, %v381
        %383 = vmatmul.f32.gmra.mxu0 %v316
        %v384 = vpop.f32.mrf.mxu0
        %v385 = vadd.f32 %v310, %v384
        %386 = vdwg.mxu0
        %s387 = scalar_lea.vmem %s1, 32
        %v388 = vld [vmem:[%s387] sm:$0xff]
        %v389 = vld [vmem:[%s387 + $0x8] sm:$0xff]
        %390 = vrot.lane.b32.xlu0 %v215, 126
        %v391 = vpop.permute.xlu0 %390
        %392 = vrot.lane.b32.xlu0 %v216, 126
        %v393 = vpop.permute.xlu0 %392
        %394 = vrot.lane.b32.xlu0 %v217, 126
        %v395 = vpop.permute.xlu0 %394
        %vm396 = vcmask 1031168
        %v397 = vsel %vm396, %v391, %v393
        %v398 = vsel %vm396, %v393, %v395
        %v403 = vsel %vm236, %v388, 0
        %v406 = vsel %vm236, %v389, 0
        %408 = vmatpush.msra.mxu0 0.0
        %409 = vmatpush.msra.mxu0 0.0
        %410 = vmatpush.msra.mxu0 0.0
        %411 = vmatpush.msra.mxu0 0.0
        %412 = vmatpush.msra.mxu0 0.0
        %413 = vmatpush.msra.mxu0 0.0
        %414 = vmatpush.msra.mxu0 0.0
        %415 = vmatpush.msra.mxu0 0.0
        %416 = vmatpush.msra.mxu0 0.0
        %417 = vmatpush.msra.mxu0 0.0
        %418 = vmatpush.msra.mxu0 0.0
        %419 = vmatpush.msra.mxu0 0.0
        %420 = vmatpush.msra.mxu0 0.0
        %421 = vmatpush.msra.mxu0 0.0
        %422 = vmatpush.msra.mxu0 0.0
        %423 = vmatpush.msra.mxu0 %v397
        %424 = vmatmul.f32.gmra.mxu0 %v403
        %v425 = vpop.f32.mrf.mxu0
        %v426 = vadd.f32 0.0, %v425
        %427 = vmatmul.f32.gmra.mxu0 %v406
        %v428 = vpop.f32.mrf.mxu0
        %v429 = vadd.f32 0.0, %v428
        %430 = vdwg.mxu0
        %431 = vmatpush.msra.mxu0 0.0
        %432 = vmatpush.msra.mxu0 0.0
        %433 = vmatpush.msra.mxu0 0.0
        %434 = vmatpush.msra.mxu0 0.0
        %435 = vmatpush.msra.mxu0 0.0
        %436 = vmatpush.msra.mxu0 0.0
        %437 = vmatpush.msra.mxu0 0.0
        %438 = vmatpush.msra.mxu0 0.0
        %439 = vmatpush.msra.mxu0 0.0
        %440 = vmatpush.msra.mxu0 0.0
        %441 = vmatpush.msra.mxu0 0.0
        %442 = vmatpush.msra.mxu0 0.0
        %443 = vmatpush.msra.mxu0 0.0
        %444 = vmatpush.msra.mxu0 0.0
        %445 = vmatpush.msra.mxu0 0.0
        %446 = vmatpush.msra.mxu0 %v398
        %447 = vmatmul.f32.gmra.mxu0 %v403
        %v448 = vpop.f32.mrf.mxu0
        %v449 = vadd.f32 0.0, %v448
        %450 = vmatmul.f32.gmra.mxu0 %v406
        %v451 = vpop.f32.mrf.mxu0
        %v452 = vadd.f32 0.0, %v451
        %453 = vdwg.mxu0
        %454 = vmatpush.msra.mxu0 0.0
        %455 = vmatpush.msra.mxu0 0.0
        %456 = vmatpush.msra.mxu0 0.0
        %457 = vmatpush.msra.mxu0 0.0
        %458 = vmatpush.msra.mxu0 0.0
        %459 = vmatpush.msra.mxu0 0.0
        %460 = vmatpush.msra.mxu0 0.0
        %461 = vmatpush.msra.mxu0 0.0
        %462 = vmatpush.msra.mxu0 0.0
        %463 = vmatpush.msra.mxu0 0.0
        %464 = vmatpush.msra.mxu0 0.0
        %465 = vmatpush.msra.mxu0 0.0
        %466 = vmatpush.msra.mxu0 0.0
        %467 = vmatpush.msra.mxu0 0.0
        %468 = vmatpush.msra.mxu0 0.0
        %469 = vmatpush.msra.mxu0 %v395
        %470 = vmatmul.f32.gmra.mxu0 %v403
        %v471 = vpop.f32.mrf.mxu0
        %v472 = vadd.f32 0.0, %v471
        %473 = vmatmul.f32.gmra.mxu0 %v406
        %v474 = vpop.f32.mrf.mxu0
        %v475 = vadd.f32 0.0, %v474
        %476 = vdwg.mxu0
        %v477 = vadd.f32 %v336, %v426
        %v478 = vadd.f32 %v359, %v449
        %v479 = vadd.f32 %v382, %v472
        %v480 = vadd.f32 %v339, %v429
        %v481 = vadd.f32 %v362, %v452
        %v482 = vadd.f32 %v385, %v475
        %s483 = scalar_lea.vmem %s1, 48
        %v484 = vld [vmem:[%s483] sm:$0xff]
        %v485 = vld [vmem:[%s483 + $0x8] sm:$0xff]
        %486 = vrot.lane.b32.xlu0 %v215, 110
        %v487 = vpop.permute.xlu0 %486
        %488 = vrot.lane.b32.xlu0 %v216, 110
        %v489 = vpop.permute.xlu0 %488
        %490 = vrot.lane.b32.xlu0 %v217, 110
        %v491 = vpop.permute.xlu0 %490
        %vm492 = vcmask 900096
        %v493 = vsel %vm492, %v487, %v489
        %v494 = vsel %vm492, %v489, %v491
        %v499 = vsel %vm236, %v484, 0
        %v502 = vsel %vm236, %v485, 0
        %504 = vmatpush.msra.mxu0 0.0
        %505 = vmatpush.msra.mxu0 0.0
        %506 = vmatpush.msra.mxu0 0.0
        %507 = vmatpush.msra.mxu0 0.0
        %508 = vmatpush.msra.mxu0 0.0
        %509 = vmatpush.msra.mxu0 0.0
        %510 = vmatpush.msra.mxu0 0.0
        %511 = vmatpush.msra.mxu0 0.0
        %512 = vmatpush.msra.mxu0 0.0
        %513 = vmatpush.msra.mxu0 0.0
        %514 = vmatpush.msra.mxu0 0.0
        %515 = vmatpush.msra.mxu0 0.0
        %516 = vmatpush.msra.mxu0 0.0
        %517 = vmatpush.msra.mxu0 0.0
        %518 = vmatpush.msra.mxu0 0.0
        %519 = vmatpush.msra.mxu0 %v493
        %520 = vmatmul.f32.gmra.mxu0 %v499
        %v521 = vpop.f32.mrf.mxu0
        %v522 = vadd.f32 0.0, %v521
        %523 = vmatmul.f32.gmra.mxu0 %v502
        %v524 = vpop.f32.mrf.mxu0
        %v525 = vadd.f32 0.0, %v524
        %526 = vdwg.mxu0
        %527 = vmatpush.msra.mxu0 0.0
        %528 = vmatpush.msra.mxu0 0.0
        %529 = vmatpush.msra.mxu0 0.0
        %530 = vmatpush.msra.mxu0 0.0
        %531 = vmatpush.msra.mxu0 0.0
        %532 = vmatpush.msra.mxu0 0.0
        %533 = vmatpush.msra.mxu0 0.0
        %534 = vmatpush.msra.mxu0 0.0
        %535 = vmatpush.msra.mxu0 0.0
        %536 = vmatpush.msra.mxu0 0.0
        %537 = vmatpush.msra.mxu0 0.0
        %538 = vmatpush.msra.mxu0 0.0
        %539 = vmatpush.msra.mxu0 0.0
        %540 = vmatpush.msra.mxu0 0.0
        %541 = vmatpush.msra.mxu0 0.0
        %542 = vmatpush.msra.mxu0 %v494
        %543 = vmatmul.f32.gmra.mxu0 %v499
        %v544 = vpop.f32.mrf.mxu0
        %v545 = vadd.f32 0.0, %v544
        %546 = vmatmul.f32.gmra.mxu0 %v502
        %v547 = vpop.f32.mrf.mxu0
        %v548 = vadd.f32 0.0, %v547
        %549 = vdwg.mxu0
        %550 = vmatpush.msra.mxu0 0.0
        %551 = vmatpush.msra.mxu0 0.0
        %552 = vmatpush.msra.mxu0 0.0
        %553 = vmatpush.msra.mxu0 0.0
        %554 = vmatpush.msra.mxu0 0.0
        %555 = vmatpush.msra.mxu0 0.0
        %556 = vmatpush.msra.mxu0 0.0
        %557 = vmatpush.msra.mxu0 0.0
        %558 = vmatpush.msra.mxu0 0.0
        %559 = vmatpush.msra.mxu0 0.0
        %560 = vmatpush.msra.mxu0 0.0
        %561 = vmatpush.msra.mxu0 0.0
        %562 = vmatpush.msra.mxu0 0.0
        %563 = vmatpush.msra.mxu0 0.0
        %564 = vmatpush.msra.mxu0 0.0
        %565 = vmatpush.msra.mxu0 %v491
        %566 = vmatmul.f32.gmra.mxu0 %v499
        %v567 = vpop.f32.mrf.mxu0
        %v568 = vadd.f32 0.0, %v567
        %569 = vmatmul.f32.gmra.mxu0 %v502
        %v570 = vpop.f32.mrf.mxu0
        %v571 = vadd.f32 0.0, %v570
        %572 = vdwg.mxu0
        %v573 = vadd.f32 %v477, %v522
        %v574 = vadd.f32 %v478, %v545
        %v575 = vadd.f32 %v479, %v568
        %v576 = vadd.f32 %v480, %v525
        %v577 = vadd.f32 %v481, %v548
        %v578 = vadd.f32 %v482, %v571
        %s579 = scalar_lea.vmem %s1, 64
        %v580 = vld [vmem:[%s579] sm:$0xff]
        %v581 = vld [vmem:[%s579 + $0x8] sm:$0xff]
        %582 = vrot.lane.b32.xlu0 %v215, 109
        %v583 = vpop.permute.xlu0 %582
        %584 = vrot.lane.b32.xlu0 %v216, 109
        %v585 = vpop.permute.xlu0 %584
        %586 = vrot.lane.b32.xlu0 %v217, 109
        %v587 = vpop.permute.xlu0 %586
        %vm588 = vcmask 891904
        %v589 = vsel %vm588, %v583, %v585
        %v590 = vsel %vm588, %v585, %v587
        %v595 = vsel %vm236, %v580, 0
        %v598 = vsel %vm236, %v581, 0
        %600 = vmatpush.msra.mxu0 0.0
        %601 = vmatpush.msra.mxu0 0.0
        %602 = vmatpush.msra.mxu0 0.0
        %603 = vmatpush.msra.mxu0 0.0
        %604 = vmatpush.msra.mxu0 0.0
        %605 = vmatpush.msra.mxu0 0.0
        %606 = vmatpush.msra.mxu0 0.0
        %607 = vmatpush.msra.mxu0 0.0
        %608 = vmatpush.msra.mxu0 0.0
        %609 = vmatpush.msra.mxu0 0.0
        %610 = vmatpush.msra.mxu0 0.0
        %611 = vmatpush.msra.mxu0 0.0
        %612 = vmatpush.msra.mxu0 0.0
        %613 = vmatpush.msra.mxu0 0.0
        %614 = vmatpush.msra.mxu0 0.0
        %615 = vmatpush.msra.mxu0 %v589
        %616 = vmatmul.f32.gmra.mxu0 %v595
        %v617 = vpop.f32.mrf.mxu0
        %v618 = vadd.f32 0.0, %v617
        %619 = vmatmul.f32.gmra.mxu0 %v598
        %v620 = vpop.f32.mrf.mxu0
        %v621 = vadd.f32 0.0, %v620
        %622 = vdwg.mxu0
        %623 = vmatpush.msra.mxu0 0.0
        %624 = vmatpush.msra.mxu0 0.0
        %625 = vmatpush.msra.mxu0 0.0
        %626 = vmatpush.msra.mxu0 0.0
        %627 = vmatpush.msra.mxu0 0.0
        %628 = vmatpush.msra.mxu0 0.0
        %629 = vmatpush.msra.mxu0 0.0
        %630 = vmatpush.msra.mxu0 0.0
        %631 = vmatpush.msra.mxu0 0.0
        %632 = vmatpush.msra.mxu0 0.0
        %633 = vmatpush.msra.mxu0 0.0
        %634 = vmatpush.msra.mxu0 0.0
        %635 = vmatpush.msra.mxu0 0.0
        %636 = vmatpush.msra.mxu0 0.0
        %637 = vmatpush.msra.mxu0 0.0
        %638 = vmatpush.msra.mxu0 %v590
        %639 = vmatmul.f32.gmra.mxu0 %v595
        %v640 = vpop.f32.mrf.mxu0
        %v641 = vadd.f32 0.0, %v640
        %642 = vmatmul.f32.gmra.mxu0 %v598
        %v643 = vpop.f32.mrf.mxu0
        %v644 = vadd.f32 0.0, %v643
        %645 = vdwg.mxu0
        %646 = vmatpush.msra.mxu0 0.0
        %647 = vmatpush.msra.mxu0 0.0
        %648 = vmatpush.msra.mxu0 0.0
        %649 = vmatpush.msra.mxu0 0.0
        %650 = vmatpush.msra.mxu0 0.0
        %651 = vmatpush.msra.mxu0 0.0
        %652 = vmatpush.msra.mxu0 0.0
        %653 = vmatpush.msra.mxu0 0.0
        %654 = vmatpush.msra.mxu0 0.0
        %655 = vmatpush.msra.mxu0 0.0
        %656 = vmatpush.msra.mxu0 0.0
        %657 = vmatpush.msra.mxu0 0.0
        %658 = vmatpush.msra.mxu0 0.0
        %659 = vmatpush.msra.mxu0 0.0
        %660 = vmatpush.msra.mxu0 0.0
        %661 = vmatpush.msra.mxu0 %v587
        %662 = vmatmul.f32.gmra.mxu0 %v595
        %v663 = vpop.f32.mrf.mxu0
        %v664 = vadd.f32 0.0, %v663
        %665 = vmatmul.f32.gmra.mxu0 %v598
        %v666 = vpop.f32.mrf.mxu0
        %v667 = vadd.f32 0.0, %v666
        %668 = vdwg.mxu0
        %v669 = vadd.f32 %v573, %v618
        %v670 = vadd.f32 %v574, %v641
        %v671 = vadd.f32 %v575, %v664
        %v672 = vadd.f32 %v576, %v621
        %v673 = vadd.f32 %v577, %v644
        %v674 = vadd.f32 %v578, %v667
        %s675 = scalar_lea.vmem %s1, 80
        %v676 = vld [vmem:[%s675] sm:$0xff]
        %v677 = vld [vmem:[%s675 + $0x8] sm:$0xff]
        %678 = vrot.lane.b32.xlu0 %v215, 108
        %v679 = vpop.permute.xlu0 %678
        %680 = vrot.lane.b32.xlu0 %v216, 108
        %v681 = vpop.permute.xlu0 %680
        %682 = vrot.lane.b32.xlu0 %v217, 108
        %v683 = vpop.permute.xlu0 %682
        %vm684 = vcmask 883712
        %v685 = vsel %vm684, %v679, %v681
        %v686 = vsel %vm684, %v681, %v683
        %v691 = vsel %vm236, %v676, 0
        %v694 = vsel %vm236, %v677, 0
        %696 = vmatpush.msra.mxu0 0.0
        %697 = vmatpush.msra.mxu0 0.0
        %698 = vmatpush.msra.mxu0 0.0
        %699 = vmatpush.msra.mxu0 0.0
        %700 = vmatpush.msra.mxu0 0.0
        %701 = vmatpush.msra.mxu0 0.0
        %702 = vmatpush.msra.mxu0 0.0
        %703 = vmatpush.msra.mxu0 0.0
        %704 = vmatpush.msra.mxu0 0.0
        %705 = vmatpush.msra.mxu0 0.0
        %706 = vmatpush.msra.mxu0 0.0
        %707 = vmatpush.msra.mxu0 0.0
        %708 = vmatpush.msra.mxu0 0.0
        %709 = vmatpush.msra.mxu0 0.0
        %710 = vmatpush.msra.mxu0 0.0
        %711 = vmatpush.msra.mxu0 %v685
        %712 = vmatmul.f32.gmra.mxu0 %v691
        %v713 = vpop.f32.mrf.mxu0
        %v714 = vadd.f32 0.0, %v713
        %715 = vmatmul.f32.gmra.mxu0 %v694
        %v716 = vpop.f32.mrf.mxu0
        %v717 = vadd.f32 0.0, %v716
        %718 = vdwg.mxu0
        %719 = vmatpush.msra.mxu0 0.0
        %720 = vmatpush.msra.mxu0 0.0
        %721 = vmatpush.msra.mxu0 0.0
        %722 = vmatpush.msra.mxu0 0.0
        %723 = vmatpush.msra.mxu0 0.0
        %724 = vmatpush.msra.mxu0 0.0
        %725 = vmatpush.msra.mxu0 0.0
        %726 = vmatpush.msra.mxu0 0.0
        %727 = vmatpush.msra.mxu0 0.0
        %728 = vmatpush.msra.mxu0 0.0
        %729 = vmatpush.msra.mxu0 0.0
        %730 = vmatpush.msra.mxu0 0.0
        %731 = vmatpush.msra.mxu0 0.0
        %732 = vmatpush.msra.mxu0 0.0
        %733 = vmatpush.msra.mxu0 0.0
        %734 = vmatpush.msra.mxu0 %v686
        %735 = vmatmul.f32.gmra.mxu0 %v691
        %v736 = vpop.f32.mrf.mxu0
        %v737 = vadd.f32 0.0, %v736
        %738 = vmatmul.f32.gmra.mxu0 %v694
        %v739 = vpop.f32.mrf.mxu0
        %v740 = vadd.f32 0.0, %v739
        %741 = vdwg.mxu0
        %742 = vmatpush.msra.mxu0 0.0
        %743 = vmatpush.msra.mxu0 0.0
        %744 = vmatpush.msra.mxu0 0.0
        %745 = vmatpush.msra.mxu0 0.0
        %746 = vmatpush.msra.mxu0 0.0
        %747 = vmatpush.msra.mxu0 0.0
        %748 = vmatpush.msra.mxu0 0.0
        %749 = vmatpush.msra.mxu0 0.0
        %750 = vmatpush.msra.mxu0 0.0
        %751 = vmatpush.msra.mxu0 0.0
        %752 = vmatpush.msra.mxu0 0.0
        %753 = vmatpush.msra.mxu0 0.0
        %754 = vmatpush.msra.mxu0 0.0
        %755 = vmatpush.msra.mxu0 0.0
        %756 = vmatpush.msra.mxu0 0.0
        %757 = vmatpush.msra.mxu0 %v683
        %758 = vmatmul.f32.gmra.mxu0 %v691
        %v759 = vpop.f32.mrf.mxu0
        %v760 = vadd.f32 0.0, %v759
        %761 = vmatmul.f32.gmra.mxu0 %v694
        %v762 = vpop.f32.mrf.mxu0
        %v763 = vadd.f32 0.0, %v762
        %764 = vdwg.mxu0
        %v765 = vadd.f32 %v669, %v714
        %v766 = vadd.f32 %v670, %v737
        %v767 = vadd.f32 %v671, %v760
        %v768 = vadd.f32 %v672, %v717
        %v769 = vadd.f32 %v673, %v740
        %v770 = vadd.f32 %v674, %v763
        %s771 = scalar_lea.vmem %s1, 96
        %v772 = vld [vmem:[%s771] sm:$0xff]
        %v773 = vld [vmem:[%s771 + $0x8] sm:$0xff]
        %774 = vrot.lane.b32.xlu0 %v215, 92
        %v775 = vpop.permute.xlu0 %774
        %776 = vrot.lane.b32.xlu0 %v216, 92
        %v777 = vpop.permute.xlu0 %776
        %778 = vrot.lane.b32.xlu0 %v217, 92
        %v779 = vpop.permute.xlu0 %778
        %vm780 = vcmask 752640
        %v781 = vsel %vm780, %v775, %v777
        %v782 = vsel %vm780, %v777, %v779
        %v787 = vsel %vm236, %v772, 0
        %v790 = vsel %vm236, %v773, 0
        %792 = vmatpush.msra.mxu0 0.0
        %793 = vmatpush.msra.mxu0 0.0
        %794 = vmatpush.msra.mxu0 0.0
        %795 = vmatpush.msra.mxu0 0.0
        %796 = vmatpush.msra.mxu0 0.0
        %797 = vmatpush.msra.mxu0 0.0
        %798 = vmatpush.msra.mxu0 0.0
        %799 = vmatpush.msra.mxu0 0.0
        %800 = vmatpush.msra.mxu0 0.0
        %801 = vmatpush.msra.mxu0 0.0
        %802 = vmatpush.msra.mxu0 0.0
        %803 = vmatpush.msra.mxu0 0.0
        %804 = vmatpush.msra.mxu0 0.0
        %805 = vmatpush.msra.mxu0 0.0
        %806 = vmatpush.msra.mxu0 0.0
        %807 = vmatpush.msra.mxu0 %v781
        %808 = vmatmul.f32.gmra.mxu0 %v787
        %v809 = vpop.f32.mrf.mxu0
        %v810 = vadd.f32 0.0, %v809
        %811 = vmatmul.f32.gmra.mxu0 %v790
        %v812 = vpop.f32.mrf.mxu0
        %v813 = vadd.f32 0.0, %v812
        %814 = vdwg.mxu0
        %815 = vmatpush.msra.mxu0 0.0
        %816 = vmatpush.msra.mxu0 0.0
        %817 = vmatpush.msra.mxu0 0.0
        %818 = vmatpush.msra.mxu0 0.0
        %819 = vmatpush.msra.mxu0 0.0
        %820 = vmatpush.msra.mxu0 0.0
        %821 = vmatpush.msra.mxu0 0.0
        %822 = vmatpush.msra.mxu0 0.0
        %823 = vmatpush.msra.mxu0 0.0
        %824 = vmatpush.msra.mxu0 0.0
        %825 = vmatpush.msra.mxu0 0.0
        %826 = vmatpush.msra.mxu0 0.0
        %827 = vmatpush.msra.mxu0 0.0
        %828 = vmatpush.msra.mxu0 0.0
        %829 = vmatpush.msra.mxu0 0.0
        %830 = vmatpush.msra.mxu0 %v782
        %831 = vmatmul.f32.gmra.mxu0 %v787
        %v832 = vpop.f32.mrf.mxu0
        %v833 = vadd.f32 0.0, %v832
        %834 = vmatmul.f32.gmra.mxu0 %v790
        %v835 = vpop.f32.mrf.mxu0
        %v836 = vadd.f32 0.0, %v835
        %837 = vdwg.mxu0
        %838 = vmatpush.msra.mxu0 0.0
        %839 = vmatpush.msra.mxu0 0.0
        %840 = vmatpush.msra.mxu0 0.0
        %841 = vmatpush.msra.mxu0 0.0
        %842 = vmatpush.msra.mxu0 0.0
        %843 = vmatpush.msra.mxu0 0.0
        %844 = vmatpush.msra.mxu0 0.0
        %845 = vmatpush.msra.mxu0 0.0
        %846 = vmatpush.msra.mxu0 0.0
        %847 = vmatpush.msra.mxu0 0.0
        %848 = vmatpush.msra.mxu0 0.0
        %849 = vmatpush.msra.mxu0 0.0
        %850 = vmatpush.msra.mxu0 0.0
        %851 = vmatpush.msra.mxu0 0.0
        %852 = vmatpush.msra.mxu0 0.0
        %853 = vmatpush.msra.mxu0 %v779
        %854 = vmatmul.f32.gmra.mxu0 %v787
        %v855 = vpop.f32.mrf.mxu0
        %v856 = vadd.f32 0.0, %v855
        %857 = vmatmul.f32.gmra.mxu0 %v790
        %v858 = vpop.f32.mrf.mxu0
        %v859 = vadd.f32 0.0, %v858
        %860 = vdwg.mxu0
        %v861 = vadd.f32 %v765, %v810
        %v862 = vadd.f32 %v766, %v833
        %v863 = vadd.f32 %v767, %v856
        %v864 = vadd.f32 %v768, %v813
        %v865 = vadd.f32 %v769, %v836
        %v866 = vadd.f32 %v770, %v859
        %s867 = scalar_lea.vmem %s1, 112
        %v868 = vld [vmem:[%s867] sm:$0xff]
        %v869 = vld [vmem:[%s867 + $0x8] sm:$0xff]
        %870 = vrot.lane.b32.xlu0 %v215, 91
        %v871 = vpop.permute.xlu0 %870
        %872 = vrot.lane.b32.xlu0 %v216, 91
        %v873 = vpop.permute.xlu0 %872
        %874 = vrot.lane.b32.xlu0 %v217, 91
        %v875 = vpop.permute.xlu0 %874
        %vm876 = vcmask 744448
        %v877 = vsel %vm876, %v871, %v873
        %v878 = vsel %vm876, %v873, %v875
        %v883 = vsel %vm236, %v868, 0
        %v886 = vsel %vm236, %v869, 0
        %888 = vmatpush.msra.mxu0 0.0
        %889 = vmatpush.msra.mxu0 0.0
        %890 = vmatpush.msra.mxu0 0.0
        %891 = vmatpush.msra.mxu0 0.0
        %892 = vmatpush.msra.mxu0 0.0
        %893 = vmatpush.msra.mxu0 0.0
        %894 = vmatpush.msra.mxu0 0.0
        %895 = vmatpush.msra.mxu0 0.0
        %896 = vmatpush.msra.mxu0 0.0
        %897 = vmatpush.msra.mxu0 0.0
        %898 = vmatpush.msra.mxu0 0.0
        %899 = vmatpush.msra.mxu0 0.0
        %900 = vmatpush.msra.mxu0 0.0
        %901 = vmatpush.msra.mxu0 0.0
        %902 = vmatpush.msra.mxu0 0.0
        %903 = vmatpush.msra.mxu0 %v877
        %904 = vmatmul.f32.gmra.mxu0 %v883
        %v905 = vpop.f32.mrf.mxu0
        %v906 = vadd.f32 0.0, %v905
        %907 = vmatmul.f32.gmra.mxu0 %v886
        %v908 = vpop.f32.mrf.mxu0
        %v909 = vadd.f32 0.0, %v908
        %910 = vdwg.mxu0
        %911 = vmatpush.msra.mxu0 0.0
        %912 = vmatpush.msra.mxu0 0.0
        %913 = vmatpush.msra.mxu0 0.0
        %914 = vmatpush.msra.mxu0 0.0
        %915 = vmatpush.msra.mxu0 0.0
        %916 = vmatpush.msra.mxu0 0.0
        %917 = vmatpush.msra.mxu0 0.0
        %918 = vmatpush.msra.mxu0 0.0
        %919 = vmatpush.msra.mxu0 0.0
        %920 = vmatpush.msra.mxu0 0.0
        %921 = vmatpush.msra.mxu0 0.0
        %922 = vmatpush.msra.mxu0 0.0
        %923 = vmatpush.msra.mxu0 0.0
        %924 = vmatpush.msra.mxu0 0.0
        %925 = vmatpush.msra.mxu0 0.0
        %926 = vmatpush.msra.mxu0 %v878
        %927 = vmatmul.f32.gmra.mxu0 %v883
        %v928 = vpop.f32.mrf.mxu0
        %v929 = vadd.f32 0.0, %v928
        %930 = vmatmul.f32.gmra.mxu0 %v886
        %v931 = vpop.f32.mrf.mxu0
        %v932 = vadd.f32 0.0, %v931
        %933 = vdwg.mxu0
        %934 = vmatpush.msra.mxu0 0.0
        %935 = vmatpush.msra.mxu0 0.0
        %936 = vmatpush.msra.mxu0 0.0
        %937 = vmatpush.msra.mxu0 0.0
        %938 = vmatpush.msra.mxu0 0.0
        %939 = vmatpush.msra.mxu0 0.0
        %940 = vmatpush.msra.mxu0 0.0
        %941 = vmatpush.msra.mxu0 0.0
        %942 = vmatpush.msra.mxu0 0.0
        %943 = vmatpush.msra.mxu0 0.0
        %944 = vmatpush.msra.mxu0 0.0
        %945 = vmatpush.msra.mxu0 0.0
        %946 = vmatpush.msra.mxu0 0.0
        %947 = vmatpush.msra.mxu0 0.0
        %948 = vmatpush.msra.mxu0 0.0
        %949 = vmatpush.msra.mxu0 %v875
        %950 = vmatmul.f32.gmra.mxu0 %v883
        %v951 = vpop.f32.mrf.mxu0
        %v952 = vadd.f32 0.0, %v951
        %953 = vmatmul.f32.gmra.mxu0 %v886
        %v954 = vpop.f32.mrf.mxu0
        %v955 = vadd.f32 0.0, %v954
        %956 = vdwg.mxu0
        %v957 = vadd.f32 %v861, %v906
        %v958 = vadd.f32 %v862, %v929
        %v959 = vadd.f32 %v863, %v952
        %v960 = vadd.f32 %v864, %v909
        %v961 = vadd.f32 %v865, %v932
        %v962 = vadd.f32 %v866, %v955
        %s963 = scalar_lea.vmem %s1, 128
        %v964 = vld [vmem:[%s963] sm:$0xff]
        %v965 = vld [vmem:[%s963 + $0x8] sm:$0xff]
        %966 = vrot.lane.b32.xlu0 %v215, 90
        %v967 = vpop.permute.xlu0 %966
        %968 = vrot.lane.b32.xlu0 %v216, 90
        %v969 = vpop.permute.xlu0 %968
        %970 = vrot.lane.b32.xlu0 %v217, 90
        %v971 = vpop.permute.xlu0 %970
        %vm972 = vcmask 736256
        %v973 = vsel %vm972, %v967, %v969
        %v974 = vsel %vm972, %v969, %v971
        %v979 = vsel %vm236, %v964, 0
        %v982 = vsel %vm236, %v965, 0
        %984 = vmatpush.msra.mxu0 0.0
        %985 = vmatpush.msra.mxu0 0.0
        %986 = vmatpush.msra.mxu0 0.0
        %987 = vmatpush.msra.mxu0 0.0
        %988 = vmatpush.msra.mxu0 0.0
        %989 = vmatpush.msra.mxu0 0.0
        %990 = vmatpush.msra.mxu0 0.0
        %991 = vmatpush.msra.mxu0 0.0
        %992 = vmatpush.msra.mxu0 0.0
        %993 = vmatpush.msra.mxu0 0.0
        %994 = vmatpush.msra.mxu0 0.0
        %995 = vmatpush.msra.mxu0 0.0
        %996 = vmatpush.msra.mxu0 0.0
        %997 = vmatpush.msra.mxu0 0.0
        %998 = vmatpush.msra.mxu0 0.0
        %999 = vmatpush.msra.mxu0 %v973
        %1000 = vmatmul.f32.gmra.mxu0 %v979
        %v1001 = vpop.f32.mrf.mxu0
        %v1002 = vadd.f32 0.0, %v1001
        %1003 = vmatmul.f32.gmra.mxu0 %v982
        %v1004 = vpop.f32.mrf.mxu0
        %v1005 = vadd.f32 0.0, %v1004
        %1006 = vdwg.mxu0
        %1007 = vmatpush.msra.mxu0 0.0
        %1008 = vmatpush.msra.mxu0 0.0
        %1009 = vmatpush.msra.mxu0 0.0
        %1010 = vmatpush.msra.mxu0 0.0
        %1011 = vmatpush.msra.mxu0 0.0
        %1012 = vmatpush.msra.mxu0 0.0
        %1013 = vmatpush.msra.mxu0 0.0
        %1014 = vmatpush.msra.mxu0 0.0
        %1015 = vmatpush.msra.mxu0 0.0
        %1016 = vmatpush.msra.mxu0 0.0
        %1017 = vmatpush.msra.mxu0 0.0
        %1018 = vmatpush.msra.mxu0 0.0
        %1019 = vmatpush.msra.mxu0 0.0
        %1020 = vmatpush.msra.mxu0 0.0
        %1021 = vmatpush.msra.mxu0 0.0
        %1022 = vmatpush.msra.mxu0 %v974
        %1023 = vmatmul.f32.gmra.mxu0 %v979
        %v1024 = vpop.f32.mrf.mxu0
        %v1025 = vadd.f32 0.0, %v1024
        %1026 = vmatmul.f32.gmra.mxu0 %v982
        %v1027 = vpop.f32.mrf.mxu0
        %v1028 = vadd.f32 0.0, %v1027
        %1029 = vdwg.mxu0
        %1030 = vmatpush.msra.mxu0 0.0
        %1031 = vmatpush.msra.mxu0 0.0
        %1032 = vmatpush.msra.mxu0 0.0
        %1033 = vmatpush.msra.mxu0 0.0
        %1034 = vmatpush.msra.mxu0 0.0
        %1035 = vmatpush.msra.mxu0 0.0
        %1036 = vmatpush.msra.mxu0 0.0
        %1037 = vmatpush.msra.mxu0 0.0
        %1038 = vmatpush.msra.mxu0 0.0
        %1039 = vmatpush.msra.mxu0 0.0
        %1040 = vmatpush.msra.mxu0 0.0
        %1041 = vmatpush.msra.mxu0 0.0
        %1042 = vmatpush.msra.mxu0 0.0
        %1043 = vmatpush.msra.mxu0 0.0
        %1044 = vmatpush.msra.mxu0 0.0
        %1045 = vmatpush.msra.mxu0 %v971
        %1046 = vmatmul.f32.gmra.mxu0 %v979
        %v1047 = vpop.f32.mrf.mxu0
        %v1048 = vadd.f32 0.0, %v1047
        %1049 = vmatmul.f32.gmra.mxu0 %v982
        %v1050 = vpop.f32.mrf.mxu0
        %v1051 = vadd.f32 0.0, %v1050
        %1052 = vdwg.mxu0
        %v1053 = vadd.f32 %v957, %v1002
        %v1054 = vadd.f32 %v958, %v1025
        %v1055 = vadd.f32 %v959, %v1048
        %v1056 = vadd.f32 %v960, %v1005
        %v1057 = vadd.f32 %v961, %v1028
        %v1058 = vadd.f32 %v962, %v1051
        %v1059 = vld [vmem:[%s2] sm:$0xff]
        %v1060 = vld [vmem:[%s2 + $0x8] sm:$0xff]
        %1062 = vset.pattern.permute.xlu0 0
        %1063 = vperm.xlu0 %1062, %v1059
        %v1064 = vpop.permute.xlu0 %1063
        %1067 = vset.pattern.permute.xlu0 0
        %1068 = vperm.xlu0 %1067, %v1060
        %v1069 = vpop.permute.xlu0 %1068
        %v1071 = vadd.f32 %v1053, %v1064
        %v1072 = vadd.f32 %v1054, %v1064
        %v1073 = vadd.f32 %v1055, %v1064
        %v1074 = vadd.f32 %v1056, %v1069
        %v1075 = vadd.f32 %v1057, %v1069
        %v1076 = vadd.f32 %v1058, %v1069
        %v1077 = vmax.f32 %v1071, 0.0
        %v1078 = vmax.f32 %v1072, 0.0
        %v1079 = vmax.f32 %v1073, 0.0
        %v1080 = vmax.f32 %v1074, 0.0
        %v1081 = vmax.f32 %v1075, 0.0
        %v1082 = vmax.f32 %v1076, 0.0
        %v1083 = vld [vmem:[#allocation2] sm:$0x7]
        %v1085 = vperm.slane %v1083, 0
        %v1086 = vperm.slane %v1083, 1
        %v1087 = vperm.slane %v1083, 2
        %v1091 = vmul.f32 %v1077, %v1085
        %v1092 = vmul.f32 %v1078, %v1086
        %v1093 = vmul.f32 %v1079, %v1087
        %v1094 = vmul.f32 %v1080, %v1085
        %v1095 = vmul.f32 %v1081, %v1086
        %v1096 = vmul.f32 %v1082, %v1087
        %1097 = vst [vmem:[%s212] sm:$0xff] 0.0
        %1098 = vst [vmem:[%s212 + $0x8] sm:$0xff] 0.0
        %vm1099 = vcmask 703488
        %1100 = vst.msk [vmem:[%s212 + $0x10] sm:$0xff] %vm1099, 0.0
        %1101 = vst [vmem:[%s212 + $0x18] sm:$0xff] 0.0
        %1102 = vst [vmem:[%s212 + $0x20] sm:$0xff] 0.0
        %1103 = vst.msk [vmem:[%s212 + $0x28] sm:$0xff] %vm1099, 0.0
        %1110 = vrot.lane.b32.xlu0 %v1091, 19
        %v1111 = vpop.permute.xlu0 %1110
        %1112 = vrot.lane.b32.xlu0 %v1092, 19
        %v1113 = vpop.permute.xlu0 %1112
        %1114 = vrot.lane.b32.xlu0 %v1093, 19
        %v1115 = vpop.permute.xlu0 %1114
        %1116 = vrot.lane.b32.xlu0 %v1094, 19
        %v1117 = vpop.permute.xlu0 %1116
        %1118 = vrot.lane.b32.xlu0 %v1095, 19
        %v1119 = vpop.permute.xlu0 %1118
        %1120 = vrot.lane.b32.xlu0 %v1096, 19
        %v1121 = vpop.permute.xlu0 %1120
        %vm1122 = vcmask 154624
        %v1123 = vsel %vm1122, %v1111, %v1113
        %v1124 = vsel %vm1122, %v1113, %v1115
        %v1125 = vsel %vm1122, %v1117, %v1119
        %v1126 = vsel %vm1122, %v1119, %v1121
        %vm1133 = vcmask 1047704
        %1134 = vst.msk [vmem:[%s212] sm:$0xff] %vm1133, %v1111
        %1135 = vst [vmem:[%s212 + $0x8] sm:$0xff] %v1123
        %vm1136 = vcmask 416768
        %1137 = vst.msk [vmem:[%s212 + $0x10] sm:$0xff] %vm1136, %v1124
        %1138 = vst.msk [vmem:[%s212 + $0x18] sm:$0xff] %vm1133, %v1117
        %1139 = vst [vmem:[%s212 + $0x20] sm:$0xff] %v1125
        %1140 = vst.msk [vmem:[%s212 + $0x28] sm:$0xff] %vm1136, %v1126
        %p1141 = scmp.lt.s32.totalorder %s16, 1
        %s1142 = scalar_select %p1141, %s16, 1
        %s1143 = smul.addr %s1142, 6
        %s1144 = smul.addr %s1143, 8
        %s1145 = scalar_lea.vmem %s4, %s1144
        // Predicated region
        $region41: #{autoencoder_forward.8} parent=35 // pred_check
          %p1146 = pneg %p123
        $region42: #{autoencoder_forward.8} parent=35 // pred_check_branch
          %1148 = sbr.rel (%p1146) target = $region44
        $region43: #{autoencoder_forward.8} parent=35 // pred_region
          _
        $region44: #{autoencoder_forward.8} parent=35 // pred_fallthru
          _
      $region36: #{autoencoder_forward.8} parent=5 // pred_fallthru
        _
      %p1149 = scmp.le.s32.totalorder 2, %s11
      // Predicated region
      $region45: #{autoencoder_forward.8} parent=5 // pred_check
        %p1150 = pneg %p1149
      $region46: #{autoencoder_forward.8} parent=5 // pred_check_branch
        %1152 = sbr.rel (%p1150) target = $region48
      $region47: #{autoencoder_forward.8} parent=5 // pred_region
        %s1153 = ssub.s32 %s11, 2
        // Predicated region
        $region49: #{autoencoder_forward.8} parent=47 // pred_check
          %p1154 = pneg %p129
        $region50: #{autoencoder_forward.8} parent=47 // pred_check_branch
          %1156 = sbr.rel (%p1154) target = $region52
        $region51: #{autoencoder_forward.8} parent=47 // pred_region
          %p1157 = scmp.lt.s32.totalorder %s17, 1
          %s1158 = scalar_select %p1157, %s17, 1
          %s1159 = smul.addr %s1158, 6
          %s1160 = smul.addr %s1159, 8
          %s1161 = scalar_lea.vmem %s4, %s1160
        $region52: #{autoencoder_forward.8} parent=47 // pred_fallthru
          _
      $region48: #{autoencoder_forward.8} parent=5 // pred_fallthru
        _
    $region6: #{autoencoder_forward.8} parent=1 // loop_footer
      %s15 = sadd.s32 1, %s11
    $region7: #{autoencoder_forward.8} parent=1 // loop_footer_branch
      %10 = sbr.rel target = $region3
    $region8: #{autoencoder_forward.8} parent=1 // loop_exit
      _
    %1162 = vsyncpa [#allocation3], 1
    %s1163 = scalar_lea.sflag [#allocation3], 1
    %1164 = vsyncpa %s1163, 1

// kernel: autoencoder_forward.7
$region0: #{autoencoder_forward.7}
  #allocation0 [shape = 'u32[]', space=smem, size = 0x4, offset = 0x4, fixed_abs, tag = 'smem constant byte address 0x4 - core index']
  #allocation1 [shape = 'u32[72,128]{1,0:T(1,128)}', space=vmem, size = 0x9000, scoped, tag = 'internal scratch']
  %s0 = inlined_call_operand.vmem [shape: f32[2,3,342], index: 0, kind: input, shape index: {}]
  %s1 = inlined_call_operand.vmem [shape: f32[9,8,3], index: 1, kind: input, shape index: {}]
  %s2 = inlined_call_operand.vmem [shape: f32[8,1], index: 2, kind: input, shape index: {}]
  %s3 = inlined_call_operand.hbm [shape: f32[1,288], index: 3, kind: input, shape index: {}]
  %s4 = inlined_call_operand.vmem [shape: f32[2,8,342], index: 4, kind: output, shape index: {}]
  %s5 = sld [smem:[#allocation0]]
  $region53: #{autoencoder_forward.7} parent=0
    _
  %s7 = ssub.s32 1, %s5
  %s8 = scalar_select 0, %s7, %s5
  $region1: #{autoencoder_forward.7} parent=0
    #allocation2 [shape = 'u8[1536]{0}', space=vmem, size = 0x800, scoped, tag = 'input window, operand 3, single buffered']
    #allocation3 [shape = 's32[2]{0}', space=sflag, size = 0x8, scoped, tag = 'scoped memory for autoencoder_forward.7']
    %9 = vsyncpa [#allocation3], 0
    loop: start=0, step=1, limit=4
    $region2: #{autoencoder_forward.7} parent=1 // loop_pre_header
      _
    $region3: #{autoencoder_forward.7} parent=1 // loop_header
      %s11 = sphi 0, %s15
      %p12 = scmp.ge.s32.totalorder %s11, 4
      %s21 = sphi 0, %s23
      %s24 = sphi 0, %s21
      %s25 = sphi 0, %s24
      %s41 = sphi 0, %s25
      %s45 = sphi 0, %s45
      %s47 = sphi 0, %s45
      %s48 = sphi 0, %s47
      %s62 = sphi 0, %s48
      %s66 = sphi 0, %s66
      %s68 = sphi 0, %s66
      %s69 = sphi 0, %s68
      %s83 = sphi 0, %s69
      %s87 = sphi 0, %s87
      %s89 = sphi 0, %s87
      %s90 = sphi 0, %s89
      %s104 = sphi 0, %s90
      %s110 = sphi 0, %s112
      %s113 = sphi 0, %s110
      %s114 = sphi 0, %s113
      %s130 = sphi 0, %s114
    $region4: #{autoencoder_forward.7} parent=1 // loop_header_branch
      %14 = sbr.rel (%p12) target = $region8
    $region5: #{autoencoder_forward.7} parent=1 // loop_body
      %s16 = ssub.s32 %s11, 1
      %s17 = ssub.s32 %s11, 2
      %s18 = sadd.s32 %s11, 1
      %s19 = ssub.s32 %s11, %s18
      %p20 = scmp.eq.s32.totalorder %s19, 0
      %s22 = sadd.s32 %s21, 1
      %s23 = scalar_select %p20, %s21, %s22
      %p26 = pneg %p20
      %p27 = scmp.eq.s32.totalorder %s11, 1
      %p28 = por %p26, %p27
      %p29 = scmp.ne.s32.totalorder %s21, %s24
      %p30 = scmp.eq.s32.totalorder %s11, 0
      %p31 = por %p29, %p30
      %p32 = scmp.ne.s32.totalorder %s21, %s24
      %p33 = scmp.eq.s32.totalorder %s16, 1
      %p34 = por %p32, %p33
      %p35 = scmp.ne.s32.totalorder %s24, %s25
      %p36 = scmp.eq.s32.totalorder %s16, 0
      %p37 = por %p35, %p36
      %p38 = scmp.ne.s32.totalorder %s24, %s25
      %p39 = scmp.eq.s32.totalorder %s17, 1
      %p40 = por %p38, %p39
      %p42 = scmp.ne.s32.totalorder %s25, %s41
      %p43 = scmp.eq.s32.totalorder %s17, 0
      %p44 = por %p42, %p43
      %s46 = sadd.s32 %s45, 1
      %p49 = scmp.eq.s32.totalorder %s11, 1
      %p50 = scmp.ne.s32.totalorder %s45, %s47
      %p51 = scmp.eq.s32.totalorder %s11, 0
      %p52 = por %p50, %p51
      %p53 = scmp.ne.s32.totalorder %s45, %s47
      %p54 = scmp.eq.s32.totalorder %s16, 1
      %p55 = por %p53, %p54
      %p56 = scmp.ne.s32.totalorder %s47, %s48
      %p57 = scmp.eq.s32.totalorder %s16, 0
      %p58 = por %p56, %p57
      %p59 = scmp.ne.s32.totalorder %s47, %s48
      %p60 = scmp.eq.s32.totalorder %s17, 1
      %p61 = por %p59, %p60
      %p63 = scmp.ne.s32.totalorder %s48, %s62
      %p64 = scmp.eq.s32.totalorder %s17, 0
      %p65 = por %p63, %p64
      %s67 = sadd.s32 %s66, 1
      %p70 = scmp.eq.s32.totalorder %s11, 1
      %p71 = scmp.ne.s32.totalorder %s66, %s68
      %p72 = scmp.eq.s32.totalorder %s11, 0
      %p73 = por %p71, %p72
      %p74 = scmp.ne.s32.totalorder %s66, %s68
      %p75 = scmp.eq.s32.totalorder %s16, 1
      %p76 = por %p74, %p75
      %p77 = scmp.ne.s32.totalorder %s68, %s69
      %p78 = scmp.eq.s32.totalorder %s16, 0
      %p79 = por %p77, %p78
      %p80 = scmp.ne.s32.totalorder %s68, %s69
      %p81 = scmp.eq.s32.totalorder %s17, 1
      %p82 = por %p80, %p81
      %p84 = scmp.ne.s32.totalorder %s69, %s83
      %p85 = scmp.eq.s32.totalorder %s17, 0
      %p86 = por %p84, %p85
      %s88 = sadd.s32 %s87, 1
      %p91 = scmp.eq.s32.totalorder %s11, 1
      %p92 = scmp.ne.s32.totalorder %s87, %s89
      %p93 = scmp.eq.s32.totalorder %s11, 0
      %p94 = por %p92, %p93
      %p95 = scmp.ne.s32.totalorder %s87, %s89
      %p96 = scmp.eq.s32.totalorder %s16, 1
      %p97 = por %p95, %p96
      %p98 = scmp.ne.s32.totalorder %s89, %s90
      %p99 = scmp.eq.s32.totalorder %s16, 0
      %p100 = por %p98, %p99
      %p101 = scmp.ne.s32.totalorder %s89, %s90
      %p102 = scmp.eq.s32.totalorder %s17, 1
      %p103 = por %p101, %p102
      %p105 = scmp.ne.s32.totalorder %s90, %s104
      %p106 = scmp.eq.s32.totalorder %s17, 0
      %p107 = por %p105, %p106
      %s108 = ssub.s32 %s11, %s18
      %p109 = scmp.eq.s32.totalorder %s108, 0
      %s111 = sadd.s32 %s110, 1
      %s112 = scalar_select %p109, %s110, %s111
      %p115 = pneg %p109
      %p116 = scmp.eq.s32.totalorder %s11, 1
      %p117 = por %p115, %p116
      %p118 = scmp.ne.s32.totalorder %s110, %s113
      %p119 = scmp.eq.s32.totalorder %s11, 0
      %p120 = por %p118, %p119
      %p121 = scmp.ne.s32.totalorder %s110, %s113
      %p122 = scmp.eq.s32.totalorder %s16, 1
      %p123 = por %p121, %p122
      %p124 = scmp.ne.s32.totalorder %s113, %s114
      %p125 = scmp.eq.s32.totalorder %s16, 0
      %p126 = por %p124, %p125
      %p127 = scmp.ne.s32.totalorder %s113, %s114
      %p128 = scmp.eq.s32.totalorder %s17, 1
      %p129 = por %p127, %p128
      %p131 = scmp.ne.s32.totalorder %s114, %s130
      %p132 = scmp.eq.s32.totalorder %s17, 0
      %p133 = por %p131, %p132
      %p134 = scmp.le.s32.totalorder 1, %s11
      %p135 = scmp.lt.s32.totalorder %s11, 3
      %p136 = pnand %p134, %p135
      %p137 = pneg %p136
      // Predicated region
      $region9: #{autoencoder_forward.7} parent=5 // pred_check
        _
      $region10: #{autoencoder_forward.7} parent=5 // pred_check_branch
        %139 = sbr.rel (%p136) target = $region12
      $region11: #{autoencoder_forward.7} parent=5 // pred_region
        %s140 = ssub.s32 %s11, 1
        // Predicated region
        $region13: #{autoencoder_forward.7} parent=11 // pred_check
          %p141 = pneg %p58
        $region14: #{autoencoder_forward.7} parent=11 // pred_check_branch
          %143 = sbr.rel (%p141) target = $region16
        $region15: #{autoencoder_forward.7} parent=11 // pred_region
          _
        $region16: #{autoencoder_forward.7} parent=11 // pred_fallthru
          _
        // Predicated region
        $region17: #{autoencoder_forward.7} parent=11 // pred_check
          %p144 = pneg %p79
        $region18: #{autoencoder_forward.7} parent=11 // pred_check_branch
          %146 = sbr.rel (%p144) target = $region20
        $region19: #{autoencoder_forward.7} parent=11 // pred_region
          _
        $region20: #{autoencoder_forward.7} parent=11 // pred_fallthru
          _
        // Predicated region
        $region21: #{autoencoder_forward.7} parent=11 // pred_check
          %p147 = pneg %p100
        $region22: #{autoencoder_forward.7} parent=11 // pred_check_branch
          %149 = sbr.rel (%p147) target = $region24
        $region23: #{autoencoder_forward.7} parent=11 // pred_region
          %151 = vsyncadd [#allocation3], 0
          %s153 = sshll.u32 %s3, 4
          %s154 = int_to_ptr.hbm [resolvable:$true] %s153
          %s155 = sshll.u32 [#allocation2], 4
          %s156 = int_to_ptr.vmem [resolvable:$true] %s155
          %158 = dma.hbm_to_vmem [thread:$0]  %s154, 48, %s156, [#allocation3]
        $region24: #{autoencoder_forward.7} parent=11 // pred_fallthru
          _
      $region12: #{autoencoder_forward.7} parent=5 // pred_fallthru
        _
      %p159 = scmp.lt.s32.totalorder %s11, 2
      // Predicated region
      $region25: #{autoencoder_forward.7} parent=5 // pred_check
        %p160 = pneg %p159
      $region26: #{autoencoder_forward.7} parent=5 // pred_check_branch
        %162 = sbr.rel (%p160) target = $region28
      $region27: #{autoencoder_forward.7} parent=5 // pred_region
        // Predicated region
        $region29: #{autoencoder_forward.7} parent=27 // pred_check
          %p163 = pneg %p31
        $region30: #{autoencoder_forward.7} parent=27 // pred_check_branch
          %165 = sbr.rel (%p163) target = $region32
        $region31: #{autoencoder_forward.7} parent=27 // pred_region
          %p166 = scmp.lt.s32.totalorder %s11, 1
          %s167 = scalar_select %p166, %s11, 1
          %s168 = smul.addr %s167, 3
          %s169 = smul.addr %s168, 4
          %s170 = scalar_lea.vmem %s0, %s169
        $region32: #{autoencoder_forward.7} parent=27 // pred_fallthru
          _
      $region28: #{autoencoder_forward.7} parent=5 // pred_fallthru
        _
      %p171 = scmp.le.s32.totalorder 1, %s11
      %p172 = scmp.lt.s32.totalorder %s11, 3
      %p173 = pnand %p171, %p172
      %p174 = pneg %p173
      // Predicated region
      $region33: #{autoencoder_forward.7} parent=5 // pred_check
        _
      $region34: #{autoencoder_forward.7} parent=5 // pred_check_branch
        %176 = sbr.rel (%p173) target = $region36
      $region35: #{autoencoder_forward.7} parent=5 // pred_region
        %s177 = ssub.s32 %s11, 1
        // Predicated region
        $region37: #{autoencoder_forward.7} parent=35 // pred_check
          %p178 = pneg %p100
        $region38: #{autoencoder_forward.7} parent=35 // pred_check_branch
          %180 = sbr.rel (%p178) target = $region40
        $region39: #{autoencoder_forward.7} parent=35 // pred_region
          %182 = dma.done [#allocation3], 48
        $region40: #{autoencoder_forward.7} parent=35 // pred_fallthru
          _
        %p183 = scmp.lt.s32.totalorder %s16, 1
        %s184 = scalar_select %p183, %s16, 1
        %s185 = smul.addr %s184, 3
        %s186 = smul.addr %s185, 4
        %s187 = scalar_lea.vmem %s0, %s186
        %p188 = pneg %p37
        %p189 = pneg %p34
        %p190 = pneg %p58
        %p191 = pneg %p55
        %p192 = pneg %p79
        %p193 = pneg %p76
        %p194 = pneg %p100
        %p195 = pneg %p97
        %p196 = pneg %p126
        %p197 = pneg %p123
        %p198 = scmp.lt.s32.totalorder %s16, 1
        %s199 = scalar_select %p198, %s16, 1
        %s200 = smul.addr %s199, 3
        %s201 = smul.addr %s200, 8
        %s202 = scalar_lea.vmem %s4, %s201
        %p203 = scmp.lt.s32.totalorder %s16, 1
        %s204 = scalar_select %p203, %s16, 1
        %s205 = smul.addr %s204, 3
        %s206 = smul.addr %s205, 4
        %s207 = scalar_lea.vmem %s0, %s206
        %p208 = scmp.lt.s32.totalorder %s16, 1
        %s209 = scalar_select %p208, %s16, 1
        %s210 = smul.addr %s209, 3
        %s211 = smul.addr %s210, 8
        %s212 = scalar_lea.vmem %s4, %s211
        %v213 = vld [vmem:[%s1] sm:$0xff]
        %v214 = vld [vmem:[%s207] sm:$0x77]
        %v215 = vld [vmem:[%s207 + $0x8] sm:$0x7]
        %s216 = scalar_lea.vmem %s1, 8
        %v217 = vld [vmem:[%s216] sm:$0xff]
        %220 = vst [vmem:[#allocation1] ss:$2 sm:$0xff] %v214
        %s221 = scalar_lea.vmem [#allocation1], 16
        %222 = vst [vmem:[%s221] ss:$2 sm:$0xff] %v215
        %v223 = vld.sshfl [vmem:[#allocation1] sm:$0xff pattern:$0x75316420]
        %v224 = vld.sshfl [vmem:[#allocation1 + $0x8] sm:$0xff pattern:$0x75316420]
        %v225 = vld.sshfl [vmem:[#allocation1 + $0x10] sm:$0xff pattern:$0x75316420]
        %226 = vrot.lane.b32.xlu0 %v223, 127
        %v227 = vpop.permute.xlu0 %226
        %228 = vrot.lane.b32.xlu0 %v224, 127
        %v229 = vpop.permute.xlu0 %228
        %230 = vrot.lane.b32.xlu0 %v225, 127
        %v231 = vpop.permute.xlu0 %230
        %vm232 = vcmask 1039360
        %v233 = vsel %vm232, %v227, %v229
        %v234 = vsel %vm232, %v229, %v231
        %vm235 = vcmask 23552
        %v237 = vsel %vm235, %v217, 0
        %vm239 = vcmask 1042432
        %v240 = vsel %vm239, %v233, 0
        %v242 = vsel %vm239, %v234, 0
        %v244 = vsel %vm239, %v231, 0
        %246 = vmatpush.msra.mxu0 0.0
        %247 = vmatpush.msra.mxu0 0.0
        %248 = vmatpush.msra.mxu0 0.0
        %249 = vmatpush.msra.mxu0 0.0
        %250 = vmatpush.msra.mxu0 0.0
        %251 = vmatpush.msra.mxu0 0.0
        %252 = vmatpush.msra.mxu0 0.0
        %253 = vmatpush.msra.mxu0 0.0
        %254 = vmatpush.msra.mxu0 0.0
        %255 = vmatpush.msra.mxu0 0.0
        %256 = vmatpush.msra.mxu0 0.0
        %257 = vmatpush.msra.mxu0 0.0
        %258 = vmatpush.msra.mxu0 0.0
        %259 = vmatpush.msra.mxu0 0.0
        %260 = vmatpush.msra.mxu0 0.0
        %261 = vmatpush.msra.mxu0 %v240
        %262 = vmatmul.f32.gmra.mxu0 %v237
        %v263 = vpop.f32.mrf.mxu0
        %v264 = vadd.f32 0.0, %v263
        %265 = vdwg.mxu0
        %266 = vmatpush.msra.mxu0 0.0
        %267 = vmatpush.msra.mxu0 0.0
        %268 = vmatpush.msra.mxu0 0.0
        %269 = vmatpush.msra.mxu0 0.0
        %270 = vmatpush.msra.mxu0 0.0
        %271 = vmatpush.msra.mxu0 0.0
        %272 = vmatpush.msra.mxu0 0.0
        %273 = vmatpush.msra.mxu0 0.0
        %274 = vmatpush.msra.mxu0 0.0
        %275 = vmatpush.msra.mxu0 0.0
        %276 = vmatpush.msra.mxu0 0.0
        %277 = vmatpush.msra.mxu0 0.0
        %278 = vmatpush.msra.mxu0 0.0
        %279 = vmatpush.msra.mxu0 0.0
        %280 = vmatpush.msra.mxu0 0.0
        %281 = vmatpush.msra.mxu0 %v242
        %282 = vmatmul.f32.gmra.mxu0 %v237
        %v283 = vpop.f32.mrf.mxu0
        %v284 = vadd.f32 0.0, %v283
        %285 = vdwg.mxu0
        %286 = vmatpush.msra.mxu0 0.0
        %287 = vmatpush.msra.mxu0 0.0
        %288 = vmatpush.msra.mxu0 0.0
        %289 = vmatpush.msra.mxu0 0.0
        %290 = vmatpush.msra.mxu0 0.0
        %291 = vmatpush.msra.mxu0 0.0
        %292 = vmatpush.msra.mxu0 0.0
        %293 = vmatpush.msra.mxu0 0.0
        %294 = vmatpush.msra.mxu0 0.0
        %295 = vmatpush.msra.mxu0 0.0
        %296 = vmatpush.msra.mxu0 0.0
        %297 = vmatpush.msra.mxu0 0.0
        %298 = vmatpush.msra.mxu0 0.0
        %299 = vmatpush.msra.mxu0 0.0
        %300 = vmatpush.msra.mxu0 0.0
        %301 = vmatpush.msra.mxu0 %v244
        %302 = vmatmul.f32.gmra.mxu0 %v237
        %v303 = vpop.f32.mrf.mxu0
        %v304 = vadd.f32 0.0, %v303
        %305 = vdwg.mxu0
        %306 = vst [vmem:[#allocation1] ss:$2 sm:$0xff] %v214
        %s307 = scalar_lea.vmem [#allocation1], 16
        %308 = vst [vmem:[%s307] ss:$2 sm:$0xff] %v215
        %v309 = vld.sshfl [vmem:[#allocation1] sm:$0xff pattern:$0x75316420]
        %v310 = vld.sshfl [vmem:[#allocation1 + $0x8] sm:$0xff pattern:$0x75316420]
        %v311 = vld.sshfl [vmem:[#allocation1 + $0x10] sm:$0xff pattern:$0x75316420]
        %v313 = vsel %vm235, %v213, 0
        %v315 = vsel %vm239, %v309, 0
        %v317 = vsel %vm239, %v310, 0
        %v319 = vsel %vm239, %v311, 0
        %321 = vmatpush.msra.mxu0 0.0
        %322 = vmatpush.msra.mxu0 0.0
        %323 = vmatpush.msra.mxu0 0.0
        %324 = vmatpush.msra.mxu0 0.0
        %325 = vmatpush.msra.mxu0 0.0
        %326 = vmatpush.msra.mxu0 0.0
        %327 = vmatpush.msra.mxu0 0.0
        %328 = vmatpush.msra.mxu0 0.0
        %329 = vmatpush.msra.mxu0 0.0
        %330 = vmatpush.msra.mxu0 0.0
        %331 = vmatpush.msra.mxu0 0.0
        %332 = vmatpush.msra.mxu0 0.0
        %333 = vmatpush.msra.mxu0 0.0
        %334 = vmatpush.msra.mxu0 0.0
        %335 = vmatpush.msra.mxu0 0.0
        %336 = vmatpush.msra.mxu0 %v315
        %337 = vmatmul.f32.gmra.mxu0 %v313
        %v338 = vpop.f32.mrf.mxu0
        %v339 = vadd.f32 %v264, %v338
        %340 = vdwg.mxu0
        %341 = vmatpush.msra.mxu0 0.0
        %342 = vmatpush.msra.mxu0 0.0
        %343 = vmatpush.msra.mxu0 0.0
        %344 = vmatpush.msra.mxu0 0.0
        %345 = vmatpush.msra.mxu0 0.0
        %346 = vmatpush.msra.mxu0 0.0
        %347 = vmatpush.msra.mxu0 0.0
        %348 = vmatpush.msra.mxu0 0.0
        %349 = vmatpush.msra.mxu0 0.0
        %350 = vmatpush.msra.mxu0 0.0
        %351 = vmatpush.msra.mxu0 0.0
        %352 = vmatpush.msra.mxu0 0.0
        %353 = vmatpush.msra.mxu0 0.0
        %354 = vmatpush.msra.mxu0 0.0
        %355 = vmatpush.msra.mxu0 0.0
        %356 = vmatpush.msra.mxu0 %v317
        %357 = vmatmul.f32.gmra.mxu0 %v313
        %v358 = vpop.f32.mrf.mxu0
        %v359 = vadd.f32 %v284, %v358
        %360 = vdwg.mxu0
        %361 = vmatpush.msra.mxu0 0.0
        %362 = vmatpush.msra.mxu0 0.0
        %363 = vmatpush.msra.mxu0 0.0
        %364 = vmatpush.msra.mxu0 0.0
        %365 = vmatpush.msra.mxu0 0.0
        %366 = vmatpush.msra.mxu0 0.0
        %367 = vmatpush.msra.mxu0 0.0
        %368 = vmatpush.msra.mxu0 0.0
        %369 = vmatpush.msra.mxu0 0.0
        %370 = vmatpush.msra.mxu0 0.0
        %371 = vmatpush.msra.mxu0 0.0
        %372 = vmatpush.msra.mxu0 0.0
        %373 = vmatpush.msra.mxu0 0.0
        %374 = vmatpush.msra.mxu0 0.0
        %375 = vmatpush.msra.mxu0 0.0
        %376 = vmatpush.msra.mxu0 %v319
        %377 = vmatmul.f32.gmra.mxu0 %v313
        %v378 = vpop.f32.mrf.mxu0
        %v379 = vadd.f32 %v304, %v378
        %380 = vdwg.mxu0
        %s381 = scalar_lea.vmem %s1, 16
        %v382 = vld [vmem:[%s381] sm:$0xff]
        %v383 = vld [vmem:[%s207] sm:$0x77]
        %v384 = vld [vmem:[%s207 + $0x8] sm:$0x7]
        %387 = vst [vmem:[#allocation1] ss:$2 sm:$0xff] %v383
        %s388 = scalar_lea.vmem [#allocation1], 16
        %389 = vst [vmem:[%s388] ss:$2 sm:$0xff] %v384
        %v390 = vld.sshfl [vmem:[#allocation1] sm:$0xff pattern:$0x75316420]
        %v391 = vld.sshfl [vmem:[#allocation1 + $0x8] sm:$0xff pattern:$0x75316420]
        %v392 = vld.sshfl [vmem:[#allocation1 + $0x10] sm:$0xff pattern:$0x75316420]
        %393 = vrot.lane.b32.xlu0 %v390, 126
        %v394 = vpop.permute.xlu0 %393
        %395 = vrot.lane.b32.xlu0 %v391, 126
        %v396 = vpop.permute.xlu0 %395
        %397 = vrot.lane.b32.xlu0 %v392, 126
        %v398 = vpop.permute.xlu0 %397
        %vm399 = vcmask 1031168
        %v400 = vsel %vm399, %v394, %v396
        %v401 = vsel %vm399, %v396, %v398
        %v403 = vsel %vm235, %v382, 0
        %v405 = vsel %vm239, %v400, 0
        %v407 = vsel %vm239, %v401, 0
        %v409 = vsel %vm239, %v398, 0
        %411 = vmatpush.msra.mxu0 0.0
        %412 = vmatpush.msra.mxu0 0.0
        %413 = vmatpush.msra.mxu0 0.0
        %414 = vmatpush.msra.mxu0 0.0
        %415 = vmatpush.msra.mxu0 0.0
        %416 = vmatpush.msra.mxu0 0.0
        %417 = vmatpush.msra.mxu0 0.0
        %418 = vmatpush.msra.mxu0 0.0
        %419 = vmatpush.msra.mxu0 0.0
        %420 = vmatpush.msra.mxu0 0.0
        %421 = vmatpush.msra.mxu0 0.0
        %422 = vmatpush.msra.mxu0 0.0
        %423 = vmatpush.msra.mxu0 0.0
        %424 = vmatpush.msra.mxu0 0.0
        %425 = vmatpush.msra.mxu0 0.0
        %426 = vmatpush.msra.mxu0 %v405
        %427 = vmatmul.f32.gmra.mxu0 %v403
        %v428 = vpop.f32.mrf.mxu0
        %v429 = vadd.f32 0.0, %v428
        %430 = vdwg.mxu0
        %431 = vmatpush.msra.mxu0 0.0
        %432 = vmatpush.msra.mxu0 0.0
        %433 = vmatpush.msra.mxu0 0.0
        %434 = vmatpush.msra.mxu0 0.0
        %435 = vmatpush.msra.mxu0 0.0
        %436 = vmatpush.msra.mxu0 0.0
        %437 = vmatpush.msra.mxu0 0.0
        %438 = vmatpush.msra.mxu0 0.0
        %439 = vmatpush.msra.mxu0 0.0
        %440 = vmatpush.msra.mxu0 0.0
        %441 = vmatpush.msra.mxu0 0.0
        %442 = vmatpush.msra.mxu0 0.0
        %443 = vmatpush.msra.mxu0 0.0
        %444 = vmatpush.msra.mxu0 0.0
        %445 = vmatpush.msra.mxu0 0.0
        %446 = vmatpush.msra.mxu0 %v407
        %447 = vmatmul.f32.gmra.mxu0 %v403
        %v448 = vpop.f32.mrf.mxu0
        %v449 = vadd.f32 0.0, %v448
        %450 = vdwg.mxu0
        %451 = vmatpush.msra.mxu0 0.0
        %452 = vmatpush.msra.mxu0 0.0
        %453 = vmatpush.msra.mxu0 0.0
        %454 = vmatpush.msra.mxu0 0.0
        %455 = vmatpush.msra.mxu0 0.0
        %456 = vmatpush.msra.mxu0 0.0
        %457 = vmatpush.msra.mxu0 0.0
        %458 = vmatpush.msra.mxu0 0.0
        %459 = vmatpush.msra.mxu0 0.0
        %460 = vmatpush.msra.mxu0 0.0
        %461 = vmatpush.msra.mxu0 0.0
        %462 = vmatpush.msra.mxu0 0.0
        %463 = vmatpush.msra.mxu0 0.0
        %464 = vmatpush.msra.mxu0 0.0
        %465 = vmatpush.msra.mxu0 0.0
        %466 = vmatpush.msra.mxu0 %v409
        %467 = vmatmul.f32.gmra.mxu0 %v403
        %v468 = vpop.f32.mrf.mxu0
        %v469 = vadd.f32 0.0, %v468
        %470 = vdwg.mxu0
        %v471 = vadd.f32 %v339, %v429
        %v472 = vadd.f32 %v359, %v449
        %v473 = vadd.f32 %v379, %v469
        %s474 = scalar_lea.vmem %s1, 24
        %v475 = vld [vmem:[%s474] sm:$0xff]
        %v476 = vld [vmem:[%s207] sm:$0x77]
        %v477 = vld [vmem:[%s207 + $0x8] sm:$0x7]
        %480 = vst [vmem:[#allocation1] ss:$2 sm:$0xff] %v476
        %s481 = scalar_lea.vmem [#allocation1], 16
        %482 = vst [vmem:[%s481] ss:$2 sm:$0xff] %v477
        %v483 = vld.sshfl [vmem:[#allocation1] sm:$0xff pattern:$0x75316420]
        %v484 = vld.sshfl [vmem:[#allocation1 + $0x8] sm:$0xff pattern:$0x75316420]
        %v485 = vld.sshfl [vmem:[#allocation1 + $0x10] sm:$0xff pattern:$0x75316420]
        %486 = vrot.lane.b32.xlu0 %v483, 110
        %v487 = vpop.permute.xlu0 %486
        %488 = vrot.lane.b32.xlu0 %v484, 110
        %v489 = vpop.permute.xlu0 %488
        %490 = vrot.lane.b32.xlu0 %v485, 110
        %v491 = vpop.permute.xlu0 %490
        %vm492 = vcmask 900096
        %v493 = vsel %vm492, %v487, %v489
        %v494 = vsel %vm492, %v489, %v491
        %v496 = vsel %vm235, %v475, 0
        %v498 = vsel %vm239, %v493, 0
        %v500 = vsel %vm239, %v494, 0
        %v502 = vsel %vm239, %v491, 0
        %504 = vmatpush.msra.mxu0 0.0
        %505 = vmatpush.msra.mxu0 0.0
        %506 = vmatpush.msra.mxu0 0.0
        %507 = vmatpush.msra.mxu0 0.0
        %508 = vmatpush.msra.mxu0 0.0
        %509 = vmatpush.msra.mxu0 0.0
        %510 = vmatpush.msra.mxu0 0.0
        %511 = vmatpush.msra.mxu0 0.0
        %512 = vmatpush.msra.mxu0 0.0
        %513 = vmatpush.msra.mxu0 0.0
        %514 = vmatpush.msra.mxu0 0.0
        %515 = vmatpush.msra.mxu0 0.0
        %516 = vmatpush.msra.mxu0 0.0
        %517 = vmatpush.msra.mxu0 0.0
        %518 = vmatpush.msra.mxu0 0.0
        %519 = vmatpush.msra.mxu0 %v498
        %520 = vmatmul.f32.gmra.mxu0 %v496
        %v521 = vpop.f32.mrf.mxu0
        %v522 = vadd.f32 0.0, %v521
        %523 = vdwg.mxu0
        %524 = vmatpush.msra.mxu0 0.0
        %525 = vmatpush.msra.mxu0 0.0
        %526 = vmatpush.msra.mxu0 0.0
        %527 = vmatpush.msra.mxu0 0.0
        %528 = vmatpush.msra.mxu0 0.0
        %529 = vmatpush.msra.mxu0 0.0
        %530 = vmatpush.msra.mxu0 0.0
        %531 = vmatpush.msra.mxu0 0.0
        %532 = vmatpush.msra.mxu0 0.0
        %533 = vmatpush.msra.mxu0 0.0
        %534 = vmatpush.msra.mxu0 0.0
        %535 = vmatpush.msra.mxu0 0.0
        %536 = vmatpush.msra.mxu0 0.0
        %537 = vmatpush.msra.mxu0 0.0
        %538 = vmatpush.msra.mxu0 0.0
        %539 = vmatpush.msra.mxu0 %v500
        %540 = vmatmul.f32.gmra.mxu0 %v496
        %v541 = vpop.f32.mrf.mxu0
        %v542 = vadd.f32 0.0, %v541
        %543 = vdwg.mxu0
        %544 = vmatpush.msra.mxu0 0.0
        %545 = vmatpush.msra.mxu0 0.0
        %546 = vmatpush.msra.mxu0 0.0
        %547 = vmatpush.msra.mxu0 0.0
        %548 = vmatpush.msra.mxu0 0.0
        %549 = vmatpush.msra.mxu0 0.0
        %550 = vmatpush.msra.mxu0 0.0
        %551 = vmatpush.msra.mxu0 0.0
        %552 = vmatpush.msra.mxu0 0.0
        %553 = vmatpush.msra.mxu0 0.0
        %554 = vmatpush.msra.mxu0 0.0
        %555 = vmatpush.msra.mxu0 0.0
        %556 = vmatpush.msra.mxu0 0.0
        %557 = vmatpush.msra.mxu0 0.0
        %558 = vmatpush.msra.mxu0 0.0
        %559 = vmatpush.msra.mxu0 %v502
        %560 = vmatmul.f32.gmra.mxu0 %v496
        %v561 = vpop.f32.mrf.mxu0
        %v562 = vadd.f32 0.0, %v561
        %563 = vdwg.mxu0
        %v564 = vadd.f32 %v471, %v522
        %v565 = vadd.f32 %v472, %v542
        %v566 = vadd.f32 %v473, %v562
        %s567 = scalar_lea.vmem %s1, 32
        %v568 = vld [vmem:[%s567] sm:$0xff]
        %v569 = vld [vmem:[%s207] sm:$0x77]
        %v570 = vld [vmem:[%s207 + $0x8] sm:$0x7]
        %573 = vst [vmem:[#allocation1] ss:$2 sm:$0xff] %v569
        %s574 = scalar_lea.vmem [#allocation1], 16
        %575 = vst [vmem:[%s574] ss:$2 sm:$0xff] %v570
        %v576 = vld.sshfl [vmem:[#allocation1] sm:$0xff pattern:$0x75316420]
        %v577 = vld.sshfl [vmem:[#allocation1 + $0x8] sm:$0xff pattern:$0x75316420]
        %v578 = vld.sshfl [vmem:[#allocation1 + $0x10] sm:$0xff pattern:$0x75316420]
        %579 = vrot.lane.b32.xlu0 %v576, 109
        %v580 = vpop.permute.xlu0 %579
        %581 = vrot.lane.b32.xlu0 %v577, 109
        %v582 = vpop.permute.xlu0 %581
        %583 = vrot.lane.b32.xlu0 %v578, 109
        %v584 = vpop.permute.xlu0 %583
        %vm585 = vcmask 891904
        %v586 = vsel %vm585, %v580, %v582
        %v587 = vsel %vm585, %v582, %v584
        %v589 = vsel %vm235, %v568, 0
        %v591 = vsel %vm239, %v586, 0
        %v593 = vsel %vm239, %v587, 0
        %v595 = vsel %vm239, %v584, 0
        %597 = vmatpush.msra.mxu0 0.0
        %598 = vmatpush.msra.mxu0 0.0
        %599 = vmatpush.msra.mxu0 0.0
        %600 = vmatpush.msra.mxu0 0.0
        %601 = vmatpush.msra.mxu0 0.0
        %602 = vmatpush.msra.mxu0 0.0
        %603 = vmatpush.msra.mxu0 0.0
        %604 = vmatpush.msra.mxu0 0.0
        %605 = vmatpush.msra.mxu0 0.0
        %606 = vmatpush.msra.mxu0 0.0
        %607 = vmatpush.msra.mxu0 0.0
        %608 = vmatpush.msra.mxu0 0.0
        %609 = vmatpush.msra.mxu0 0.0
        %610 = vmatpush.msra.mxu0 0.0
        %611 = vmatpush.msra.mxu0 0.0
        %612 = vmatpush.msra.mxu0 %v591
        %613 = vmatmul.f32.gmra.mxu0 %v589
        %v614 = vpop.f32.mrf.mxu0
        %v615 = vadd.f32 0.0, %v614
        %616 = vdwg.mxu0
        %617 = vmatpush.msra.mxu0 0.0
        %618 = vmatpush.msra.mxu0 0.0
        %619 = vmatpush.msra.mxu0 0.0
        %620 = vmatpush.msra.mxu0 0.0
        %621 = vmatpush.msra.mxu0 0.0
        %622 = vmatpush.msra.mxu0 0.0
        %623 = vmatpush.msra.mxu0 0.0
        %624 = vmatpush.msra.mxu0 0.0
        %625 = vmatpush.msra.mxu0 0.0
        %626 = vmatpush.msra.mxu0 0.0
        %627 = vmatpush.msra.mxu0 0.0
        %628 = vmatpush.msra.mxu0 0.0
        %629 = vmatpush.msra.mxu0 0.0
        %630 = vmatpush.msra.mxu0 0.0
        %631 = vmatpush.msra.mxu0 0.0
        %632 = vmatpush.msra.mxu0 %v593
        %633 = vmatmul.f32.gmra.mxu0 %v589
        %v634 = vpop.f32.mrf.mxu0
        %v635 = vadd.f32 0.0, %v634
        %636 = vdwg.mxu0
        %637 = vmatpush.msra.mxu0 0.0
        %638 = vmatpush.msra.mxu0 0.0
        %639 = vmatpush.msra.mxu0 0.0
        %640 = vmatpush.msra.mxu0 0.0
        %641 = vmatpush.msra.mxu0 0.0
        %642 = vmatpush.msra.mxu0 0.0
        %643 = vmatpush.msra.mxu0 0.0
        %644 = vmatpush.msra.mxu0 0.0
        %645 = vmatpush.msra.mxu0 0.0
        %646 = vmatpush.msra.mxu0 0.0
        %647 = vmatpush.msra.mxu0 0.0
        %648 = vmatpush.msra.mxu0 0.0
        %649 = vmatpush.msra.mxu0 0.0
        %650 = vmatpush.msra.mxu0 0.0
        %651 = vmatpush.msra.mxu0 0.0
        %652 = vmatpush.msra.mxu0 %v595
        %653 = vmatmul.f32.gmra.mxu0 %v589
        %v654 = vpop.f32.mrf.mxu0
        %v655 = vadd.f32 0.0, %v654
        %656 = vdwg.mxu0
        %v657 = vadd.f32 %v564, %v615
        %v658 = vadd.f32 %v565, %v635
        %v659 = vadd.f32 %v566, %v655
        %s660 = scalar_lea.vmem %s1, 40
        %v661 = vld [vmem:[%s660] sm:$0xff]
        %v662 = vld [vmem:[%s207] sm:$0x77]
        %v663 = vld [vmem:[%s207 + $0x8] sm:$0x7]
        %666 = vst [vmem:[#allocation1] ss:$2 sm:$0xff] %v662
        %s667 = scalar_lea.vmem [#allocation1], 16
        %668 = vst [vmem:[%s667] ss:$2 sm:$0xff] %v663
        %v669 = vld.sshfl [vmem:[#allocation1] sm:$0xff pattern:$0x75316420]
        %v670 = vld.sshfl [vmem:[#allocation1 + $0x8] sm:$0xff pattern:$0x75316420]
        %v671 = vld.sshfl [vmem:[#allocation1 + $0x10] sm:$0xff pattern:$0x75316420]
        %672 = vrot.lane.b32.xlu0 %v669, 108
        %v673 = vpop.permute.xlu0 %672
        %674 = vrot.lane.b32.xlu0 %v670, 108
        %v675 = vpop.permute.xlu0 %674
        %676 = vrot.lane.b32.xlu0 %v671, 108
        %v677 = vpop.permute.xlu0 %676
        %vm678 = vcmask 883712
        %v679 = vsel %vm678, %v673, %v675
        %v680 = vsel %vm678, %v675, %v677
        %v682 = vsel %vm235, %v661, 0
        %v684 = vsel %vm239, %v679, 0
        %v686 = vsel %vm239, %v680, 0
        %v688 = vsel %vm239, %v677, 0
        %690 = vmatpush.msra.mxu0 0.0
        %691 = vmatpush.msra.mxu0 0.0
        %692 = vmatpush.msra.mxu0 0.0
        %693 = vmatpush.msra.mxu0 0.0
        %694 = vmatpush.msra.mxu0 0.0
        %695 = vmatpush.msra.mxu0 0.0
        %696 = vmatpush.msra.mxu0 0.0
        %697 = vmatpush.msra.mxu0 0.0
        %698 = vmatpush.msra.mxu0 0.0
        %699 = vmatpush.msra.mxu0 0.0
        %700 = vmatpush.msra.mxu0 0.0
        %701 = vmatpush.msra.mxu0 0.0
        %702 = vmatpush.msra.mxu0 0.0
        %703 = vmatpush.msra.mxu0 0.0
        %704 = vmatpush.msra.mxu0 0.0
        %705 = vmatpush.msra.mxu0 %v684
        %706 = vmatmul.f32.gmra.mxu0 %v682
        %v707 = vpop.f32.mrf.mxu0
        %v708 = vadd.f32 0.0, %v707
        %709 = vdwg.mxu0
        %710 = vmatpush.msra.mxu0 0.0
        %711 = vmatpush.msra.mxu0 0.0
        %712 = vmatpush.msra.mxu0 0.0
        %713 = vmatpush.msra.mxu0 0.0
        %714 = vmatpush.msra.mxu0 0.0
        %715 = vmatpush.msra.mxu0 0.0
        %716 = vmatpush.msra.mxu0 0.0
        %717 = vmatpush.msra.mxu0 0.0
        %718 = vmatpush.msra.mxu0 0.0
        %719 = vmatpush.msra.mxu0 0.0
        %720 = vmatpush.msra.mxu0 0.0
        %721 = vmatpush.msra.mxu0 0.0
        %722 = vmatpush.msra.mxu0 0.0
        %723 = vmatpush.msra.mxu0 0.0
        %724 = vmatpush.msra.mxu0 0.0
        %725 = vmatpush.msra.mxu0 %v686
        %726 = vmatmul.f32.gmra.mxu0 %v682
        %v727 = vpop.f32.mrf.mxu0
        %v728 = vadd.f32 0.0, %v727
        %729 = vdwg.mxu0
        %730 = vmatpush.msra.mxu0 0.0
        %731 = vmatpush.msra.mxu0 0.0
        %732 = vmatpush.msra.mxu0 0.0
        %733 = vmatpush.msra.mxu0 0.0
        %734 = vmatpush.msra.mxu0 0.0
        %735 = vmatpush.msra.mxu0 0.0
        %736 = vmatpush.msra.mxu0 0.0
        %737 = vmatpush.msra.mxu0 0.0
        %738 = vmatpush.msra.mxu0 0.0
        %739 = vmatpush.msra.mxu0 0.0
        %740 = vmatpush.msra.mxu0 0.0
        %741 = vmatpush.msra.mxu0 0.0
        %742 = vmatpush.msra.mxu0 0.0
        %743 = vmatpush.msra.mxu0 0.0
        %744 = vmatpush.msra.mxu0 0.0
        %745 = vmatpush.msra.mxu0 %v688
        %746 = vmatmul.f32.gmra.mxu0 %v682
        %v747 = vpop.f32.mrf.mxu0
        %v748 = vadd.f32 0.0, %v747
        %749 = vdwg.mxu0
        %v750 = vadd.f32 %v657, %v708
        %v751 = vadd.f32 %v658, %v728
        %v752 = vadd.f32 %v659, %v748
        %s753 = scalar_lea.vmem %s1, 48
        %v754 = vld [vmem:[%s753] sm:$0xff]
        %v755 = vld [vmem:[%s207] sm:$0x77]
        %v756 = vld [vmem:[%s207 + $0x8] sm:$0x7]
        %759 = vst [vmem:[#allocation1] ss:$2 sm:$0xff] %v755
        %s760 = scalar_lea.vmem [#allocation1], 16
        %761 = vst [vmem:[%s760] ss:$2 sm:$0xff] %v756
        %v762 = vld.sshfl [vmem:[#allocation1] sm:$0xff pattern:$0x75316420]
        %v763 = vld.sshfl [vmem:[#allocation1 + $0x8] sm:$0xff pattern:$0x75316420]
        %v764 = vld.sshfl [vmem:[#allocation1 + $0x10] sm:$0xff pattern:$0x75316420]
        %765 = vrot.lane.b32.xlu0 %v762, 92
        %v766 = vpop.permute.xlu0 %765
        %767 = vrot.lane.b32.xlu0 %v763, 92
        %v768 = vpop.permute.xlu0 %767
        %769 = vrot.lane.b32.xlu0 %v764, 92
        %v770 = vpop.permute.xlu0 %769
        %vm771 = vcmask 752640
        %v772 = vsel %vm771, %v766, %v768
        %v773 = vsel %vm771, %v768, %v770
        %v775 = vsel %vm235, %v754, 0
        %v777 = vsel %vm239, %v772, 0
        %v779 = vsel %vm239, %v773, 0
        %v781 = vsel %vm239, %v770, 0
        %783 = vmatpush.msra.mxu0 0.0
        %784 = vmatpush.msra.mxu0 0.0
        %785 = vmatpush.msra.mxu0 0.0
        %786 = vmatpush.msra.mxu0 0.0
        %787 = vmatpush.msra.mxu0 0.0
        %788 = vmatpush.msra.mxu0 0.0
        %789 = vmatpush.msra.mxu0 0.0
        %790 = vmatpush.msra.mxu0 0.0
        %791 = vmatpush.msra.mxu0 0.0
        %792 = vmatpush.msra.mxu0 0.0
        %793 = vmatpush.msra.mxu0 0.0
        %794 = vmatpush.msra.mxu0 0.0
        %795 = vmatpush.msra.mxu0 0.0
        %796 = vmatpush.msra.mxu0 0.0
        %797 = vmatpush.msra.mxu0 0.0
        %798 = vmatpush.msra.mxu0 %v777
        %799 = vmatmul.f32.gmra.mxu0 %v775
        %v800 = vpop.f32.mrf.mxu0
        %v801 = vadd.f32 0.0, %v800
        %802 = vdwg.mxu0
        %803 = vmatpush.msra.mxu0 0.0
        %804 = vmatpush.msra.mxu0 0.0
        %805 = vmatpush.msra.mxu0 0.0
        %806 = vmatpush.msra.mxu0 0.0
        %807 = vmatpush.msra.mxu0 0.0
        %808 = vmatpush.msra.mxu0 0.0
        %809 = vmatpush.msra.mxu0 0.0
        %810 = vmatpush.msra.mxu0 0.0
        %811 = vmatpush.msra.mxu0 0.0
        %812 = vmatpush.msra.mxu0 0.0
        %813 = vmatpush.msra.mxu0 0.0
        %814 = vmatpush.msra.mxu0 0.0
        %815 = vmatpush.msra.mxu0 0.0
        %816 = vmatpush.msra.mxu0 0.0
        %817 = vmatpush.msra.mxu0 0.0
        %818 = vmatpush.msra.mxu0 %v779
        %819 = vmatmul.f32.gmra.mxu0 %v775
        %v820 = vpop.f32.mrf.mxu0
        %v821 = vadd.f32 0.0, %v820
        %822 = vdwg.mxu0
        %823 = vmatpush.msra.mxu0 0.0
        %824 = vmatpush.msra.mxu0 0.0
        %825 = vmatpush.msra.mxu0 0.0
        %826 = vmatpush.msra.mxu0 0.0
        %827 = vmatpush.msra.mxu0 0.0
        %828 = vmatpush.msra.mxu0 0.0
        %829 = vmatpush.msra.mxu0 0.0
        %830 = vmatpush.msra.mxu0 0.0
        %831 = vmatpush.msra.mxu0 0.0
        %832 = vmatpush.msra.mxu0 0.0
        %833 = vmatpush.msra.mxu0 0.0
        %834 = vmatpush.msra.mxu0 0.0
        %835 = vmatpush.msra.mxu0 0.0
        %836 = vmatpush.msra.mxu0 0.0
        %837 = vmatpush.msra.mxu0 0.0
        %838 = vmatpush.msra.mxu0 %v781
        %839 = vmatmul.f32.gmra.mxu0 %v775
        %v840 = vpop.f32.mrf.mxu0
        %v841 = vadd.f32 0.0, %v840
        %842 = vdwg.mxu0
        %v843 = vadd.f32 %v750, %v801
        %v844 = vadd.f32 %v751, %v821
        %v845 = vadd.f32 %v752, %v841
        %s846 = scalar_lea.vmem %s1, 56
        %v847 = vld [vmem:[%s846] sm:$0xff]
        %v848 = vld [vmem:[%s207] sm:$0x77]
        %v849 = vld [vmem:[%s207 + $0x8] sm:$0x7]
        %852 = vst [vmem:[#allocation1] ss:$2 sm:$0xff] %v848
        %s853 = scalar_lea.vmem [#allocation1], 16
        %854 = vst [vmem:[%s853] ss:$2 sm:$0xff] %v849
        %v855 = vld.sshfl [vmem:[#allocation1] sm:$0xff pattern:$0x75316420]
        %v856 = vld.sshfl [vmem:[#allocation1 + $0x8] sm:$0xff pattern:$0x75316420]
        %v857 = vld.sshfl [vmem:[#allocation1 + $0x10] sm:$0xff pattern:$0x75316420]
        %858 = vrot.lane.b32.xlu0 %v855, 91
        %v859 = vpop.permute.xlu0 %858
        %860 = vrot.lane.b32.xlu0 %v856, 91
        %v861 = vpop.permute.xlu0 %860
        %862 = vrot.lane.b32.xlu0 %v857, 91
        %v863 = vpop.permute.xlu0 %862
        %vm864 = vcmask 744448
        %v865 = vsel %vm864, %v859, %v861
        %v866 = vsel %vm864, %v861, %v863
        %v868 = vsel %vm235, %v847, 0
        %v870 = vsel %vm239, %v865, 0
        %v872 = vsel %vm239, %v866, 0
        %v874 = vsel %vm239, %v863, 0
        %876 = vmatpush.msra.mxu0 0.0
        %877 = vmatpush.msra.mxu0 0.0
        %878 = vmatpush.msra.mxu0 0.0
        %879 = vmatpush.msra.mxu0 0.0
        %880 = vmatpush.msra.mxu0 0.0
        %881 = vmatpush.msra.mxu0 0.0
        %882 = vmatpush.msra.mxu0 0.0
        %883 = vmatpush.msra.mxu0 0.0
        %884 = vmatpush.msra.mxu0 0.0
        %885 = vmatpush.msra.mxu0 0.0
        %886 = vmatpush.msra.mxu0 0.0
        %887 = vmatpush.msra.mxu0 0.0
        %888 = vmatpush.msra.mxu0 0.0
        %889 = vmatpush.msra.mxu0 0.0
        %890 = vmatpush.msra.mxu0 0.0
        %891 = vmatpush.msra.mxu0 %v870
        %892 = vmatmul.f32.gmra.mxu0 %v868
        %v893 = vpop.f32.mrf.mxu0
        %v894 = vadd.f32 0.0, %v893
        %895 = vdwg.mxu0
        %896 = vmatpush.msra.mxu0 0.0
        %897 = vmatpush.msra.mxu0 0.0
        %898 = vmatpush.msra.mxu0 0.0
        %899 = vmatpush.msra.mxu0 0.0
        %900 = vmatpush.msra.mxu0 0.0
        %901 = vmatpush.msra.mxu0 0.0
        %902 = vmatpush.msra.mxu0 0.0
        %903 = vmatpush.msra.mxu0 0.0
        %904 = vmatpush.msra.mxu0 0.0
        %905 = vmatpush.msra.mxu0 0.0
        %906 = vmatpush.msra.mxu0 0.0
        %907 = vmatpush.msra.mxu0 0.0
        %908 = vmatpush.msra.mxu0 0.0
        %909 = vmatpush.msra.mxu0 0.0
        %910 = vmatpush.msra.mxu0 0.0
        %911 = vmatpush.msra.mxu0 %v872
        %912 = vmatmul.f32.gmra.mxu0 %v868
        %v913 = vpop.f32.mrf.mxu0
        %v914 = vadd.f32 0.0, %v913
        %915 = vdwg.mxu0
        %916 = vmatpush.msra.mxu0 0.0
        %917 = vmatpush.msra.mxu0 0.0
        %918 = vmatpush.msra.mxu0 0.0
        %919 = vmatpush.msra.mxu0 0.0
        %920 = vmatpush.msra.mxu0 0.0
        %921 = vmatpush.msra.mxu0 0.0
        %922 = vmatpush.msra.mxu0 0.0
        %923 = vmatpush.msra.mxu0 0.0
        %924 = vmatpush.msra.mxu0 0.0
        %925 = vmatpush.msra.mxu0 0.0
        %926 = vmatpush.msra.mxu0 0.0
        %927 = vmatpush.msra.mxu0 0.0
        %928 = vmatpush.msra.mxu0 0.0
        %929 = vmatpush.msra.mxu0 0.0
        %930 = vmatpush.msra.mxu0 0.0
        %931 = vmatpush.msra.mxu0 %v874
        %932 = vmatmul.f32.gmra.mxu0 %v868
        %v933 = vpop.f32.mrf.mxu0
        %v934 = vadd.f32 0.0, %v933
        %935 = vdwg.mxu0
        %v936 = vadd.f32 %v843, %v894
        %v937 = vadd.f32 %v844, %v914
        %v938 = vadd.f32 %v845, %v934
        %s939 = scalar_lea.vmem %s1, 64
        %v940 = vld [vmem:[%s939] sm:$0xff]
        %v941 = vld [vmem:[%s207] sm:$0x77]
        %v942 = vld [vmem:[%s207 + $0x8] sm:$0x7]
        %945 = vst [vmem:[#allocation1] ss:$2 sm:$0xff] %v941
        %s946 = scalar_lea.vmem [#allocation1], 16
        %947 = vst [vmem:[%s946] ss:$2 sm:$0xff] %v942
        %v948 = vld.sshfl [vmem:[#allocation1] sm:$0xff pattern:$0x75316420]
        %v949 = vld.sshfl [vmem:[#allocation1 + $0x8] sm:$0xff pattern:$0x75316420]
        %v950 = vld.sshfl [vmem:[#allocation1 + $0x10] sm:$0xff pattern:$0x75316420]
        %951 = vrot.lane.b32.xlu0 %v948, 90
        %v952 = vpop.permute.xlu0 %951
        %953 = vrot.lane.b32.xlu0 %v949, 90
        %v954 = vpop.permute.xlu0 %953
        %955 = vrot.lane.b32.xlu0 %v950, 90
        %v956 = vpop.permute.xlu0 %955
        %vm957 = vcmask 736256
        %v958 = vsel %vm957, %v952, %v954
        %v959 = vsel %vm957, %v954, %v956
        %v961 = vsel %vm235, %v940, 0
        %v963 = vsel %vm239, %v958, 0
        %v965 = vsel %vm239, %v959, 0
        %v967 = vsel %vm239, %v956, 0
        %969 = vmatpush.msra.mxu0 0.0
        %970 = vmatpush.msra.mxu0 0.0
        %971 = vmatpush.msra.mxu0 0.0
        %972 = vmatpush.msra.mxu0 0.0
        %973 = vmatpush.msra.mxu0 0.0
        %974 = vmatpush.msra.mxu0 0.0
        %975 = vmatpush.msra.mxu0 0.0
        %976 = vmatpush.msra.mxu0 0.0
        %977 = vmatpush.msra.mxu0 0.0
        %978 = vmatpush.msra.mxu0 0.0
        %979 = vmatpush.msra.mxu0 0.0
        %980 = vmatpush.msra.mxu0 0.0
        %981 = vmatpush.msra.mxu0 0.0
        %982 = vmatpush.msra.mxu0 0.0
        %983 = vmatpush.msra.mxu0 0.0
        %984 = vmatpush.msra.mxu0 %v963
        %985 = vmatmul.f32.gmra.mxu0 %v961
        %v986 = vpop.f32.mrf.mxu0
        %v987 = vadd.f32 0.0, %v986
        %988 = vdwg.mxu0
        %989 = vmatpush.msra.mxu0 0.0
        %990 = vmatpush.msra.mxu0 0.0
        %991 = vmatpush.msra.mxu0 0.0
        %992 = vmatpush.msra.mxu0 0.0
        %993 = vmatpush.msra.mxu0 0.0
        %994 = vmatpush.msra.mxu0 0.0
        %995 = vmatpush.msra.mxu0 0.0
        %996 = vmatpush.msra.mxu0 0.0
        %997 = vmatpush.msra.mxu0 0.0
        %998 = vmatpush.msra.mxu0 0.0
        %999 = vmatpush.msra.mxu0 0.0
        %1000 = vmatpush.msra.mxu0 0.0
        %1001 = vmatpush.msra.mxu0 0.0
        %1002 = vmatpush.msra.mxu0 0.0
        %1003 = vmatpush.msra.mxu0 0.0
        %1004 = vmatpush.msra.mxu0 %v965
        %1005 = vmatmul.f32.gmra.mxu0 %v961
        %v1006 = vpop.f32.mrf.mxu0
        %v1007 = vadd.f32 0.0, %v1006
        %1008 = vdwg.mxu0
        %1009 = vmatpush.msra.mxu0 0.0
        %1010 = vmatpush.msra.mxu0 0.0
        %1011 = vmatpush.msra.mxu0 0.0
        %1012 = vmatpush.msra.mxu0 0.0
        %1013 = vmatpush.msra.mxu0 0.0
        %1014 = vmatpush.msra.mxu0 0.0
        %1015 = vmatpush.msra.mxu0 0.0
        %1016 = vmatpush.msra.mxu0 0.0
        %1017 = vmatpush.msra.mxu0 0.0
        %1018 = vmatpush.msra.mxu0 0.0
        %1019 = vmatpush.msra.mxu0 0.0
        %1020 = vmatpush.msra.mxu0 0.0
        %1021 = vmatpush.msra.mxu0 0.0
        %1022 = vmatpush.msra.mxu0 0.0
        %1023 = vmatpush.msra.mxu0 0.0
        %1024 = vmatpush.msra.mxu0 %v967
        %1025 = vmatmul.f32.gmra.mxu0 %v961
        %v1026 = vpop.f32.mrf.mxu0
        %v1027 = vadd.f32 0.0, %v1026
        %1028 = vdwg.mxu0
        %v1029 = vadd.f32 %v936, %v987
        %v1030 = vadd.f32 %v937, %v1007
        %v1031 = vadd.f32 %v938, %v1027
        %v1032 = vld [vmem:[%s2] sm:$0xff]
        %1034 = vset.pattern.permute.xlu0 0
        %1035 = vperm.xlu0 %1034, %v1032
        %v1036 = vpop.permute.xlu0 %1035
        %v1038 = vadd.f32 %v1029, %v1036
        %v1039 = vadd.f32 %v1030, %v1036
        %v1040 = vadd.f32 %v1031, %v1036
        %v1041 = vmax.f32 %v1038, 0.0
        %v1042 = vmax.f32 %v1039, 0.0
        %v1043 = vmax.f32 %v1040, 0.0
        %v1044 = vld [vmem:[#allocation2] sm:$0x7]
        %v1046 = vperm.slane %v1044, 0
        %v1047 = vperm.slane %v1044, 1
        %v1048 = vperm.slane %v1044, 2
        %v1052 = vmul.f32 %v1041, %v1046
        %v1053 = vmul.f32 %v1042, %v1047
        %v1054 = vmul.f32 %v1043, %v1048
        %1055 = vst [vmem:[%s212] sm:$0xff] 0.0
        %1056 = vst [vmem:[%s212 + $0x8] sm:$0xff] 0.0
        %vm1057 = vcmask 703488
        %1058 = vst.msk [vmem:[%s212 + $0x10] sm:$0xff] %vm1057, 0.0
        %1062 = vrot.lane.b32.xlu0 %v1052, 19
        %v1063 = vpop.permute.xlu0 %1062
        %1064 = vrot.lane.b32.xlu0 %v1053, 19
        %v1065 = vpop.permute.xlu0 %1064
        %1066 = vrot.lane.b32.xlu0 %v1054, 19
        %v1067 = vpop.permute.xlu0 %1066
        %vm1068 = vcmask 154624
        %v1069 = vsel %vm1068, %v1063, %v1065
        %v1070 = vsel %vm1068, %v1065, %v1067
        %vm1074 = vcmask 1047704
        %1075 = vst.msk [vmem:[%s212] sm:$0xff] %vm1074, %v1063
        %1076 = vst [vmem:[%s212 + $0x8] sm:$0xff] %v1069
        %vm1077 = vcmask 416768
        %1078 = vst.msk [vmem:[%s212 + $0x10] sm:$0xff] %vm1077, %v1070
        %p1079 = scmp.lt.s32.totalorder %s16, 1
        %s1080 = scalar_select %p1079, %s16, 1
        %s1081 = smul.addr %s1080, 3
        %s1082 = smul.addr %s1081, 8
        %s1083 = scalar_lea.vmem %s4, %s1082
        // Predicated region
        $region41: #{autoencoder_forward.7} parent=35 // pred_check
          %p1084 = pneg %p123
        $region42: #{autoencoder_forward.7} parent=35 // pred_check_branch
          %1086 = sbr.rel (%p1084) target = $region44
        $region43: #{autoencoder_forward.7} parent=35 // pred_region
          _
        $region44: #{autoencoder_forward.7} parent=35 // pred_fallthru
          _
      $region36: #{autoencoder_forward.7} parent=5 // pred_fallthru
        _
      %p1087 = scmp.le.s32.totalorder 2, %s11
      // Predicated region
      $region45: #{autoencoder_forward.7} parent=5 // pred_check
        %p1088 = pneg %p1087
      $region46: #{autoencoder_forward.7} parent=5 // pred_check_branch
        %1090 = sbr.rel (%p1088) target = $region48
      $region47: #{autoencoder_forward.7} parent=5 // pred_region
        %s1091 = ssub.s32 %s11, 2
        // Predicated region
        $region49: #{autoencoder_forward.7} parent=47 // pred_check
          %p1092 = pneg %p129
        $region50: #{autoencoder_forward.7} parent=47 // pred_check_branch
          %1094 = sbr.rel (%p1092) target = $region52
        $region51: #{autoencoder_forward.7} parent=47 // pred_region
          %p1095 = scmp.lt.s32.totalorder %s17, 1
          %s1096 = scalar_select %p1095, %s17, 1
          %s1097 = smul.addr %s1096, 3
          %s1098 = smul.addr %s1097, 8
          %s1099 = scalar_lea.vmem %s4, %s1098
        $region52: #{autoencoder_forward.7} parent=47 // pred_fallthru
          _
      $region48: #{autoencoder_forward.7} parent=5 // pred_fallthru
        _
    $region6: #{autoencoder_forward.7} parent=1 // loop_footer
      %s15 = sadd.s32 1, %s11
    $region7: #{autoencoder_forward.7} parent=1 // loop_footer_branch
      %10 = sbr.rel target = $region3
    $region8: #{autoencoder_forward.7} parent=1 // loop_exit
      _
    %1100 = vsyncpa [#allocation3], 1
    %s1101 = scalar_lea.sflag [#allocation3], 1
    %1102 = vsyncpa %s1101, 1

// kernel: autoencoder_forward.9
$region0: #{autoencoder_forward.9}
  #allocation0 [shape = 'u32[]', space=smem, size = 0x4, offset = 0x4, fixed_abs, tag = 'smem constant byte address 0x4 - core index']
  #allocation1 [shape = 'u32[72,128]{1,0:T(1,128)}', space=vmem, size = 0x9000, scoped, tag = 'internal scratch']
  %s0 = inlined_call_operand.vmem [shape: f32[2,16,19,18], index: 0, kind: input, shape index: {}]
  %s1 = inlined_call_operand.vmem [shape: f32[18,8], index: 1, kind: input, shape index: {}]
  %s2 = inlined_call_operand.vmem [shape: f32[18,8], index: 2, kind: input, shape index: {}]
  %s3 = inlined_call_operand.vmem [shape: f32[2,16,8,8], index: 3, kind: output, shape index: {}]
  %s4 = sld [smem:[#allocation0]]
  $region45: #{autoencoder_forward.9} parent=0
    _
  %s6 = ssub.s32 1, %s4
  %s7 = scalar_select 0, %s6, %s4
  loop: start=0, step=1, limit=4
  $region2: #{autoencoder_forward.9} parent=0 // loop_pre_header
    _
  $region3: #{autoencoder_forward.9} parent=0 // loop_header
    %s9 = sphi 0, %s13
    %p10 = scmp.ge.s32.totalorder %s9, 4
    %s19 = sphi 0, %s21
    %s22 = sphi 0, %s19
    %s23 = sphi 0, %s22
    %s39 = sphi 0, %s23
    %s43 = sphi 0, %s43
    %s45 = sphi 0, %s43
    %s46 = sphi 0, %s45
    %s60 = sphi 0, %s46
    %s64 = sphi 0, %s64
    %s66 = sphi 0, %s64
    %s67 = sphi 0, %s66
    %s81 = sphi 0, %s67
    %s87 = sphi 0, %s89
    %s90 = sphi 0, %s87
    %s91 = sphi 0, %s90
    %s107 = sphi 0, %s91
  $region4: #{autoencoder_forward.9} parent=0 // loop_header_branch
    %12 = sbr.rel (%p10) target = $region8
  $region5: #{autoencoder_forward.9} parent=0 // loop_body
    %s14 = ssub.s32 %s9, 1
    %s15 = ssub.s32 %s9, 2
    %s16 = sadd.s32 %s9, 1
    %s17 = ssub.s32 %s9, %s16
    %p18 = scmp.eq.s32.totalorder %s17, 0
    %s20 = sadd.s32 %s19, 1
    %s21 = scalar_select %p18, %s19, %s20
    %p24 = pneg %p18
    %p25 = scmp.eq.s32.totalorder %s9, 1
    %p26 = por %p24, %p25
    %p27 = scmp.ne.s32.totalorder %s19, %s22
    %p28 = scmp.eq.s32.totalorder %s9, 0
    %p29 = por %p27, %p28
    %p30 = scmp.ne.s32.totalorder %s19, %s22
    %p31 = scmp.eq.s32.totalorder %s14, 1
    %p32 = por %p30, %p31
    %p33 = scmp.ne.s32.totalorder %s22, %s23
    %p34 = scmp.eq.s32.totalorder %s14, 0
    %p35 = por %p33, %p34
    %p36 = scmp.ne.s32.totalorder %s22, %s23
    %p37 = scmp.eq.s32.totalorder %s15, 1
    %p38 = por %p36, %p37
    %p40 = scmp.ne.s32.totalorder %s23, %s39
    %p41 = scmp.eq.s32.totalorder %s15, 0
    %p42 = por %p40, %p41
    %s44 = sadd.s32 %s43, 1
    %p47 = scmp.eq.s32.totalorder %s9, 1
    %p48 = scmp.ne.s32.totalorder %s43, %s45
    %p49 = scmp.eq.s32.totalorder %s9, 0
    %p50 = por %p48, %p49
    %p51 = scmp.ne.s32.totalorder %s43, %s45
    %p52 = scmp.eq.s32.totalorder %s14, 1
    %p53 = por %p51, %p52
    %p54 = scmp.ne.s32.totalorder %s45, %s46
    %p55 = scmp.eq.s32.totalorder %s14, 0
    %p56 = por %p54, %p55
    %p57 = scmp.ne.s32.totalorder %s45, %s46
    %p58 = scmp.eq.s32.totalorder %s15, 1
    %p59 = por %p57, %p58
    %p61 = scmp.ne.s32.totalorder %s46, %s60
    %p62 = scmp.eq.s32.totalorder %s15, 0
    %p63 = por %p61, %p62
    %s65 = sadd.s32 %s64, 1
    %p68 = scmp.eq.s32.totalorder %s9, 1
    %p69 = scmp.ne.s32.totalorder %s64, %s66
    %p70 = scmp.eq.s32.totalorder %s9, 0
    %p71 = por %p69, %p70
    %p72 = scmp.ne.s32.totalorder %s64, %s66
    %p73 = scmp.eq.s32.totalorder %s14, 1
    %p74 = por %p72, %p73
    %p75 = scmp.ne.s32.totalorder %s66, %s67
    %p76 = scmp.eq.s32.totalorder %s14, 0
    %p77 = por %p75, %p76
    %p78 = scmp.ne.s32.totalorder %s66, %s67
    %p79 = scmp.eq.s32.totalorder %s15, 1
    %p80 = por %p78, %p79
    %p82 = scmp.ne.s32.totalorder %s67, %s81
    %p83 = scmp.eq.s32.totalorder %s15, 0
    %p84 = por %p82, %p83
    %s85 = ssub.s32 %s9, %s16
    %p86 = scmp.eq.s32.totalorder %s85, 0
    %s88 = sadd.s32 %s87, 1
    %s89 = scalar_select %p86, %s87, %s88
    %p92 = pneg %p86
    %p93 = scmp.eq.s32.totalorder %s9, 1
    %p94 = por %p92, %p93
    %p95 = scmp.ne.s32.totalorder %s87, %s90
    %p96 = scmp.eq.s32.totalorder %s9, 0
    %p97 = por %p95, %p96
    %p98 = scmp.ne.s32.totalorder %s87, %s90
    %p99 = scmp.eq.s32.totalorder %s14, 1
    %p100 = por %p98, %p99
    %p101 = scmp.ne.s32.totalorder %s90, %s91
    %p102 = scmp.eq.s32.totalorder %s14, 0
    %p103 = por %p101, %p102
    %p104 = scmp.ne.s32.totalorder %s90, %s91
    %p105 = scmp.eq.s32.totalorder %s15, 1
    %p106 = por %p104, %p105
    %p108 = scmp.ne.s32.totalorder %s91, %s107
    %p109 = scmp.eq.s32.totalorder %s15, 0
    %p110 = por %p108, %p109
    %p111 = scmp.le.s32.totalorder 1, %s9
    %p112 = scmp.lt.s32.totalorder %s9, 3
    %p113 = pnand %p111, %p112
    %p114 = pneg %p113
    // Predicated region
    $region9: #{autoencoder_forward.9} parent=5 // pred_check
      _
    $region10: #{autoencoder_forward.9} parent=5 // pred_check_branch
      %116 = sbr.rel (%p113) target = $region12
    $region11: #{autoencoder_forward.9} parent=5 // pred_region
      %s117 = ssub.s32 %s9, 1
      // Predicated region
      $region13: #{autoencoder_forward.9} parent=11 // pred_check
        %p118 = pneg %p56
      $region14: #{autoencoder_forward.9} parent=11 // pred_check_branch
        %120 = sbr.rel (%p118) target = $region16
      $region15: #{autoencoder_forward.9} parent=11 // pred_region
        _
      $region16: #{autoencoder_forward.9} parent=11 // pred_fallthru
        _
      // Predicated region
      $region17: #{autoencoder_forward.9} parent=11 // pred_check
        %p121 = pneg %p77
      $region18: #{autoencoder_forward.9} parent=11 // pred_check_branch
        %123 = sbr.rel (%p121) target = $region20
      $region19: #{autoencoder_forward.9} parent=11 // pred_region
        _
      $region20: #{autoencoder_forward.9} parent=11 // pred_fallthru
        _
    $region12: #{autoencoder_forward.9} parent=5 // pred_fallthru
      _
    %p124 = scmp.lt.s32.totalorder %s9, 2
    // Predicated region
    $region21: #{autoencoder_forward.9} parent=5 // pred_check
      %p125 = pneg %p124
    $region22: #{autoencoder_forward.9} parent=5 // pred_check_branch
      %127 = sbr.rel (%p125) target = $region24
    $region23: #{autoencoder_forward.9} parent=5 // pred_region
      // Predicated region
      $region25: #{autoencoder_forward.9} parent=23 // pred_check
        %p128 = pneg %p29
      $region26: #{autoencoder_forward.9} parent=23 // pred_check_branch
        %130 = sbr.rel (%p128) target = $region28
      $region27: #{autoencoder_forward.9} parent=23 // pred_region
        %p131 = scmp.lt.s32.totalorder %s9, 1
        %s132 = scalar_select %p131, %s9, 1
        %s133 = smul.addr %s132, 48
        %s134 = smul.addr %s133, 8
        %s135 = scalar_lea.vmem %s0, %s134
      $region28: #{autoencoder_forward.9} parent=23 // pred_fallthru
        _
    $region24: #{autoencoder_forward.9} parent=5 // pred_fallthru
      _
    %p136 = scmp.le.s32.totalorder 1, %s9
    %p137 = scmp.lt.s32.totalorder %s9, 3
    %p138 = pnand %p136, %p137
    %p139 = pneg %p138
    // Predicated region
    $region29: #{autoencoder_forward.9} parent=5 // pred_check
      _
    $region30: #{autoencoder_forward.9} parent=5 // pred_check_branch
      %141 = sbr.rel (%p138) target = $region32
    $region31: #{autoencoder_forward.9} parent=5 // pred_region
      %s142 = ssub.s32 %s9, 1
      %p143 = scmp.lt.s32.totalorder %s14, 1
      %s144 = scalar_select %p143, %s14, 1
      %s145 = smul.addr %s144, 48
      %s146 = smul.addr %s145, 8
      %s147 = scalar_lea.vmem %s0, %s146
      %p148 = pneg %p35
      %p149 = pneg %p32
      %p150 = pneg %p56
      %p151 = pneg %p53
      %p152 = pneg %p77
      %p153 = pneg %p74
      %p154 = pneg %p103
      %p155 = pneg %p100
      %p156 = scmp.lt.s32.totalorder %s14, 1
      %s157 = scalar_select %p156, %s14, 1
      %s158 = smul.addr %s157, 16
      %s159 = smul.addr %s158, 8
      %s160 = scalar_lea.vmem %s3, %s159
      %p161 = scmp.lt.s32.totalorder %s14, 1
      %s162 = scalar_select %p161, %s14, 1
      %s163 = smul.addr %s162, 48
      %s164 = smul.addr %s163, 8
      %s165 = scalar_lea.vmem %s0, %s164
      %p166 = scmp.lt.s32.totalorder %s14, 1
      %s167 = scalar_select %p166, %s14, 1
      %s168 = smul.addr %s167, 16
      %s169 = smul.addr %s168, 8
      %s170 = scalar_lea.vmem %s3, %s169
      %v171 = vld [vmem:[%s165 + $0x1] sm:$0xff]
      %v172 = vld [vmem:[%s165 + $0x9] sm:$0xff]
      %v173 = vld [vmem:[%s165 + $0x19] sm:$0xff]
      %v174 = vld [vmem:[%s165 + $0x21] sm:$0xff]
      %v175 = vld [vmem:[%s165 + $0x31] sm:$0xff]
      %v176 = vld [vmem:[%s165 + $0x39] sm:$0xff]
      %v177 = vld [vmem:[%s165 + $0x49] sm:$0xff]
      %v178 = vld [vmem:[%s165 + $0x51] sm:$0xff]
      %v179 = vld [vmem:[%s165 + $0x61] sm:$0xff]
      %v180 = vld [vmem:[%s165 + $0x69] sm:$0xff]
      %v181 = vld [vmem:[%s165 + $0x79] sm:$0xff]
      %v182 = vld [vmem:[%s165 + $0x81] sm:$0xff]
      %v183 = vld [vmem:[%s165 + $0x91] sm:$0xff]
      %v184 = vld [vmem:[%s165 + $0x99] sm:$0xff]
      %v185 = vld [vmem:[%s165 + $0xa9] sm:$0xff]
      %v186 = vld [vmem:[%s165 + $0xb1] sm:$0xff]
      %v187 = vld [vmem:[%s165 + $0xc1] sm:$0xff]
      %v188 = vld [vmem:[%s165 + $0xc9] sm:$0xff]
      %v189 = vld [vmem:[%s165 + $0xd9] sm:$0xff]
      %v190 = vld [vmem:[%s165 + $0xe1] sm:$0xff]
      %v191 = vld [vmem:[%s165 + $0xf1] sm:$0xff]
      %v192 = vld [vmem:[%s165 + $0xf9] sm:$0xff]
      %v193 = vld [vmem:[%s165 + $0x109] sm:$0xff]
      %v194 = vld [vmem:[%s165 + $0x111] sm:$0xff]
      %v195 = vld [vmem:[%s165 + $0x121] sm:$0xff]
      %v196 = vld [vmem:[%s165 + $0x129] sm:$0xff]
      %v197 = vld [vmem:[%s165 + $0x139] sm:$0xff]
      %v198 = vld [vmem:[%s165 + $0x141] sm:$0xff]
      %v199 = vld [vmem:[%s165 + $0x151] sm:$0xff]
      %v200 = vld [vmem:[%s165 + $0x159] sm:$0xff]
      %v201 = vld [vmem:[%s165 + $0x169] sm:$0xff]
      %v202 = vld [vmem:[%s165 + $0x171] sm:$0xff]
      %v235 = vrot.slane %v171, 2
      %v236 = vrot.slane %v171, 4
      %v237 = vrot.slane %v171, 6
      %v238 = vrot.slane %v172, 2
      %v239 = vrot.slane %v172, 4
      %v240 = vrot.slane %v172, 6
      %v241 = vrot.slane %v173, 2
      %v242 = vrot.slane %v173, 4
      %v243 = vrot.slane %v173, 6
      %v244 = vrot.slane %v174, 2
      %v245 = vrot.slane %v174, 4
      %v246 = vrot.slane %v174, 6
      %v247 = vrot.slane %v175, 2
      %v248 = vrot.slane %v175, 4
      %v249 = vrot.slane %v175, 6
      %v250 = vrot.slane %v176, 2
      %v251 = vrot.slane %v176, 4
      %v252 = vrot.slane %v176, 6
      %v253 = vrot.slane %v177, 2
      %v254 = vrot.slane %v177, 4
      %v255 = vrot.slane %v177, 6
      %v256 = vrot.slane %v178, 2
      %v257 = vrot.slane %v178, 4
      %v258 = vrot.slane %v178, 6
      %v259 = vrot.slane %v179, 2
      %v260 = vrot.slane %v179, 4
      %v261 = vrot.slane %v179, 6
      %v262 = vrot.slane %v180, 2
      %v263 = vrot.slane %v180, 4
      %v264 = vrot.slane %v180, 6
      %v265 = vrot.slane %v181, 2
      %v266 = vrot.slane %v181, 4
      %v267 = vrot.slane %v181, 6
      %v268 = vrot.slane %v182, 2
      %v269 = vrot.slane %v182, 4
      %v270 = vrot.slane %v182, 6
      %v271 = vrot.slane %v183, 2
      %v272 = vrot.slane %v183, 4
      %v273 = vrot.slane %v183, 6
      %v274 = vrot.slane %v184, 2
      %v275 = vrot.slane %v184, 4
      %v276 = vrot.slane %v184, 6
      %v277 = vrot.slane %v185, 2
      %v278 = vrot.slane %v185, 4
      %v279 = vrot.slane %v185, 6
      %v280 = vrot.slane %v186, 2
      %v281 = vrot.slane %v186, 4
      %v282 = vrot.slane %v186, 6
      %v283 = vrot.slane %v187, 2
      %v284 = vrot.slane %v187, 4
      %v285 = vrot.slane %v187, 6
      %v286 = vrot.slane %v188, 2
      %v287 = vrot.slane %v188, 4
      %v288 = vrot.slane %v188, 6
      %v289 = vrot.slane %v189, 2
      %v290 = vrot.slane %v189, 4
      %v291 = vrot.slane %v189, 6
      %v292 = vrot.slane %v190, 2
      %v293 = vrot.slane %v190, 4
      %v294 = vrot.slane %v190, 6
      %v295 = vrot.slane %v191, 2
      %v296 = vrot.slane %v191, 4
      %v297 = vrot.slane %v191, 6
      %v298 = vrot.slane %v192, 2
      %v299 = vrot.slane %v192, 4
      %v300 = vrot.slane %v192, 6
      %v301 = vrot.slane %v193, 2
      %v302 = vrot.slane %v193, 4
      %v303 = vrot.slane %v193, 6
      %v304 = vrot.slane %v194, 2
      %v305 = vrot.slane %v194, 4
      %v306 = vrot.slane %v194, 6
      %v307 = vrot.slane %v195, 2
      %v308 = vrot.slane %v195, 4
      %v309 = vrot.slane %v195, 6
      %v310 = vrot.slane %v196, 2
      %v311 = vrot.slane %v196, 4
      %v312 = vrot.slane %v196, 6
      %v313 = vrot.slane %v197, 2
      %v314 = vrot.slane %v197, 4
      %v315 = vrot.slane %v197, 6
      %v316 = vrot.slane %v198, 2
      %v317 = vrot.slane %v198, 4
      %v318 = vrot.slane %v198, 6
      %v319 = vrot.slane %v199, 2
      %v320 = vrot.slane %v199, 4
      %v321 = vrot.slane %v199, 6
      %v322 = vrot.slane %v200, 2
      %v323 = vrot.slane %v200, 4
      %v324 = vrot.slane %v200, 6
      %v325 = vrot.slane %v201, 2
      %v326 = vrot.slane %v201, 4
      %v327 = vrot.slane %v201, 6
      %v328 = vrot.slane %v202, 2
      %v329 = vrot.slane %v202, 4
      %v330 = vrot.slane %v202, 6
      %vm427 = vcmask 140288
      %v428 = vsel %vm427, %v171, -inf
      %v429 = vrot.slane %v428, 4
      %v430 = vmax.f32 %v428, %v429
      %v431 = vrot.slane %v430, 2
      %v432 = vmax.f32 %v430, %v431
      %v433 = vrot.slane %v432, 1
      %v434 = vmax.f32 %v432, %v433
      %v435 = vsel %vm427, %v235, -inf
      %v436 = vrot.slane %v435, 4
      %v437 = vmax.f32 %v435, %v436
      %v438 = vrot.slane %v437, 2
      %v439 = vmax.f32 %v437, %v438
      %v440 = vrot.slane %v439, 1
      %v441 = vmax.f32 %v439, %v440
      %v442 = vsel %vm427, %v236, -inf
      %v443 = vrot.slane %v442, 4
      %v444 = vmax.f32 %v442, %v443
      %v445 = vrot.slane %v444, 2
      %v446 = vmax.f32 %v444, %v445
      %v447 = vrot.slane %v446, 1
      %v448 = vmax.f32 %v446, %v447
      %v449 = vsel %vm427, %v237, -inf
      %v450 = vrot.slane %v449, 4
      %v451 = vmax.f32 %v449, %v450
      %v452 = vrot.slane %v451, 2
      %v453 = vmax.f32 %v451, %v452
      %v454 = vrot.slane %v453, 1
      %v455 = vmax.f32 %v453, %v454
      %v456 = vsel %vm427, %v172, -inf
      %v457 = vrot.slane %v456, 4
      %v458 = vmax.f32 %v456, %v457
      %v459 = vrot.slane %v458, 2
      %v460 = vmax.f32 %v458, %v459
      %v461 = vrot.slane %v460, 1
      %v462 = vmax.f32 %v460, %v461
      %v463 = vsel %vm427, %v238, -inf
      %v464 = vrot.slane %v463, 4
      %v465 = vmax.f32 %v463, %v464
      %v466 = vrot.slane %v465, 2
      %v467 = vmax.f32 %v465, %v466
      %v468 = vrot.slane %v467, 1
      %v469 = vmax.f32 %v467, %v468
      %v470 = vsel %vm427, %v239, -inf
      %v471 = vrot.slane %v470, 4
      %v472 = vmax.f32 %v470, %v471
      %v473 = vrot.slane %v472, 2
      %v474 = vmax.f32 %v472, %v473
      %v475 = vrot.slane %v474, 1
      %v476 = vmax.f32 %v474, %v475
      %v477 = vsel %vm427, %v240, -inf
      %v478 = vrot.slane %v477, 4
      %v479 = vmax.f32 %v477, %v478
      %v480 = vrot.slane %v479, 2
      %v481 = vmax.f32 %v479, %v480
      %v482 = vrot.slane %v481, 1
      %v483 = vmax.f32 %v481, %v482
      %v484 = vsel %vm427, %v173, -inf
      %v485 = vrot.slane %v484, 4
      %v486 = vmax.f32 %v484, %v485
      %v487 = vrot.slane %v486, 2
      %v488 = vmax.f32 %v486, %v487
      %v489 = vrot.slane %v488, 1
      %v490 = vmax.f32 %v488, %v489
      %v491 = vsel %vm427, %v241, -inf
      %v492 = vrot.slane %v491, 4
      %v493 = vmax.f32 %v491, %v492
      %v494 = vrot.slane %v493, 2
      %v495 = vmax.f32 %v493, %v494
      %v496 = vrot.slane %v495, 1
      %v497 = vmax.f32 %v495, %v496
      %v498 = vsel %vm427, %v242, -inf
      %v499 = vrot.slane %v498, 4
      %v500 = vmax.f32 %v498, %v499
      %v501 = vrot.slane %v500, 2
      %v502 = vmax.f32 %v500, %v501
      %v503 = vrot.slane %v502, 1
      %v504 = vmax.f32 %v502, %v503
      %v505 = vsel %vm427, %v243, -inf
      %v506 = vrot.slane %v505, 4
      %v507 = vmax.f32 %v505, %v506
      %v508 = vrot.slane %v507, 2
      %v509 = vmax.f32 %v507, %v508
      %v510 = vrot.slane %v509, 1
      %v511 = vmax.f32 %v509, %v510
      %v512 = vsel %vm427, %v174, -inf
      %v513 = vrot.slane %v512, 4
      %v514 = vmax.f32 %v512, %v513
      %v515 = vrot.slane %v514, 2
      %v516 = vmax.f32 %v514, %v515
      %v517 = vrot.slane %v516, 1
      %v518 = vmax.f32 %v516, %v517
      %v519 = vsel %vm427, %v244, -inf
      %v520 = vrot.slane %v519, 4
      %v521 = vmax.f32 %v519, %v520
      %v522 = vrot.slane %v521, 2
      %v523 = vmax.f32 %v521, %v522
      %v524 = vrot.slane %v523, 1
      %v525 = vmax.f32 %v523, %v524
      %v526 = vsel %vm427, %v245, -inf
      %v527 = vrot.slane %v526, 4
      %v528 = vmax.f32 %v526, %v527
      %v529 = vrot.slane %v528, 2
      %v530 = vmax.f32 %v528, %v529
      %v531 = vrot.slane %v530, 1
      %v532 = vmax.f32 %v530, %v531
      %v533 = vsel %vm427, %v246, -inf
      %v534 = vrot.slane %v533, 4
      %v535 = vmax.f32 %v533, %v534
      %v536 = vrot.slane %v535, 2
      %v537 = vmax.f32 %v535, %v536
      %v538 = vrot.slane %v537, 1
      %v539 = vmax.f32 %v537, %v538
      %v540 = vsel %vm427, %v175, -inf
      %v541 = vrot.slane %v540, 4
      %v542 = vmax.f32 %v540, %v541
      %v543 = vrot.slane %v542, 2
      %v544 = vmax.f32 %v542, %v543
      %v545 = vrot.slane %v544, 1
      %v546 = vmax.f32 %v544, %v545
      %v547 = vsel %vm427, %v247, -inf
      %v548 = vrot.slane %v547, 4
      %v549 = vmax.f32 %v547, %v548
      %v550 = vrot.slane %v549, 2
      %v551 = vmax.f32 %v549, %v550
      %v552 = vrot.slane %v551, 1
      %v553 = vmax.f32 %v551, %v552
      %v554 = vsel %vm427, %v248, -inf
      %v555 = vrot.slane %v554, 4
      %v556 = vmax.f32 %v554, %v555
      %v557 = vrot.slane %v556, 2
      %v558 = vmax.f32 %v556, %v557
      %v559 = vrot.slane %v558, 1
      %v560 = vmax.f32 %v558, %v559
      %v561 = vsel %vm427, %v249, -inf
      %v562 = vrot.slane %v561, 4
      %v563 = vmax.f32 %v561, %v562
      %v564 = vrot.slane %v563, 2
      %v565 = vmax.f32 %v563, %v564
      %v566 = vrot.slane %v565, 1
      %v567 = vmax.f32 %v565, %v566
      %v568 = vsel %vm427, %v176, -inf
      %v569 = vrot.slane %v568, 4
      %v570 = vmax.f32 %v568, %v569
      %v571 = vrot.slane %v570, 2
      %v572 = vmax.f32 %v570, %v571
      %v573 = vrot.slane %v572, 1
      %v574 = vmax.f32 %v572, %v573
      %v575 = vsel %vm427, %v250, -inf
      %v576 = vrot.slane %v575, 4
      %v577 = vmax.f32 %v575, %v576
      %v578 = vrot.slane %v577, 2
      %v579 = vmax.f32 %v577, %v578
      %v580 = vrot.slane %v579, 1
      %v581 = vmax.f32 %v579, %v580
      %v582 = vsel %vm427, %v251, -inf
      %v583 = vrot.slane %v582, 4
      %v584 = vmax.f32 %v582, %v583
      %v585 = vrot.slane %v584, 2
      %v586 = vmax.f32 %v584, %v585
      %v587 = vrot.slane %v586, 1
      %v588 = vmax.f32 %v586, %v587
      %v589 = vsel %vm427, %v252, -inf
      %v590 = vrot.slane %v589, 4
      %v591 = vmax.f32 %v589, %v590
      %v592 = vrot.slane %v591, 2
      %v593 = vmax.f32 %v591, %v592
      %v594 = vrot.slane %v593, 1
      %v595 = vmax.f32 %v593, %v594
      %v596 = vsel %vm427, %v177, -inf
      %v597 = vrot.slane %v596, 4
      %v598 = vmax.f32 %v596, %v597
      %v599 = vrot.slane %v598, 2
      %v600 = vmax.f32 %v598, %v599
      %v601 = vrot.slane %v600, 1
      %v602 = vmax.f32 %v600, %v601
      %v603 = vsel %vm427, %v253, -inf
      %v604 = vrot.slane %v603, 4
      %v605 = vmax.f32 %v603, %v604
      %v606 = vrot.slane %v605, 2
      %v607 = vmax.f32 %v605, %v606
      %v608 = vrot.slane %v607, 1
      %v609 = vmax.f32 %v607, %v608
      %v610 = vsel %vm427, %v254, -inf
      %v611 = vrot.slane %v610, 4
      %v612 = vmax.f32 %v610, %v611
      %v613 = vrot.slane %v612, 2
      %v614 = vmax.f32 %v612, %v613
      %v615 = vrot.slane %v614, 1
      %v616 = vmax.f32 %v614, %v615
      %v617 = vsel %vm427, %v255, -inf
      %v618 = vrot.slane %v617, 4
      %v619 = vmax.f32 %v617, %v618
      %v620 = vrot.slane %v619, 2
      %v621 = vmax.f32 %v619, %v620
      %v622 = vrot.slane %v621, 1
      %v623 = vmax.f32 %v621, %v622
      %v624 = vsel %vm427, %v178, -inf
      %v625 = vrot.slane %v624, 4
      %v626 = vmax.f32 %v624, %v625
      %v627 = vrot.slane %v626, 2
      %v628 = vmax.f32 %v626, %v627
      %v629 = vrot.slane %v628, 1
      %v630 = vmax.f32 %v628, %v629
      %v631 = vsel %vm427, %v256, -inf
      %v632 = vrot.slane %v631, 4
      %v633 = vmax.f32 %v631, %v632
      %v634 = vrot.slane %v633, 2
      %v635 = vmax.f32 %v633, %v634
      %v636 = vrot.slane %v635, 1
      %v637 = vmax.f32 %v635, %v636
      %v638 = vsel %vm427, %v257, -inf
      %v639 = vrot.slane %v638, 4
      %v640 = vmax.f32 %v638, %v639
      %v641 = vrot.slane %v640, 2
      %v642 = vmax.f32 %v640, %v641
      %v643 = vrot.slane %v642, 1
      %v644 = vmax.f32 %v642, %v643
      %v645 = vsel %vm427, %v258, -inf
      %v646 = vrot.slane %v645, 4
      %v647 = vmax.f32 %v645, %v646
      %v648 = vrot.slane %v647, 2
      %v649 = vmax.f32 %v647, %v648
      %v650 = vrot.slane %v649, 1
      %v651 = vmax.f32 %v649, %v650
      %v652 = vsel %vm427, %v179, -inf
      %v653 = vrot.slane %v652, 4
      %v654 = vmax.f32 %v652, %v653
      %v655 = vrot.slane %v654, 2
      %v656 = vmax.f32 %v654, %v655
      %v657 = vrot.slane %v656, 1
      %v658 = vmax.f32 %v656, %v657
      %v659 = vsel %vm427, %v259, -inf
      %v660 = vrot.slane %v659, 4
      %v661 = vmax.f32 %v659, %v660
      %v662 = vrot.slane %v661, 2
      %v663 = vmax.f32 %v661, %v662
      %v664 = vrot.slane %v663, 1
      %v665 = vmax.f32 %v663, %v664
      %v666 = vsel %vm427, %v260, -inf
      %v667 = vrot.slane %v666, 4
      %v668 = vmax.f32 %v666, %v667
      %v669 = vrot.slane %v668, 2
      %v670 = vmax.f32 %v668, %v669
      %v671 = vrot.slane %v670, 1
      %v672 = vmax.f32 %v670, %v671
      %v673 = vsel %vm427, %v261, -inf
      %v674 = vrot.slane %v673, 4
      %v675 = vmax.f32 %v673, %v674
      %v676 = vrot.slane %v675, 2
      %v677 = vmax.f32 %v675, %v676
      %v678 = vrot.slane %v677, 1
      %v679 = vmax.f32 %v677, %v678
      %v680 = vsel %vm427, %v180, -inf
      %v681 = vrot.slane %v680, 4
      %v682 = vmax.f32 %v680, %v681
      %v683 = vrot.slane %v682, 2
      %v684 = vmax.f32 %v682, %v683
      %v685 = vrot.slane %v684, 1
      %v686 = vmax.f32 %v684, %v685
      %v687 = vsel %vm427, %v262, -inf
      %v688 = vrot.slane %v687, 4
      %v689 = vmax.f32 %v687, %v688
      %v690 = vrot.slane %v689, 2
      %v691 = vmax.f32 %v689, %v690
      %v692 = vrot.slane %v691, 1
      %v693 = vmax.f32 %v691, %v692
      %v694 = vsel %vm427, %v263, -inf
      %v695 = vrot.slane %v694, 4
      %v696 = vmax.f32 %v694, %v695
      %v697 = vrot.slane %v696, 2
      %v698 = vmax.f32 %v696, %v697
      %v699 = vrot.slane %v698, 1
      %v700 = vmax.f32 %v698, %v699
      %v701 = vsel %vm427, %v264, -inf
      %v702 = vrot.slane %v701, 4
      %v703 = vmax.f32 %v701, %v702
      %v704 = vrot.slane %v703, 2
      %v705 = vmax.f32 %v703, %v704
      %v706 = vrot.slane %v705, 1
      %v707 = vmax.f32 %v705, %v706
      %v708 = vsel %vm427, %v181, -inf
      %v709 = vrot.slane %v708, 4
      %v710 = vmax.f32 %v708, %v709
      %v711 = vrot.slane %v710, 2
      %v712 = vmax.f32 %v710, %v711
      %v713 = vrot.slane %v712, 1
      %v714 = vmax.f32 %v712, %v713
      %v715 = vsel %vm427, %v265, -inf
      %v716 = vrot.slane %v715, 4
      %v717 = vmax.f32 %v715, %v716
      %v718 = vrot.slane %v717, 2
      %v719 = vmax.f32 %v717, %v718
      %v720 = vrot.slane %v719, 1
      %v721 = vmax.f32 %v719, %v720
      %v722 = vsel %vm427, %v266, -inf
      %v723 = vrot.slane %v722, 4
      %v724 = vmax.f32 %v722, %v723
      %v725 = vrot.slane %v724, 2
      %v726 = vmax.f32 %v724, %v725
      %v727 = vrot.slane %v726, 1
      %v728 = vmax.f32 %v726, %v727
      %v729 = vsel %vm427, %v267, -inf
      %v730 = vrot.slane %v729, 4
      %v731 = vmax.f32 %v729, %v730
      %v732 = vrot.slane %v731, 2
      %v733 = vmax.f32 %v731, %v732
      %v734 = vrot.slane %v733, 1
      %v735 = vmax.f32 %v733, %v734
      %v736 = vsel %vm427, %v182, -inf
      %v737 = vrot.slane %v736, 4
      %v738 = vmax.f32 %v736, %v737
      %v739 = vrot.slane %v738, 2
      %v740 = vmax.f32 %v738, %v739
      %v741 = vrot.slane %v740, 1
      %v742 = vmax.f32 %v740, %v741
      %v743 = vsel %vm427, %v268, -inf
      %v744 = vrot.slane %v743, 4
      %v745 = vmax.f32 %v743, %v744
      %v746 = vrot.slane %v745, 2
      %v747 = vmax.f32 %v745, %v746
      %v748 = vrot.slane %v747, 1
      %v749 = vmax.f32 %v747, %v748
      %v750 = vsel %vm427, %v269, -inf
      %v751 = vrot.slane %v750, 4
      %v752 = vmax.f32 %v750, %v751
      %v753 = vrot.slane %v752, 2
      %v754 = vmax.f32 %v752, %v753
      %v755 = vrot.slane %v754, 1
      %v756 = vmax.f32 %v754, %v755
      %v757 = vsel %vm427, %v270, -inf
      %v758 = vrot.slane %v757, 4
      %v759 = vmax.f32 %v757, %v758
      %v760 = vrot.slane %v759, 2
      %v761 = vmax.f32 %v759, %v760
      %v762 = vrot.slane %v761, 1
      %v763 = vmax.f32 %v761, %v762
      %v764 = vsel %vm427, %v183, -inf
      %v765 = vrot.slane %v764, 4
      %v766 = vmax.f32 %v764, %v765
      %v767 = vrot.slane %v766, 2
      %v768 = vmax.f32 %v766, %v767
      %v769 = vrot.slane %v768, 1
      %v770 = vmax.f32 %v768, %v769
      %v771 = vsel %vm427, %v271, -inf
      %v772 = vrot.slane %v771, 4
      %v773 = vmax.f32 %v771, %v772
      %v774 = vrot.slane %v773, 2
      %v775 = vmax.f32 %v773, %v774
      %v776 = vrot.slane %v775, 1
      %v777 = vmax.f32 %v775, %v776
      %v778 = vsel %vm427, %v272, -inf
      %v779 = vrot.slane %v778, 4
      %v780 = vmax.f32 %v778, %v779
      %v781 = vrot.slane %v780, 2
      %v782 = vmax.f32 %v780, %v781
      %v783 = vrot.slane %v782, 1
      %v784 = vmax.f32 %v782, %v783
      %v785 = vsel %vm427, %v273, -inf
      %v786 = vrot.slane %v785, 4
      %v787 = vmax.f32 %v785, %v786
      %v788 = vrot.slane %v787, 2
      %v789 = vmax.f32 %v787, %v788
      %v790 = vrot.slane %v789, 1
      %v791 = vmax.f32 %v789, %v790
      %v792 = vsel %vm427, %v184, -inf
      %v793 = vrot.slane %v792, 4
      %v794 = vmax.f32 %v792, %v793
      %v795 = vrot.slane %v794, 2
      %v796 = vmax.f32 %v794, %v795
      %v797 = vrot.slane %v796, 1
      %v798 = vmax.f32 %v796, %v797
      %v799 = vsel %vm427, %v274, -inf
      %v800 = vrot.slane %v799, 4
      %v801 = vmax.f32 %v799, %v800
      %v802 = vrot.slane %v801, 2
      %v803 = vmax.f32 %v801, %v802
      %v804 = vrot.slane %v803, 1
      %v805 = vmax.f32 %v803, %v804
      %v806 = vsel %vm427, %v275, -inf
      %v807 = vrot.slane %v806, 4
      %v808 = vmax.f32 %v806, %v807
      %v809 = vrot.slane %v808, 2
      %v810 = vmax.f32 %v808, %v809
      %v811 = vrot.slane %v810, 1
      %v812 = vmax.f32 %v810, %v811
      %v813 = vsel %vm427, %v276, -inf
      %v814 = vrot.slane %v813, 4
      %v815 = vmax.f32 %v813, %v814
      %v816 = vrot.slane %v815, 2
      %v817 = vmax.f32 %v815, %v816
      %v818 = vrot.slane %v817, 1
      %v819 = vmax.f32 %v817, %v818
      %v820 = vsel %vm427, %v185, -inf
      %v821 = vrot.slane %v820, 4
      %v822 = vmax.f32 %v820, %v821
      %v823 = vrot.slane %v822, 2
      %v824 = vmax.f32 %v822, %v823
      %v825 = vrot.slane %v824, 1
      %v826 = vmax.f32 %v824, %v825
      %v827 = vsel %vm427, %v277, -inf
      %v828 = vrot.slane %v827, 4
      %v829 = vmax.f32 %v827, %v828
      %v830 = vrot.slane %v829, 2
      %v831 = vmax.f32 %v829, %v830
      %v832 = vrot.slane %v831, 1
      %v833 = vmax.f32 %v831, %v832
      %v834 = vsel %vm427, %v278, -inf
      %v835 = vrot.slane %v834, 4
      %v836 = vmax.f32 %v834, %v835
      %v837 = vrot.slane %v836, 2
      %v838 = vmax.f32 %v836, %v837
      %v839 = vrot.slane %v838, 1
      %v840 = vmax.f32 %v838, %v839
      %v841 = vsel %vm427, %v279, -inf
      %v842 = vrot.slane %v841, 4
      %v843 = vmax.f32 %v841, %v842
      %v844 = vrot.slane %v843, 2
      %v845 = vmax.f32 %v843, %v844
      %v846 = vrot.slane %v845, 1
      %v847 = vmax.f32 %v845, %v846
      %v848 = vsel %vm427, %v186, -inf
      %v849 = vrot.slane %v848, 4
      %v850 = vmax.f32 %v848, %v849
      %v851 = vrot.slane %v850, 2
      %v852 = vmax.f32 %v850, %v851
      %v853 = vrot.slane %v852, 1
      %v854 = vmax.f32 %v852, %v853
      %v855 = vsel %vm427, %v280, -inf
      %v856 = vrot.slane %v855, 4
      %v857 = vmax.f32 %v855, %v856
      %v858 = vrot.slane %v857, 2
      %v859 = vmax.f32 %v857, %v858
      %v860 = vrot.slane %v859, 1
      %v861 = vmax.f32 %v859, %v860
      %v862 = vsel %vm427, %v281, -inf
      %v863 = vrot.slane %v862, 4
      %v864 = vmax.f32 %v862, %v863
      %v865 = vrot.slane %v864, 2
      %v866 = vmax.f32 %v864, %v865
      %v867 = vrot.slane %v866, 1
      %v868 = vmax.f32 %v866, %v867
      %v869 = vsel %vm427, %v282, -inf
      %v870 = vrot.slane %v869, 4
      %v871 = vmax.f32 %v869, %v870
      %v872 = vrot.slane %v871, 2
      %v873 = vmax.f32 %v871, %v872
      %v874 = vrot.slane %v873, 1
      %v875 = vmax.f32 %v873, %v874
      %v876 = vsel %vm427, %v187, -inf
      %v877 = vrot.slane %v876, 4
      %v878 = vmax.f32 %v876, %v877
      %v879 = vrot.slane %v878, 2
      %v880 = vmax.f32 %v878, %v879
      %v881 = vrot.slane %v880, 1
      %v882 = vmax.f32 %v880, %v881
      %v883 = vsel %vm427, %v283, -inf
      %v884 = vrot.slane %v883, 4
      %v885 = vmax.f32 %v883, %v884
      %v886 = vrot.slane %v885, 2
      %v887 = vmax.f32 %v885, %v886
      %v888 = vrot.slane %v887, 1
      %v889 = vmax.f32 %v887, %v888
      %v890 = vsel %vm427, %v284, -inf
      %v891 = vrot.slane %v890, 4
      %v892 = vmax.f32 %v890, %v891
      %v893 = vrot.slane %v892, 2
      %v894 = vmax.f32 %v892, %v893
      %v895 = vrot.slane %v894, 1
      %v896 = vmax.f32 %v894, %v895
      %v897 = vsel %vm427, %v285, -inf
      %v898 = vrot.slane %v897, 4
      %v899 = vmax.f32 %v897, %v898
      %v900 = vrot.slane %v899, 2
      %v901 = vmax.f32 %v899, %v900
      %v902 = vrot.slane %v901, 1
      %v903 = vmax.f32 %v901, %v902
      %v904 = vsel %vm427, %v188, -inf
      %v905 = vrot.slane %v904, 4
      %v906 = vmax.f32 %v904, %v905
      %v907 = vrot.slane %v906, 2
      %v908 = vmax.f32 %v906, %v907
      %v909 = vrot.slane %v908, 1
      %v910 = vmax.f32 %v908, %v909
      %v911 = vsel %vm427, %v286, -inf
      %v912 = vrot.slane %v911, 4
      %v913 = vmax.f32 %v911, %v912
      %v914 = vrot.slane %v913, 2
      %v915 = vmax.f32 %v913, %v914
      %v916 = vrot.slane %v915, 1
      %v917 = vmax.f32 %v915, %v916
      %v918 = vsel %vm427, %v287, -inf
      %v919 = vrot.slane %v918, 4
      %v920 = vmax.f32 %v918, %v919
      %v921 = vrot.slane %v920, 2
      %v922 = vmax.f32 %v920, %v921
      %v923 = vrot.slane %v922, 1
      %v924 = vmax.f32 %v922, %v923
      %v925 = vsel %vm427, %v288, -inf
      %v926 = vrot.slane %v925, 4
      %v927 = vmax.f32 %v925, %v926
      %v928 = vrot.slane %v927, 2
      %v929 = vmax.f32 %v927, %v928
      %v930 = vrot.slane %v929, 1
      %v931 = vmax.f32 %v929, %v930
      %v932 = vsel %vm427, %v189, -inf
      %v933 = vrot.slane %v932, 4
      %v934 = vmax.f32 %v932, %v933
      %v935 = vrot.slane %v934, 2
      %v936 = vmax.f32 %v934, %v935
      %v937 = vrot.slane %v936, 1
      %v938 = vmax.f32 %v936, %v937
      %v939 = vsel %vm427, %v289, -inf
      %v940 = vrot.slane %v939, 4
      %v941 = vmax.f32 %v939, %v940
      %v942 = vrot.slane %v941, 2
      %v943 = vmax.f32 %v941, %v942
      %v944 = vrot.slane %v943, 1
      %v945 = vmax.f32 %v943, %v944
      %v946 = vsel %vm427, %v290, -inf
      %v947 = vrot.slane %v946, 4
      %v948 = vmax.f32 %v946, %v947
      %v949 = vrot.slane %v948, 2
      %v950 = vmax.f32 %v948, %v949
      %v951 = vrot.slane %v950, 1
      %v952 = vmax.f32 %v950, %v951
      %v953 = vsel %vm427, %v291, -inf
      %v954 = vrot.slane %v953, 4
      %v955 = vmax.f32 %v953, %v954
      %v956 = vrot.slane %v955, 2
      %v957 = vmax.f32 %v955, %v956
      %v958 = vrot.slane %v957, 1
      %v959 = vmax.f32 %v957, %v958
      %v960 = vsel %vm427, %v190, -inf
      %v961 = vrot.slane %v960, 4
      %v962 = vmax.f32 %v960, %v961
      %v963 = vrot.slane %v962, 2
      %v964 = vmax.f32 %v962, %v963
      %v965 = vrot.slane %v964, 1
      %v966 = vmax.f32 %v964, %v965
      %v967 = vsel %vm427, %v292, -inf
      %v968 = vrot.slane %v967, 4
      %v969 = vmax.f32 %v967, %v968
      %v970 = vrot.slane %v969, 2
      %v971 = vmax.f32 %v969, %v970
      %v972 = vrot.slane %v971, 1
      %v973 = vmax.f32 %v971, %v972
      %v974 = vsel %vm427, %v293, -inf
      %v975 = vrot.slane %v974, 4
      %v976 = vmax.f32 %v974, %v975
      %v977 = vrot.slane %v976, 2
      %v978 = vmax.f32 %v976, %v977
      %v979 = vrot.slane %v978, 1
      %v980 = vmax.f32 %v978, %v979
      %v981 = vsel %vm427, %v294, -inf
      %v982 = vrot.slane %v981, 4
      %v983 = vmax.f32 %v981, %v982
      %v984 = vrot.slane %v983, 2
      %v985 = vmax.f32 %v983, %v984
      %v986 = vrot.slane %v985, 1
      %v987 = vmax.f32 %v985, %v986
      %v988 = vsel %vm427, %v191, -inf
      %v989 = vrot.slane %v988, 4
      %v990 = vmax.f32 %v988, %v989
      %v991 = vrot.slane %v990, 2
      %v992 = vmax.f32 %v990, %v991
      %v993 = vrot.slane %v992, 1
      %v994 = vmax.f32 %v992, %v993
      %v995 = vsel %vm427, %v295, -inf
      %v996 = vrot.slane %v995, 4
      %v997 = vmax.f32 %v995, %v996
      %v998 = vrot.slane %v997, 2
      %v999 = vmax.f32 %v997, %v998
      %v1000 = vrot.slane %v999, 1
      %v1001 = vmax.f32 %v999, %v1000
      %v1002 = vsel %vm427, %v296, -inf
      %v1003 = vrot.slane %v1002, 4
      %v1004 = vmax.f32 %v1002, %v1003
      %v1005 = vrot.slane %v1004, 2
      %v1006 = vmax.f32 %v1004, %v1005
      %v1007 = vrot.slane %v1006, 1
      %v1008 = vmax.f32 %v1006, %v1007
      %v1009 = vsel %vm427, %v297, -inf
      %v1010 = vrot.slane %v1009, 4
      %v1011 = vmax.f32 %v1009, %v1010
      %v1012 = vrot.slane %v1011, 2
      %v1013 = vmax.f32 %v1011, %v1012
      %v1014 = vrot.slane %v1013, 1
      %v1015 = vmax.f32 %v1013, %v1014
      %v1016 = vsel %vm427, %v192, -inf
      %v1017 = vrot.slane %v1016, 4
      %v1018 = vmax.f32 %v1016, %v1017
      %v1019 = vrot.slane %v1018, 2
      %v1020 = vmax.f32 %v1018, %v1019
      %v1021 = vrot.slane %v1020, 1
      %v1022 = vmax.f32 %v1020, %v1021
      %v1023 = vsel %vm427, %v298, -inf
      %v1024 = vrot.slane %v1023, 4
      %v1025 = vmax.f32 %v1023, %v1024
      %v1026 = vrot.slane %v1025, 2
      %v1027 = vmax.f32 %v1025, %v1026
      %v1028 = vrot.slane %v1027, 1
      %v1029 = vmax.f32 %v1027, %v1028
      %v1030 = vsel %vm427, %v299, -inf
      %v1031 = vrot.slane %v1030, 4
      %v1032 = vmax.f32 %v1030, %v1031
      %v1033 = vrot.slane %v1032, 2
      %v1034 = vmax.f32 %v1032, %v1033
      %v1035 = vrot.slane %v1034, 1
      %v1036 = vmax.f32 %v1034, %v1035
      %v1037 = vsel %vm427, %v300, -inf
      %v1038 = vrot.slane %v1037, 4
      %v1039 = vmax.f32 %v1037, %v1038
      %v1040 = vrot.slane %v1039, 2
      %v1041 = vmax.f32 %v1039, %v1040
      %v1042 = vrot.slane %v1041, 1
      %v1043 = vmax.f32 %v1041, %v1042
      %v1044 = vsel %vm427, %v193, -inf
      %v1045 = vrot.slane %v1044, 4
      %v1046 = vmax.f32 %v1044, %v1045
      %v1047 = vrot.slane %v1046, 2
      %v1048 = vmax.f32 %v1046, %v1047
      %v1049 = vrot.slane %v1048, 1
      %v1050 = vmax.f32 %v1048, %v1049
      %v1051 = vsel %vm427, %v301, -inf
      %v1052 = vrot.slane %v1051, 4
      %v1053 = vmax.f32 %v1051, %v1052
      %v1054 = vrot.slane %v1053, 2
      %v1055 = vmax.f32 %v1053, %v1054
      %v1056 = vrot.slane %v1055, 1
      %v1057 = vmax.f32 %v1055, %v1056
      %v1058 = vsel %vm427, %v302, -inf
      %v1059 = vrot.slane %v1058, 4
      %v1060 = vmax.f32 %v1058, %v1059
      %v1061 = vrot.slane %v1060, 2
      %v1062 = vmax.f32 %v1060, %v1061
      %v1063 = vrot.slane %v1062, 1
      %v1064 = vmax.f32 %v1062, %v1063
      %v1065 = vsel %vm427, %v303, -inf
      %v1066 = vrot.slane %v1065, 4
      %v1067 = vmax.f32 %v1065, %v1066
      %v1068 = vrot.slane %v1067, 2
      %v1069 = vmax.f32 %v1067, %v1068
      %v1070 = vrot.slane %v1069, 1
      %v1071 = vmax.f32 %v1069, %v1070
      %v1072 = vsel %vm427, %v194, -inf
      %v1073 = vrot.slane %v1072, 4
      %v1074 = vmax.f32 %v1072, %v1073
      %v1075 = vrot.slane %v1074, 2
      %v1076 = vmax.f32 %v1074, %v1075
      %v1077 = vrot.slane %v1076, 1
      %v1078 = vmax.f32 %v1076, %v1077
      %v1079 = vsel %vm427, %v304, -inf
      %v1080 = vrot.slane %v1079, 4
      %v1081 = vmax.f32 %v1079, %v1080
      %v1082 = vrot.slane %v1081, 2
      %v1083 = vmax.f32 %v1081, %v1082
      %v1084 = vrot.slane %v1083, 1
      %v1085 = vmax.f32 %v1083, %v1084
      %v1086 = vsel %vm427, %v305, -inf
      %v1087 = vrot.slane %v1086, 4
      %v1088 = vmax.f32 %v1086, %v1087
      %v1089 = vrot.slane %v1088, 2
      %v1090 = vmax.f32 %v1088, %v1089
      %v1091 = vrot.slane %v1090, 1
      %v1092 = vmax.f32 %v1090, %v1091
      %v1093 = vsel %vm427, %v306, -inf
      %v1094 = vrot.slane %v1093, 4
      %v1095 = vmax.f32 %v1093, %v1094
      %v1096 = vrot.slane %v1095, 2
      %v1097 = vmax.f32 %v1095, %v1096
      %v1098 = vrot.slane %v1097, 1
      %v1099 = vmax.f32 %v1097, %v1098
      %v1100 = vsel %vm427, %v195, -inf
      %v1101 = vrot.slane %v1100, 4
      %v1102 = vmax.f32 %v1100, %v1101
      %v1103 = vrot.slane %v1102, 2
      %v1104 = vmax.f32 %v1102, %v1103
      %v1105 = vrot.slane %v1104, 1
      %v1106 = vmax.f32 %v1104, %v1105
      %v1107 = vsel %vm427, %v307, -inf
      %v1108 = vrot.slane %v1107, 4
      %v1109 = vmax.f32 %v1107, %v1108
      %v1110 = vrot.slane %v1109, 2
      %v1111 = vmax.f32 %v1109, %v1110
      %v1112 = vrot.slane %v1111, 1
      %v1113 = vmax.f32 %v1111, %v1112
      %v1114 = vsel %vm427, %v308, -inf
      %v1115 = vrot.slane %v1114, 4
      %v1116 = vmax.f32 %v1114, %v1115
      %v1117 = vrot.slane %v1116, 2
      %v1118 = vmax.f32 %v1116, %v1117
      %v1119 = vrot.slane %v1118, 1
      %v1120 = vmax.f32 %v1118, %v1119
      %v1121 = vsel %vm427, %v309, -inf
      %v1122 = vrot.slane %v1121, 4
      %v1123 = vmax.f32 %v1121, %v1122
      %v1124 = vrot.slane %v1123, 2
      %v1125 = vmax.f32 %v1123, %v1124
      %v1126 = vrot.slane %v1125, 1
      %v1127 = vmax.f32 %v1125, %v1126
      %v1128 = vsel %vm427, %v196, -inf
      %v1129 = vrot.slane %v1128, 4
      %v1130 = vmax.f32 %v1128, %v1129
      %v1131 = vrot.slane %v1130, 2
      %v1132 = vmax.f32 %v1130, %v1131
      %v1133 = vrot.slane %v1132, 1
      %v1134 = vmax.f32 %v1132, %v1133
      %v1135 = vsel %vm427, %v310, -inf
      %v1136 = vrot.slane %v1135, 4
      %v1137 = vmax.f32 %v1135, %v1136
      %v1138 = vrot.slane %v1137, 2
      %v1139 = vmax.f32 %v1137, %v1138
      %v1140 = vrot.slane %v1139, 1
      %v1141 = vmax.f32 %v1139, %v1140
      %v1142 = vsel %vm427, %v311, -inf
      %v1143 = vrot.slane %v1142, 4
      %v1144 = vmax.f32 %v1142, %v1143
      %v1145 = vrot.slane %v1144, 2
      %v1146 = vmax.f32 %v1144, %v1145
      %v1147 = vrot.slane %v1146, 1
      %v1148 = vmax.f32 %v1146, %v1147
      %v1149 = vsel %vm427, %v312, -inf
      %v1150 = vrot.slane %v1149, 4
      %v1151 = vmax.f32 %v1149, %v1150
      %v1152 = vrot.slane %v1151, 2
      %v1153 = vmax.f32 %v1151, %v1152
      %v1154 = vrot.slane %v1153, 1
      %v1155 = vmax.f32 %v1153, %v1154
      %v1156 = vsel %vm427, %v197, -inf
      %v1157 = vrot.slane %v1156, 4
      %v1158 = vmax.f32 %v1156, %v1157
      %v1159 = vrot.slane %v1158, 2
      %v1160 = vmax.f32 %v1158, %v1159
      %v1161 = vrot.slane %v1160, 1
      %v1162 = vmax.f32 %v1160, %v1161
      %v1163 = vsel %vm427, %v313, -inf
      %v1164 = vrot.slane %v1163, 4
      %v1165 = vmax.f32 %v1163, %v1164
      %v1166 = vrot.slane %v1165, 2
      %v1167 = vmax.f32 %v1165, %v1166
      %v1168 = vrot.slane %v1167, 1
      %v1169 = vmax.f32 %v1167, %v1168
      %v1170 = vsel %vm427, %v314, -inf
      %v1171 = vrot.slane %v1170, 4
      %v1172 = vmax.f32 %v1170, %v1171
      %v1173 = vrot.slane %v1172, 2
      %v1174 = vmax.f32 %v1172, %v1173
      %v1175 = vrot.slane %v1174, 1
      %v1176 = vmax.f32 %v1174, %v1175
      %v1177 = vsel %vm427, %v315, -inf
      %v1178 = vrot.slane %v1177, 4
      %v1179 = vmax.f32 %v1177, %v1178
      %v1180 = vrot.slane %v1179, 2
      %v1181 = vmax.f32 %v1179, %v1180
      %v1182 = vrot.slane %v1181, 1
      %v1183 = vmax.f32 %v1181, %v1182
      %v1184 = vsel %vm427, %v198, -inf
      %v1185 = vrot.slane %v1184, 4
      %v1186 = vmax.f32 %v1184, %v1185
      %v1187 = vrot.slane %v1186, 2
      %v1188 = vmax.f32 %v1186, %v1187
      %v1189 = vrot.slane %v1188, 1
      %v1190 = vmax.f32 %v1188, %v1189
      %v1191 = vsel %vm427, %v316, -inf
      %v1192 = vrot.slane %v1191, 4
      %v1193 = vmax.f32 %v1191, %v1192
      %v1194 = vrot.slane %v1193, 2
      %v1195 = vmax.f32 %v1193, %v1194
      %v1196 = vrot.slane %v1195, 1
      %v1197 = vmax.f32 %v1195, %v1196
      %v1198 = vsel %vm427, %v317, -inf
      %v1199 = vrot.slane %v1198, 4
      %v1200 = vmax.f32 %v1198, %v1199
      %v1201 = vrot.slane %v1200, 2
      %v1202 = vmax.f32 %v1200, %v1201
      %v1203 = vrot.slane %v1202, 1
      %v1204 = vmax.f32 %v1202, %v1203
      %v1205 = vsel %vm427, %v318, -inf
      %v1206 = vrot.slane %v1205, 4
      %v1207 = vmax.f32 %v1205, %v1206
      %v1208 = vrot.slane %v1207, 2
      %v1209 = vmax.f32 %v1207, %v1208
      %v1210 = vrot.slane %v1209, 1
      %v1211 = vmax.f32 %v1209, %v1210
      %v1212 = vsel %vm427, %v199, -inf
      %v1213 = vrot.slane %v1212, 4
      %v1214 = vmax.f32 %v1212, %v1213
      %v1215 = vrot.slane %v1214, 2
      %v1216 = vmax.f32 %v1214, %v1215
      %v1217 = vrot.slane %v1216, 1
      %v1218 = vmax.f32 %v1216, %v1217
      %v1219 = vsel %vm427, %v319, -inf
      %v1220 = vrot.slane %v1219, 4
      %v1221 = vmax.f32 %v1219, %v1220
      %v1222 = vrot.slane %v1221, 2
      %v1223 = vmax.f32 %v1221, %v1222
      %v1224 = vrot.slane %v1223, 1
      %v1225 = vmax.f32 %v1223, %v1224
      %v1226 = vsel %vm427, %v320, -inf
      %v1227 = vrot.slane %v1226, 4
      %v1228 = vmax.f32 %v1226, %v1227
      %v1229 = vrot.slane %v1228, 2
      %v1230 = vmax.f32 %v1228, %v1229
      %v1231 = vrot.slane %v1230, 1
      %v1232 = vmax.f32 %v1230, %v1231
      %v1233 = vsel %vm427, %v321, -inf
      %v1234 = vrot.slane %v1233, 4
      %v1235 = vmax.f32 %v1233, %v1234
      %v1236 = vrot.slane %v1235, 2
      %v1237 = vmax.f32 %v1235, %v1236
      %v1238 = vrot.slane %v1237, 1
      %v1239 = vmax.f32 %v1237, %v1238
      %v1240 = vsel %vm427, %v200, -inf
      %v1241 = vrot.slane %v1240, 4
      %v1242 = vmax.f32 %v1240, %v1241
      %v1243 = vrot.slane %v1242, 2
      %v1244 = vmax.f32 %v1242, %v1243
      %v1245 = vrot.slane %v1244, 1
      %v1246 = vmax.f32 %v1244, %v1245
      %v1247 = vsel %vm427, %v322, -inf
      %v1248 = vrot.slane %v1247, 4
      %v1249 = vmax.f32 %v1247, %v1248
      %v1250 = vrot.slane %v1249, 2
      %v1251 = vmax.f32 %v1249, %v1250
      %v1252 = vrot.slane %v1251, 1
      %v1253 = vmax.f32 %v1251, %v1252
      %v1254 = vsel %vm427, %v323, -inf
      %v1255 = vrot.slane %v1254, 4
      %v1256 = vmax.f32 %v1254, %v1255
      %v1257 = vrot.slane %v1256, 2
      %v1258 = vmax.f32 %v1256, %v1257
      %v1259 = vrot.slane %v1258, 1
      %v1260 = vmax.f32 %v1258, %v1259
      %v1261 = vsel %vm427, %v324, -inf
      %v1262 = vrot.slane %v1261, 4
      %v1263 = vmax.f32 %v1261, %v1262
      %v1264 = vrot.slane %v1263, 2
      %v1265 = vmax.f32 %v1263, %v1264
      %v1266 = vrot.slane %v1265, 1
      %v1267 = vmax.f32 %v1265, %v1266
      %v1268 = vsel %vm427, %v201, -inf
      %v1269 = vrot.slane %v1268, 4
      %v1270 = vmax.f32 %v1268, %v1269
      %v1271 = vrot.slane %v1270, 2
      %v1272 = vmax.f32 %v1270, %v1271
      %v1273 = vrot.slane %v1272, 1
      %v1274 = vmax.f32 %v1272, %v1273
      %v1275 = vsel %vm427, %v325, -inf
      %v1276 = vrot.slane %v1275, 4
      %v1277 = vmax.f32 %v1275, %v1276
      %v1278 = vrot.slane %v1277, 2
      %v1279 = vmax.f32 %v1277, %v1278
      %v1280 = vrot.slane %v1279, 1
      %v1281 = vmax.f32 %v1279, %v1280
      %v1282 = vsel %vm427, %v326, -inf
      %v1283 = vrot.slane %v1282, 4
      %v1284 = vmax.f32 %v1282, %v1283
      %v1285 = vrot.slane %v1284, 2
      %v1286 = vmax.f32 %v1284, %v1285
      %v1287 = vrot.slane %v1286, 1
      %v1288 = vmax.f32 %v1286, %v1287
      %v1289 = vsel %vm427, %v327, -inf
      %v1290 = vrot.slane %v1289, 4
      %v1291 = vmax.f32 %v1289, %v1290
      %v1292 = vrot.slane %v1291, 2
      %v1293 = vmax.f32 %v1291, %v1292
      %v1294 = vrot.slane %v1293, 1
      %v1295 = vmax.f32 %v1293, %v1294
      %v1296 = vsel %vm427, %v202, -inf
      %v1297 = vrot.slane %v1296, 4
      %v1298 = vmax.f32 %v1296, %v1297
      %v1299 = vrot.slane %v1298, 2
      %v1300 = vmax.f32 %v1298, %v1299
      %v1301 = vrot.slane %v1300, 1
      %v1302 = vmax.f32 %v1300, %v1301
      %v1303 = vsel %vm427, %v328, -inf
      %v1304 = vrot.slane %v1303, 4
      %v1305 = vmax.f32 %v1303, %v1304
      %v1306 = vrot.slane %v1305, 2
      %v1307 = vmax.f32 %v1305, %v1306
      %v1308 = vrot.slane %v1307, 1
      %v1309 = vmax.f32 %v1307, %v1308
      %v1310 = vsel %vm427, %v329, -inf
      %v1311 = vrot.slane %v1310, 4
      %v1312 = vmax.f32 %v1310, %v1311
      %v1313 = vrot.slane %v1312, 2
      %v1314 = vmax.f32 %v1312, %v1313
      %v1315 = vrot.slane %v1314, 1
      %v1316 = vmax.f32 %v1314, %v1315
      %v1317 = vsel %vm427, %v330, -inf
      %v1318 = vrot.slane %v1317, 4
      %v1319 = vmax.f32 %v1317, %v1318
      %v1320 = vrot.slane %v1319, 2
      %v1321 = vmax.f32 %v1319, %v1320
      %v1322 = vrot.slane %v1321, 1
      %v1323 = vmax.f32 %v1321, %v1322
      %v1324 = vld [vmem:[%s1] sm:$0xff]
      %v1325 = vld [vmem:[%s1 + $0x8] sm:$0xff]
      %v1326 = vld [vmem:[%s1 + $0x10] sm:$0x3]
      %vm1455 = vcmask 1041409
      %v1456 = vsel %vm1455, %v441, %v434
      %vm1457 = vcmask 1042434
      %v1458 = vsel %vm1457, %v448, %v1456
      %vm1459 = vcmask 1043459
      %v1460 = vsel %vm1459, %v455, %v1458
      %vm1461 = vcmask 1044484
      %v1462 = vsel %vm1461, %v462, %v1460
      %vm1463 = vcmask 1045509
      %v1464 = vsel %vm1463, %v469, %v1462
      %vm1465 = vcmask 1046534
      %v1466 = vsel %vm1465, %v476, %v1464
      %vm1467 = vcmask 1047559
      %v1468 = vsel %vm1467, %v483, %v1466
      %v1469 = vsel %vm1455, %v497, %v490
      %v1470 = vsel %vm1457, %v504, %v1469
      %v1471 = vsel %vm1459, %v511, %v1470
      %v1472 = vsel %vm1461, %v518, %v1471
      %v1473 = vsel %vm1463, %v525, %v1472
      %v1474 = vsel %vm1465, %v532, %v1473
      %v1475 = vsel %vm1467, %v539, %v1474
      %v1476 = vsel %vm1455, %v553, %v546
      %v1477 = vsel %vm1457, %v560, %v1476
      %v1478 = vsel %vm1459, %v567, %v1477
      %v1479 = vsel %vm1461, %v574, %v1478
      %v1480 = vsel %vm1463, %v581, %v1479
      %v1481 = vsel %vm1465, %v588, %v1480
      %v1482 = vsel %vm1467, %v595, %v1481
      %v1483 = vsel %vm1455, %v609, %v602
      %v1484 = vsel %vm1457, %v616, %v1483
      %v1485 = vsel %vm1459, %v623, %v1484
      %v1486 = vsel %vm1461, %v630, %v1485
      %v1487 = vsel %vm1463, %v637, %v1486
      %v1488 = vsel %vm1465, %v644, %v1487
      %v1489 = vsel %vm1467, %v651, %v1488
      %v1490 = vsel %vm1455, %v665, %v658
      %v1491 = vsel %vm1457, %v672, %v1490
      %v1492 = vsel %vm1459, %v679, %v1491
      %v1493 = vsel %vm1461, %v686, %v1492
      %v1494 = vsel %vm1463, %v693, %v1493
      %v1495 = vsel %vm1465, %v700, %v1494
      %v1496 = vsel %vm1467, %v707, %v1495
      %v1497 = vsel %vm1455, %v721, %v714
      %v1498 = vsel %vm1457, %v728, %v1497
      %v1499 = vsel %vm1459, %v735, %v1498
      %v1500 = vsel %vm1461, %v742, %v1499
      %v1501 = vsel %vm1463, %v749, %v1500
      %v1502 = vsel %vm1465, %v756, %v1501
      %v1503 = vsel %vm1467, %v763, %v1502
      %v1504 = vsel %vm1455, %v777, %v770
      %v1505 = vsel %vm1457, %v784, %v1504
      %v1506 = vsel %vm1459, %v791, %v1505
      %v1507 = vsel %vm1461, %v798, %v1506
      %v1508 = vsel %vm1463, %v805, %v1507
      %v1509 = vsel %vm1465, %v812, %v1508
      %v1510 = vsel %vm1467, %v819, %v1509
      %v1511 = vsel %vm1455, %v833, %v826
      %v1512 = vsel %vm1457, %v840, %v1511
      %v1513 = vsel %vm1459, %v847, %v1512
      %v1514 = vsel %vm1461, %v854, %v1513
      %v1515 = vsel %vm1463, %v861, %v1514
      %v1516 = vsel %vm1465, %v868, %v1515
      %v1517 = vsel %vm1467, %v875, %v1516
      %v1518 = vsel %vm1455, %v889, %v882
      %v1519 = vsel %vm1457, %v896, %v1518
      %v1520 = vsel %vm1459, %v903, %v1519
      %v1521 = vsel %vm1461, %v910, %v1520
      %v1522 = vsel %vm1463, %v917, %v1521
      %v1523 = vsel %vm1465, %v924, %v1522
      %v1524 = vsel %vm1467, %v931, %v1523
      %v1525 = vsel %vm1455, %v945, %v938
      %v1526 = vsel %vm1457, %v952, %v1525
      %v1527 = vsel %vm1459, %v959, %v1526
      %v1528 = vsel %vm1461, %v966, %v1527
      %v1529 = vsel %vm1463, %v973, %v1528
      %v1530 = vsel %vm1465, %v980, %v1529
      %v1531 = vsel %vm1467, %v987, %v1530
      %v1532 = vsel %vm1455, %v1001, %v994
      %v1533 = vsel %vm1457, %v1008, %v1532
      %v1534 = vsel %vm1459, %v1015, %v1533
      %v1535 = vsel %vm1461, %v1022, %v1534
      %v1536 = vsel %vm1463, %v1029, %v1535
      %v1537 = vsel %vm1465, %v1036, %v1536
      %v1538 = vsel %vm1467, %v1043, %v1537
      %v1539 = vsel %vm1455, %v1057, %v1050
      %v1540 = vsel %vm1457, %v1064, %v1539
      %v1541 = vsel %vm1459, %v1071, %v1540
      %v1542 = vsel %vm1461, %v1078, %v1541
      %v1543 = vsel %vm1463, %v1085, %v1542
      %v1544 = vsel %vm1465, %v1092, %v1543
      %v1545 = vsel %vm1467, %v1099, %v1544
      %v1546 = vsel %vm1455, %v1113, %v1106
      %v1547 = vsel %vm1457, %v1120, %v1546
      %v1548 = vsel %vm1459, %v1127, %v1547
      %v1549 = vsel %vm1461, %v1134, %v1548
      %v1550 = vsel %vm1463, %v1141, %v1549
      %v1551 = vsel %vm1465, %v1148, %v1550
      %v1552 = vsel %vm1467, %v1155, %v1551
      %v1553 = vsel %vm1455, %v1169, %v1162
      %v1554 = vsel %vm1457, %v1176, %v1553
      %v1555 = vsel %vm1459, %v1183, %v1554
      %v1556 = vsel %vm1461, %v1190, %v1555
      %v1557 = vsel %vm1463, %v1197, %v1556
      %v1558 = vsel %vm1465, %v1204, %v1557
      %v1559 = vsel %vm1467, %v1211, %v1558
      %v1560 = vsel %vm1455, %v1225, %v1218
      %v1561 = vsel %vm1457, %v1232, %v1560
      %v1562 = vsel %vm1459, %v1239, %v1561
      %v1563 = vsel %vm1461, %v1246, %v1562
      %v1564 = vsel %vm1463, %v1253, %v1563
      %v1565 = vsel %vm1465, %v1260, %v1564
      %v1566 = vsel %vm1467, %v1267, %v1565
      %v1567 = vsel %vm1455, %v1281, %v1274
      %v1568 = vsel %vm1457, %v1288, %v1567
      %v1569 = vsel %vm1459, %v1295, %v1568
      %v1570 = vsel %vm1461, %v1302, %v1569
      %v1571 = vsel %vm1463, %v1309, %v1570
      %v1572 = vsel %vm1465, %v1316, %v1571
      %v1573 = vsel %vm1467, %v1323, %v1572
      %vm1574 = vcmask 146432
      %v1575 = vsel %vm1574, %v1468, 0
      %v1577 = vsel %vm1574, %v1475, 0
      %v1579 = vsel %vm1574, %v1482, 0
      %v1581 = vsel %vm1574, %v1489, 0
      %v1583 = vsel %vm1574, %v1496, 0
      %v1585 = vsel %vm1574, %v1503, 0
      %v1587 = vsel %vm1574, %v1510, 0
      %v1589 = vsel %vm1574, %v1517, 0
      %v1591 = vsel %vm1574, %v1524, 0
      %v1593 = vsel %vm1574, %v1531, 0
      %v1595 = vsel %vm1574, %v1538, 0
      %v1597 = vsel %vm1574, %v1545, 0
      %v1599 = vsel %vm1574, %v1552, 0
      %v1601 = vsel %vm1574, %v1559, 0
      %v1603 = vsel %vm1574, %v1566, 0
      %v1605 = vsel %vm1574, %v1573, 0
      %vm1607 = vcmask 1041408
      %v1609 = vsel %vm1607, %v1326, 0
      %1611 = vmatpush.msra.mxu0 0.0
      %1612 = vmatpush.msra.mxu0 0.0
      %1613 = vmatpush.msra.mxu0 0.0
      %1614 = vmatpush.msra.mxu0 0.0
      %1615 = vmatpush.msra.mxu0 0.0
      %1616 = vmatpush.msra.mxu0 0.0
      %1617 = vmatpush.msra.mxu0 0.0
      %1618 = vmatpush.msra.mxu0 0.0
      %1619 = vmatpush.msra.mxu0 0.0
      %1620 = vmatpush.msra.mxu0 0.0
      %1621 = vmatpush.msra.mxu0 0.0
      %1622 = vmatpush.msra.mxu0 0.0
      %1623 = vmatpush.msra.mxu0 0.0
      %1624 = vmatpush.msra.mxu0 %v1609
      %1625 = vmatpush.msra.mxu0 %v1325
      %1626 = vmatpush.msra.mxu0 %v1324
      %1627 = vmatmul.f32.gmra.mxu0 %v1575
      %v1628 = vpop.f32.mrf.mxu0
      %v1629 = vadd.f32 0.0, %v1628
      %1630 = vmatmul.f32.gmra.mxu0 %v1577
      %v1631 = vpop.f32.mrf.mxu0
      %v1632 = vadd.f32 0.0, %v1631
      %1633 = vmatmul.f32.gmra.mxu0 %v1579
      %v1634 = vpop.f32.mrf.mxu0
      %v1635 = vadd.f32 0.0, %v1634
      %1636 = vmatmul.f32.gmra.mxu0 %v1581
      %v1637 = vpop.f32.mrf.mxu0
      %v1638 = vadd.f32 0.0, %v1637
      %1639 = vmatmul.f32.gmra.mxu0 %v1583
      %v1640 = vpop.f32.mrf.mxu0
      %v1641 = vadd.f32 0.0, %v1640
      %1642 = vmatmul.f32.gmra.mxu0 %v1585
      %v1643 = vpop.f32.mrf.mxu0
      %v1644 = vadd.f32 0.0, %v1643
      %1645 = vmatmul.f32.gmra.mxu0 %v1587
      %v1646 = vpop.f32.mrf.mxu0
      %v1647 = vadd.f32 0.0, %v1646
      %1648 = vmatmul.f32.gmra.mxu0 %v1589
      %v1649 = vpop.f32.mrf.mxu0
      %v1650 = vadd.f32 0.0, %v1649
      %1651 = vmatmul.f32.gmra.mxu0 %v1591
      %v1652 = vpop.f32.mrf.mxu0
      %v1653 = vadd.f32 0.0, %v1652
      %1654 = vmatmul.f32.gmra.mxu0 %v1593
      %v1655 = vpop.f32.mrf.mxu0
      %v1656 = vadd.f32 0.0, %v1655
      %1657 = vmatmul.f32.gmra.mxu0 %v1595
      %v1658 = vpop.f32.mrf.mxu0
      %v1659 = vadd.f32 0.0, %v1658
      %1660 = vmatmul.f32.gmra.mxu0 %v1597
      %v1661 = vpop.f32.mrf.mxu0
      %v1662 = vadd.f32 0.0, %v1661
      %1663 = vmatmul.f32.gmra.mxu0 %v1599
      %v1664 = vpop.f32.mrf.mxu0
      %v1665 = vadd.f32 0.0, %v1664
      %1666 = vmatmul.f32.gmra.mxu0 %v1601
      %v1667 = vpop.f32.mrf.mxu0
      %v1668 = vadd.f32 0.0, %v1667
      %1669 = vmatmul.f32.gmra.mxu0 %v1603
      %v1670 = vpop.f32.mrf.mxu0
      %v1671 = vadd.f32 0.0, %v1670
      %1672 = vmatmul.f32.gmra.mxu0 %v1605
      %v1673 = vpop.f32.mrf.mxu0
      %v1674 = vadd.f32 0.0, %v1673
      %1675 = vdwg.mxu0
      %v1676 = vld [vmem:[%s2] sm:$0xff]
      %v1677 = vld [vmem:[%s2 + $0x8] sm:$0xff]
      %v1678 = vld [vmem:[%s2 + $0x10] sm:$0x3]
      %v1680 = vsel %vm1607, %v1678, 0
      %1682 = vmatpush.msra.mxu0 0.0
      %1683 = vmatpush.msra.mxu0 0.0
      %1684 = vmatpush.msra.mxu0 0.0
      %1685 = vmatpush.msra.mxu0 0.0
      %1686 = vmatpush.msra.mxu0 0.0
      %1687 = vmatpush.msra.mxu0 0.0
      %1688 = vmatpush.msra.mxu0 0.0
      %1689 = vmatpush.msra.mxu0 0.0
      %1690 = vmatpush.msra.mxu0 0.0
      %1691 = vmatpush.msra.mxu0 0.0
      %1692 = vmatpush.msra.mxu0 0.0
      %1693 = vmatpush.msra.mxu0 0.0
      %1694 = vmatpush.msra.mxu0 0.0
      %1695 = vmatpush.msra.mxu0 %v1680
      %1696 = vmatpush.msra.mxu0 %v1677
      %1697 = vmatpush.msra.mxu0 %v1676
      %1698 = vmatmul.f32.gmra.mxu0 %v1575
      %v1699 = vpop.f32.mrf.mxu0
      %v1700 = vadd.f32 0.0, %v1699
      %1701 = vmatmul.f32.gmra.mxu0 %v1577
      %v1702 = vpop.f32.mrf.mxu0
      %v1703 = vadd.f32 0.0, %v1702
      %1704 = vmatmul.f32.gmra.mxu0 %v1579
      %v1705 = vpop.f32.mrf.mxu0
      %v1706 = vadd.f32 0.0, %v1705
      %1707 = vmatmul.f32.gmra.mxu0 %v1581
      %v1708 = vpop.f32.mrf.mxu0
      %v1709 = vadd.f32 0.0, %v1708
      %1710 = vmatmul.f32.gmra.mxu0 %v1583
      %v1711 = vpop.f32.mrf.mxu0
      %v1712 = vadd.f32 0.0, %v1711
      %1713 = vmatmul.f32.gmra.mxu0 %v1585
      %v1714 = vpop.f32.mrf.mxu0
      %v1715 = vadd.f32 0.0, %v1714
      %1716 = vmatmul.f32.gmra.mxu0 %v1587
      %v1717 = vpop.f32.mrf.mxu0
      %v1718 = vadd.f32 0.0, %v1717
      %1719 = vmatmul.f32.gmra.mxu0 %v1589
      %v1720 = vpop.f32.mrf.mxu0
      %v1721 = vadd.f32 0.0, %v1720
      %1722 = vmatmul.f32.gmra.mxu0 %v1591
      %v1723 = vpop.f32.mrf.mxu0
      %v1724 = vadd.f32 0.0, %v1723
      %1725 = vmatmul.f32.gmra.mxu0 %v1593
      %v1726 = vpop.f32.mrf.mxu0
      %v1727 = vadd.f32 0.0, %v1726
      %1728 = vmatmul.f32.gmra.mxu0 %v1595
      %v1729 = vpop.f32.mrf.mxu0
      %v1730 = vadd.f32 0.0, %v1729
      %1731 = vmatmul.f32.gmra.mxu0 %v1597
      %v1732 = vpop.f32.mrf.mxu0
      %v1733 = vadd.f32 0.0, %v1732
      %1734 = vmatmul.f32.gmra.mxu0 %v1599
      %v1735 = vpop.f32.mrf.mxu0
      %v1736 = vadd.f32 0.0, %v1735
      %1737 = vmatmul.f32.gmra.mxu0 %v1601
      %v1738 = vpop.f32.mrf.mxu0
      %v1739 = vadd.f32 0.0, %v1738
      %1740 = vmatmul.f32.gmra.mxu0 %v1603
      %v1741 = vpop.f32.mrf.mxu0
      %v1742 = vadd.f32 0.0, %v1741
      %1743 = vmatmul.f32.gmra.mxu0 %v1605
      %v1744 = vpop.f32.mrf.mxu0
      %v1745 = vadd.f32 0.0, %v1744
      %1746 = vdwg.mxu0
      %v1747 = vmax.f32 %v1629, %v1700
      %v1748 = vmax.f32 %v1632, %v1703
      %v1749 = vmax.f32 %v1635, %v1706
      %v1750 = vmax.f32 %v1638, %v1709
      %v1751 = vmax.f32 %v1641, %v1712
      %v1752 = vmax.f32 %v1644, %v1715
      %v1753 = vmax.f32 %v1647, %v1718
      %v1754 = vmax.f32 %v1650, %v1721
      %v1755 = vmax.f32 %v1653, %v1724
      %v1756 = vmax.f32 %v1656, %v1727
      %v1757 = vmax.f32 %v1659, %v1730
      %v1758 = vmax.f32 %v1662, %v1733
      %v1759 = vmax.f32 %v1665, %v1736
      %v1760 = vmax.f32 %v1668, %v1739
      %v1761 = vmax.f32 %v1671, %v1742
      %v1762 = vmax.f32 %v1674, %v1745
      %vm1763 = vcmask 64512
      %1764 = vst.msk [vmem:[%s170] sm:$0xff] %vm1763, %v1747
      %1765 = vst.msk [vmem:[%s170 + $0x8] sm:$0xff] %vm1763, %v1748
      %1766 = vst.msk [vmem:[%s170 + $0x10] sm:$0xff] %vm1763, %v1749
      %1767 = vst.msk [vmem:[%s170 + $0x18] sm:$0xff] %vm1763, %v1750
      %1768 = vst.msk [vmem:[%s170 + $0x20] sm:$0xff] %vm1763, %v1751
      %1769 = vst.msk [vmem:[%s170 + $0x28] sm:$0xff] %vm1763, %v1752
      %1770 = vst.msk [vmem:[%s170 + $0x30] sm:$0xff] %vm1763, %v1753
      %1771 = vst.msk [vmem:[%s170 + $0x38] sm:$0xff] %vm1763, %v1754
      %1772 = vst.msk [vmem:[%s170 + $0x40] sm:$0xff] %vm1763, %v1755
      %1773 = vst.msk [vmem:[%s170 + $0x48] sm:$0xff] %vm1763, %v1756
      %1774 = vst.msk [vmem:[%s170 + $0x50] sm:$0xff] %vm1763, %v1757
      %1775 = vst.msk [vmem:[%s170 + $0x58] sm:$0xff] %vm1763, %v1758
      %1776 = vst.msk [vmem:[%s170 + $0x60] sm:$0xff] %vm1763, %v1759
      %1777 = vst.msk [vmem:[%s170 + $0x68] sm:$0xff] %vm1763, %v1760
      %1778 = vst.msk [vmem:[%s170 + $0x70] sm:$0xff] %vm1763, %v1761
      %1779 = vst.msk [vmem:[%s170 + $0x78] sm:$0xff] %vm1763, %v1762
      %p1780 = scmp.lt.s32.totalorder %s14, 1
      %s1781 = scalar_select %p1780, %s14, 1
      %s1782 = smul.addr %s1781, 16
      %s1783 = smul.addr %s1782, 8
      %s1784 = scalar_lea.vmem %s3, %s1783
      // Predicated region
      $region33: #{autoencoder_forward.9} parent=31 // pred_check
        %p1785 = pneg %p100
      $region34: #{autoencoder_forward.9} parent=31 // pred_check_branch
        %1787 = sbr.rel (%p1785) target = $region36
      $region35: #{autoencoder_forward.9} parent=31 // pred_region
        _
      $region36: #{autoencoder_forward.9} parent=31 // pred_fallthru
        _
    $region32: #{autoencoder_forward.9} parent=5 // pred_fallthru
      _
    %p1788 = scmp.le.s32.totalorder 2, %s9
    // Predicated region
    $region37: #{autoencoder_forward.9} parent=5 // pred_check
      %p1789 = pneg %p1788
    $region38: #{autoencoder_forward.9} parent=5 // pred_check_branch
      %1791 = sbr.rel (%p1789) target = $region40
    $region39: #{autoencoder_forward.9} parent=5 // pred_region
      %s1792 = ssub.s32 %s9, 2
      // Predicated region
      $region41: #{autoencoder_forward.9} parent=39 // pred_check
        %p1793 = pneg %p106
      $region42: #{autoencoder_forward.9} parent=39 // pred_check_branch
        %1795 = sbr.rel (%p1793) target = $region44
      $region43: #{autoencoder_forward.9} parent=39 // pred_region
        %p1796 = scmp.lt.s32.totalorder %s15, 1
        %s1797 = scalar_select %p1796, %s15, 1
        %s1798 = smul.addr %s1797, 16
        %s1799 = smul.addr %s1798, 8
        %s1800 = scalar_lea.vmem %s3, %s1799
      $region44: #{autoencoder_forward.9} parent=39 // pred_fallthru
        _
    $region40: #{autoencoder_forward.9} parent=5 // pred_fallthru
      _
  $region6: #{autoencoder_forward.9} parent=0 // loop_footer
    %s13 = sadd.s32 1, %s9
  $region7: #{autoencoder_forward.9} parent=0 // loop_footer_branch
    %8 = sbr.rel target = $region3
  $region8: #{autoencoder_forward.9} parent=0 // loop_exit
    _

// kernel: autoencoder_forward.12
$region0: #{autoencoder_forward.12}
  #allocation0 [shape = 'u32[]', space=smem, size = 0x4, offset = 0x4, fixed_abs, tag = 'smem constant byte address 0x4 - core index']
  #allocation1 [shape = 'u32[72,128]{1,0:T(1,128)}', space=vmem, size = 0x9000, scoped, tag = 'internal scratch']
  %s0 = inlined_call_operand.vmem [shape: f32[2,16,64], index: 0, kind: input, shape index: {}]
  %s1 = inlined_call_operand.hbm [shape: f32[4,8,16], index: 1, kind: input, shape index: {}]
  %s2 = inlined_call_operand.vmem [shape: f32[8,1], index: 2, kind: input, shape index: {}]
  %s3 = inlined_call_operand.vmem [shape: f32[2,2,2,8,64], index: 3, kind: output, shape index: {}]
  %s4 = sld [smem:[#allocation0]]
  $region49: #{autoencoder_forward.12} parent=0
    _
  %s6 = ssub.s32 1, %s4
  %s7 = scalar_select 0, %s6, %s4
  $region1: #{autoencoder_forward.12} parent=0
    #allocation2 [shape = 'u8[16384]{0}', space=vmem, size = 0x4000, scoped, tag = 'input window, operand 1, single buffered']
    #allocation3 [shape = 's32[2]{0}', space=sflag, size = 0x8, scoped, tag = 'scoped memory for autoencoder_forward.12']
    %8 = vsyncpa [#allocation3], 0
    loop: start=0, step=1, limit=4
    $region2: #{autoencoder_forward.12} parent=1 // loop_pre_header
      _
    $region3: #{autoencoder_forward.12} parent=1 // loop_header
      %s10 = sphi 0, %s14
      %p11 = scmp.ge.s32.totalorder %s10, 4
      %s20 = sphi 0, %s22
      %s23 = sphi 0, %s20
      %s24 = sphi 0, %s23
      %s40 = sphi 0, %s24
      %s44 = sphi 0, %s44
      %s46 = sphi 0, %s44
      %s47 = sphi 0, %s46
      %s61 = sphi 0, %s47
      %s65 = sphi 0, %s65
      %s67 = sphi 0, %s65
      %s68 = sphi 0, %s67
      %s82 = sphi 0, %s68
      %s88 = sphi 0, %s90
      %s91 = sphi 0, %s88
      %s92 = sphi 0, %s91
      %s108 = sphi 0, %s92
    $region4: #{autoencoder_forward.12} parent=1 // loop_header_branch
      %13 = sbr.rel (%p11) target = $region8
    $region5: #{autoencoder_forward.12} parent=1 // loop_body
      %s15 = ssub.s32 %s10, 1
      %s16 = ssub.s32 %s10, 2
      %s17 = sadd.s32 %s10, 1
      %s18 = ssub.s32 %s10, %s17
      %p19 = scmp.eq.s32.totalorder %s18, 0
      %s21 = sadd.s32 %s20, 1
      %s22 = scalar_select %p19, %s20, %s21
      %p25 = pneg %p19
      %p26 = scmp.eq.s32.totalorder %s10, 1
      %p27 = por %p25, %p26
      %p28 = scmp.ne.s32.totalorder %s20, %s23
      %p29 = scmp.eq.s32.totalorder %s10, 0
      %p30 = por %p28, %p29
      %p31 = scmp.ne.s32.totalorder %s20, %s23
      %p32 = scmp.eq.s32.totalorder %s15, 1
      %p33 = por %p31, %p32
      %p34 = scmp.ne.s32.totalorder %s23, %s24
      %p35 = scmp.eq.s32.totalorder %s15, 0
      %p36 = por %p34, %p35
      %p37 = scmp.ne.s32.totalorder %s23, %s24
      %p38 = scmp.eq.s32.totalorder %s16, 1
      %p39 = por %p37, %p38
      %p41 = scmp.ne.s32.totalorder %s24, %s40
      %p42 = scmp.eq.s32.totalorder %s16, 0
      %p43 = por %p41, %p42
      %s45 = sadd.s32 %s44, 1
      %p48 = scmp.eq.s32.totalorder %s10, 1
      %p49 = scmp.ne.s32.totalorder %s44, %s46
      %p50 = scmp.eq.s32.totalorder %s10, 0
      %p51 = por %p49, %p50
      %p52 = scmp.ne.s32.totalorder %s44, %s46
      %p53 = scmp.eq.s32.totalorder %s15, 1
      %p54 = por %p52, %p53
      %p55 = scmp.ne.s32.totalorder %s46, %s47
      %p56 = scmp.eq.s32.totalorder %s15, 0
      %p57 = por %p55, %p56
      %p58 = scmp.ne.s32.totalorder %s46, %s47
      %p59 = scmp.eq.s32.totalorder %s16, 1
      %p60 = por %p58, %p59
      %p62 = scmp.ne.s32.totalorder %s47, %s61
      %p63 = scmp.eq.s32.totalorder %s16, 0
      %p64 = por %p62, %p63
      %s66 = sadd.s32 %s65, 1
      %p69 = scmp.eq.s32.totalorder %s10, 1
      %p70 = scmp.ne.s32.totalorder %s65, %s67
      %p71 = scmp.eq.s32.totalorder %s10, 0
      %p72 = por %p70, %p71
      %p73 = scmp.ne.s32.totalorder %s65, %s67
      %p74 = scmp.eq.s32.totalorder %s15, 1
      %p75 = por %p73, %p74
      %p76 = scmp.ne.s32.totalorder %s67, %s68
      %p77 = scmp.eq.s32.totalorder %s15, 0
      %p78 = por %p76, %p77
      %p79 = scmp.ne.s32.totalorder %s67, %s68
      %p80 = scmp.eq.s32.totalorder %s16, 1
      %p81 = por %p79, %p80
      %p83 = scmp.ne.s32.totalorder %s68, %s82
      %p84 = scmp.eq.s32.totalorder %s16, 0
      %p85 = por %p83, %p84
      %s86 = ssub.s32 %s10, %s17
      %p87 = scmp.eq.s32.totalorder %s86, 0
      %s89 = sadd.s32 %s88, 1
      %s90 = scalar_select %p87, %s88, %s89
      %p93 = pneg %p87
      %p94 = scmp.eq.s32.totalorder %s10, 1
      %p95 = por %p93, %p94
      %p96 = scmp.ne.s32.totalorder %s88, %s91
      %p97 = scmp.eq.s32.totalorder %s10, 0
      %p98 = por %p96, %p97
      %p99 = scmp.ne.s32.totalorder %s88, %s91
      %p100 = scmp.eq.s32.totalorder %s15, 1
      %p101 = por %p99, %p100
      %p102 = scmp.ne.s32.totalorder %s91, %s92
      %p103 = scmp.eq.s32.totalorder %s15, 0
      %p104 = por %p102, %p103
      %p105 = scmp.ne.s32.totalorder %s91, %s92
      %p106 = scmp.eq.s32.totalorder %s16, 1
      %p107 = por %p105, %p106
      %p109 = scmp.ne.s32.totalorder %s92, %s108
      %p110 = scmp.eq.s32.totalorder %s16, 0
      %p111 = por %p109, %p110
      %p112 = scmp.le.s32.totalorder 1, %s10
      %p113 = scmp.lt.s32.totalorder %s10, 3
      %p114 = pnand %p112, %p113
      %p115 = pneg %p114
      // Predicated region
      $region9: #{autoencoder_forward.12} parent=5 // pred_check
        _
      $region10: #{autoencoder_forward.12} parent=5 // pred_check_branch
        %117 = sbr.rel (%p114) target = $region12
      $region11: #{autoencoder_forward.12} parent=5 // pred_region
        %s118 = ssub.s32 %s10, 1
        // Predicated region
        $region13: #{autoencoder_forward.12} parent=11 // pred_check
          %p119 = pneg %p57
        $region14: #{autoencoder_forward.12} parent=11 // pred_check_branch
          %121 = sbr.rel (%p119) target = $region16
        $region15: #{autoencoder_forward.12} parent=11 // pred_region
          %123 = vsyncadd [#allocation3], 0
          %s124 = sshll.u32 %s1, 4
          %s125 = int_to_ptr.hbm [resolvable:$true] %s124
          %s126 = sshll.u32 [#allocation2], 4
          %s127 = int_to_ptr.vmem [resolvable:$true] %s126
          %132 = dma.hbm_to_vmem [thread:$0]  %s125, 512, %s127, [#allocation3], 128, 128, 8
        $region16: #{autoencoder_forward.12} parent=11 // pred_fallthru
          _
        // Predicated region
        $region17: #{autoencoder_forward.12} parent=11 // pred_check
          %p133 = pneg %p78
        $region18: #{autoencoder_forward.12} parent=11 // pred_check_branch
          %135 = sbr.rel (%p133) target = $region20
        $region19: #{autoencoder_forward.12} parent=11 // pred_region
          _
        $region20: #{autoencoder_forward.12} parent=11 // pred_fallthru
          _
      $region12: #{autoencoder_forward.12} parent=5 // pred_fallthru
        _
      %p136 = scmp.lt.s32.totalorder %s10, 2
      // Predicated region
      $region21: #{autoencoder_forward.12} parent=5 // pred_check
        %p137 = pneg %p136
      $region22: #{autoencoder_forward.12} parent=5 // pred_check_branch
        %139 = sbr.rel (%p137) target = $region24
      $region23: #{autoencoder_forward.12} parent=5 // pred_region
        // Predicated region
        $region25: #{autoencoder_forward.12} parent=23 // pred_check
          %p140 = pneg %p30
        $region26: #{autoencoder_forward.12} parent=23 // pred_check_branch
          %142 = sbr.rel (%p140) target = $region28
        $region27: #{autoencoder_forward.12} parent=23 // pred_region
          %p143 = scmp.lt.s32.totalorder %s10, 1
          %s144 = scalar_select %p143, %s10, 1
          %s145 = smul.addr %s144, 2
          %s146 = smul.addr %s145, 8
          %s147 = scalar_lea.vmem %s0, %s146
        $region28: #{autoencoder_forward.12} parent=23 // pred_fallthru
          _
      $region24: #{autoencoder_forward.12} parent=5 // pred_fallthru
        _
      %p148 = scmp.le.s32.totalorder 1, %s10
      %p149 = scmp.lt.s32.totalorder %s10, 3
      %p150 = pnand %p148, %p149
      %p151 = pneg %p150
      // Predicated region
      $region29: #{autoencoder_forward.12} parent=5 // pred_check
        _
      $region30: #{autoencoder_forward.12} parent=5 // pred_check_branch
        %153 = sbr.rel (%p150) target = $region32
      $region31: #{autoencoder_forward.12} parent=5 // pred_region
        %s154 = ssub.s32 %s10, 1
        // Predicated region
        $region33: #{autoencoder_forward.12} parent=31 // pred_check
          %p155 = pneg %p57
        $region34: #{autoencoder_forward.12} parent=31 // pred_check_branch
          %157 = sbr.rel (%p155) target = $region36
        $region35: #{autoencoder_forward.12} parent=31 // pred_region
          %159 = dma.done [#allocation3], 512
        $region36: #{autoencoder_forward.12} parent=31 // pred_fallthru
          _
        %p160 = scmp.lt.s32.totalorder %s15, 1
        %s161 = scalar_select %p160, %s15, 1
        %s162 = smul.addr %s161, 2
        %s163 = smul.addr %s162, 8
        %s164 = scalar_lea.vmem %s0, %s163
        %p165 = pneg %p36
        %p166 = pneg %p33
        %p167 = pneg %p57
        %p168 = pneg %p54
        %p169 = pneg %p78
        %p170 = pneg %p75
        %p171 = pneg %p104
        %p172 = pneg %p101
        %p173 = scmp.lt.s32.totalorder %s15, 1
        %s174 = scalar_select %p173, %s15, 1
        %s175 = smul.addr %s174, 4
        %s176 = smul.addr %s175, 8
        %s177 = scalar_lea.vmem %s3, %s176
        %p178 = scmp.lt.s32.totalorder %s15, 1
        %s179 = scalar_select %p178, %s15, 1
        %s180 = smul.addr %s179, 2
        %s181 = smul.addr %s180, 8
        %s182 = scalar_lea.vmem %s0, %s181
        %p183 = scmp.lt.s32.totalorder %s15, 1
        %s184 = scalar_select %p183, %s15, 1
        %s185 = smul.addr %s184, 4
        %s186 = smul.addr %s185, 8
        %s187 = scalar_lea.vmem %s3, %s186
        %v188 = vld [vmem:[#allocation2] sm:$0xff]
        %v189 = vld [vmem:[%s182] sm:$0xff]
        %v190 = vld [vmem:[%s182 + $0x8] sm:$0xff]
        %v191 = vld [vmem:[%s2] sm:$0xff]
        %193 = vset.pattern.permute.xlu0 0
        %194 = vperm.xlu0 %193, %v191
        %v195 = vpop.permute.xlu0 %194
        %vm197 = vcmask 130048
        %v199 = vsel %vm197, %v188, 0
        %201 = vmatpush.msra.mxu0 0.0
        %202 = vmatpush.msra.mxu0 0.0
        %203 = vmatpush.msra.mxu0 0.0
        %204 = vmatpush.msra.mxu0 0.0
        %205 = vmatpush.msra.mxu0 0.0
        %206 = vmatpush.msra.mxu0 0.0
        %207 = vmatpush.msra.mxu0 0.0
        %208 = vmatpush.msra.mxu0 0.0
        %209 = vmatpush.msra.mxu0 0.0
        %210 = vmatpush.msra.mxu0 0.0
        %211 = vmatpush.msra.mxu0 0.0
        %212 = vmatpush.msra.mxu0 0.0
        %213 = vmatpush.msra.mxu0 0.0
        %214 = vmatpush.msra.mxu0 0.0
        %215 = vmatpush.msra.mxu0 %v190
        %216 = vmatpush.msra.mxu0 %v189
        %217 = vmatmul.f32.gmra.mxu0 %v199
        %v218 = vpop.f32.mrf.mxu0
        %v219 = vadd.f32 %v195, %v218
        %220 = vdwg.mxu0
        %v221 = vmax.f32 %v219, 0.0
        %vm222 = vcmask 523264
        %223 = vst.msk [vmem:[%s187] sm:$0xff] %vm222, %v221
        %s224 = scalar_lea.vmem [#allocation2], 8
        %v225 = vld [vmem:[%s224] sm:$0xff]
        %v226 = vld [vmem:[%s182] sm:$0xff]
        %v227 = vld [vmem:[%s182 + $0x8] sm:$0xff]
        %v228 = vld [vmem:[%s2] sm:$0xff]
        %230 = vset.pattern.permute.xlu0 0
        %231 = vperm.xlu0 %230, %v228
        %v232 = vpop.permute.xlu0 %231
        %v235 = vsel %vm197, %v225, 0
        %237 = vmatpush.msra.mxu0 0.0
        %238 = vmatpush.msra.mxu0 0.0
        %239 = vmatpush.msra.mxu0 0.0
        %240 = vmatpush.msra.mxu0 0.0
        %241 = vmatpush.msra.mxu0 0.0
        %242 = vmatpush.msra.mxu0 0.0
        %243 = vmatpush.msra.mxu0 0.0
        %244 = vmatpush.msra.mxu0 0.0
        %245 = vmatpush.msra.mxu0 0.0
        %246 = vmatpush.msra.mxu0 0.0
        %247 = vmatpush.msra.mxu0 0.0
        %248 = vmatpush.msra.mxu0 0.0
        %249 = vmatpush.msra.mxu0 0.0
        %250 = vmatpush.msra.mxu0 0.0
        %251 = vmatpush.msra.mxu0 %v227
        %252 = vmatpush.msra.mxu0 %v226
        %253 = vmatmul.f32.gmra.mxu0 %v235
        %v254 = vpop.f32.mrf.mxu0
        %v255 = vadd.f32 %v232, %v254
        %256 = vdwg.mxu0
        %v257 = vmax.f32 %v255, 0.0
        %s258 = scalar_lea.vmem %s187, 8
        %259 = vst.msk [vmem:[%s258] sm:$0xff] %vm222, %v257
        %s260 = scalar_lea.vmem [#allocation2], 16
        %v261 = vld [vmem:[%s260] sm:$0xff]
        %v262 = vld [vmem:[%s182] sm:$0xff]
        %v263 = vld [vmem:[%s182 + $0x8] sm:$0xff]
        %v264 = vld [vmem:[%s2] sm:$0xff]
        %266 = vset.pattern.permute.xlu0 0
        %267 = vperm.xlu0 %266, %v264
        %v268 = vpop.permute.xlu0 %267
        %v271 = vsel %vm197, %v261, 0
        %273 = vmatpush.msra.mxu0 0.0
        %274 = vmatpush.msra.mxu0 0.0
        %275 = vmatpush.msra.mxu0 0.0
        %276 = vmatpush.msra.mxu0 0.0
        %277 = vmatpush.msra.mxu0 0.0
        %278 = vmatpush.msra.mxu0 0.0
        %279 = vmatpush.msra.mxu0 0.0
        %280 = vmatpush.msra.mxu0 0.0
        %281 = vmatpush.msra.mxu0 0.0
        %282 = vmatpush.msra.mxu0 0.0
        %283 = vmatpush.msra.mxu0 0.0
        %284 = vmatpush.msra.mxu0 0.0
        %285 = vmatpush.msra.mxu0 0.0
        %286 = vmatpush.msra.mxu0 0.0
        %287 = vmatpush.msra.mxu0 %v263
        %288 = vmatpush.msra.mxu0 %v262
        %289 = vmatmul.f32.gmra.mxu0 %v271
        %v290 = vpop.f32.mrf.mxu0
        %v291 = vadd.f32 %v268, %v290
        %292 = vdwg.mxu0
        %v293 = vmax.f32 %v291, 0.0
        %s294 = scalar_lea.vmem %s187, 16
        %295 = vst.msk [vmem:[%s294] sm:$0xff] %vm222, %v293
        %s296 = scalar_lea.vmem [#allocation2], 24
        %v297 = vld [vmem:[%s296] sm:$0xff]
        %v298 = vld [vmem:[%s182] sm:$0xff]
        %v299 = vld [vmem:[%s182 + $0x8] sm:$0xff]
        %v300 = vld [vmem:[%s2] sm:$0xff]
        %302 = vset.pattern.permute.xlu0 0
        %303 = vperm.xlu0 %302, %v300
        %v304 = vpop.permute.xlu0 %303
        %v307 = vsel %vm197, %v297, 0
        %309 = vmatpush.msra.mxu0 0.0
        %310 = vmatpush.msra.mxu0 0.0
        %311 = vmatpush.msra.mxu0 0.0
        %312 = vmatpush.msra.mxu0 0.0
        %313 = vmatpush.msra.mxu0 0.0
        %314 = vmatpush.msra.mxu0 0.0
        %315 = vmatpush.msra.mxu0 0.0
        %316 = vmatpush.msra.mxu0 0.0
        %317 = vmatpush.msra.mxu0 0.0
        %318 = vmatpush.msra.mxu0 0.0
        %319 = vmatpush.msra.mxu0 0.0
        %320 = vmatpush.msra.mxu0 0.0
        %321 = vmatpush.msra.mxu0 0.0
        %322 = vmatpush.msra.mxu0 0.0
        %323 = vmatpush.msra.mxu0 %v299
        %324 = vmatpush.msra.mxu0 %v298
        %325 = vmatmul.f32.gmra.mxu0 %v307
        %v326 = vpop.f32.mrf.mxu0
        %v327 = vadd.f32 %v304, %v326
        %328 = vdwg.mxu0
        %v329 = vmax.f32 %v327, 0.0
        %s330 = scalar_lea.vmem %s187, 24
        %331 = vst.msk [vmem:[%s330] sm:$0xff] %vm222, %v329
        %p332 = scmp.lt.s32.totalorder %s15, 1
        %s333 = scalar_select %p332, %s15, 1
        %s334 = smul.addr %s333, 4
        %s335 = smul.addr %s334, 8
        %s336 = scalar_lea.vmem %s3, %s335
        // Predicated region
        $region37: #{autoencoder_forward.12} parent=31 // pred_check
          %p337 = pneg %p101
        $region38: #{autoencoder_forward.12} parent=31 // pred_check_branch
          %339 = sbr.rel (%p337) target = $region40
        $region39: #{autoencoder_forward.12} parent=31 // pred_region
          _
        $region40: #{autoencoder_forward.12} parent=31 // pred_fallthru
          _
      $region32: #{autoencoder_forward.12} parent=5 // pred_fallthru
        _
      %p340 = scmp.le.s32.totalorder 2, %s10
      // Predicated region
      $region41: #{autoencoder_forward.12} parent=5 // pred_check
        %p341 = pneg %p340
      $region42: #{autoencoder_forward.12} parent=5 // pred_check_branch
        %343 = sbr.rel (%p341) target = $region44
      $region43: #{autoencoder_forward.12} parent=5 // pred_region
        %s344 = ssub.s32 %s10, 2
        // Predicated region
        $region45: #{autoencoder_forward.12} parent=43 // pred_check
          %p345 = pneg %p107
        $region46: #{autoencoder_forward.12} parent=43 // pred_check_branch
          %347 = sbr.rel (%p345) target = $region48
        $region47: #{autoencoder_forward.12} parent=43 // pred_region
          %p348 = scmp.lt.s32.totalorder %s16, 1
          %s349 = scalar_select %p348, %s16, 1
          %s350 = smul.addr %s349, 4
          %s351 = smul.addr %s350, 8
          %s352 = scalar_lea.vmem %s3, %s351
        $region48: #{autoencoder_forward.12} parent=43 // pred_fallthru
          _
      $region44: #{autoencoder_forward.12} parent=5 // pred_fallthru
        _
    $region6: #{autoencoder_forward.12} parent=1 // loop_footer
      %s14 = sadd.s32 1, %s10
    $region7: #{autoencoder_forward.12} parent=1 // loop_footer_branch
      %9 = sbr.rel target = $region3
    $region8: #{autoencoder_forward.12} parent=1 // loop_exit
      _
    %353 = vsyncpa [#allocation3], 1
    %s354 = scalar_lea.sflag [#allocation3], 1
    %355 = vsyncpa %s354, 1

// kernel: autoencoder_forward.10
$region0: #{autoencoder_forward.10}
  #allocation0 [shape = 'u32[]', space=smem, size = 0x4, offset = 0x4, fixed_abs, tag = 'smem constant byte address 0x4 - core index']
  #allocation1 [shape = 'u32[72,128]{1,0:T(1,128)}', space=vmem, size = 0x9000, scoped, tag = 'internal scratch']
  #allocation2 [shape = 'f32[2,512]{1,0:T(2,128)}', space=vmem, size = 0x1000, scoped, tag = 'scratch operand']
  %s0 = inlined_call_operand.vmem [shape: bf16[2,1024], index: 0, kind: input, shape index: {}]
  %s1 = inlined_call_operand.hbm [shape: bf16[1024,1024], index: 1, kind: input, shape index: {}]
  %s2 = inlined_call_operand.hbm [shape: f32[1,1024], index: 2, kind: input, shape index: {}]
  %s3 = inlined_call_operand.vmem [shape: f32[2,1024], index: 3, kind: output, shape index: {}]
  %s4 = sld [smem:[#allocation0]]
  $region61: #{autoencoder_forward.10} parent=0
    _
  %s6 = ssub.s32 1, %s4
  %s7 = scalar_select 0, %s6, %s4
  $region1: #{autoencoder_forward.10} parent=0
    #allocation3 [shape = 'u8[1048576]{0}', space=vmem, size = 0x100000, scoped, tag = 'input window, operand 1']
    #allocation4 [shape = 's32[2]{0}', space=sflag, size = 0x8, scoped, tag = 'scoped memory for autoencoder_forward.10']
    #allocation5 [shape = 'u8[4096]{0}', space=vmem, size = 0x1000, scoped, tag = 'input window, operand 2']
    #allocation6 [shape = 's32[2]{0}', space=sflag, size = 0x8, scoped, tag = 'scoped memory for autoencoder_forward.10']
    %8 = vsyncpa [#allocation4], 0
    %s9 = scalar_lea.sflag [#allocation4], 1
    %10 = vsyncpa %s9, 0
    %11 = vsyncpa [#allocation6], 0
    %s12 = scalar_lea.sflag [#allocation6], 1
    %13 = vsyncpa %s12, 0
    loop: start=0, step=1, limit=6
    $region2: #{autoencoder_forward.10} parent=1 // loop_pre_header
      _
    $region3: #{autoencoder_forward.10} parent=1 // loop_header
      %s15 = sphi 0, %s19
      %p16 = scmp.ge.s32.totalorder %s15, 6
      %s22 = sphi 0, %s41
      %s23 = sphi 0, %s37
      %s24 = sphi 0, %s33
      %s25 = sphi 0, %s22
      %s26 = sphi 0, %s23
      %s27 = sphi 0, %s24
      %s28 = sphi 0, %s25
      %s29 = sphi 0, %s26
      %s30 = sphi 0, %s27
      %s46 = sphi 0, %s48
      %s49 = sphi 0, %s46
      %s50 = sphi 0, %s49
      %s66 = sphi 0, %s50
      %s74 = sphi 0, %s76
      %s77 = sphi 0, %s74
      %s78 = sphi 0, %s77
      %s94 = sphi 0, %s78
      %s100 = sphi 0, %s102
      %s103 = sphi 0, %s100
      %s104 = sphi 0, %s103
      %s120 = sphi 0, %s104
      %s128 = sphi 0, %s130
      %s131 = sphi 0, %s128
      %s132 = sphi 0, %s131
      %s148 = sphi 0, %s132
    $region4: #{autoencoder_forward.10} parent=1 // loop_header_branch
      %18 = sbr.rel (%p16) target = $region8
    $region5: #{autoencoder_forward.10} parent=1 // loop_body
      %s20 = ssub.s32 %s15, 1
      %s21 = ssub.s32 %s15, 2
      %s31 = sadd.s32 1, %s24
      %p32 = scmp.ge.s32.totalorder %s31, 2
      %s33 = scalar_select %p32, 0, %s31
      %s34 = sadd.s32 1, %s23
      %s35 = scalar_select %p32, %s34, %s23
      %p36 = scmp.ge.s32.totalorder %s35, 2
      %s37 = scalar_select %p36, 0, %s35
      %s38 = sadd.s32 1, %s22
      %s39 = scalar_select %p36, %s38, %s22
      %p40 = scmp.ge.s32.totalorder %s39, 1
      %s41 = scalar_select %p40, 0, %s39
      %s42 = ssub.s32 %s22, %s41
      %s43 = ssub.s32 %s24, %s33
      %s44 = sor.u32 %s42, %s43
      %p45 = scmp.eq.s32.totalorder %s44, 0
      %s47 = sadd.s32 %s46, 1
      %s48 = scalar_select %p45, %s46, %s47
      %p51 = pneg %p45
      %p52 = scmp.eq.s32.totalorder %s15, 3
      %p53 = por %p51, %p52
      %p54 = scmp.ne.s32.totalorder %s46, %s49
      %p55 = scmp.eq.s32.totalorder %s15, 0
      %p56 = por %p54, %p55
      %p57 = scmp.ne.s32.totalorder %s46, %s49
      %p58 = scmp.eq.s32.totalorder %s20, 3
      %p59 = por %p57, %p58
      %p60 = scmp.ne.s32.totalorder %s49, %s50
      %p61 = scmp.eq.s32.totalorder %s20, 0
      %p62 = por %p60, %p61
      %p63 = scmp.ne.s32.totalorder %s49, %s50
      %p64 = scmp.eq.s32.totalorder %s21, 3
      %p65 = por %p63, %p64
      %p67 = scmp.ne.s32.totalorder %s50, %s66
      %p68 = scmp.eq.s32.totalorder %s21, 0
      %p69 = por %p67, %p68
      %s70 = ssub.s32 %s24, %s33
      %s71 = ssub.s32 %s23, %s37
      %s72 = sor.u32 %s70, %s71
      %p73 = scmp.eq.s32.totalorder %s72, 0
      %s75 = sadd.s32 %s74, 1
      %s76 = scalar_select %p73, %s74, %s75
      %p79 = pneg %p73
      %p80 = scmp.eq.s32.totalorder %s15, 3
      %p81 = por %p79, %p80
      %p82 = scmp.ne.s32.totalorder %s74, %s77
      %p83 = scmp.eq.s32.totalorder %s15, 0
      %p84 = por %p82, %p83
      %p85 = scmp.ne.s32.totalorder %s74, %s77
      %p86 = scmp.eq.s32.totalorder %s20, 3
      %p87 = por %p85, %p86
      %p88 = scmp.ne.s32.totalorder %s77, %s78
      %p89 = scmp.eq.s32.totalorder %s20, 0
      %p90 = por %p88, %p89
      %p91 = scmp.ne.s32.totalorder %s77, %s78
      %p92 = scmp.eq.s32.totalorder %s21, 3
      %p93 = por %p91, %p92
      %p95 = scmp.ne.s32.totalorder %s78, %s94
      %p96 = scmp.eq.s32.totalorder %s21, 0
      %p97 = por %p95, %p96
      %s98 = ssub.s32 %s23, %s37
      %p99 = scmp.eq.s32.totalorder %s98, 0
      %s101 = sadd.s32 %s100, 1
      %s102 = scalar_select %p99, %s100, %s101
      %p105 = pneg %p99
      %p106 = scmp.eq.s32.totalorder %s15, 3
      %p107 = por %p105, %p106
      %p108 = scmp.ne.s32.totalorder %s100, %s103
      %p109 = scmp.eq.s32.totalorder %s15, 0
      %p110 = por %p108, %p109
      %p111 = scmp.ne.s32.totalorder %s100, %s103
      %p112 = scmp.eq.s32.totalorder %s20, 3
      %p113 = por %p111, %p112
      %p114 = scmp.ne.s32.totalorder %s103, %s104
      %p115 = scmp.eq.s32.totalorder %s20, 0
      %p116 = por %p114, %p115
      %p117 = scmp.ne.s32.totalorder %s103, %s104
      %p118 = scmp.eq.s32.totalorder %s21, 3
      %p119 = por %p117, %p118
      %p121 = scmp.ne.s32.totalorder %s104, %s120
      %p122 = scmp.eq.s32.totalorder %s21, 0
      %p123 = por %p121, %p122
      %s124 = ssub.s32 %s22, %s41
      %s125 = ssub.s32 %s23, %s37
      %s126 = sor.u32 %s124, %s125
      %p127 = scmp.eq.s32.totalorder %s126, 0
      %s129 = sadd.s32 %s128, 1
      %s130 = scalar_select %p127, %s128, %s129
      %p133 = pneg %p127
      %p134 = scmp.eq.s32.totalorder %s15, 3
      %p135 = por %p133, %p134
      %p136 = scmp.ne.s32.totalorder %s128, %s131
      %p137 = scmp.eq.s32.totalorder %s15, 0
      %p138 = por %p136, %p137
      %p139 = scmp.ne.s32.totalorder %s128, %s131
      %p140 = scmp.eq.s32.totalorder %s20, 3
      %p141 = por %p139, %p140
      %p142 = scmp.ne.s32.totalorder %s131, %s132
      %p143 = scmp.eq.s32.totalorder %s20, 0
      %p144 = por %p142, %p143
      %p145 = scmp.ne.s32.totalorder %s131, %s132
      %p146 = scmp.eq.s32.totalorder %s21, 3
      %p147 = por %p145, %p146
      %p149 = scmp.ne.s32.totalorder %s132, %s148
      %p150 = scmp.eq.s32.totalorder %s21, 0
      %p151 = por %p149, %p150
      %p152 = scmp.le.s32.totalorder 1, %s15
      %p153 = scmp.lt.s32.totalorder %s15, 5
      %p154 = pnand %p152, %p153
      %p155 = pneg %p154
      // Predicated region
      $region9: #{autoencoder_forward.10} parent=5 // pred_check
        _
      $region10: #{autoencoder_forward.10} parent=5 // pred_check_branch
        %157 = sbr.rel (%p154) target = $region12
      $region11: #{autoencoder_forward.10} parent=5 // pred_region
        %s158 = ssub.s32 %s15, 1
      $region12: #{autoencoder_forward.10} parent=5 // pred_fallthru
        _
      %p159 = scmp.lt.s32.totalorder %s15, 4
      // Predicated region
      $region13: #{autoencoder_forward.10} parent=5 // pred_check
        %p160 = pneg %p159
      $region14: #{autoencoder_forward.10} parent=5 // pred_check_branch
        %162 = sbr.rel (%p160) target = $region16
      $region15: #{autoencoder_forward.10} parent=5 // pred_region
        // Predicated region
        $region17: #{autoencoder_forward.10} parent=15 // pred_check
          %p163 = pneg %p56
        $region18: #{autoencoder_forward.10} parent=15 // pred_check_branch
          %165 = sbr.rel (%p163) target = $region20
        $region19: #{autoencoder_forward.10} parent=15 // pred_region
          %s166 = smul.u32 4, %s24
          %p167 = scmp.lt.s32.totalorder %s22, 0
          %s168 = scalar_select %p167, %s22, 0
          %p169 = scmp.lt.s32.totalorder %s166, 7
          %s170 = scalar_select %p169, %s166, 7
          %s171 = smul.addr %s168, 8
          %s172 = sadd.s32 %s170, %s171
          %s173 = scalar_lea.vmem %s0, %s172
          %s174 = smul.u32 4, %s24
        $region20: #{autoencoder_forward.10} parent=15 // pred_fallthru
          _
        // Predicated region
        $region21: #{autoencoder_forward.10} parent=15 // pred_check
          %p175 = pneg %p84
        $region22: #{autoencoder_forward.10} parent=15 // pred_check_branch
          %177 = sbr.rel (%p175) target = $region24
        $region23: #{autoencoder_forward.10} parent=15 // pred_region
          %s178 = sand.u32 %s74, 1
          %s179 = scalar_lea.sflag [#allocation4], %s178
          %s180 = sand.u32 %s74, 1
          %s181 = smul.addr %s180, 1024
          %s182 = scalar_lea.vmem [#allocation3], %s181
          %s183 = smul.u32 64, %s24
          %s184 = smul.u32 4, %s23
          %186 = vsyncadd %s179, 0
          %s187 = smul.addr %s183, 8
          %s188 = sadd.s32 %s184, %s187
          %s189 = smul.addr %s188, 4
          %s190 = scalar_lea.hbm %s1, %s189
          %s191 = sshll.u32 %s190, 4
          %s192 = int_to_ptr.hbm [resolvable:$true] %s191
          %s193 = sshll.u32 %s182, 4
          %s194 = int_to_ptr.vmem [resolvable:$true] %s193
          %199 = dma.hbm_to_vmem [thread:$0]  %s192, 16384, %s194, %s179, 512, 256, 16
        $region24: #{autoencoder_forward.10} parent=15 // pred_fallthru
          _
        // Predicated region
        $region25: #{autoencoder_forward.10} parent=15 // pred_check
          %p200 = pneg %p110
        $region26: #{autoencoder_forward.10} parent=15 // pred_check_branch
          %202 = sbr.rel (%p200) target = $region28
        $region27: #{autoencoder_forward.10} parent=15 // pred_region
          %s203 = sand.u32 %s100, 1
          %s204 = scalar_lea.sflag [#allocation6], %s203
          %s205 = sand.u32 %s100, 1
          %s206 = smul.addr %s205, 4
          %s207 = scalar_lea.vmem [#allocation5], %s206
          %s208 = smul.u32 4, %s23
          %210 = vsyncadd %s204, 0
          %s211 = scalar_lea.hbm %s2, %s208
          %s213 = sshll.u32 %s211, 4
          %s214 = int_to_ptr.hbm [resolvable:$true] %s213
          %s215 = sshll.u32 %s207, 4
          %s216 = int_to_ptr.vmem [resolvable:$true] %s215
          %218 = dma.hbm_to_vmem [thread:$0]  %s214, 64, %s216, %s204
        $region28: #{autoencoder_forward.10} parent=15 // pred_fallthru
          _
      $region16: #{autoencoder_forward.10} parent=5 // pred_fallthru
        _
      %p219 = scmp.le.s32.totalorder 1, %s15
      %p220 = scmp.lt.s32.totalorder %s15, 5
      %p221 = pnand %p219, %p220
      %p222 = pneg %p221
      // Predicated region
      $region29: #{autoencoder_forward.10} parent=5 // pred_check
        _
      $region30: #{autoencoder_forward.10} parent=5 // pred_check_branch
        %224 = sbr.rel (%p221) target = $region32
      $region31: #{autoencoder_forward.10} parent=5 // pred_region
        %s225 = ssub.s32 %s15, 1
        %s226 = sand.u32 %s77, 1
        %s227 = scalar_lea.sflag [#allocation4], %s226
        %s228 = sand.u32 %s77, 1
        %s229 = smul.addr %s228, 1024
        %s230 = scalar_lea.vmem [#allocation3], %s229
        // Predicated region
        $region33: #{autoencoder_forward.10} parent=31 // pred_check
          %p231 = pneg %p90
        $region34: #{autoencoder_forward.10} parent=31 // pred_check_branch
          %233 = sbr.rel (%p231) target = $region36
        $region35: #{autoencoder_forward.10} parent=31 // pred_region
          %235 = dma.done %s227, 16384
        $region36: #{autoencoder_forward.10} parent=31 // pred_fallthru
          _
        %s236 = sand.u32 %s103, 1
        %s237 = scalar_lea.sflag [#allocation6], %s236
        %s238 = sand.u32 %s103, 1
        %s239 = smul.addr %s238, 4
        %s240 = scalar_lea.vmem [#allocation5], %s239
        // Predicated region
        $region37: #{autoencoder_forward.10} parent=31 // pred_check
          %p241 = pneg %p116
        $region38: #{autoencoder_forward.10} parent=31 // pred_check_branch
          %243 = sbr.rel (%p241) target = $region40
        $region39: #{autoencoder_forward.10} parent=31 // pred_region
          %245 = dma.done %s237, 64
        $region40: #{autoencoder_forward.10} parent=31 // pred_fallthru
          _
        %s246 = smul.u32 4, %s27
        %p247 = scmp.lt.s32.totalorder %s25, 0
        %s248 = scalar_select %p247, %s25, 0
        %p249 = scmp.lt.s32.totalorder %s246, 7
        %s250 = scalar_select %p249, %s246, 7
        %s251 = smul.addr %s248, 8
        %s252 = sadd.s32 %s250, %s251
        %s253 = scalar_lea.vmem %s0, %s252
        %p254 = pneg %p62
        %p255 = pneg %p59
        %s256 = sand.u32 %s77, 1
        %s257 = scalar_lea.sflag [#allocation4], %s256
        %s258 = sand.u32 %s77, 1
        %s259 = smul.addr %s258, 1024
        %s260 = scalar_lea.vmem [#allocation3], %s259
        %p261 = pneg %p90
        %p262 = pneg %p87
        %s263 = sand.u32 %s103, 1
        %s264 = scalar_lea.sflag [#allocation6], %s263
        %s265 = sand.u32 %s103, 1
        %s266 = smul.addr %s265, 4
        %s267 = scalar_lea.vmem [#allocation5], %s266
        %p268 = pneg %p116
        %p269 = pneg %p113
        %p270 = pneg %p144
        %p271 = pneg %p141
        %s272 = smul.u32 4, %s26
        %p273 = scmp.lt.s32.totalorder %s25, 0
        %s274 = scalar_select %p273, %s25, 0
        %p275 = scmp.lt.s32.totalorder %s272, 7
        %s276 = scalar_select %p275, %s272, 7
        %s277 = smul.addr %s274, 8
        %s278 = sadd.s32 %s276, %s277
        %s279 = smul.addr %s278, 2
        %s280 = scalar_lea.vmem %s3, %s279
        %s281 = smul.u32 4, %s27
        %p282 = scmp.lt.s32.totalorder %s25, 0
        %s283 = scalar_select %p282, %s25, 0
        %p284 = scmp.lt.s32.totalorder %s281, 7
        %s285 = scalar_select %p284, %s281, 7
        %s286 = smul.addr %s283, 8
        %s287 = sadd.s32 %s285, %s286
        %s288 = scalar_lea.vmem %s0, %s287
        %s289 = smul.u32 4, %s27
        %s290 = smul.u32 64, %s27
        %s291 = smul.u32 4, %s26
        %s292 = smul.u32 4, %s26
        %s293 = smul.u32 4, %s26
        %p294 = scmp.lt.s32.totalorder %s25, 0
        %s295 = scalar_select %p294, %s25, 0
        %p296 = scmp.lt.s32.totalorder %s293, 7
        %s297 = scalar_select %p296, %s293, 7
        %s298 = smul.addr %s295, 8
        %s299 = sadd.s32 %s297, %s298
        %s300 = smul.addr %s299, 2
        %s301 = scalar_lea.vmem %s3, %s300
        %s302 = smul.u32 4, %s26
        %p303 = scmp.eq.s32.totalorder %s27, 0
        // Predicated region
        $region41: #{autoencoder_forward.10} parent=31 // pred_check
          %p304 = pneg %p303
        $region42: #{autoencoder_forward.10} parent=31 // pred_check_branch
          %306 = sbr.rel (%p304) target = $region44
        $region43: #{autoencoder_forward.10} parent=31 // pred_region
          %307 = vst [vmem:[#allocation2] sm:$0xff] 0.0
        $region44: #{autoencoder_forward.10} parent=31 // pred_fallthru
          _
        %v308 = vld [vmem:[#allocation2] sm:$0xff]
        %v309 = vld [vmem:[%s288] sm:$0xf]
        %v310 = vld [vmem:[%s230] sm:$0xff]
        %v311 = vld [vmem:[%s230 + $0x8] sm:$0xff]
        %v312 = vld [vmem:[%s230 + $0x10] sm:$0xff]
        %v313 = vld [vmem:[%s230 + $0x18] sm:$0xff]
        %v314 = vld [vmem:[%s230 + $0x20] sm:$0xff]
        %v315 = vld [vmem:[%s230 + $0x28] sm:$0xff]
        %v316 = vld [vmem:[%s230 + $0x30] sm:$0xff]
        %v317 = vld [vmem:[%s230 + $0x38] sm:$0xff]
        %v318 = vld [vmem:[%s230 + $0x40] sm:$0xff]
        %v319 = vld [vmem:[%s230 + $0x48] sm:$0xff]
        %v320 = vld [vmem:[%s230 + $0x50] sm:$0xff]
        %v321 = vld [vmem:[%s230 + $0x58] sm:$0xff]
        %v322 = vld [vmem:[%s230 + $0x60] sm:$0xff]
        %v323 = vld [vmem:[%s230 + $0x68] sm:$0xff]
        %v324 = vld [vmem:[%s230 + $0x70] sm:$0xff]
        %v325 = vld [vmem:[%s230 + $0x78] sm:$0xff]
        %v326 = vld [vmem:[%s230 + $0x80] sm:$0xff]
        %v327 = vld [vmem:[%s230 + $0x88] sm:$0xff]
        %v328 = vld [vmem:[%s230 + $0x90] sm:$0xff]
        %v329 = vld [vmem:[%s230 + $0x98] sm:$0xff]
        %v330 = vld [vmem:[%s230 + $0xa0] sm:$0xff]
        %v331 = vld [vmem:[%s230 + $0xa8] sm:$0xff]
        %v332 = vld [vmem:[%s230 + $0xb0] sm:$0xff]
        %v333 = vld [vmem:[%s230 + $0xb8] sm:$0xff]
        %v334 = vld [vmem:[%s230 + $0xc0] sm:$0xff]
        %v335 = vld [vmem:[%s230 + $0xc8] sm:$0xff]
        %v336 = vld [vmem:[%s230 + $0xd0] sm:$0xff]
        %v337 = vld [vmem:[%s230 + $0xd8] sm:$0xff]
        %v338 = vld [vmem:[%s230 + $0xe0] sm:$0xff]
        %v339 = vld [vmem:[%s230 + $0xe8] sm:$0xff]
        %v340 = vld [vmem:[%s230 + $0xf0] sm:$0xff]
        %v341 = vld [vmem:[%s230 + $0xf8] sm:$0xff]
        %v342 = vld [vmem:[%s230 + $0x100] sm:$0xff]
        %v343 = vld [vmem:[%s230 + $0x108] sm:$0xff]
        %v344 = vld [vmem:[%s230 + $0x110] sm:$0xff]
        %v345 = vld [vmem:[%s230 + $0x118] sm:$0xff]
        %v346 = vld [vmem:[%s230 + $0x120] sm:$0xff]
        %v347 = vld [vmem:[%s230 + $0x128] sm:$0xff]
        %v348 = vld [vmem:[%s230 + $0x130] sm:$0xff]
        %v349 = vld [vmem:[%s230 + $0x138] sm:$0xff]
        %v350 = vld [vmem:[%s230 + $0x140] sm:$0xff]
        %v351 = vld [vmem:[%s230 + $0x148] sm:$0xff]
        %v352 = vld [vmem:[%s230 + $0x150] sm:$0xff]
        %v353 = vld [vmem:[%s230 + $0x158] sm:$0xff]
        %v354 = vld [vmem:[%s230 + $0x160] sm:$0xff]
        %v355 = vld [vmem:[%s230 + $0x168] sm:$0xff]
        %v356 = vld [vmem:[%s230 + $0x170] sm:$0xff]
        %v357 = vld [vmem:[%s230 + $0x178] sm:$0xff]
        %v358 = vld [vmem:[%s230 + $0x180] sm:$0xff]
        %v359 = vld [vmem:[%s230 + $0x188] sm:$0xff]
        %v360 = vld [vmem:[%s230 + $0x190] sm:$0xff]
        %v361 = vld [vmem:[%s230 + $0x198] sm:$0xff]
        %v362 = vld [vmem:[%s230 + $0x1a0] sm:$0xff]
        %v363 = vld [vmem:[%s230 + $0x1a8] sm:$0xff]
        %v364 = vld [vmem:[%s230 + $0x1b0] sm:$0xff]
        %v365 = vld [vmem:[%s230 + $0x1b8] sm:$0xff]
        %v366 = vld [vmem:[%s230 + $0x1c0] sm:$0xff]
        %v367 = vld [vmem:[%s230 + $0x1c8] sm:$0xff]
        %v368 = vld [vmem:[%s230 + $0x1d0] sm:$0xff]
        %v369 = vld [vmem:[%s230 + $0x1d8] sm:$0xff]
        %v370 = vld [vmem:[%s230 + $0x1e0] sm:$0xff]
        %v371 = vld [vmem:[%s230 + $0x1e8] sm:$0xff]
        %v372 = vld [vmem:[%s230 + $0x1f0] sm:$0xff]
        %v373 = vld [vmem:[%s230 + $0x1f8] sm:$0xff]
        %v374 = vld [vmem:[%s230 + $0x200] sm:$0xff]
        %v375 = vld [vmem:[%s230 + $0x208] sm:$0xff]
        %v376 = vld [vmem:[%s230 + $0x210] sm:$0xff]
        %v377 = vld [vmem:[%s230 + $0x218] sm:$0xff]
        %v378 = vld [vmem:[%s230 + $0x220] sm:$0xff]
        %v379 = vld [vmem:[%s230 + $0x228] sm:$0xff]
        %v380 = vld [vmem:[%s230 + $0x230] sm:$0xff]
        %v381 = vld [vmem:[%s230 + $0x238] sm:$0xff]
        %v382 = vld [vmem:[%s230 + $0x240] sm:$0xff]
        %v383 = vld [vmem:[%s230 + $0x248] sm:$0xff]
        %v384 = vld [vmem:[%s230 + $0x250] sm:$0xff]
        %v385 = vld [vmem:[%s230 + $0x258] sm:$0xff]
        %v386 = vld [vmem:[%s230 + $0x260] sm:$0xff]
        %v387 = vld [vmem:[%s230 + $0x268] sm:$0xff]
        %v388 = vld [vmem:[%s230 + $0x270] sm:$0xff]
        %v389 = vld [vmem:[%s230 + $0x278] sm:$0xff]
        %v390 = vld [vmem:[%s230 + $0x280] sm:$0xff]
        %v391 = vld [vmem:[%s230 + $0x288] sm:$0xff]
        %v392 = vld [vmem:[%s230 + $0x290] sm:$0xff]
        %v393 = vld [vmem:[%s230 + $0x298] sm:$0xff]
        %v394 = vld [vmem:[%s230 + $0x2a0] sm:$0xff]
        %v395 = vld [vmem:[%s230 + $0x2a8] sm:$0xff]
        %v396 = vld [vmem:[%s230 + $0x2b0] sm:$0xff]
        %v397 = vld [vmem:[%s230 + $0x2b8] sm:$0xff]
        %v398 = vld [vmem:[%s230 + $0x2c0] sm:$0xff]
        %v399 = vld [vmem:[%s230 + $0x2c8] sm:$0xff]
        %v400 = vld [vmem:[%s230 + $0x2d0] sm:$0xff]
        %v401 = vld [vmem:[%s230 + $0x2d8] sm:$0xff]
        %v402 = vld [vmem:[%s230 + $0x2e0] sm:$0xff]
        %v403 = vld [vmem:[%s230 + $0x2e8] sm:$0xff]
        %v404 = vld [vmem:[%s230 + $0x2f0] sm:$0xff]
        %v405 = vld [vmem:[%s230 + $0x2f8] sm:$0xff]
        %v406 = vld [vmem:[%s230 + $0x300] sm:$0xff]
        %v407 = vld [vmem:[%s230 + $0x308] sm:$0xff]
        %v408 = vld [vmem:[%s230 + $0x310] sm:$0xff]
        %v409 = vld [vmem:[%s230 + $0x318] sm:$0xff]
        %v410 = vld [vmem:[%s230 + $0x320] sm:$0xff]
        %v411 = vld [vmem:[%s230 + $0x328] sm:$0xff]
        %v412 = vld [vmem:[%s230 + $0x330] sm:$0xff]
        %v413 = vld [vmem:[%s230 + $0x338] sm:$0xff]
        %v414 = vld [vmem:[%s230 + $0x340] sm:$0xff]
        %v415 = vld [vmem:[%s230 + $0x348] sm:$0xff]
        %v416 = vld [vmem:[%s230 + $0x350] sm:$0xff]
        %v417 = vld [vmem:[%s230 + $0x358] sm:$0xff]
        %v418 = vld [vmem:[%s230 + $0x360] sm:$0xff]
        %v419 = vld [vmem:[%s230 + $0x368] sm:$0xff]
        %v420 = vld [vmem:[%s230 + $0x370] sm:$0xff]
        %v421 = vld [vmem:[%s230 + $0x378] sm:$0xff]
        %v422 = vld [vmem:[%s230 + $0x380] sm:$0xff]
        %v423 = vld [vmem:[%s230 + $0x388] sm:$0xff]
        %v424 = vld [vmem:[%s230 + $0x390] sm:$0xff]
        %v425 = vld [vmem:[%s230 + $0x398] sm:$0xff]
        %v426 = vld [vmem:[%s230 + $0x3a0] sm:$0xff]
        %v427 = vld [vmem:[%s230 + $0x3a8] sm:$0xff]
        %v428 = vld [vmem:[%s230 + $0x3b0] sm:$0xff]
        %v429 = vld [vmem:[%s230 + $0x3b8] sm:$0xff]
        %v430 = vld [vmem:[%s230 + $0x3c0] sm:$0xff]
        %v431 = vld [vmem:[%s230 + $0x3c8] sm:$0xff]
        %v432 = vld [vmem:[%s230 + $0x3d0] sm:$0xff]
        %v433 = vld [vmem:[%s230 + $0x3d8] sm:$0xff]
        %v434 = vld [vmem:[%s230 + $0x3e0] sm:$0xff]
        %v435 = vld [vmem:[%s230 + $0x3e8] sm:$0xff]
        %v436 = vld [vmem:[%s230 + $0x3f0] sm:$0xff]
        %v437 = vld [vmem:[%s230 + $0x3f8] sm:$0xff]
        %439 = vst [vmem:[#allocation1] ss:$9 sm:$0xff] %v309
        %v440 = vld [vmem:[#allocation1] sm:$0xff]
        %v441 = vld [vmem:[#allocation1 + $0x9] sm:$0xff]
        %v442 = vld [vmem:[#allocation1 + $0x12] sm:$0xff]
        %v443 = vld [vmem:[#allocation1 + $0x1b] sm:$0xff]
        %v576 = vunpack.c.l.b16 %v310
        %v577 = vunpack.c.h.b16 %v310
        %v578 = vunpack.c.l.b16 %v311
        %v579 = vunpack.c.h.b16 %v311
        %v580 = vunpack.c.l.b16 %v312
        %v581 = vunpack.c.h.b16 %v312
        %v582 = vunpack.c.l.b16 %v313
        %v583 = vunpack.c.h.b16 %v313
        %v584 = vunpack.c.l.b16 %v314
        %v585 = vunpack.c.h.b16 %v314
        %v586 = vunpack.c.l.b16 %v315
        %v587 = vunpack.c.h.b16 %v315
        %v588 = vunpack.c.l.b16 %v316
        %v589 = vunpack.c.h.b16 %v316
        %v590 = vunpack.c.l.b16 %v317
        %v591 = vunpack.c.h.b16 %v317
        %v592 = vunpack.c.l.b16 %v318
        %v593 = vunpack.c.h.b16 %v318
        %v594 = vunpack.c.l.b16 %v319
        %v595 = vunpack.c.h.b16 %v319
        %v596 = vunpack.c.l.b16 %v320
        %v597 = vunpack.c.h.b16 %v320
        %v598 = vunpack.c.l.b16 %v321
        %v599 = vunpack.c.h.b16 %v321
        %v600 = vunpack.c.l.b16 %v322
        %v601 = vunpack.c.h.b16 %v322
        %v602 = vunpack.c.l.b16 %v323
        %v603 = vunpack.c.h.b16 %v323
        %v604 = vunpack.c.l.b16 %v324
        %v605 = vunpack.c.h.b16 %v324
        %v606 = vunpack.c.l.b16 %v325
        %v607 = vunpack.c.h.b16 %v325
        %v608 = vunpack.c.l.b16 %v326
        %v609 = vunpack.c.h.b16 %v326
        %v610 = vunpack.c.l.b16 %v327
        %v611 = vunpack.c.h.b16 %v327
        %v612 = vunpack.c.l.b16 %v328
        %v613 = vunpack.c.h.b16 %v328
        %v614 = vunpack.c.l.b16 %v329
        %v615 = vunpack.c.h.b16 %v329
        %v616 = vunpack.c.l.b16 %v330
        %v617 = vunpack.c.h.b16 %v330
        %v618 = vunpack.c.l.b16 %v331
        %v619 = vunpack.c.h.b16 %v331
        %v620 = vunpack.c.l.b16 %v332
        %v621 = vunpack.c.h.b16 %v332
        %v622 = vunpack.c.l.b16 %v333
        %v623 = vunpack.c.h.b16 %v333
        %v624 = vunpack.c.l.b16 %v334
        %v625 = vunpack.c.h.b16 %v334
        %v626 = vunpack.c.l.b16 %v335
        %v627 = vunpack.c.h.b16 %v335
        %v628 = vunpack.c.l.b16 %v336
        %v629 = vunpack.c.h.b16 %v336
        %v630 = vunpack.c.l.b16 %v337
        %v631 = vunpack.c.h.b16 %v337
        %v632 = vunpack.c.l.b16 %v338
        %v633 = vunpack.c.h.b16 %v338
        %v634 = vunpack.c.l.b16 %v339
        %v635 = vunpack.c.h.b16 %v339
        %v636 = vunpack.c.l.b16 %v340
        %v637 = vunpack.c.h.b16 %v340
        %v638 = vunpack.c.l.b16 %v341
        %v639 = vunpack.c.h.b16 %v341
        %v640 = vunpack.c.l.b16 %v342
        %v641 = vunpack.c.h.b16 %v342
        %v642 = vunpack.c.l.b16 %v343
        %v643 = vunpack.c.h.b16 %v343
        %v644 = vunpack.c.l.b16 %v344
        %v645 = vunpack.c.h.b16 %v344
        %v646 = vunpack.c.l.b16 %v345
        %v647 = vunpack.c.h.b16 %v345
        %v648 = vunpack.c.l.b16 %v346
        %v649 = vunpack.c.h.b16 %v346
        %v650 = vunpack.c.l.b16 %v347
        %v651 = vunpack.c.h.b16 %v347
        %v652 = vunpack.c.l.b16 %v348
        %v653 = vunpack.c.h.b16 %v348
        %v654 = vunpack.c.l.b16 %v349
        %v655 = vunpack.c.h.b16 %v349
        %v656 = vunpack.c.l.b16 %v350
        %v657 = vunpack.c.h.b16 %v350
        %v658 = vunpack.c.l.b16 %v351
        %v659 = vunpack.c.h.b16 %v351
        %v660 = vunpack.c.l.b16 %v352
        %v661 = vunpack.c.h.b16 %v352
        %v662 = vunpack.c.l.b16 %v353
        %v663 = vunpack.c.h.b16 %v353
        %v664 = vunpack.c.l.b16 %v354
        %v665 = vunpack.c.h.b16 %v354
        %v666 = vunpack.c.l.b16 %v355
        %v667 = vunpack.c.h.b16 %v355
        %v668 = vunpack.c.l.b16 %v356
        %v669 = vunpack.c.h.b16 %v356
        %v670 = vunpack.c.l.b16 %v357
        %v671 = vunpack.c.h.b16 %v357
        %v672 = vunpack.c.l.b16 %v358
        %v673 = vunpack.c.h.b16 %v358
        %v674 = vunpack.c.l.b16 %v359
        %v675 = vunpack.c.h.b16 %v359
        %v676 = vunpack.c.l.b16 %v360
        %v677 = vunpack.c.h.b16 %v360
        %v678 = vunpack.c.l.b16 %v361
        %v679 = vunpack.c.h.b16 %v361
        %v680 = vunpack.c.l.b16 %v362
        %v681 = vunpack.c.h.b16 %v362
        %v682 = vunpack.c.l.b16 %v363
        %v683 = vunpack.c.h.b16 %v363
        %v684 = vunpack.c.l.b16 %v364
        %v685 = vunpack.c.h.b16 %v364
        %v686 = vunpack.c.l.b16 %v365
        %v687 = vunpack.c.h.b16 %v365
        %v688 = vunpack.c.l.b16 %v366
        %v689 = vunpack.c.h.b16 %v366
        %v690 = vunpack.c.l.b16 %v367
        %v691 = vunpack.c.h.b16 %v367
        %v692 = vunpack.c.l.b16 %v368
        %v693 = vunpack.c.h.b16 %v368
        %v694 = vunpack.c.l.b16 %v369
        %v695 = vunpack.c.h.b16 %v369
        %v696 = vunpack.c.l.b16 %v370
        %v697 = vunpack.c.h.b16 %v370
        %v698 = vunpack.c.l.b16 %v371
        %v699 = vunpack.c.h.b16 %v371
        %v700 = vunpack.c.l.b16 %v372
        %v701 = vunpack.c.h.b16 %v372
        %v702 = vunpack.c.l.b16 %v373
        %v703 = vunpack.c.h.b16 %v373
        %v704 = vunpack.c.l.b16 %v374
        %v705 = vunpack.c.h.b16 %v374
        %v706 = vunpack.c.l.b16 %v375
        %v707 = vunpack.c.h.b16 %v375
        %v708 = vunpack.c.l.b16 %v376
        %v709 = vunpack.c.h.b16 %v376
        %v710 = vunpack.c.l.b16 %v377
        %v711 = vunpack.c.h.b16 %v377
        %v712 = vunpack.c.l.b16 %v378
        %v713 = vunpack.c.h.b16 %v378
        %v714 = vunpack.c.l.b16 %v379
        %v715 = vunpack.c.h.b16 %v379
        %v716 = vunpack.c.l.b16 %v380
        %v717 = vunpack.c.h.b16 %v380
        %v718 = vunpack.c.l.b16 %v381
        %v719 = vunpack.c.h.b16 %v381
        %v720 = vunpack.c.l.b16 %v382
        %v721 = vunpack.c.h.b16 %v382
        %v722 = vunpack.c.l.b16 %v383
        %v723 = vunpack.c.h.b16 %v383
        %v724 = vunpack.c.l.b16 %v384
        %v725 = vunpack.c.h.b16 %v384
        %v726 = vunpack.c.l.b16 %v385
        %v727 = vunpack.c.h.b16 %v385
        %v728 = vunpack.c.l.b16 %v386
        %v729 = vunpack.c.h.b16 %v386
        %v730 = vunpack.c.l.b16 %v387
        %v731 = vunpack.c.h.b16 %v387
        %v732 = vunpack.c.l.b16 %v388
        %v733 = vunpack.c.h.b16 %v388
        %v734 = vunpack.c.l.b16 %v389
        %v735 = vunpack.c.h.b16 %v389
        %v736 = vunpack.c.l.b16 %v390
        %v737 = vunpack.c.h.b16 %v390
        %v738 = vunpack.c.l.b16 %v391
        %v739 = vunpack.c.h.b16 %v391
        %v740 = vunpack.c.l.b16 %v392
        %v741 = vunpack.c.h.b16 %v392
        %v742 = vunpack.c.l.b16 %v393
        %v743 = vunpack.c.h.b16 %v393
        %v744 = vunpack.c.l.b16 %v394
        %v745 = vunpack.c.h.b16 %v394
        %v746 = vunpack.c.l.b16 %v395
        %v747 = vunpack.c.h.b16 %v395
        %v748 = vunpack.c.l.b16 %v396
        %v749 = vunpack.c.h.b16 %v396
        %v750 = vunpack.c.l.b16 %v397
        %v751 = vunpack.c.h.b16 %v397
        %v752 = vunpack.c.l.b16 %v398
        %v753 = vunpack.c.h.b16 %v398
        %v754 = vunpack.c.l.b16 %v399
        %v755 = vunpack.c.h.b16 %v399
        %v756 = vunpack.c.l.b16 %v400
        %v757 = vunpack.c.h.b16 %v400
        %v758 = vunpack.c.l.b16 %v401
        %v759 = vunpack.c.h.b16 %v401
        %v760 = vunpack.c.l.b16 %v402
        %v761 = vunpack.c.h.b16 %v402
        %v762 = vunpack.c.l.b16 %v403
        %v763 = vunpack.c.h.b16 %v403
        %v764 = vunpack.c.l.b16 %v404
        %v765 = vunpack.c.h.b16 %v404
        %v766 = vunpack.c.l.b16 %v405
        %v767 = vunpack.c.h.b16 %v405
        %v768 = vunpack.c.l.b16 %v406
        %v769 = vunpack.c.h.b16 %v406
        %v770 = vunpack.c.l.b16 %v407
        %v771 = vunpack.c.h.b16 %v407
        %v772 = vunpack.c.l.b16 %v408
        %v773 = vunpack.c.h.b16 %v408
        %v774 = vunpack.c.l.b16 %v409
        %v775 = vunpack.c.h.b16 %v409
        %v776 = vunpack.c.l.b16 %v410
        %v777 = vunpack.c.h.b16 %v410
        %v778 = vunpack.c.l.b16 %v411
        %v779 = vunpack.c.h.b16 %v411
        %v780 = vunpack.c.l.b16 %v412
        %v781 = vunpack.c.h.b16 %v412
        %v782 = vunpack.c.l.b16 %v413
        %v783 = vunpack.c.h.b16 %v413
        %v784 = vunpack.c.l.b16 %v414
        %v785 = vunpack.c.h.b16 %v414
        %v786 = vunpack.c.l.b16 %v415
        %v787 = vunpack.c.h.b16 %v415
        %v788 = vunpack.c.l.b16 %v416
        %v789 = vunpack.c.h.b16 %v416
        %v790 = vunpack.c.l.b16 %v417
        %v791 = vunpack.c.h.b16 %v417
        %v792 = vunpack.c.l.b16 %v418
        %v793 = vunpack.c.h.b16 %v418
        %v794 = vunpack.c.l.b16 %v419
        %v795 = vunpack.c.h.b16 %v419
        %v796 = vunpack.c.l.b16 %v420
        %v797 = vunpack.c.h.b16 %v420
        %v798 = vunpack.c.l.b16 %v421
        %v799 = vunpack.c.h.b16 %v421
        %v800 = vunpack.c.l.b16 %v422
        %v801 = vunpack.c.h.b16 %v422
        %v802 = vunpack.c.l.b16 %v423
        %v803 = vunpack.c.h.b16 %v423
        %v804 = vunpack.c.l.b16 %v424
        %v805 = vunpack.c.h.b16 %v424
        %v806 = vunpack.c.l.b16 %v425
        %v807 = vunpack.c.h.b16 %v425
        %v808 = vunpack.c.l.b16 %v426
        %v809 = vunpack.c.h.b16 %v426
        %v810 = vunpack.c.l.b16 %v427
        %v811 = vunpack.c.h.b16 %v427
        %v812 = vunpack.c.l.b16 %v428
        %v813 = vunpack.c.h.b16 %v428
        %v814 = vunpack.c.l.b16 %v429
        %v815 = vunpack.c.h.b16 %v429
        %v816 = vunpack.c.l.b16 %v430
        %v817 = vunpack.c.h.b16 %v430
        %v818 = vunpack.c.l.b16 %v431
        %v819 = vunpack.c.h.b16 %v431
        %v820 = vunpack.c.l.b16 %v432
        %v821 = vunpack.c.h.b16 %v432
        %v822 = vunpack.c.l.b16 %v433
        %v823 = vunpack.c.h.b16 %v433
        %v824 = vunpack.c.l.b16 %v434
        %v825 = vunpack.c.h.b16 %v434
        %v826 = vunpack.c.l.b16 %v435
        %v827 = vunpack.c.h.b16 %v435
        %v828 = vunpack.c.l.b16 %v436
        %v829 = vunpack.c.h.b16 %v436
        %v830 = vunpack.c.l.b16 %v437
        %v831 = vunpack.c.h.b16 %v437
        %v832 = vpack.c.b16 %v580, %v576
        %v833 = vpack.c.b16 %v581, %v577
        %v834 = vpack.c.b16 %v582, %v578
        %v835 = vpack.c.b16 %v583, %v579
        %v836 = vpack.c.b16 %v588, %v584
        %v837 = vpack.c.b16 %v589, %v585
        %v838 = vpack.c.b16 %v590, %v586
        %v839 = vpack.c.b16 %v591, %v587
        %v840 = vpack.c.b16 %v596, %v592
        %v841 = vpack.c.b16 %v597, %v593
        %v842 = vpack.c.b16 %v598, %v594
        %v843 = vpack.c.b16 %v599, %v595
        %v844 = vpack.c.b16 %v604, %v600
        %v845 = vpack.c.b16 %v605, %v601
        %v846 = vpack.c.b16 %v606, %v602
        %v847 = vpack.c.b16 %v607, %v603
        %v848 = vpack.c.b16 %v612, %v608
        %v849 = vpack.c.b16 %v613, %v609
        %v850 = vpack.c.b16 %v614, %v610
        %v851 = vpack.c.b16 %v615, %v611
        %v852 = vpack.c.b16 %v620, %v616
        %v853 = vpack.c.b16 %v621, %v617
        %v854 = vpack.c.b16 %v622, %v618
        %v855 = vpack.c.b16 %v623, %v619
        %v856 = vpack.c.b16 %v628, %v624
        %v857 = vpack.c.b16 %v629, %v625
        %v858 = vpack.c.b16 %v630, %v626
        %v859 = vpack.c.b16 %v631, %v627
        %v860 = vpack.c.b16 %v636, %v632
        %v861 = vpack.c.b16 %v637, %v633
        %v862 = vpack.c.b16 %v638, %v634
        %v863 = vpack.c.b16 %v639, %v635
        %v864 = vpack.c.b16 %v644, %v640
        %v865 = vpack.c.b16 %v645, %v641
        %v866 = vpack.c.b16 %v646, %v642
        %v867 = vpack.c.b16 %v647, %v643
        %v868 = vpack.c.b16 %v652, %v648
        %v869 = vpack.c.b16 %v653, %v649
        %v870 = vpack.c.b16 %v654, %v650
        %v871 = vpack.c.b16 %v655, %v651
        %v872 = vpack.c.b16 %v660, %v656
        %v873 = vpack.c.b16 %v661, %v657
        %v874 = vpack.c.b16 %v662, %v658
        %v875 = vpack.c.b16 %v663, %v659
        %v876 = vpack.c.b16 %v668, %v664
        %v877 = vpack.c.b16 %v669, %v665
        %v878 = vpack.c.b16 %v670, %v666
        %v879 = vpack.c.b16 %v671, %v667
        %v880 = vpack.c.b16 %v676, %v672
        %v881 = vpack.c.b16 %v677, %v673
        %v882 = vpack.c.b16 %v678, %v674
        %v883 = vpack.c.b16 %v679, %v675
        %v884 = vpack.c.b16 %v684, %v680
        %v885 = vpack.c.b16 %v685, %v681
        %v886 = vpack.c.b16 %v686, %v682
        %v887 = vpack.c.b16 %v687, %v683
        %v888 = vpack.c.b16 %v692, %v688
        %v889 = vpack.c.b16 %v693, %v689
        %v890 = vpack.c.b16 %v694, %v690
        %v891 = vpack.c.b16 %v695, %v691
        %v892 = vpack.c.b16 %v700, %v696
        %v893 = vpack.c.b16 %v701, %v697
        %v894 = vpack.c.b16 %v702, %v698
        %v895 = vpack.c.b16 %v703, %v699
        %v896 = vpack.c.b16 %v708, %v704
        %v897 = vpack.c.b16 %v709, %v705
        %v898 = vpack.c.b16 %v710, %v706
        %v899 = vpack.c.b16 %v711, %v707
        %v900 = vpack.c.b16 %v716, %v712
        %v901 = vpack.c.b16 %v717, %v713
        %v902 = vpack.c.b16 %v718, %v714
        %v903 = vpack.c.b16 %v719, %v715
        %v904 = vpack.c.b16 %v724, %v720
        %v905 = vpack.c.b16 %v725, %v721
        %v906 = vpack.c.b16 %v726, %v722
        %v907 = vpack.c.b16 %v727, %v723
        %v908 = vpack.c.b16 %v732, %v728
        %v909 = vpack.c.b16 %v733, %v729
        %v910 = vpack.c.b16 %v734, %v730
        %v911 = vpack.c.b16 %v735, %v731
        %v912 = vpack.c.b16 %v740, %v736
        %v913 = vpack.c.b16 %v741, %v737
        %v914 = vpack.c.b16 %v742, %v738
        %v915 = vpack.c.b16 %v743, %v739
        %v916 = vpack.c.b16 %v748, %v744
        %v917 = vpack.c.b16 %v749, %v745
        %v918 = vpack.c.b16 %v750, %v746
        %v919 = vpack.c.b16 %v751, %v747
        %v920 = vpack.c.b16 %v756, %v752
        %v921 = vpack.c.b16 %v757, %v753
        %v922 = vpack.c.b16 %v758, %v754
        %v923 = vpack.c.b16 %v759, %v755
        %v924 = vpack.c.b16 %v764, %v760
        %v925 = vpack.c.b16 %v765, %v761
        %v926 = vpack.c.b16 %v766, %v762
        %v927 = vpack.c.b16 %v767, %v763
        %v928 = vpack.c.b16 %v772, %v768
        %v929 = vpack.c.b16 %v773, %v769
        %v930 = vpack.c.b16 %v774, %v770
        %v931 = vpack.c.b16 %v775, %v771
        %v932 = vpack.c.b16 %v780, %v776
        %v933 = vpack.c.b16 %v781, %v777
        %v934 = vpack.c.b16 %v782, %v778
        %v935 = vpack.c.b16 %v783, %v779
        %v936 = vpack.c.b16 %v788, %v784
        %v937 = vpack.c.b16 %v789, %v785
        %v938 = vpack.c.b16 %v790, %v786
        %v939 = vpack.c.b16 %v791, %v787
        %v940 = vpack.c.b16 %v796, %v792
        %v941 = vpack.c.b16 %v797, %v793
        %v942 = vpack.c.b16 %v798, %v794
        %v943 = vpack.c.b16 %v799, %v795
        %v944 = vpack.c.b16 %v804, %v800
        %v945 = vpack.c.b16 %v805, %v801
        %v946 = vpack.c.b16 %v806, %v802
        %v947 = vpack.c.b16 %v807, %v803
        %v948 = vpack.c.b16 %v812, %v808
        %v949 = vpack.c.b16 %v813, %v809
        %v950 = vpack.c.b16 %v814, %v810
        %v951 = vpack.c.b16 %v815, %v811
        %v952 = vpack.c.b16 %v820, %v816
        %v953 = vpack.c.b16 %v821, %v817
        %v954 = vpack.c.b16 %v822, %v818
        %v955 = vpack.c.b16 %v823, %v819
        %v956 = vpack.c.b16 %v828, %v824
        %v957 = vpack.c.b16 %v829, %v825
        %v958 = vpack.c.b16 %v830, %v826
        %v959 = vpack.c.b16 %v831, %v827
        %1088 = vmatpush.bf16.msra.mxu0 %v860
        %1089 = vmatpush.bf16.msra.mxu0 %v856
        %1090 = vmatpush.bf16.msra.mxu0 %v852
        %1091 = vmatpush.bf16.msra.mxu0 %v848
        %1092 = vmatpush.bf16.msra.mxu0 %v844
        %1093 = vmatpush.bf16.msra.mxu0 %v840
        %1094 = vmatpush.bf16.msra.mxu0 %v836
        %1095 = vmatpush.bf16.msra.mxu0 %v832
        %1096 = vmatmul.bf16.gmra.mxu0 %v440
        %v1097 = vpop.f32.mrf.mxu0
        %v1098 = vadd.f32 0.0, %v1097
        %v1099 = vpop.f32.mrf.mxu0
        %1100 = vdwg.mxu0
        %1101 = vmatpush.bf16.msra.mxu0 %v892
        %1102 = vmatpush.bf16.msra.mxu0 %v888
        %1103 = vmatpush.bf16.msra.mxu0 %v884
        %1104 = vmatpush.bf16.msra.mxu0 %v880
        %1105 = vmatpush.bf16.msra.mxu0 %v876
        %1106 = vmatpush.bf16.msra.mxu0 %v872
        %1107 = vmatpush.bf16.msra.mxu0 %v868
        %1108 = vmatpush.bf16.msra.mxu0 %v864
        %1109 = vmatmul.bf16.gmra.mxu0 %v441
        %v1110 = vpop.f32.mrf.mxu0
        %v1111 = vadd.f32 %v1098, %v1110
        %v1112 = vpop.f32.mrf.mxu0
        %1113 = vdwg.mxu0
        %1114 = vmatpush.bf16.msra.mxu0 %v924
        %1115 = vmatpush.bf16.msra.mxu0 %v920
        %1116 = vmatpush.bf16.msra.mxu0 %v916
        %1117 = vmatpush.bf16.msra.mxu0 %v912
        %1118 = vmatpush.bf16.msra.mxu0 %v908
        %1119 = vmatpush.bf16.msra.mxu0 %v904
        %1120 = vmatpush.bf16.msra.mxu0 %v900
        %1121 = vmatpush.bf16.msra.mxu0 %v896
        %1122 = vmatmul.bf16.gmra.mxu0 %v442
        %v1123 = vpop.f32.mrf.mxu0
        %v1124 = vadd.f32 %v1111, %v1123
        %v1125 = vpop.f32.mrf.mxu0
        %1126 = vdwg.mxu0
        %1127 = vmatpush.bf16.msra.mxu0 %v956
        %1128 = vmatpush.bf16.msra.mxu0 %v952
        %1129 = vmatpush.bf16.msra.mxu0 %v948
        %1130 = vmatpush.bf16.msra.mxu0 %v944
        %1131 = vmatpush.bf16.msra.mxu0 %v940
        %1132 = vmatpush.bf16.msra.mxu0 %v936
        %1133 = vmatpush.bf16.msra.mxu0 %v932
        %1134 = vmatpush.bf16.msra.mxu0 %v928
        %1135 = vmatmul.bf16.gmra.mxu0 %v443
        %v1136 = vpop.f32.mrf.mxu0
        %v1137 = vadd.f32 %v1124, %v1136
        %v1138 = vpop.f32.mrf.mxu0
        %1139 = vdwg.mxu0
        %1140 = vmatpush.bf16.msra.mxu0 %v861
        %1141 = vmatpush.bf16.msra.mxu0 %v857
        %1142 = vmatpush.bf16.msra.mxu0 %v853
        %1143 = vmatpush.bf16.msra.mxu0 %v849
        %1144 = vmatpush.bf16.msra.mxu0 %v845
        %1145 = vmatpush.bf16.msra.mxu0 %v841
        %1146 = vmatpush.bf16.msra.mxu0 %v837
        %1147 = vmatpush.bf16.msra.mxu0 %v833
        %1148 = vmatmul.bf16.gmra.mxu0 %v440
        %v1149 = vpop.f32.mrf.mxu0
        %v1150 = vadd.f32 0.0, %v1149
        %v1151 = vpop.f32.mrf.mxu0
        %1152 = vdwg.mxu0
        %1153 = vmatpush.bf16.msra.mxu0 %v893
        %1154 = vmatpush.bf16.msra.mxu0 %v889
        %1155 = vmatpush.bf16.msra.mxu0 %v885
        %1156 = vmatpush.bf16.msra.mxu0 %v881
        %1157 = vmatpush.bf16.msra.mxu0 %v877
        %1158 = vmatpush.bf16.msra.mxu0 %v873
        %1159 = vmatpush.bf16.msra.mxu0 %v869
        %1160 = vmatpush.bf16.msra.mxu0 %v865
        %1161 = vmatmul.bf16.gmra.mxu0 %v441
        %v1162 = vpop.f32.mrf.mxu0
        %v1163 = vadd.f32 %v1150, %v1162
        %v1164 = vpop.f32.mrf.mxu0
        %1165 = vdwg.mxu0
        %1166 = vmatpush.bf16.msra.mxu0 %v925
        %1167 = vmatpush.bf16.msra.mxu0 %v921
        %1168 = vmatpush.bf16.msra.mxu0 %v917
        %1169 = vmatpush.bf16.msra.mxu0 %v913
        %1170 = vmatpush.bf16.msra.mxu0 %v909
        %1171 = vmatpush.bf16.msra.mxu0 %v905
        %1172 = vmatpush.bf16.msra.mxu0 %v901
        %1173 = vmatpush.bf16.msra.mxu0 %v897
        %1174 = vmatmul.bf16.gmra.mxu0 %v442
        %v1175 = vpop.f32.mrf.mxu0
        %v1176 = vadd.f32 %v1163, %v1175
        %v1177 = vpop.f32.mrf.mxu0
        %1178 = vdwg.mxu0
        %1179 = vmatpush.bf16.msra.mxu0 %v957
        %1180 = vmatpush.bf16.msra.mxu0 %v953
        %1181 = vmatpush.bf16.msra.mxu0 %v949
        %1182 = vmatpush.bf16.msra.mxu0 %v945
        %1183 = vmatpush.bf16.msra.mxu0 %v941
        %1184 = vmatpush.bf16.msra.mxu0 %v937
        %1185 = vmatpush.bf16.msra.mxu0 %v933
        %1186 = vmatpush.bf16.msra.mxu0 %v929
        %1187 = vmatmul.bf16.gmra.mxu0 %v443
        %v1188 = vpop.f32.mrf.mxu0
        %v1189 = vadd.f32 %v1176, %v1188
        %v1190 = vpop.f32.mrf.mxu0
        %1191 = vdwg.mxu0
        %1192 = vmatpush.bf16.msra.mxu0 %v862
        %1193 = vmatpush.bf16.msra.mxu0 %v858
        %1194 = vmatpush.bf16.msra.mxu0 %v854
        %1195 = vmatpush.bf16.msra.mxu0 %v850
        %1196 = vmatpush.bf16.msra.mxu0 %v846
        %1197 = vmatpush.bf16.msra.mxu0 %v842
        %1198 = vmatpush.bf16.msra.mxu0 %v838
        %1199 = vmatpush.bf16.msra.mxu0 %v834
        %1200 = vmatmul.bf16.gmra.mxu0 %v440
        %v1201 = vpop.f32.mrf.mxu0
        %v1202 = vadd.f32 0.0, %v1201
        %v1203 = vpop.f32.mrf.mxu0
        %1204 = vdwg.mxu0
        %1205 = vmatpush.bf16.msra.mxu0 %v894
        %1206 = vmatpush.bf16.msra.mxu0 %v890
        %1207 = vmatpush.bf16.msra.mxu0 %v886
        %1208 = vmatpush.bf16.msra.mxu0 %v882
        %1209 = vmatpush.bf16.msra.mxu0 %v878
        %1210 = vmatpush.bf16.msra.mxu0 %v874
        %1211 = vmatpush.bf16.msra.mxu0 %v870
        %1212 = vmatpush.bf16.msra.mxu0 %v866
        %1213 = vmatmul.bf16.gmra.mxu0 %v441
        %v1214 = vpop.f32.mrf.mxu0
        %v1215 = vadd.f32 %v1202, %v1214
        %v1216 = vpop.f32.mrf.mxu0
        %1217 = vdwg.mxu0
        %1218 = vmatpush.bf16.msra.mxu0 %v926
        %1219 = vmatpush.bf16.msra.mxu0 %v922
        %1220 = vmatpush.bf16.msra.mxu0 %v918
        %1221 = vmatpush.bf16.msra.mxu0 %v914
        %1222 = vmatpush.bf16.msra.mxu0 %v910
        %1223 = vmatpush.bf16.msra.mxu0 %v906
        %1224 = vmatpush.bf16.msra.mxu0 %v902
        %1225 = vmatpush.bf16.msra.mxu0 %v898
        %1226 = vmatmul.bf16.gmra.mxu0 %v442
        %v1227 = vpop.f32.mrf.mxu0
        %v1228 = vadd.f32 %v1215, %v1227
        %v1229 = vpop.f32.mrf.mxu0
        %1230 = vdwg.mxu0
        %1231 = vmatpush.bf16.msra.mxu0 %v958
        %1232 = vmatpush.bf16.msra.mxu0 %v954
        %1233 = vmatpush.bf16.msra.mxu0 %v950
        %1234 = vmatpush.bf16.msra.mxu0 %v946
        %1235 = vmatpush.bf16.msra.mxu0 %v942
        %1236 = vmatpush.bf16.msra.mxu0 %v938
        %1237 = vmatpush.bf16.msra.mxu0 %v934
        %1238 = vmatpush.bf16.msra.mxu0 %v930
        %1239 = vmatmul.bf16.gmra.mxu0 %v443
        %v1240 = vpop.f32.mrf.mxu0
        %v1241 = vadd.f32 %v1228, %v1240
        %v1242 = vpop.f32.mrf.mxu0
        %1243 = vdwg.mxu0
        %1244 = vmatpush.bf16.msra.mxu0 %v863
        %1245 = vmatpush.bf16.msra.mxu0 %v859
        %1246 = vmatpush.bf16.msra.mxu0 %v855
        %1247 = vmatpush.bf16.msra.mxu0 %v851
        %1248 = vmatpush.bf16.msra.mxu0 %v847
        %1249 = vmatpush.bf16.msra.mxu0 %v843
        %1250 = vmatpush.bf16.msra.mxu0 %v839
        %1251 = vmatpush.bf16.msra.mxu0 %v835
        %1252 = vmatmul.bf16.gmra.mxu0 %v440
        %v1253 = vpop.f32.mrf.mxu0
        %v1254 = vadd.f32 0.0, %v1253
        %v1255 = vpop.f32.mrf.mxu0
        %1256 = vdwg.mxu0
        %1257 = vmatpush.bf16.msra.mxu0 %v895
        %1258 = vmatpush.bf16.msra.mxu0 %v891
        %1259 = vmatpush.bf16.msra.mxu0 %v887
        %1260 = vmatpush.bf16.msra.mxu0 %v883
        %1261 = vmatpush.bf16.msra.mxu0 %v879
        %1262 = vmatpush.bf16.msra.mxu0 %v875
        %1263 = vmatpush.bf16.msra.mxu0 %v871
        %1264 = vmatpush.bf16.msra.mxu0 %v867
        %1265 = vmatmul.bf16.gmra.mxu0 %v441
        %v1266 = vpop.f32.mrf.mxu0
        %v1267 = vadd.f32 %v1254, %v1266
        %v1268 = vpop.f32.mrf.mxu0
        %1269 = vdwg.mxu0
        %1270 = vmatpush.bf16.msra.mxu0 %v927
        %1271 = vmatpush.bf16.msra.mxu0 %v923
        %1272 = vmatpush.bf16.msra.mxu0 %v919
        %1273 = vmatpush.bf16.msra.mxu0 %v915
        %1274 = vmatpush.bf16.msra.mxu0 %v911
        %1275 = vmatpush.bf16.msra.mxu0 %v907
        %1276 = vmatpush.bf16.msra.mxu0 %v903
        %1277 = vmatpush.bf16.msra.mxu0 %v899
        %1278 = vmatmul.bf16.gmra.mxu0 %v442
        %v1279 = vpop.f32.mrf.mxu0
        %v1280 = vadd.f32 %v1267, %v1279
        %v1281 = vpop.f32.mrf.mxu0
        %1282 = vdwg.mxu0
        %1283 = vmatpush.bf16.msra.mxu0 %v959
        %1284 = vmatpush.bf16.msra.mxu0 %v955
        %1285 = vmatpush.bf16.msra.mxu0 %v951
        %1286 = vmatpush.bf16.msra.mxu0 %v947
        %1287 = vmatpush.bf16.msra.mxu0 %v943
        %1288 = vmatpush.bf16.msra.mxu0 %v939
        %1289 = vmatpush.bf16.msra.mxu0 %v935
        %1290 = vmatpush.bf16.msra.mxu0 %v931
        %1291 = vmatmul.bf16.gmra.mxu0 %v443
        %v1292 = vpop.f32.mrf.mxu0
        %v1293 = vadd.f32 %v1280, %v1292
        %v1294 = vpop.f32.mrf.mxu0
        %1295 = vdwg.mxu0
        %v1300 = vrot.slane %v1189, 6
        %v1301 = vrot.slane %v1241, 4
        %v1302 = vrot.slane %v1293, 2
        %vm1303 = vcmask 1041408
        %v1304 = vsel %vm1303, %v1137, %v1300
        %vm1305 = vcmask 1045508
        %v1306 = vsel %vm1305, %v1301, %v1302
        %vm1307 = vcmask 1043456
        %v1308 = vsel %vm1307, %v1304, %v1306
        %v1310 = vadd.f32 %v308, %v1308
        %1311 = vst [vmem:[#allocation2] sm:$0xff] %v1310
        %p1312 = scmp.eq.s32.totalorder %s27, 1
        // Predicated region
        $region45: #{autoencoder_forward.10} parent=31 // pred_check
          %p1313 = pneg %p1312
        $region46: #{autoencoder_forward.10} parent=31 // pred_check_branch
          %1315 = sbr.rel (%p1313) target = $region48
        $region47: #{autoencoder_forward.10} parent=31 // pred_region
          %v1316 = vld [vmem:[#allocation2] sm:$0xff]
          %v1317 = vld [vmem:[%s240] sm:$0xf]
          %v1319 = vperm.slane %v1317, 0
          %v1320 = vperm.slane %v1317, 1
          %v1321 = vperm.slane %v1317, 2
          %v1322 = vperm.slane %v1317, 3
          %v1323 = vrot.slane %v1320, 6
          %v1324 = vrot.slane %v1321, 4
          %v1325 = vrot.slane %v1322, 2
          %v1326 = vsel %vm1303, %v1319, %v1323
          %v1327 = vsel %vm1305, %v1324, %v1325
          %v1328 = vsel %vm1307, %v1326, %v1327
          %v1330 = vadd.f32 %v1316, %v1328
          %1331 = vst [vmem:[%s301] sm:$0xff] %v1330
        $region48: #{autoencoder_forward.10} parent=31 // pred_fallthru
          _
        %s1332 = smul.u32 4, %s26
        %p1333 = scmp.lt.s32.totalorder %s25, 0
        %s1334 = scalar_select %p1333, %s25, 0
        %p1335 = scmp.lt.s32.totalorder %s1332, 7
        %s1336 = scalar_select %p1335, %s1332, 7
        %s1337 = smul.addr %s1334, 8
        %s1338 = sadd.s32 %s1336, %s1337
        %s1339 = smul.addr %s1338, 2
        %s1340 = scalar_lea.vmem %s3, %s1339
        // Predicated region
        $region49: #{autoencoder_forward.10} parent=31 // pred_check
          %p1341 = pneg %p141
        $region50: #{autoencoder_forward.10} parent=31 // pred_check_branch
          %1343 = sbr.rel (%p1341) target = $region52
        $region51: #{autoencoder_forward.10} parent=31 // pred_region
          %s1344 = smul.u32 4, %s26
        $region52: #{autoencoder_forward.10} parent=31 // pred_fallthru
          _
      $region32: #{autoencoder_forward.10} parent=5 // pred_fallthru
        _
      %p1345 = scmp.le.s32.totalorder 2, %s15
      // Predicated region
      $region53: #{autoencoder_forward.10} parent=5 // pred_check
        %p1346 = pneg %p1345
      $region54: #{autoencoder_forward.10} parent=5 // pred_check_branch
        %1348 = sbr.rel (%p1346) target = $region56
      $region55: #{autoencoder_forward.10} parent=5 // pred_region
        %s1349 = ssub.s32 %s15, 2
        // Predicated region
        $region57: #{autoencoder_forward.10} parent=55 // pred_check
          %p1350 = pneg %p147
        $region58: #{autoencoder_forward.10} parent=55 // pred_check_branch
          %1352 = sbr.rel (%p1350) target = $region60
        $region59: #{autoencoder_forward.10} parent=55 // pred_region
          %s1353 = smul.u32 4, %s29
          %p1354 = scmp.lt.s32.totalorder %s28, 0
          %s1355 = scalar_select %p1354, %s28, 0
          %p1356 = scmp.lt.s32.totalorder %s1353, 7
          %s1357 = scalar_select %p1356, %s1353, 7
          %s1358 = smul.addr %s1355, 8
          %s1359 = sadd.s32 %s1357, %s1358
          %s1360 = smul.addr %s1359, 2
          %s1361 = scalar_lea.vmem %s3, %s1360
        $region60: #{autoencoder_forward.10} parent=55 // pred_fallthru
          _
      $region56: #{autoencoder_forward.10} parent=5 // pred_fallthru
        _
    $region6: #{autoencoder_forward.10} parent=1 // loop_footer
      %s19 = sadd.s32 1, %s15
    $region7: #{autoencoder_forward.10} parent=1 // loop_footer_branch
      %14 = sbr.rel target = $region3
    $region8: #{autoencoder_forward.10} parent=1 // loop_exit
      _
    %1362 = vsyncpa [#allocation4], 1
    %s1363 = scalar_lea.sflag [#allocation4], 1
    %1364 = vsyncpa %s1363, 1
    %1365 = vsyncpa [#allocation6], 1
    %s1366 = scalar_lea.sflag [#allocation6], 1
    %1367 = vsyncpa %s1366, 1

// kernel: autoencoder_forward.11
$region0: #{autoencoder_forward.11}
  #allocation0 [shape = 'u32[]', space=smem, size = 0x4, offset = 0x4, fixed_abs, tag = 'smem constant byte address 0x4 - core index']
  #allocation1 [shape = 'u32[72,128]{1,0:T(1,128)}', space=vmem, size = 0x9000, scoped, tag = 'internal scratch']
  #allocation2 [shape = 'f32[2,512]{1,0:T(2,128)}', space=vmem, size = 0x1000, scoped, tag = 'scratch operand']
  %s0 = inlined_call_operand.vmem [shape: bf16[2,1024], index: 0, kind: input, shape index: {}]
  %s1 = inlined_call_operand.hbm [shape: bf16[1024,1024], index: 1, kind: input, shape index: {}]
  %s2 = inlined_call_operand.hbm [shape: f32[1,1024], index: 2, kind: input, shape index: {}]
  %s3 = inlined_call_operand.vmem [shape: f32[2,1024], index: 3, kind: output, shape index: {}]
  %s4 = sld [smem:[#allocation0]]
  $region61: #{autoencoder_forward.11} parent=0
    _
  %s6 = ssub.s32 1, %s4
  %s7 = scalar_select 0, %s6, %s4
  $region1: #{autoencoder_forward.11} parent=0
    #allocation3 [shape = 'u8[1048576]{0}', space=vmem, size = 0x100000, scoped, tag = 'input window, operand 1']
    #allocation4 [shape = 's32[2]{0}', space=sflag, size = 0x8, scoped, tag = 'scoped memory for autoencoder_forward.11']
    #allocation5 [shape = 'u8[4096]{0}', space=vmem, size = 0x1000, scoped, tag = 'input window, operand 2']
    #allocation6 [shape = 's32[2]{0}', space=sflag, size = 0x8, scoped, tag = 'scoped memory for autoencoder_forward.11']
    %8 = vsyncpa [#allocation4], 0
    %s9 = scalar_lea.sflag [#allocation4], 1
    %10 = vsyncpa %s9, 0
    %11 = vsyncpa [#allocation6], 0
    %s12 = scalar_lea.sflag [#allocation6], 1
    %13 = vsyncpa %s12, 0
    loop: start=0, step=1, limit=6
    $region2: #{autoencoder_forward.11} parent=1 // loop_pre_header
      _
    $region3: #{autoencoder_forward.11} parent=1 // loop_header
      %s15 = sphi 0, %s19
      %p16 = scmp.ge.s32.totalorder %s15, 6
      %s22 = sphi 0, %s41
      %s23 = sphi 0, %s37
      %s24 = sphi 0, %s33
      %s25 = sphi 0, %s22
      %s26 = sphi 0, %s23
      %s27 = sphi 0, %s24
      %s28 = sphi 0, %s25
      %s29 = sphi 0, %s26
      %s30 = sphi 0, %s27
      %s46 = sphi 0, %s48
      %s49 = sphi 0, %s46
      %s50 = sphi 0, %s49
      %s66 = sphi 0, %s50
      %s74 = sphi 0, %s76
      %s77 = sphi 0, %s74
      %s78 = sphi 0, %s77
      %s94 = sphi 0, %s78
      %s100 = sphi 0, %s102
      %s103 = sphi 0, %s100
      %s104 = sphi 0, %s103
      %s120 = sphi 0, %s104
      %s128 = sphi 0, %s130
      %s131 = sphi 0, %s128
      %s132 = sphi 0, %s131
      %s148 = sphi 0, %s132
    $region4: #{autoencoder_forward.11} parent=1 // loop_header_branch
      %18 = sbr.rel (%p16) target = $region8
    $region5: #{autoencoder_forward.11} parent=1 // loop_body
      %s20 = ssub.s32 %s15, 1
      %s21 = ssub.s32 %s15, 2
      %s31 = sadd.s32 1, %s24
      %p32 = scmp.ge.s32.totalorder %s31, 2
      %s33 = scalar_select %p32, 0, %s31
      %s34 = sadd.s32 1, %s23
      %s35 = scalar_select %p32, %s34, %s23
      %p36 = scmp.ge.s32.totalorder %s35, 2
      %s37 = scalar_select %p36, 0, %s35
      %s38 = sadd.s32 1, %s22
      %s39 = scalar_select %p36, %s38, %s22
      %p40 = scmp.ge.s32.totalorder %s39, 1
      %s41 = scalar_select %p40, 0, %s39
      %s42 = ssub.s32 %s22, %s41
      %s43 = ssub.s32 %s24, %s33
      %s44 = sor.u32 %s42, %s43
      %p45 = scmp.eq.s32.totalorder %s44, 0
      %s47 = sadd.s32 %s46, 1
      %s48 = scalar_select %p45, %s46, %s47
      %p51 = pneg %p45
      %p52 = scmp.eq.s32.totalorder %s15, 3
      %p53 = por %p51, %p52
      %p54 = scmp.ne.s32.totalorder %s46, %s49
      %p55 = scmp.eq.s32.totalorder %s15, 0
      %p56 = por %p54, %p55
      %p57 = scmp.ne.s32.totalorder %s46, %s49
      %p58 = scmp.eq.s32.totalorder %s20, 3
      %p59 = por %p57, %p58
      %p60 = scmp.ne.s32.totalorder %s49, %s50
      %p61 = scmp.eq.s32.totalorder %s20, 0
      %p62 = por %p60, %p61
      %p63 = scmp.ne.s32.totalorder %s49, %s50
      %p64 = scmp.eq.s32.totalorder %s21, 3
      %p65 = por %p63, %p64
      %p67 = scmp.ne.s32.totalorder %s50, %s66
      %p68 = scmp.eq.s32.totalorder %s21, 0
      %p69 = por %p67, %p68
      %s70 = ssub.s32 %s24, %s33
      %s71 = ssub.s32 %s23, %s37
      %s72 = sor.u32 %s70, %s71
      %p73 = scmp.eq.s32.totalorder %s72, 0
      %s75 = sadd.s32 %s74, 1
      %s76 = scalar_select %p73, %s74, %s75
      %p79 = pneg %p73
      %p80 = scmp.eq.s32.totalorder %s15, 3
      %p81 = por %p79, %p80
      %p82 = scmp.ne.s32.totalorder %s74, %s77
      %p83 = scmp.eq.s32.totalorder %s15, 0
      %p84 = por %p82, %p83
      %p85 = scmp.ne.s32.totalorder %s74, %s77
      %p86 = scmp.eq.s32.totalorder %s20, 3
      %p87 = por %p85, %p86
      %p88 = scmp.ne.s32.totalorder %s77, %s78
      %p89 = scmp.eq.s32.totalorder %s20, 0
      %p90 = por %p88, %p89
      %p91 = scmp.ne.s32.totalorder %s77, %s78
      %p92 = scmp.eq.s32.totalorder %s21, 3
      %p93 = por %p91, %p92
      %p95 = scmp.ne.s32.totalorder %s78, %s94
      %p96 = scmp.eq.s32.totalorder %s21, 0
      %p97 = por %p95, %p96
      %s98 = ssub.s32 %s23, %s37
      %p99 = scmp.eq.s32.totalorder %s98, 0
      %s101 = sadd.s32 %s100, 1
      %s102 = scalar_select %p99, %s100, %s101
      %p105 = pneg %p99
      %p106 = scmp.eq.s32.totalorder %s15, 3
      %p107 = por %p105, %p106
      %p108 = scmp.ne.s32.totalorder %s100, %s103
      %p109 = scmp.eq.s32.totalorder %s15, 0
      %p110 = por %p108, %p109
      %p111 = scmp.ne.s32.totalorder %s100, %s103
      %p112 = scmp.eq.s32.totalorder %s20, 3
      %p113 = por %p111, %p112
      %p114 = scmp.ne.s32.totalorder %s103, %s104
      %p115 = scmp.eq.s32.totalorder %s20, 0
      %p116 = por %p114, %p115
      %p117 = scmp.ne.s32.totalorder %s103, %s104
      %p118 = scmp.eq.s32.totalorder %s21, 3
      %p119 = por %p117, %p118
      %p121 = scmp.ne.s32.totalorder %s104, %s120
      %p122 = scmp.eq.s32.totalorder %s21, 0
      %p123 = por %p121, %p122
      %s124 = ssub.s32 %s22, %s41
      %s125 = ssub.s32 %s23, %s37
      %s126 = sor.u32 %s124, %s125
      %p127 = scmp.eq.s32.totalorder %s126, 0
      %s129 = sadd.s32 %s128, 1
      %s130 = scalar_select %p127, %s128, %s129
      %p133 = pneg %p127
      %p134 = scmp.eq.s32.totalorder %s15, 3
      %p135 = por %p133, %p134
      %p136 = scmp.ne.s32.totalorder %s128, %s131
      %p137 = scmp.eq.s32.totalorder %s15, 0
      %p138 = por %p136, %p137
      %p139 = scmp.ne.s32.totalorder %s128, %s131
      %p140 = scmp.eq.s32.totalorder %s20, 3
      %p141 = por %p139, %p140
      %p142 = scmp.ne.s32.totalorder %s131, %s132
      %p143 = scmp.eq.s32.totalorder %s20, 0
      %p144 = por %p142, %p143
      %p145 = scmp.ne.s32.totalorder %s131, %s132
      %p146 = scmp.eq.s32.totalorder %s21, 3
      %p147 = por %p145, %p146
      %p149 = scmp.ne.s32.totalorder %s132, %s148
      %p150 = scmp.eq.s32.totalorder %s21, 0
      %p151 = por %p149, %p150
      %p152 = scmp.le.s32.totalorder 1, %s15
      %p153 = scmp.lt.s32.totalorder %s15, 5
      %p154 = pnand %p152, %p153
      %p155 = pneg %p154
      // Predicated region
      $region9: #{autoencoder_forward.11} parent=5 // pred_check
        _
      $region10: #{autoencoder_forward.11} parent=5 // pred_check_branch
        %157 = sbr.rel (%p154) target = $region12
      $region11: #{autoencoder_forward.11} parent=5 // pred_region
        %s158 = ssub.s32 %s15, 1
      $region12: #{autoencoder_forward.11} parent=5 // pred_fallthru
        _
      %p159 = scmp.lt.s32.totalorder %s15, 4
      // Predicated region
      $region13: #{autoencoder_forward.11} parent=5 // pred_check
        %p160 = pneg %p159
      $region14: #{autoencoder_forward.11} parent=5 // pred_check_branch
        %162 = sbr.rel (%p160) target = $region16
      $region15: #{autoencoder_forward.11} parent=5 // pred_region
        // Predicated region
        $region17: #{autoencoder_forward.11} parent=15 // pred_check
          %p163 = pneg %p56
        $region18: #{autoencoder_forward.11} parent=15 // pred_check_branch
          %165 = sbr.rel (%p163) target = $region20
        $region19: #{autoencoder_forward.11} parent=15 // pred_region
          %s166 = smul.u32 4, %s24
          %p167 = scmp.lt.s32.totalorder %s22, 0
          %s168 = scalar_select %p167, %s22, 0
          %p169 = scmp.lt.s32.totalorder %s166, 7
          %s170 = scalar_select %p169, %s166, 7
          %s171 = smul.addr %s168, 8
          %s172 = sadd.s32 %s170, %s171
          %s173 = scalar_lea.vmem %s0, %s172
          %s174 = smul.u32 4, %s24
        $region20: #{autoencoder_forward.11} parent=15 // pred_fallthru
          _
        // Predicated region
        $region21: #{autoencoder_forward.11} parent=15 // pred_check
          %p175 = pneg %p84
        $region22: #{autoencoder_forward.11} parent=15 // pred_check_branch
          %177 = sbr.rel (%p175) target = $region24
        $region23: #{autoencoder_forward.11} parent=15 // pred_region
          %s178 = sand.u32 %s74, 1
          %s179 = scalar_lea.sflag [#allocation4], %s178
          %s180 = sand.u32 %s74, 1
          %s181 = smul.addr %s180, 1024
          %s182 = scalar_lea.vmem [#allocation3], %s181
          %s183 = smul.u32 64, %s24
          %s184 = smul.u32 4, %s23
          %186 = vsyncadd %s179, 0
          %s187 = smul.addr %s183, 8
          %s188 = sadd.s32 %s184, %s187
          %s189 = smul.addr %s188, 4
          %s190 = scalar_lea.hbm %s1, %s189
          %s191 = sshll.u32 %s190, 4
          %s192 = int_to_ptr.hbm [resolvable:$true] %s191
          %s193 = sshll.u32 %s182, 4
          %s194 = int_to_ptr.vmem [resolvable:$true] %s193
          %199 = dma.hbm_to_vmem [thread:$0]  %s192, 16384, %s194, %s179, 512, 256, 16
        $region24: #{autoencoder_forward.11} parent=15 // pred_fallthru
          _
        // Predicated region
        $region25: #{autoencoder_forward.11} parent=15 // pred_check
          %p200 = pneg %p110
        $region26: #{autoencoder_forward.11} parent=15 // pred_check_branch
          %202 = sbr.rel (%p200) target = $region28
        $region27: #{autoencoder_forward.11} parent=15 // pred_region
          %s203 = sand.u32 %s100, 1
          %s204 = scalar_lea.sflag [#allocation6], %s203
          %s205 = sand.u32 %s100, 1
          %s206 = smul.addr %s205, 4
          %s207 = scalar_lea.vmem [#allocation5], %s206
          %s208 = smul.u32 4, %s23
          %210 = vsyncadd %s204, 0
          %s211 = scalar_lea.hbm %s2, %s208
          %s213 = sshll.u32 %s211, 4
          %s214 = int_to_ptr.hbm [resolvable:$true] %s213
          %s215 = sshll.u32 %s207, 4
          %s216 = int_to_ptr.vmem [resolvable:$true] %s215
          %218 = dma.hbm_to_vmem [thread:$0]  %s214, 64, %s216, %s204
        $region28: #{autoencoder_forward.11} parent=15 // pred_fallthru
          _
      $region16: #{autoencoder_forward.11} parent=5 // pred_fallthru
        _
      %p219 = scmp.le.s32.totalorder 1, %s15
      %p220 = scmp.lt.s32.totalorder %s15, 5
      %p221 = pnand %p219, %p220
      %p222 = pneg %p221
      // Predicated region
      $region29: #{autoencoder_forward.11} parent=5 // pred_check
        _
      $region30: #{autoencoder_forward.11} parent=5 // pred_check_branch
        %224 = sbr.rel (%p221) target = $region32
      $region31: #{autoencoder_forward.11} parent=5 // pred_region
        %s225 = ssub.s32 %s15, 1
        %s226 = sand.u32 %s77, 1
        %s227 = scalar_lea.sflag [#allocation4], %s226
        %s228 = sand.u32 %s77, 1
        %s229 = smul.addr %s228, 1024
        %s230 = scalar_lea.vmem [#allocation3], %s229
        // Predicated region
        $region33: #{autoencoder_forward.11} parent=31 // pred_check
          %p231 = pneg %p90
        $region34: #{autoencoder_forward.11} parent=31 // pred_check_branch
          %233 = sbr.rel (%p231) target = $region36
        $region35: #{autoencoder_forward.11} parent=31 // pred_region
          %235 = dma.done %s227, 16384
        $region36: #{autoencoder_forward.11} parent=31 // pred_fallthru
          _
        %s236 = sand.u32 %s103, 1
        %s237 = scalar_lea.sflag [#allocation6], %s236
        %s238 = sand.u32 %s103, 1
        %s239 = smul.addr %s238, 4
        %s240 = scalar_lea.vmem [#allocation5], %s239
        // Predicated region
        $region37: #{autoencoder_forward.11} parent=31 // pred_check
          %p241 = pneg %p116
        $region38: #{autoencoder_forward.11} parent=31 // pred_check_branch
          %243 = sbr.rel (%p241) target = $region40
        $region39: #{autoencoder_forward.11} parent=31 // pred_region
          %245 = dma.done %s237, 64
        $region40: #{autoencoder_forward.11} parent=31 // pred_fallthru
          _
        %s246 = smul.u32 4, %s27
        %p247 = scmp.lt.s32.totalorder %s25, 0
        %s248 = scalar_select %p247, %s25, 0
        %p249 = scmp.lt.s32.totalorder %s246, 7
        %s250 = scalar_select %p249, %s246, 7
        %s251 = smul.addr %s248, 8
        %s252 = sadd.s32 %s250, %s251
        %s253 = scalar_lea.vmem %s0, %s252
        %p254 = pneg %p62
        %p255 = pneg %p59
        %s256 = sand.u32 %s77, 1
        %s257 = scalar_lea.sflag [#allocation4], %s256
        %s258 = sand.u32 %s77, 1
        %s259 = smul.addr %s258, 1024
        %s260 = scalar_lea.vmem [#allocation3], %s259
        %p261 = pneg %p90
        %p262 = pneg %p87
        %s263 = sand.u32 %s103, 1
        %s264 = scalar_lea.sflag [#allocation6], %s263
        %s265 = sand.u32 %s103, 1
        %s266 = smul.addr %s265, 4
        %s267 = scalar_lea.vmem [#allocation5], %s266
        %p268 = pneg %p116
        %p269 = pneg %p113
        %p270 = pneg %p144
        %p271 = pneg %p141
        %s272 = smul.u32 4, %s26
        %p273 = scmp.lt.s32.totalorder %s25, 0
        %s274 = scalar_select %p273, %s25, 0
        %p275 = scmp.lt.s32.totalorder %s272, 7
        %s276 = scalar_select %p275, %s272, 7
        %s277 = smul.addr %s274, 8
        %s278 = sadd.s32 %s276, %s277
        %s279 = smul.addr %s278, 2
        %s280 = scalar_lea.vmem %s3, %s279
        %s281 = smul.u32 4, %s27
        %p282 = scmp.lt.s32.totalorder %s25, 0
        %s283 = scalar_select %p282, %s25, 0
        %p284 = scmp.lt.s32.totalorder %s281, 7
        %s285 = scalar_select %p284, %s281, 7
        %s286 = smul.addr %s283, 8
        %s287 = sadd.s32 %s285, %s286
        %s288 = scalar_lea.vmem %s0, %s287
        %s289 = smul.u32 4, %s27
        %s290 = smul.u32 64, %s27
        %s291 = smul.u32 4, %s26
        %s292 = smul.u32 4, %s26
        %s293 = smul.u32 4, %s26
        %p294 = scmp.lt.s32.totalorder %s25, 0
        %s295 = scalar_select %p294, %s25, 0
        %p296 = scmp.lt.s32.totalorder %s293, 7
        %s297 = scalar_select %p296, %s293, 7
        %s298 = smul.addr %s295, 8
        %s299 = sadd.s32 %s297, %s298
        %s300 = smul.addr %s299, 2
        %s301 = scalar_lea.vmem %s3, %s300
        %s302 = smul.u32 4, %s26
        %p303 = scmp.eq.s32.totalorder %s27, 0
        // Predicated region
        $region41: #{autoencoder_forward.11} parent=31 // pred_check
          %p304 = pneg %p303
        $region42: #{autoencoder_forward.11} parent=31 // pred_check_branch
          %306 = sbr.rel (%p304) target = $region44
        $region43: #{autoencoder_forward.11} parent=31 // pred_region
          %307 = vst [vmem:[#allocation2] sm:$0xff] 0.0
        $region44: #{autoencoder_forward.11} parent=31 // pred_fallthru
          _
        %v308 = vld [vmem:[#allocation2] sm:$0xff]
        %v309 = vld [vmem:[%s288] sm:$0xf]
        %v310 = vld [vmem:[%s230] sm:$0xff]
        %v311 = vld [vmem:[%s230 + $0x8] sm:$0xff]
        %v312 = vld [vmem:[%s230 + $0x10] sm:$0xff]
        %v313 = vld [vmem:[%s230 + $0x18] sm:$0xff]
        %v314 = vld [vmem:[%s230 + $0x20] sm:$0xff]
        %v315 = vld [vmem:[%s230 + $0x28] sm:$0xff]
        %v316 = vld [vmem:[%s230 + $0x30] sm:$0xff]
        %v317 = vld [vmem:[%s230 + $0x38] sm:$0xff]
        %v318 = vld [vmem:[%s230 + $0x40] sm:$0xff]
        %v319 = vld [vmem:[%s230 + $0x48] sm:$0xff]
        %v320 = vld [vmem:[%s230 + $0x50] sm:$0xff]
        %v321 = vld [vmem:[%s230 + $0x58] sm:$0xff]
        %v322 = vld [vmem:[%s230 + $0x60] sm:$0xff]
        %v323 = vld [vmem:[%s230 + $0x68] sm:$0xff]
        %v324 = vld [vmem:[%s230 + $0x70] sm:$0xff]
        %v325 = vld [vmem:[%s230 + $0x78] sm:$0xff]
        %v326 = vld [vmem:[%s230 + $0x80] sm:$0xff]
        %v327 = vld [vmem:[%s230 + $0x88] sm:$0xff]
        %v328 = vld [vmem:[%s230 + $0x90] sm:$0xff]
        %v329 = vld [vmem:[%s230 + $0x98] sm:$0xff]
        %v330 = vld [vmem:[%s230 + $0xa0] sm:$0xff]
        %v331 = vld [vmem:[%s230 + $0xa8] sm:$0xff]
        %v332 = vld [vmem:[%s230 + $0xb0] sm:$0xff]
        %v333 = vld [vmem:[%s230 + $0xb8] sm:$0xff]
        %v334 = vld [vmem:[%s230 + $0xc0] sm:$0xff]
        %v335 = vld [vmem:[%s230 + $0xc8] sm:$0xff]
        %v336 = vld [vmem:[%s230 + $0xd0] sm:$0xff]
        %v337 = vld [vmem:[%s230 + $0xd8] sm:$0xff]
        %v338 = vld [vmem:[%s230 + $0xe0] sm:$0xff]
        %v339 = vld [vmem:[%s230 + $0xe8] sm:$0xff]
        %v340 = vld [vmem:[%s230 + $0xf0] sm:$0xff]
        %v341 = vld [vmem:[%s230 + $0xf8] sm:$0xff]
        %v342 = vld [vmem:[%s230 + $0x100] sm:$0xff]
        %v343 = vld [vmem:[%s230 + $0x108] sm:$0xff]
        %v344 = vld [vmem:[%s230 + $0x110] sm:$0xff]
        %v345 = vld [vmem:[%s230 + $0x118] sm:$0xff]
        %v346 = vld [vmem:[%s230 + $0x120] sm:$0xff]
        %v347 = vld [vmem:[%s230 + $0x128] sm:$0xff]
        %v348 = vld [vmem:[%s230 + $0x130] sm:$0xff]
        %v349 = vld [vmem:[%s230 + $0x138] sm:$0xff]
        %v350 = vld [vmem:[%s230 + $0x140] sm:$0xff]
        %v351 = vld [vmem:[%s230 + $0x148] sm:$0xff]
        %v352 = vld [vmem:[%s230 + $0x150] sm:$0xff]
        %v353 = vld [vmem:[%s230 + $0x158] sm:$0xff]
        %v354 = vld [vmem:[%s230 + $0x160] sm:$0xff]
        %v355 = vld [vmem:[%s230 + $0x168] sm:$0xff]
        %v356 = vld [vmem:[%s230 + $0x170] sm:$0xff]
        %v357 = vld [vmem:[%s230 + $0x178] sm:$0xff]
        %v358 = vld [vmem:[%s230 + $0x180] sm:$0xff]
        %v359 = vld [vmem:[%s230 + $0x188] sm:$0xff]
        %v360 = vld [vmem:[%s230 + $0x190] sm:$0xff]
        %v361 = vld [vmem:[%s230 + $0x198] sm:$0xff]
        %v362 = vld [vmem:[%s230 + $0x1a0] sm:$0xff]
        %v363 = vld [vmem:[%s230 + $0x1a8] sm:$0xff]
        %v364 = vld [vmem:[%s230 + $0x1b0] sm:$0xff]
        %v365 = vld [vmem:[%s230 + $0x1b8] sm:$0xff]
        %v366 = vld [vmem:[%s230 + $0x1c0] sm:$0xff]
        %v367 = vld [vmem:[%s230 + $0x1c8] sm:$0xff]
        %v368 = vld [vmem:[%s230 + $0x1d0] sm:$0xff]
        %v369 = vld [vmem:[%s230 + $0x1d8] sm:$0xff]
        %v370 = vld [vmem:[%s230 + $0x1e0] sm:$0xff]
        %v371 = vld [vmem:[%s230 + $0x1e8] sm:$0xff]
        %v372 = vld [vmem:[%s230 + $0x1f0] sm:$0xff]
        %v373 = vld [vmem:[%s230 + $0x1f8] sm:$0xff]
        %v374 = vld [vmem:[%s230 + $0x200] sm:$0xff]
        %v375 = vld [vmem:[%s230 + $0x208] sm:$0xff]
        %v376 = vld [vmem:[%s230 + $0x210] sm:$0xff]
        %v377 = vld [vmem:[%s230 + $0x218] sm:$0xff]
        %v378 = vld [vmem:[%s230 + $0x220] sm:$0xff]
        %v379 = vld [vmem:[%s230 + $0x228] sm:$0xff]
        %v380 = vld [vmem:[%s230 + $0x230] sm:$0xff]
        %v381 = vld [vmem:[%s230 + $0x238] sm:$0xff]
        %v382 = vld [vmem:[%s230 + $0x240] sm:$0xff]
        %v383 = vld [vmem:[%s230 + $0x248] sm:$0xff]
        %v384 = vld [vmem:[%s230 + $0x250] sm:$0xff]
        %v385 = vld [vmem:[%s230 + $0x258] sm:$0xff]
        %v386 = vld [vmem:[%s230 + $0x260] sm:$0xff]
        %v387 = vld [vmem:[%s230 + $0x268] sm:$0xff]
        %v388 = vld [vmem:[%s230 + $0x270] sm:$0xff]
        %v389 = vld [vmem:[%s230 + $0x278] sm:$0xff]
        %v390 = vld [vmem:[%s230 + $0x280] sm:$0xff]
        %v391 = vld [vmem:[%s230 + $0x288] sm:$0xff]
        %v392 = vld [vmem:[%s230 + $0x290] sm:$0xff]
        %v393 = vld [vmem:[%s230 + $0x298] sm:$0xff]
        %v394 = vld [vmem:[%s230 + $0x2a0] sm:$0xff]
        %v395 = vld [vmem:[%s230 + $0x2a8] sm:$0xff]
        %v396 = vld [vmem:[%s230 + $0x2b0] sm:$0xff]
        %v397 = vld [vmem:[%s230 + $0x2b8] sm:$0xff]
        %v398 = vld [vmem:[%s230 + $0x2c0] sm:$0xff]
        %v399 = vld [vmem:[%s230 + $0x2c8] sm:$0xff]
        %v400 = vld [vmem:[%s230 + $0x2d0] sm:$0xff]
        %v401 = vld [vmem:[%s230 + $0x2d8] sm:$0xff]
        %v402 = vld [vmem:[%s230 + $0x2e0] sm:$0xff]
        %v403 = vld [vmem:[%s230 + $0x2e8] sm:$0xff]
        %v404 = vld [vmem:[%s230 + $0x2f0] sm:$0xff]
        %v405 = vld [vmem:[%s230 + $0x2f8] sm:$0xff]
        %v406 = vld [vmem:[%s230 + $0x300] sm:$0xff]
        %v407 = vld [vmem:[%s230 + $0x308] sm:$0xff]
        %v408 = vld [vmem:[%s230 + $0x310] sm:$0xff]
        %v409 = vld [vmem:[%s230 + $0x318] sm:$0xff]
        %v410 = vld [vmem:[%s230 + $0x320] sm:$0xff]
        %v411 = vld [vmem:[%s230 + $0x328] sm:$0xff]
        %v412 = vld [vmem:[%s230 + $0x330] sm:$0xff]
        %v413 = vld [vmem:[%s230 + $0x338] sm:$0xff]
        %v414 = vld [vmem:[%s230 + $0x340] sm:$0xff]
        %v415 = vld [vmem:[%s230 + $0x348] sm:$0xff]
        %v416 = vld [vmem:[%s230 + $0x350] sm:$0xff]
        %v417 = vld [vmem:[%s230 + $0x358] sm:$0xff]
        %v418 = vld [vmem:[%s230 + $0x360] sm:$0xff]
        %v419 = vld [vmem:[%s230 + $0x368] sm:$0xff]
        %v420 = vld [vmem:[%s230 + $0x370] sm:$0xff]
        %v421 = vld [vmem:[%s230 + $0x378] sm:$0xff]
        %v422 = vld [vmem:[%s230 + $0x380] sm:$0xff]
        %v423 = vld [vmem:[%s230 + $0x388] sm:$0xff]
        %v424 = vld [vmem:[%s230 + $0x390] sm:$0xff]
        %v425 = vld [vmem:[%s230 + $0x398] sm:$0xff]
        %v426 = vld [vmem:[%s230 + $0x3a0] sm:$0xff]
        %v427 = vld [vmem:[%s230 + $0x3a8] sm:$0xff]
        %v428 = vld [vmem:[%s230 + $0x3b0] sm:$0xff]
        %v429 = vld [vmem:[%s230 + $0x3b8] sm:$0xff]
        %v430 = vld [vmem:[%s230 + $0x3c0] sm:$0xff]
        %v431 = vld [vmem:[%s230 + $0x3c8] sm:$0xff]
        %v432 = vld [vmem:[%s230 + $0x3d0] sm:$0xff]
        %v433 = vld [vmem:[%s230 + $0x3d8] sm:$0xff]
        %v434 = vld [vmem:[%s230 + $0x3e0] sm:$0xff]
        %v435 = vld [vmem:[%s230 + $0x3e8] sm:$0xff]
        %v436 = vld [vmem:[%s230 + $0x3f0] sm:$0xff]
        %v437 = vld [vmem:[%s230 + $0x3f8] sm:$0xff]
        %439 = vst [vmem:[#allocation1] ss:$9 sm:$0xff] %v309
        %v440 = vld [vmem:[#allocation1] sm:$0xff]
        %v441 = vld [vmem:[#allocation1 + $0x9] sm:$0xff]
        %v442 = vld [vmem:[#allocation1 + $0x12] sm:$0xff]
        %v443 = vld [vmem:[#allocation1 + $0x1b] sm:$0xff]
        %v576 = vunpack.c.l.b16 %v310
        %v577 = vunpack.c.h.b16 %v310
        %v578 = vunpack.c.l.b16 %v311
        %v579 = vunpack.c.h.b16 %v311
        %v580 = vunpack.c.l.b16 %v312
        %v581 = vunpack.c.h.b16 %v312
        %v582 = vunpack.c.l.b16 %v313
        %v583 = vunpack.c.h.b16 %v313
        %v584 = vunpack.c.l.b16 %v314
        %v585 = vunpack.c.h.b16 %v314
        %v586 = vunpack.c.l.b16 %v315
        %v587 = vunpack.c.h.b16 %v315
        %v588 = vunpack.c.l.b16 %v316
        %v589 = vunpack.c.h.b16 %v316
        %v590 = vunpack.c.l.b16 %v317
        %v591 = vunpack.c.h.b16 %v317
        %v592 = vunpack.c.l.b16 %v318
        %v593 = vunpack.c.h.b16 %v318
        %v594 = vunpack.c.l.b16 %v319
        %v595 = vunpack.c.h.b16 %v319
        %v596 = vunpack.c.l.b16 %v320
        %v597 = vunpack.c.h.b16 %v320
        %v598 = vunpack.c.l.b16 %v321
        %v599 = vunpack.c.h.b16 %v321
        %v600 = vunpack.c.l.b16 %v322
        %v601 = vunpack.c.h.b16 %v322
        %v602 = vunpack.c.l.b16 %v323
        %v603 = vunpack.c.h.b16 %v323
        %v604 = vunpack.c.l.b16 %v324
        %v605 = vunpack.c.h.b16 %v324
        %v606 = vunpack.c.l.b16 %v325
        %v607 = vunpack.c.h.b16 %v325
        %v608 = vunpack.c.l.b16 %v326
        %v609 = vunpack.c.h.b16 %v326
        %v610 = vunpack.c.l.b16 %v327
        %v611 = vunpack.c.h.b16 %v327
        %v612 = vunpack.c.l.b16 %v328
        %v613 = vunpack.c.h.b16 %v328
        %v614 = vunpack.c.l.b16 %v329
        %v615 = vunpack.c.h.b16 %v329
        %v616 = vunpack.c.l.b16 %v330
        %v617 = vunpack.c.h.b16 %v330
        %v618 = vunpack.c.l.b16 %v331
        %v619 = vunpack.c.h.b16 %v331
        %v620 = vunpack.c.l.b16 %v332
        %v621 = vunpack.c.h.b16 %v332
        %v622 = vunpack.c.l.b16 %v333
        %v623 = vunpack.c.h.b16 %v333
        %v624 = vunpack.c.l.b16 %v334
        %v625 = vunpack.c.h.b16 %v334
        %v626 = vunpack.c.l.b16 %v335
        %v627 = vunpack.c.h.b16 %v335
        %v628 = vunpack.c.l.b16 %v336
        %v629 = vunpack.c.h.b16 %v336
        %v630 = vunpack.c.l.b16 %v337
        %v631 = vunpack.c.h.b16 %v337
        %v632 = vunpack.c.l.b16 %v338
        %v633 = vunpack.c.h.b16 %v338
        %v634 = vunpack.c.l.b16 %v339
        %v635 = vunpack.c.h.b16 %v339
        %v636 = vunpack.c.l.b16 %v340
        %v637 = vunpack.c.h.b16 %v340
        %v638 = vunpack.c.l.b16 %v341
        %v639 = vunpack.c.h.b16 %v341
        %v640 = vunpack.c.l.b16 %v342
        %v641 = vunpack.c.h.b16 %v342
        %v642 = vunpack.c.l.b16 %v343
        %v643 = vunpack.c.h.b16 %v343
        %v644 = vunpack.c.l.b16 %v344
        %v645 = vunpack.c.h.b16 %v344
        %v646 = vunpack.c.l.b16 %v345
        %v647 = vunpack.c.h.b16 %v345
        %v648 = vunpack.c.l.b16 %v346
        %v649 = vunpack.c.h.b16 %v346
        %v650 = vunpack.c.l.b16 %v347
        %v651 = vunpack.c.h.b16 %v347
        %v652 = vunpack.c.l.b16 %v348
        %v653 = vunpack.c.h.b16 %v348
        %v654 = vunpack.c.l.b16 %v349
        %v655 = vunpack.c.h.b16 %v349
        %v656 = vunpack.c.l.b16 %v350
        %v657 = vunpack.c.h.b16 %v350
        %v658 = vunpack.c.l.b16 %v351
        %v659 = vunpack.c.h.b16 %v351
        %v660 = vunpack.c.l.b16 %v352
        %v661 = vunpack.c.h.b16 %v352
        %v662 = vunpack.c.l.b16 %v353
        %v663 = vunpack.c.h.b16 %v353
        %v664 = vunpack.c.l.b16 %v354
        %v665 = vunpack.c.h.b16 %v354
        %v666 = vunpack.c.l.b16 %v355
        %v667 = vunpack.c.h.b16 %v355
        %v668 = vunpack.c.l.b16 %v356
        %v669 = vunpack.c.h.b16 %v356
        %v670 = vunpack.c.l.b16 %v357
        %v671 = vunpack.c.h.b16 %v357
        %v672 = vunpack.c.l.b16 %v358
        %v673 = vunpack.c.h.b16 %v358
        %v674 = vunpack.c.l.b16 %v359
        %v675 = vunpack.c.h.b16 %v359
        %v676 = vunpack.c.l.b16 %v360
        %v677 = vunpack.c.h.b16 %v360
        %v678 = vunpack.c.l.b16 %v361
        %v679 = vunpack.c.h.b16 %v361
        %v680 = vunpack.c.l.b16 %v362
        %v681 = vunpack.c.h.b16 %v362
        %v682 = vunpack.c.l.b16 %v363
        %v683 = vunpack.c.h.b16 %v363
        %v684 = vunpack.c.l.b16 %v364
        %v685 = vunpack.c.h.b16 %v364
        %v686 = vunpack.c.l.b16 %v365
        %v687 = vunpack.c.h.b16 %v365
        %v688 = vunpack.c.l.b16 %v366
        %v689 = vunpack.c.h.b16 %v366
        %v690 = vunpack.c.l.b16 %v367
        %v691 = vunpack.c.h.b16 %v367
        %v692 = vunpack.c.l.b16 %v368
        %v693 = vunpack.c.h.b16 %v368
        %v694 = vunpack.c.l.b16 %v369
        %v695 = vunpack.c.h.b16 %v369
        %v696 = vunpack.c.l.b16 %v370
        %v697 = vunpack.c.h.b16 %v370
        %v698 = vunpack.c.l.b16 %v371
        %v699 = vunpack.c.h.b16 %v371
        %v700 = vunpack.c.l.b16 %v372
        %v701 = vunpack.c.h.b16 %v372
        %v702 = vunpack.c.l.b16 %v373
        %v703 = vunpack.c.h.b16 %v373
        %v704 = vunpack.c.l.b16 %v374
        %v705 = vunpack.c.h.b16 %v374
        %v706 = vunpack.c.l.b16 %v375
        %v707 = vunpack.c.h.b16 %v375
        %v708 = vunpack.c.l.b16 %v376
        %v709 = vunpack.c.h.b16 %v376
        %v710 = vunpack.c.l.b16 %v377
        %v711 = vunpack.c.h.b16 %v377
        %v712 = vunpack.c.l.b16 %v378
        %v713 = vunpack.c.h.b16 %v378
        %v714 = vunpack.c.l.b16 %v379
        %v715 = vunpack.c.h.b16 %v379
        %v716 = vunpack.c.l.b16 %v380
        %v717 = vunpack.c.h.b16 %v380
        %v718 = vunpack.c.l.b16 %v381
        %v719 = vunpack.c.h.b16 %v381
        %v720 = vunpack.c.l.b16 %v382
        %v721 = vunpack.c.h.b16 %v382
        %v722 = vunpack.c.l.b16 %v383
        %v723 = vunpack.c.h.b16 %v383
        %v724 = vunpack.c.l.b16 %v384
        %v725 = vunpack.c.h.b16 %v384
        %v726 = vunpack.c.l.b16 %v385
        %v727 = vunpack.c.h.b16 %v385
        %v728 = vunpack.c.l.b16 %v386
        %v729 = vunpack.c.h.b16 %v386
        %v730 = vunpack.c.l.b16 %v387
        %v731 = vunpack.c.h.b16 %v387
        %v732 = vunpack.c.l.b16 %v388
        %v733 = vunpack.c.h.b16 %v388
        %v734 = vunpack.c.l.b16 %v389
        %v735 = vunpack.c.h.b16 %v389
        %v736 = vunpack.c.l.b16 %v390
        %v737 = vunpack.c.h.b16 %v390
        %v738 = vunpack.c.l.b16 %v391
        %v739 = vunpack.c.h.b16 %v391
        %v740 = vunpack.c.l.b16 %v392
        %v741 = vunpack.c.h.b16 %v392
        %v742 = vunpack.c.l.b16 %v393
        %v743 = vunpack.c.h.b16 %v393
        %v744 = vunpack.c.l.b16 %v394
        %v745 = vunpack.c.h.b16 %v394
        %v746 = vunpack.c.l.b16 %v395
        %v747 = vunpack.c.h.b16 %v395
        %v748 = vunpack.c.l.b16 %v396
        %v749 = vunpack.c.h.b16 %v396
        %v750 = vunpack.c.l.b16 %v397
        %v751 = vunpack.c.h.b16 %v397
        %v752 = vunpack.c.l.b16 %v398
        %v753 = vunpack.c.h.b16 %v398
        %v754 = vunpack.c.l.b16 %v399
        %v755 = vunpack.c.h.b16 %v399
        %v756 = vunpack.c.l.b16 %v400
        %v757 = vunpack.c.h.b16 %v400
        %v758 = vunpack.c.l.b16 %v401
        %v759 = vunpack.c.h.b16 %v401
        %v760 = vunpack.c.l.b16 %v402
        %v761 = vunpack.c.h.b16 %v402
        %v762 = vunpack.c.l.b16 %v403
        %v763 = vunpack.c.h.b16 %v403
        %v764 = vunpack.c.l.b16 %v404
        %v765 = vunpack.c.h.b16 %v404
        %v766 = vunpack.c.l.b16 %v405
        %v767 = vunpack.c.h.b16 %v405
        %v768 = vunpack.c.l.b16 %v406
        %v769 = vunpack.c.h.b16 %v406
        %v770 = vunpack.c.l.b16 %v407
        %v771 = vunpack.c.h.b16 %v407
        %v772 = vunpack.c.l.b16 %v408
        %v773 = vunpack.c.h.b16 %v408
        %v774 = vunpack.c.l.b16 %v409
        %v775 = vunpack.c.h.b16 %v409
        %v776 = vunpack.c.l.b16 %v410
        %v777 = vunpack.c.h.b16 %v410
        %v778 = vunpack.c.l.b16 %v411
        %v779 = vunpack.c.h.b16 %v411
        %v780 = vunpack.c.l.b16 %v412
        %v781 = vunpack.c.h.b16 %v412
        %v782 = vunpack.c.l.b16 %v413
        %v783 = vunpack.c.h.b16 %v413
        %v784 = vunpack.c.l.b16 %v414
        %v785 = vunpack.c.h.b16 %v414
        %v786 = vunpack.c.l.b16 %v415
        %v787 = vunpack.c.h.b16 %v415
        %v788 = vunpack.c.l.b16 %v416
        %v789 = vunpack.c.h.b16 %v416
        %v790 = vunpack.c.l.b16 %v417
        %v791 = vunpack.c.h.b16 %v417
        %v792 = vunpack.c.l.b16 %v418
        %v793 = vunpack.c.h.b16 %v418
        %v794 = vunpack.c.l.b16 %v419
        %v795 = vunpack.c.h.b16 %v419
        %v796 = vunpack.c.l.b16 %v420
        %v797 = vunpack.c.h.b16 %v420
        %v798 = vunpack.c.l.b16 %v421
        %v799 = vunpack.c.h.b16 %v421
        %v800 = vunpack.c.l.b16 %v422
        %v801 = vunpack.c.h.b16 %v422
        %v802 = vunpack.c.l.b16 %v423
        %v803 = vunpack.c.h.b16 %v423
        %v804 = vunpack.c.l.b16 %v424
        %v805 = vunpack.c.h.b16 %v424
        %v806 = vunpack.c.l.b16 %v425
        %v807 = vunpack.c.h.b16 %v425
        %v808 = vunpack.c.l.b16 %v426
        %v809 = vunpack.c.h.b16 %v426
        %v810 = vunpack.c.l.b16 %v427
        %v811 = vunpack.c.h.b16 %v427
        %v812 = vunpack.c.l.b16 %v428
        %v813 = vunpack.c.h.b16 %v428
        %v814 = vunpack.c.l.b16 %v429
        %v815 = vunpack.c.h.b16 %v429
        %v816 = vunpack.c.l.b16 %v430
        %v817 = vunpack.c.h.b16 %v430
        %v818 = vunpack.c.l.b16 %v431
        %v819 = vunpack.c.h.b16 %v431
        %v820 = vunpack.c.l.b16 %v432
        %v821 = vunpack.c.h.b16 %v432
        %v822 = vunpack.c.l.b16 %v433
        %v823 = vunpack.c.h.b16 %v433
        %v824 = vunpack.c.l.b16 %v434
        %v825 = vunpack.c.h.b16 %v434
        %v826 = vunpack.c.l.b16 %v435
        %v827 = vunpack.c.h.b16 %v435
        %v828 = vunpack.c.l.b16 %v436
        %v829 = vunpack.c.h.b16 %v436
        %v830 = vunpack.c.l.b16 %v437
        %v831 = vunpack.c.h.b16 %v437
        %v832 = vpack.c.b16 %v580, %v576
        %v833 = vpack.c.b16 %v581, %v577
        %v834 = vpack.c.b16 %v582, %v578
        %v835 = vpack.c.b16 %v583, %v579
        %v836 = vpack.c.b16 %v588, %v584
        %v837 = vpack.c.b16 %v589, %v585
        %v838 = vpack.c.b16 %v590, %v586
        %v839 = vpack.c.b16 %v591, %v587
        %v840 = vpack.c.b16 %v596, %v592
        %v841 = vpack.c.b16 %v597, %v593
        %v842 = vpack.c.b16 %v598, %v594
        %v843 = vpack.c.b16 %v599, %v595
        %v844 = vpack.c.b16 %v604, %v600
        %v845 = vpack.c.b16 %v605, %v601
        %v846 = vpack.c.b16 %v606, %v602
        %v847 = vpack.c.b16 %v607, %v603
        %v848 = vpack.c.b16 %v612, %v608
        %v849 = vpack.c.b16 %v613, %v609
        %v850 = vpack.c.b16 %v614, %v610
        %v851 = vpack.c.b16 %v615, %v611
        %v852 = vpack.c.b16 %v620, %v616
        %v853 = vpack.c.b16 %v621, %v617
        %v854 = vpack.c.b16 %v622, %v618
        %v855 = vpack.c.b16 %v623, %v619
        %v856 = vpack.c.b16 %v628, %v624
        %v857 = vpack.c.b16 %v629, %v625
        %v858 = vpack.c.b16 %v630, %v626
        %v859 = vpack.c.b16 %v631, %v627
        %v860 = vpack.c.b16 %v636, %v632
        %v861 = vpack.c.b16 %v637, %v633
        %v862 = vpack.c.b16 %v638, %v634
        %v863 = vpack.c.b16 %v639, %v635
        %v864 = vpack.c.b16 %v644, %v640
        %v865 = vpack.c.b16 %v645, %v641
        %v866 = vpack.c.b16 %v646, %v642
        %v867 = vpack.c.b16 %v647, %v643
        %v868 = vpack.c.b16 %v652, %v648
        %v869 = vpack.c.b16 %v653, %v649
        %v870 = vpack.c.b16 %v654, %v650
        %v871 = vpack.c.b16 %v655, %v651
        %v872 = vpack.c.b16 %v660, %v656
        %v873 = vpack.c.b16 %v661, %v657
        %v874 = vpack.c.b16 %v662, %v658
        %v875 = vpack.c.b16 %v663, %v659
        %v876 = vpack.c.b16 %v668, %v664
        %v877 = vpack.c.b16 %v669, %v665
        %v878 = vpack.c.b16 %v670, %v666
        %v879 = vpack.c.b16 %v671, %v667
        %v880 = vpack.c.b16 %v676, %v672
        %v881 = vpack.c.b16 %v677, %v673
        %v882 = vpack.c.b16 %v678, %v674
        %v883 = vpack.c.b16 %v679, %v675
        %v884 = vpack.c.b16 %v684, %v680
        %v885 = vpack.c.b16 %v685, %v681
        %v886 = vpack.c.b16 %v686, %v682
        %v887 = vpack.c.b16 %v687, %v683
        %v888 = vpack.c.b16 %v692, %v688
        %v889 = vpack.c.b16 %v693, %v689
        %v890 = vpack.c.b16 %v694, %v690
        %v891 = vpack.c.b16 %v695, %v691
        %v892 = vpack.c.b16 %v700, %v696
        %v893 = vpack.c.b16 %v701, %v697
        %v894 = vpack.c.b16 %v702, %v698
        %v895 = vpack.c.b16 %v703, %v699
        %v896 = vpack.c.b16 %v708, %v704
        %v897 = vpack.c.b16 %v709, %v705
        %v898 = vpack.c.b16 %v710, %v706
        %v899 = vpack.c.b16 %v711, %v707
        %v900 = vpack.c.b16 %v716, %v712
        %v901 = vpack.c.b16 %v717, %v713
        %v902 = vpack.c.b16 %v718, %v714
        %v903 = vpack.c.b16 %v719, %v715
        %v904 = vpack.c.b16 %v724, %v720
        %v905 = vpack.c.b16 %v725, %v721
        %v906 = vpack.c.b16 %v726, %v722
        %v907 = vpack.c.b16 %v727, %v723
        %v908 = vpack.c.b16 %v732, %v728
        %v909 = vpack.c.b16 %v733, %v729
        %v910 = vpack.c.b16 %v734, %v730
        %v911 = vpack.c.b16 %v735, %v731
        %v912 = vpack.c.b16 %v740, %v736
        %v913 = vpack.c.b16 %v741, %v737
        %v914 = vpack.c.b16 %v742, %v738
        %v915 = vpack.c.b16 %v743, %v739
        %v916 = vpack.c.b16 %v748, %v744
        %v917 = vpack.c.b16 %v749, %v745
        %v918 = vpack.c.b16 %v750, %v746
        %v919 = vpack.c.b16 %v751, %v747
        %v920 = vpack.c.b16 %v756, %v752
        %v921 = vpack.c.b16 %v757, %v753
        %v922 = vpack.c.b16 %v758, %v754
        %v923 = vpack.c.b16 %v759, %v755
        %v924 = vpack.c.b16 %v764, %v760
        %v925 = vpack.c.b16 %v765, %v761
        %v926 = vpack.c.b16 %v766, %v762
        %v927 = vpack.c.b16 %v767, %v763
        %v928 = vpack.c.b16 %v772, %v768
        %v929 = vpack.c.b16 %v773, %v769
        %v930 = vpack.c.b16 %v774, %v770
        %v931 = vpack.c.b16 %v775, %v771
        %v932 = vpack.c.b16 %v780, %v776
        %v933 = vpack.c.b16 %v781, %v777
        %v934 = vpack.c.b16 %v782, %v778
        %v935 = vpack.c.b16 %v783, %v779
        %v936 = vpack.c.b16 %v788, %v784
        %v937 = vpack.c.b16 %v789, %v785
        %v938 = vpack.c.b16 %v790, %v786
        %v939 = vpack.c.b16 %v791, %v787
        %v940 = vpack.c.b16 %v796, %v792
        %v941 = vpack.c.b16 %v797, %v793
        %v942 = vpack.c.b16 %v798, %v794
        %v943 = vpack.c.b16 %v799, %v795
        %v944 = vpack.c.b16 %v804, %v800
        %v945 = vpack.c.b16 %v805, %v801
        %v946 = vpack.c.b16 %v806, %v802
        %v947 = vpack.c.b16 %v807, %v803
        %v948 = vpack.c.b16 %v812, %v808
        %v949 = vpack.c.b16 %v813, %v809
        %v950 = vpack.c.b16 %v814, %v810
        %v951 = vpack.c.b16 %v815, %v811
        %v952 = vpack.c.b16 %v820, %v816
        %v953 = vpack.c.b16 %v821, %v817
        %v954 = vpack.c.b16 %v822, %v818
        %v955 = vpack.c.b16 %v823, %v819
        %v956 = vpack.c.b16 %v828, %v824
        %v957 = vpack.c.b16 %v829, %v825
        %v958 = vpack.c.b16 %v830, %v826
        %v959 = vpack.c.b16 %v831, %v827
        %1088 = vmatpush.bf16.msra.mxu0 %v860
        %1089 = vmatpush.bf16.msra.mxu0 %v856
        %1090 = vmatpush.bf16.msra.mxu0 %v852
        %1091 = vmatpush.bf16.msra.mxu0 %v848
        %1092 = vmatpush.bf16.msra.mxu0 %v844
        %1093 = vmatpush.bf16.msra.mxu0 %v840
        %1094 = vmatpush.bf16.msra.mxu0 %v836
        %1095 = vmatpush.bf16.msra.mxu0 %v832
        %1096 = vmatmul.bf16.gmra.mxu0 %v440
        %v1097 = vpop.f32.mrf.mxu0
        %v1098 = vadd.f32 0.0, %v1097
        %v1099 = vpop.f32.mrf.mxu0
        %1100 = vdwg.mxu0
        %1101 = vmatpush.bf16.msra.mxu0 %v892
        %1102 = vmatpush.bf16.msra.mxu0 %v888
        %1103 = vmatpush.bf16.msra.mxu0 %v884
        %1104 = vmatpush.bf16.msra.mxu0 %v880
        %1105 = vmatpush.bf16.msra.mxu0 %v876
        %1106 = vmatpush.bf16.msra.mxu0 %v872
        %1107 = vmatpush.bf16.msra.mxu0 %v868
        %1108 = vmatpush.bf16.msra.mxu0 %v864
        %1109 = vmatmul.bf16.gmra.mxu0 %v441
        %v1110 = vpop.f32.mrf.mxu0
        %v1111 = vadd.f32 %v1098, %v1110
        %v1112 = vpop.f32.mrf.mxu0
        %1113 = vdwg.mxu0
        %1114 = vmatpush.bf16.msra.mxu0 %v924
        %1115 = vmatpush.bf16.msra.mxu0 %v920
        %1116 = vmatpush.bf16.msra.mxu0 %v916
        %1117 = vmatpush.bf16.msra.mxu0 %v912
        %1118 = vmatpush.bf16.msra.mxu0 %v908
        %1119 = vmatpush.bf16.msra.mxu0 %v904
        %1120 = vmatpush.bf16.msra.mxu0 %v900
        %1121 = vmatpush.bf16.msra.mxu0 %v896
        %1122 = vmatmul.bf16.gmra.mxu0 %v442
        %v1123 = vpop.f32.mrf.mxu0
        %v1124 = vadd.f32 %v1111, %v1123
        %v1125 = vpop.f32.mrf.mxu0
        %1126 = vdwg.mxu0
        %1127 = vmatpush.bf16.msra.mxu0 %v956
        %1128 = vmatpush.bf16.msra.mxu0 %v952
        %1129 = vmatpush.bf16.msra.mxu0 %v948
        %1130 = vmatpush.bf16.msra.mxu0 %v944
        %1131 = vmatpush.bf16.msra.mxu0 %v940
        %1132 = vmatpush.bf16.msra.mxu0 %v936
        %1133 = vmatpush.bf16.msra.mxu0 %v932
        %1134 = vmatpush.bf16.msra.mxu0 %v928
        %1135 = vmatmul.bf16.gmra.mxu0 %v443
        %v1136 = vpop.f32.mrf.mxu0
        %v1137 = vadd.f32 %v1124, %v1136
        %v1138 = vpop.f32.mrf.mxu0
        %1139 = vdwg.mxu0
        %1140 = vmatpush.bf16.msra.mxu0 %v861
        %1141 = vmatpush.bf16.msra.mxu0 %v857
        %1142 = vmatpush.bf16.msra.mxu0 %v853
        %1143 = vmatpush.bf16.msra.mxu0 %v849
        %1144 = vmatpush.bf16.msra.mxu0 %v845
        %1145 = vmatpush.bf16.msra.mxu0 %v841
        %1146 = vmatpush.bf16.msra.mxu0 %v837
        %1147 = vmatpush.bf16.msra.mxu0 %v833
        %1148 = vmatmul.bf16.gmra.mxu0 %v440
        %v1149 = vpop.f32.mrf.mxu0
        %v1150 = vadd.f32 0.0, %v1149
        %v1151 = vpop.f32.mrf.mxu0
        %1152 = vdwg.mxu0
        %1153 = vmatpush.bf16.msra.mxu0 %v893
        %1154 = vmatpush.bf16.msra.mxu0 %v889
        %1155 = vmatpush.bf16.msra.mxu0 %v885
        %1156 = vmatpush.bf16.msra.mxu0 %v881
        %1157 = vmatpush.bf16.msra.mxu0 %v877
        %1158 = vmatpush.bf16.msra.mxu0 %v873
        %1159 = vmatpush.bf16.msra.mxu0 %v869
        %1160 = vmatpush.bf16.msra.mxu0 %v865
        %1161 = vmatmul.bf16.gmra.mxu0 %v441
        %v1162 = vpop.f32.mrf.mxu0
        %v1163 = vadd.f32 %v1150, %v1162
        %v1164 = vpop.f32.mrf.mxu0
        %1165 = vdwg.mxu0
        %1166 = vmatpush.bf16.msra.mxu0 %v925
        %1167 = vmatpush.bf16.msra.mxu0 %v921
        %1168 = vmatpush.bf16.msra.mxu0 %v917
        %1169 = vmatpush.bf16.msra.mxu0 %v913
        %1170 = vmatpush.bf16.msra.mxu0 %v909
        %1171 = vmatpush.bf16.msra.mxu0 %v905
        %1172 = vmatpush.bf16.msra.mxu0 %v901
        %1173 = vmatpush.bf16.msra.mxu0 %v897
        %1174 = vmatmul.bf16.gmra.mxu0 %v442
        %v1175 = vpop.f32.mrf.mxu0
        %v1176 = vadd.f32 %v1163, %v1175
        %v1177 = vpop.f32.mrf.mxu0
        %1178 = vdwg.mxu0
        %1179 = vmatpush.bf16.msra.mxu0 %v957
        %1180 = vmatpush.bf16.msra.mxu0 %v953
        %1181 = vmatpush.bf16.msra.mxu0 %v949
        %1182 = vmatpush.bf16.msra.mxu0 %v945
        %1183 = vmatpush.bf16.msra.mxu0 %v941
        %1184 = vmatpush.bf16.msra.mxu0 %v937
        %1185 = vmatpush.bf16.msra.mxu0 %v933
        %1186 = vmatpush.bf16.msra.mxu0 %v929
        %1187 = vmatmul.bf16.gmra.mxu0 %v443
        %v1188 = vpop.f32.mrf.mxu0
        %v1189 = vadd.f32 %v1176, %v1188
        %v1190 = vpop.f32.mrf.mxu0
        %1191 = vdwg.mxu0
        %1192 = vmatpush.bf16.msra.mxu0 %v862
        %1193 = vmatpush.bf16.msra.mxu0 %v858
        %1194 = vmatpush.bf16.msra.mxu0 %v854
        %1195 = vmatpush.bf16.msra.mxu0 %v850
        %1196 = vmatpush.bf16.msra.mxu0 %v846
        %1197 = vmatpush.bf16.msra.mxu0 %v842
        %1198 = vmatpush.bf16.msra.mxu0 %v838
        %1199 = vmatpush.bf16.msra.mxu0 %v834
        %1200 = vmatmul.bf16.gmra.mxu0 %v440
        %v1201 = vpop.f32.mrf.mxu0
        %v1202 = vadd.f32 0.0, %v1201
        %v1203 = vpop.f32.mrf.mxu0
        %1204 = vdwg.mxu0
        %1205 = vmatpush.bf16.msra.mxu0 %v894
        %1206 = vmatpush.bf16.msra.mxu0 %v890
        %1207 = vmatpush.bf16.msra.mxu0 %v886
        %1208 = vmatpush.bf16.msra.mxu0 %v882
        %1209 = vmatpush.bf16.msra.mxu0 %v878
        %1210 = vmatpush.bf16.msra.mxu0 %v874
        %1211 = vmatpush.bf16.msra.mxu0 %v870
        %1212 = vmatpush.bf16.msra.mxu0 %v866
        %1213 = vmatmul.bf16.gmra.mxu0 %v441
        %v1214 = vpop.f32.mrf.mxu0
        %v1215 = vadd.f32 %v1202, %v1214
        %v1216 = vpop.f32.mrf.mxu0
        %1217 = vdwg.mxu0
        %1218 = vmatpush.bf16.msra.mxu0 %v926
        %1219 = vmatpush.bf16.msra.mxu0 %v922
        %1220 = vmatpush.bf16.msra.mxu0 %v918
        %1221 = vmatpush.bf16.msra.mxu0 %v914
        %1222 = vmatpush.bf16.msra.mxu0 %v910
        %1223 = vmatpush.bf16.msra.mxu0 %v906
        %1224 = vmatpush.bf16.msra.mxu0 %v902
        %1225 = vmatpush.bf16.msra.mxu0 %v898
        %1226 = vmatmul.bf16.gmra.mxu0 %v442
        %v1227 = vpop.f32.mrf.mxu0
        %v1228 = vadd.f32 %v1215, %v1227
        %v1229 = vpop.f32.mrf.mxu0
        %1230 = vdwg.mxu0
        %1231 = vmatpush.bf16.msra.mxu0 %v958
        %1232 = vmatpush.bf16.msra.mxu0 %v954
        %1233 = vmatpush.bf16.msra.mxu0 %v950
        %1234 = vmatpush.bf16.msra.mxu0 %v946
        %1235 = vmatpush.bf16.msra.mxu0 %v942
        %1236 = vmatpush.bf16.msra.mxu0 %v938
        %1237 = vmatpush.bf16.msra.mxu0 %v934
        %1238 = vmatpush.bf16.msra.mxu0 %v930
        %1239 = vmatmul.bf16.gmra.mxu0 %v443
        %v1240 = vpop.f32.mrf.mxu0
        %v1241 = vadd.f32 %v1228, %v1240
        %v1242 = vpop.f32.mrf.mxu0
        %1243 = vdwg.mxu0
        %1244 = vmatpush.bf16.msra.mxu0 %v863
        %1245 = vmatpush.bf16.msra.mxu0 %v859
        %1246 = vmatpush.bf16.msra.mxu0 %v855
        %1247 = vmatpush.bf16.msra.mxu0 %v851
        %1248 = vmatpush.bf16.msra.mxu0 %v847
        %1249 = vmatpush.bf16.msra.mxu0 %v843
        %1250 = vmatpush.bf16.msra.mxu0 %v839
        %1251 = vmatpush.bf16.msra.mxu0 %v835
        %1252 = vmatmul.bf16.gmra.mxu0 %v440
        %v1253 = vpop.f32.mrf.mxu0
        %v1254 = vadd.f32 0.0, %v1253
        %v1255 = vpop.f32.mrf.mxu0
        %1256 = vdwg.mxu0
        %1257 = vmatpush.bf16.msra.mxu0 %v895
        %1258 = vmatpush.bf16.msra.mxu0 %v891
        %1259 = vmatpush.bf16.msra.mxu0 %v887
        %1260 = vmatpush.bf16.msra.mxu0 %v883
        %1261 = vmatpush.bf16.msra.mxu0 %v879
        %1262 = vmatpush.bf16.msra.mxu0 %v875
        %1263 = vmatpush.bf16.msra.mxu0 %v871
        %1264 = vmatpush.bf16.msra.mxu0 %v867
        %1265 = vmatmul.bf16.gmra.mxu0 %v441
        %v1266 = vpop.f32.mrf.mxu0
        %v1267 = vadd.f32 %v1254, %v1266
        %v1268 = vpop.f32.mrf.mxu0
        %1269 = vdwg.mxu0
        %1270 = vmatpush.bf16.msra.mxu0 %v927
        %1271 = vmatpush.bf16.msra.mxu0 %v923
        %1272 = vmatpush.bf16.msra.mxu0 %v919
        %1273 = vmatpush.bf16.msra.mxu0 %v915
        %1274 = vmatpush.bf16.msra.mxu0 %v911
        %1275 = vmatpush.bf16.msra.mxu0 %v907
        %1276 = vmatpush.bf16.msra.mxu0 %v903
        %1277 = vmatpush.bf16.msra.mxu0 %v899
        %1278 = vmatmul.bf16.gmra.mxu0 %v442
        %v1279 = vpop.f32.mrf.mxu0
        %v1280 = vadd.f32 %v1267, %v1279
        %v1281 = vpop.f32.mrf.mxu0
        %1282 = vdwg.mxu0
        %1283 = vmatpush.bf16.msra.mxu0 %v959
        %1284 = vmatpush.bf16.msra.mxu0 %v955
        %1285 = vmatpush.bf16.msra.mxu0 %v951
        %1286 = vmatpush.bf16.msra.mxu0 %v947
        %1287 = vmatpush.bf16.msra.mxu0 %v943
        %1288 = vmatpush.bf16.msra.mxu0 %v939
        %1289 = vmatpush.bf16.msra.mxu0 %v935
        %1290 = vmatpush.bf16.msra.mxu0 %v931
        %1291 = vmatmul.bf16.gmra.mxu0 %v443
        %v1292 = vpop.f32.mrf.mxu0
        %v1293 = vadd.f32 %v1280, %v1292
        %v1294 = vpop.f32.mrf.mxu0
        %1295 = vdwg.mxu0
        %v1300 = vrot.slane %v1189, 6
        %v1301 = vrot.slane %v1241, 4
        %v1302 = vrot.slane %v1293, 2
        %vm1303 = vcmask 1041408
        %v1304 = vsel %vm1303, %v1137, %v1300
        %vm1305 = vcmask 1045508
        %v1306 = vsel %vm1305, %v1301, %v1302
        %vm1307 = vcmask 1043456
        %v1308 = vsel %vm1307, %v1304, %v1306
        %v1310 = vadd.f32 %v308, %v1308
        %1311 = vst [vmem:[#allocation2] sm:$0xff] %v1310
        %p1312 = scmp.eq.s32.totalorder %s27, 1
        // Predicated region
        $region45: #{autoencoder_forward.11} parent=31 // pred_check
          %p1313 = pneg %p1312
        $region46: #{autoencoder_forward.11} parent=31 // pred_check_branch
          %1315 = sbr.rel (%p1313) target = $region48
        $region47: #{autoencoder_forward.11} parent=31 // pred_region
          %v1316 = vld [vmem:[#allocation2] sm:$0xff]
          %v1317 = vld [vmem:[%s240] sm:$0xf]
          %v1319 = vperm.slane %v1317, 0
          %v1320 = vperm.slane %v1317, 1
          %v1321 = vperm.slane %v1317, 2
          %v1322 = vperm.slane %v1317, 3
          %v1323 = vrot.slane %v1320, 6
          %v1324 = vrot.slane %v1321, 4
          %v1325 = vrot.slane %v1322, 2
          %v1326 = vsel %vm1303, %v1319, %v1323
          %v1327 = vsel %vm1305, %v1324, %v1325
          %v1328 = vsel %vm1307, %v1326, %v1327
          %v1330 = vadd.f32 %v1316, %v1328
          %v1331 = vmax.f32 %v1330, 0.0
          %1332 = vst [vmem:[%s301] sm:$0xff] %v1331
        $region48: #{autoencoder_forward.11} parent=31 // pred_fallthru
          _
        %s1333 = smul.u32 4, %s26
        %p1334 = scmp.lt.s32.totalorder %s25, 0
        %s1335 = scalar_select %p1334, %s25, 0
        %p1336 = scmp.lt.s32.totalorder %s1333, 7
        %s1337 = scalar_select %p1336, %s1333, 7
        %s1338 = smul.addr %s1335, 8
        %s1339 = sadd.s32 %s1337, %s1338
        %s1340 = smul.addr %s1339, 2
        %s1341 = scalar_lea.vmem %s3, %s1340
        // Predicated region
        $region49: #{autoencoder_forward.11} parent=31 // pred_check
          %p1342 = pneg %p141
        $region50: #{autoencoder_forward.11} parent=31 // pred_check_branch
          %1344 = sbr.rel (%p1342) target = $region52
        $region51: #{autoencoder_forward.11} parent=31 // pred_region
          %s1345 = smul.u32 4, %s26
        $region52: #{autoencoder_forward.11} parent=31 // pred_fallthru
          _
      $region32: #{autoencoder_forward.11} parent=5 // pred_fallthru
        _
      %p1346 = scmp.le.s32.totalorder 2, %s15
      // Predicated region
      $region53: #{autoencoder_forward.11} parent=5 // pred_check
        %p1347 = pneg %p1346
      $region54: #{autoencoder_forward.11} parent=5 // pred_check_branch
        %1349 = sbr.rel (%p1347) target = $region56
      $region55: #{autoencoder_forward.11} parent=5 // pred_region
        %s1350 = ssub.s32 %s15, 2
        // Predicated region
        $region57: #{autoencoder_forward.11} parent=55 // pred_check
          %p1351 = pneg %p147
        $region58: #{autoencoder_forward.11} parent=55 // pred_check_branch
          %1353 = sbr.rel (%p1351) target = $region60
        $region59: #{autoencoder_forward.11} parent=55 // pred_region
          %s1354 = smul.u32 4, %s29
          %p1355 = scmp.lt.s32.totalorder %s28, 0
          %s1356 = scalar_select %p1355, %s28, 0
          %p1357 = scmp.lt.s32.totalorder %s1354, 7
          %s1358 = scalar_select %p1357, %s1354, 7
          %s1359 = smul.addr %s1356, 8
          %s1360 = sadd.s32 %s1358, %s1359
          %s1361 = smul.addr %s1360, 2
          %s1362 = scalar_lea.vmem %s3, %s1361
        $region60: #{autoencoder_forward.11} parent=55 // pred_fallthru
          _
      $region56: #{autoencoder_forward.11} parent=5 // pred_fallthru
        _
    $region6: #{autoencoder_forward.11} parent=1 // loop_footer
      %s19 = sadd.s32 1, %s15
    $region7: #{autoencoder_forward.11} parent=1 // loop_footer_branch
      %14 = sbr.rel target = $region3
    $region8: #{autoencoder_forward.11} parent=1 // loop_exit
      _
    %1363 = vsyncpa [#allocation4], 1
    %s1364 = scalar_lea.sflag [#allocation4], 1
    %1365 = vsyncpa %s1364, 1
    %1366 = vsyncpa [#allocation6], 1
    %s1367 = scalar_lea.sflag [#allocation6], 1
    %1368 = vsyncpa %s1367, 1

// kernel: autoencoder_forward.13
$region0: #{autoencoder_forward.13}
  #allocation0 [shape = 'u32[]', space=smem, size = 0x4, offset = 0x4, fixed_abs, tag = 'smem constant byte address 0x4 - core index']
  #allocation1 [shape = 'u32[72,128]{1,0:T(1,128)}', space=vmem, size = 0x9000, scoped, tag = 'internal scratch']
  %s0 = inlined_call_operand.vmem [shape: f32[2,8,342], index: 0, kind: input, shape index: {}]
  %s1 = inlined_call_operand.vmem [shape: f32[9,3,8], index: 1, kind: input, shape index: {}]
  %s2 = inlined_call_operand.vmem [shape: f32[3,1], index: 2, kind: input, shape index: {}]
  %s3 = inlined_call_operand.vmem [shape: f32[1,288], index: 3, kind: input, shape index: {}]
  %s4 = inlined_call_operand.vmem [shape: f32[2,3,342], index: 4, kind: output, shape index: {}]
  %s5 = sld [smem:[#allocation0]]
  $region49: #{autoencoder_forward.13} parent=0
    _
  %s7 = ssub.s32 1, %s5
  %s8 = scalar_select 0, %s7, %s5
  loop: start=0, step=1, limit=4
  $region2: #{autoencoder_forward.13} parent=0 // loop_pre_header
    _
  $region3: #{autoencoder_forward.13} parent=0 // loop_header
    %s10 = sphi 0, %s14
    %p11 = scmp.ge.s32.totalorder %s10, 4
    %s20 = sphi 0, %s22
    %s23 = sphi 0, %s20
    %s24 = sphi 0, %s23
    %s40 = sphi 0, %s24
    %s44 = sphi 0, %s44
    %s46 = sphi 0, %s44
    %s47 = sphi 0, %s46
    %s61 = sphi 0, %s47
    %s65 = sphi 0, %s65
    %s67 = sphi 0, %s65
    %s68 = sphi 0, %s67
    %s82 = sphi 0, %s68
    %s86 = sphi 0, %s86
    %s88 = sphi 0, %s86
    %s89 = sphi 0, %s88
    %s103 = sphi 0, %s89
    %s109 = sphi 0, %s111
    %s112 = sphi 0, %s109
    %s113 = sphi 0, %s112
    %s129 = sphi 0, %s113
  $region4: #{autoencoder_forward.13} parent=0 // loop_header_branch
    %13 = sbr.rel (%p11) target = $region8
  $region5: #{autoencoder_forward.13} parent=0 // loop_body
    %s15 = ssub.s32 %s10, 1
    %s16 = ssub.s32 %s10, 2
    %s17 = sadd.s32 %s10, 1
    %s18 = ssub.s32 %s10, %s17
    %p19 = scmp.eq.s32.totalorder %s18, 0
    %s21 = sadd.s32 %s20, 1
    %s22 = scalar_select %p19, %s20, %s21
    %p25 = pneg %p19
    %p26 = scmp.eq.s32.totalorder %s10, 1
    %p27 = por %p25, %p26
    %p28 = scmp.ne.s32.totalorder %s20, %s23
    %p29 = scmp.eq.s32.totalorder %s10, 0
    %p30 = por %p28, %p29
    %p31 = scmp.ne.s32.totalorder %s20, %s23
    %p32 = scmp.eq.s32.totalorder %s15, 1
    %p33 = por %p31, %p32
    %p34 = scmp.ne.s32.totalorder %s23, %s24
    %p35 = scmp.eq.s32.totalorder %s15, 0
    %p36 = por %p34, %p35
    %p37 = scmp.ne.s32.totalorder %s23, %s24
    %p38 = scmp.eq.s32.totalorder %s16, 1
    %p39 = por %p37, %p38
    %p41 = scmp.ne.s32.totalorder %s24, %s40
    %p42 = scmp.eq.s32.totalorder %s16, 0
    %p43 = por %p41, %p42
    %s45 = sadd.s32 %s44, 1
    %p48 = scmp.eq.s32.totalorder %s10, 1
    %p49 = scmp.ne.s32.totalorder %s44, %s46
    %p50 = scmp.eq.s32.totalorder %s10, 0
    %p51 = por %p49, %p50
    %p52 = scmp.ne.s32.totalorder %s44, %s46
    %p53 = scmp.eq.s32.totalorder %s15, 1
    %p54 = por %p52, %p53
    %p55 = scmp.ne.s32.totalorder %s46, %s47
    %p56 = scmp.eq.s32.totalorder %s15, 0
    %p57 = por %p55, %p56
    %p58 = scmp.ne.s32.totalorder %s46, %s47
    %p59 = scmp.eq.s32.totalorder %s16, 1
    %p60 = por %p58, %p59
    %p62 = scmp.ne.s32.totalorder %s47, %s61
    %p63 = scmp.eq.s32.totalorder %s16, 0
    %p64 = por %p62, %p63
    %s66 = sadd.s32 %s65, 1
    %p69 = scmp.eq.s32.totalorder %s10, 1
    %p70 = scmp.ne.s32.totalorder %s65, %s67
    %p71 = scmp.eq.s32.totalorder %s10, 0
    %p72 = por %p70, %p71
    %p73 = scmp.ne.s32.totalorder %s65, %s67
    %p74 = scmp.eq.s32.totalorder %s15, 1
    %p75 = por %p73, %p74
    %p76 = scmp.ne.s32.totalorder %s67, %s68
    %p77 = scmp.eq.s32.totalorder %s15, 0
    %p78 = por %p76, %p77
    %p79 = scmp.ne.s32.totalorder %s67, %s68
    %p80 = scmp.eq.s32.totalorder %s16, 1
    %p81 = por %p79, %p80
    %p83 = scmp.ne.s32.totalorder %s68, %s82
    %p84 = scmp.eq.s32.totalorder %s16, 0
    %p85 = por %p83, %p84
    %s87 = sadd.s32 %s86, 1
    %p90 = scmp.eq.s32.totalorder %s10, 1
    %p91 = scmp.ne.s32.totalorder %s86, %s88
    %p92 = scmp.eq.s32.totalorder %s10, 0
    %p93 = por %p91, %p92
    %p94 = scmp.ne.s32.totalorder %s86, %s88
    %p95 = scmp.eq.s32.totalorder %s15, 1
    %p96 = por %p94, %p95
    %p97 = scmp.ne.s32.totalorder %s88, %s89
    %p98 = scmp.eq.s32.totalorder %s15, 0
    %p99 = por %p97, %p98
    %p100 = scmp.ne.s32.totalorder %s88, %s89
    %p101 = scmp.eq.s32.totalorder %s16, 1
    %p102 = por %p100, %p101
    %p104 = scmp.ne.s32.totalorder %s89, %s103
    %p105 = scmp.eq.s32.totalorder %s16, 0
    %p106 = por %p104, %p105
    %s107 = ssub.s32 %s10, %s17
    %p108 = scmp.eq.s32.totalorder %s107, 0
    %s110 = sadd.s32 %s109, 1
    %s111 = scalar_select %p108, %s109, %s110
    %p114 = pneg %p108
    %p115 = scmp.eq.s32.totalorder %s10, 1
    %p116 = por %p114, %p115
    %p117 = scmp.ne.s32.totalorder %s109, %s112
    %p118 = scmp.eq.s32.totalorder %s10, 0
    %p119 = por %p117, %p118
    %p120 = scmp.ne.s32.totalorder %s109, %s112
    %p121 = scmp.eq.s32.totalorder %s15, 1
    %p122 = por %p120, %p121
    %p123 = scmp.ne.s32.totalorder %s112, %s113
    %p124 = scmp.eq.s32.totalorder %s15, 0
    %p125 = por %p123, %p124
    %p126 = scmp.ne.s32.totalorder %s112, %s113
    %p127 = scmp.eq.s32.totalorder %s16, 1
    %p128 = por %p126, %p127
    %p130 = scmp.ne.s32.totalorder %s113, %s129
    %p131 = scmp.eq.s32.totalorder %s16, 0
    %p132 = por %p130, %p131
    %p133 = scmp.le.s32.totalorder 1, %s10
    %p134 = scmp.lt.s32.totalorder %s10, 3
    %p135 = pnand %p133, %p134
    %p136 = pneg %p135
    // Predicated region
    $region9: #{autoencoder_forward.13} parent=5 // pred_check
      _
    $region10: #{autoencoder_forward.13} parent=5 // pred_check_branch
      %138 = sbr.rel (%p135) target = $region12
    $region11: #{autoencoder_forward.13} parent=5 // pred_region
      %s139 = ssub.s32 %s10, 1
      // Predicated region
      $region13: #{autoencoder_forward.13} parent=11 // pred_check
        %p140 = pneg %p57
      $region14: #{autoencoder_forward.13} parent=11 // pred_check_branch
        %142 = sbr.rel (%p140) target = $region16
      $region15: #{autoencoder_forward.13} parent=11 // pred_region
        _
      $region16: #{autoencoder_forward.13} parent=11 // pred_fallthru
        _
      // Predicated region
      $region17: #{autoencoder_forward.13} parent=11 // pred_check
        %p143 = pneg %p78
      $region18: #{autoencoder_forward.13} parent=11 // pred_check_branch
        %145 = sbr.rel (%p143) target = $region20
      $region19: #{autoencoder_forward.13} parent=11 // pred_region
        _
      $region20: #{autoencoder_forward.13} parent=11 // pred_fallthru
        _
      // Predicated region
      $region21: #{autoencoder_forward.13} parent=11 // pred_check
        %p146 = pneg %p99
      $region22: #{autoencoder_forward.13} parent=11 // pred_check_branch
        %148 = sbr.rel (%p146) target = $region24
      $region23: #{autoencoder_forward.13} parent=11 // pred_region
        _
      $region24: #{autoencoder_forward.13} parent=11 // pred_fallthru
        _
    $region12: #{autoencoder_forward.13} parent=5 // pred_fallthru
      _
    %p149 = scmp.lt.s32.totalorder %s10, 2
    // Predicated region
    $region25: #{autoencoder_forward.13} parent=5 // pred_check
      %p150 = pneg %p149
    $region26: #{autoencoder_forward.13} parent=5 // pred_check_branch
      %152 = sbr.rel (%p150) target = $region28
    $region27: #{autoencoder_forward.13} parent=5 // pred_region
      // Predicated region
      $region29: #{autoencoder_forward.13} parent=27 // pred_check
        %p153 = pneg %p30
      $region30: #{autoencoder_forward.13} parent=27 // pred_check_branch
        %155 = sbr.rel (%p153) target = $region32
      $region31: #{autoencoder_forward.13} parent=27 // pred_region
        %p156 = scmp.lt.s32.totalorder %s10, 1
        %s157 = scalar_select %p156, %s10, 1
        %s158 = smul.addr %s157, 3
        %s159 = smul.addr %s158, 8
        %s160 = scalar_lea.vmem %s0, %s159
      $region32: #{autoencoder_forward.13} parent=27 // pred_fallthru
        _
    $region28: #{autoencoder_forward.13} parent=5 // pred_fallthru
      _
    %p161 = scmp.le.s32.totalorder 1, %s10
    %p162 = scmp.lt.s32.totalorder %s10, 3
    %p163 = pnand %p161, %p162
    %p164 = pneg %p163
    // Predicated region
    $region33: #{autoencoder_forward.13} parent=5 // pred_check
      _
    $region34: #{autoencoder_forward.13} parent=5 // pred_check_branch
      %166 = sbr.rel (%p163) target = $region36
    $region35: #{autoencoder_forward.13} parent=5 // pred_region
      %s167 = ssub.s32 %s10, 1
      %p168 = scmp.lt.s32.totalorder %s15, 1
      %s169 = scalar_select %p168, %s15, 1
      %s170 = smul.addr %s169, 3
      %s171 = smul.addr %s170, 8
      %s172 = scalar_lea.vmem %s0, %s171
      %p173 = pneg %p36
      %p174 = pneg %p33
      %p175 = pneg %p57
      %p176 = pneg %p54
      %p177 = pneg %p78
      %p178 = pneg %p75
      %p179 = pneg %p99
      %p180 = pneg %p96
      %p181 = pneg %p125
      %p182 = pneg %p122
      %p183 = scmp.lt.s32.totalorder %s15, 1
      %s184 = scalar_select %p183, %s15, 1
      %s185 = smul.addr %s184, 3
      %s186 = smul.addr %s185, 4
      %s187 = scalar_lea.vmem %s4, %s186
      %p188 = scmp.lt.s32.totalorder %s15, 1
      %s189 = scalar_select %p188, %s15, 1
      %s190 = smul.addr %s189, 3
      %s191 = smul.addr %s190, 8
      %s192 = scalar_lea.vmem %s0, %s191
      %p193 = scmp.lt.s32.totalorder %s15, 1
      %s194 = scalar_select %p193, %s15, 1
      %s195 = smul.addr %s194, 3
      %s196 = smul.addr %s195, 4
      %s197 = scalar_lea.vmem %s4, %s196
      %v198 = vld [vmem:[%s1] sm:$0x7]
      %v199 = vld [vmem:[%s192] sm:$0xff]
      %v200 = vld [vmem:[%s192 + $0x8] sm:$0xff]
      %v201 = vld [vmem:[%s192 + $0x10] sm:$0xff]
      %s202 = scalar_lea.vmem %s1, 4
      %v203 = vld [vmem:[%s202] sm:$0x7]
      %207 = vrot.lane.b32.xlu0 %v199, 127
      %v208 = vpop.permute.xlu0 %207
      %209 = vrot.lane.b32.xlu0 %v200, 127
      %v210 = vpop.permute.xlu0 %209
      %211 = vrot.lane.b32.xlu0 %v201, 127
      %v212 = vpop.permute.xlu0 %211
      %vm213 = vcmask 1039360
      %v214 = vsel %vm213, %v208, %v210
      %v215 = vsel %vm213, %v210, %v212
      %vm219 = vcmask 64512
      %v221 = vsel %vm219, %v203, 0
      %223 = vmatpush.msra.mxu0 0.0
      %224 = vmatpush.msra.mxu0 0.0
      %225 = vmatpush.msra.mxu0 0.0
      %226 = vmatpush.msra.mxu0 0.0
      %227 = vmatpush.msra.mxu0 0.0
      %228 = vmatpush.msra.mxu0 0.0
      %229 = vmatpush.msra.mxu0 0.0
      %230 = vmatpush.msra.mxu0 0.0
      %231 = vmatpush.msra.mxu0 0.0
      %232 = vmatpush.msra.mxu0 0.0
      %233 = vmatpush.msra.mxu0 0.0
      %234 = vmatpush.msra.mxu0 0.0
      %235 = vmatpush.msra.mxu0 0.0
      %236 = vmatpush.msra.mxu0 0.0
      %237 = vmatpush.msra.mxu0 0.0
      %238 = vmatpush.msra.mxu0 %v214
      %239 = vmatmul.f32.gmra.mxu0 %v221
      %v240 = vpop.f32.mrf.mxu0
      %v241 = vadd.f32 0.0, %v240
      %242 = vdwg.mxu0
      %243 = vmatpush.msra.mxu0 0.0
      %244 = vmatpush.msra.mxu0 0.0
      %245 = vmatpush.msra.mxu0 0.0
      %246 = vmatpush.msra.mxu0 0.0
      %247 = vmatpush.msra.mxu0 0.0
      %248 = vmatpush.msra.mxu0 0.0
      %249 = vmatpush.msra.mxu0 0.0
      %250 = vmatpush.msra.mxu0 0.0
      %251 = vmatpush.msra.mxu0 0.0
      %252 = vmatpush.msra.mxu0 0.0
      %253 = vmatpush.msra.mxu0 0.0
      %254 = vmatpush.msra.mxu0 0.0
      %255 = vmatpush.msra.mxu0 0.0
      %256 = vmatpush.msra.mxu0 0.0
      %257 = vmatpush.msra.mxu0 0.0
      %258 = vmatpush.msra.mxu0 %v215
      %259 = vmatmul.f32.gmra.mxu0 %v221
      %v260 = vpop.f32.mrf.mxu0
      %v261 = vadd.f32 0.0, %v260
      %262 = vdwg.mxu0
      %263 = vmatpush.msra.mxu0 0.0
      %264 = vmatpush.msra.mxu0 0.0
      %265 = vmatpush.msra.mxu0 0.0
      %266 = vmatpush.msra.mxu0 0.0
      %267 = vmatpush.msra.mxu0 0.0
      %268 = vmatpush.msra.mxu0 0.0
      %269 = vmatpush.msra.mxu0 0.0
      %270 = vmatpush.msra.mxu0 0.0
      %271 = vmatpush.msra.mxu0 0.0
      %272 = vmatpush.msra.mxu0 0.0
      %273 = vmatpush.msra.mxu0 0.0
      %274 = vmatpush.msra.mxu0 0.0
      %275 = vmatpush.msra.mxu0 0.0
      %276 = vmatpush.msra.mxu0 0.0
      %277 = vmatpush.msra.mxu0 0.0
      %278 = vmatpush.msra.mxu0 %v212
      %279 = vmatmul.f32.gmra.mxu0 %v221
      %v280 = vpop.f32.mrf.mxu0
      %v281 = vadd.f32 0.0, %v280
      %282 = vdwg.mxu0
      %v284 = vsel %vm219, %v198, 0
      %286 = vmatpush.msra.mxu0 0.0
      %287 = vmatpush.msra.mxu0 0.0
      %288 = vmatpush.msra.mxu0 0.0
      %289 = vmatpush.msra.mxu0 0.0
      %290 = vmatpush.msra.mxu0 0.0
      %291 = vmatpush.msra.mxu0 0.0
      %292 = vmatpush.msra.mxu0 0.0
      %293 = vmatpush.msra.mxu0 0.0
      %294 = vmatpush.msra.mxu0 0.0
      %295 = vmatpush.msra.mxu0 0.0
      %296 = vmatpush.msra.mxu0 0.0
      %297 = vmatpush.msra.mxu0 0.0
      %298 = vmatpush.msra.mxu0 0.0
      %299 = vmatpush.msra.mxu0 0.0
      %300 = vmatpush.msra.mxu0 0.0
      %301 = vmatpush.msra.mxu0 %v199
      %302 = vmatmul.f32.gmra.mxu0 %v284
      %v303 = vpop.f32.mrf.mxu0
      %v304 = vadd.f32 %v241, %v303
      %305 = vdwg.mxu0
      %306 = vmatpush.msra.mxu0 0.0
      %307 = vmatpush.msra.mxu0 0.0
      %308 = vmatpush.msra.mxu0 0.0
      %309 = vmatpush.msra.mxu0 0.0
      %310 = vmatpush.msra.mxu0 0.0
      %311 = vmatpush.msra.mxu0 0.0
      %312 = vmatpush.msra.mxu0 0.0
      %313 = vmatpush.msra.mxu0 0.0
      %314 = vmatpush.msra.mxu0 0.0
      %315 = vmatpush.msra.mxu0 0.0
      %316 = vmatpush.msra.mxu0 0.0
      %317 = vmatpush.msra.mxu0 0.0
      %318 = vmatpush.msra.mxu0 0.0
      %319 = vmatpush.msra.mxu0 0.0
      %320 = vmatpush.msra.mxu0 0.0
      %321 = vmatpush.msra.mxu0 %v200
      %322 = vmatmul.f32.gmra.mxu0 %v284
      %v323 = vpop.f32.mrf.mxu0
      %v324 = vadd.f32 %v261, %v323
      %325 = vdwg.mxu0
      %326 = vmatpush.msra.mxu0 0.0
      %327 = vmatpush.msra.mxu0 0.0
      %328 = vmatpush.msra.mxu0 0.0
      %329 = vmatpush.msra.mxu0 0.0
      %330 = vmatpush.msra.mxu0 0.0
      %331 = vmatpush.msra.mxu0 0.0
      %332 = vmatpush.msra.mxu0 0.0
      %333 = vmatpush.msra.mxu0 0.0
      %334 = vmatpush.msra.mxu0 0.0
      %335 = vmatpush.msra.mxu0 0.0
      %336 = vmatpush.msra.mxu0 0.0
      %337 = vmatpush.msra.mxu0 0.0
      %338 = vmatpush.msra.mxu0 0.0
      %339 = vmatpush.msra.mxu0 0.0
      %340 = vmatpush.msra.mxu0 0.0
      %341 = vmatpush.msra.mxu0 %v201
      %342 = vmatmul.f32.gmra.mxu0 %v284
      %v343 = vpop.f32.mrf.mxu0
      %v344 = vadd.f32 %v281, %v343
      %345 = vdwg.mxu0
      %s346 = scalar_lea.vmem %s1, 8
      %v347 = vld [vmem:[%s346] sm:$0x7]
      %348 = vrot.lane.b32.xlu0 %v199, 126
      %v349 = vpop.permute.xlu0 %348
      %350 = vrot.lane.b32.xlu0 %v200, 126
      %v351 = vpop.permute.xlu0 %350
      %352 = vrot.lane.b32.xlu0 %v201, 126
      %v353 = vpop.permute.xlu0 %352
      %vm354 = vcmask 1031168
      %v355 = vsel %vm354, %v349, %v351
      %v356 = vsel %vm354, %v351, %v353
      %v361 = vsel %vm219, %v347, 0
      %363 = vmatpush.msra.mxu0 0.0
      %364 = vmatpush.msra.mxu0 0.0
      %365 = vmatpush.msra.mxu0 0.0
      %366 = vmatpush.msra.mxu0 0.0
      %367 = vmatpush.msra.mxu0 0.0
      %368 = vmatpush.msra.mxu0 0.0
      %369 = vmatpush.msra.mxu0 0.0
      %370 = vmatpush.msra.mxu0 0.0
      %371 = vmatpush.msra.mxu0 0.0
      %372 = vmatpush.msra.mxu0 0.0
      %373 = vmatpush.msra.mxu0 0.0
      %374 = vmatpush.msra.mxu0 0.0
      %375 = vmatpush.msra.mxu0 0.0
      %376 = vmatpush.msra.mxu0 0.0
      %377 = vmatpush.msra.mxu0 0.0
      %378 = vmatpush.msra.mxu0 %v355
      %379 = vmatmul.f32.gmra.mxu0 %v361
      %v380 = vpop.f32.mrf.mxu0
      %v381 = vadd.f32 0.0, %v380
      %382 = vdwg.mxu0
      %383 = vmatpush.msra.mxu0 0.0
      %384 = vmatpush.msra.mxu0 0.0
      %385 = vmatpush.msra.mxu0 0.0
      %386 = vmatpush.msra.mxu0 0.0
      %387 = vmatpush.msra.mxu0 0.0
      %388 = vmatpush.msra.mxu0 0.0
      %389 = vmatpush.msra.mxu0 0.0
      %390 = vmatpush.msra.mxu0 0.0
      %391 = vmatpush.msra.mxu0 0.0
      %392 = vmatpush.msra.mxu0 0.0
      %393 = vmatpush.msra.mxu0 0.0
      %394 = vmatpush.msra.mxu0 0.0
      %395 = vmatpush.msra.mxu0 0.0
      %396 = vmatpush.msra.mxu0 0.0
      %397 = vmatpush.msra.mxu0 0.0
      %398 = vmatpush.msra.mxu0 %v356
      %399 = vmatmul.f32.gmra.mxu0 %v361
      %v400 = vpop.f32.mrf.mxu0
      %v401 = vadd.f32 0.0, %v400
      %402 = vdwg.mxu0
      %403 = vmatpush.msra.mxu0 0.0
      %404 = vmatpush.msra.mxu0 0.0
      %405 = vmatpush.msra.mxu0 0.0
      %406 = vmatpush.msra.mxu0 0.0
      %407 = vmatpush.msra.mxu0 0.0
      %408 = vmatpush.msra.mxu0 0.0
      %409 = vmatpush.msra.mxu0 0.0
      %410 = vmatpush.msra.mxu0 0.0
      %411 = vmatpush.msra.mxu0 0.0
      %412 = vmatpush.msra.mxu0 0.0
      %413 = vmatpush.msra.mxu0 0.0
      %414 = vmatpush.msra.mxu0 0.0
      %415 = vmatpush.msra.mxu0 0.0
      %416 = vmatpush.msra.mxu0 0.0
      %417 = vmatpush.msra.mxu0 0.0
      %418 = vmatpush.msra.mxu0 %v353
      %419 = vmatmul.f32.gmra.mxu0 %v361
      %v420 = vpop.f32.mrf.mxu0
      %v421 = vadd.f32 0.0, %v420
      %422 = vdwg.mxu0
      %v423 = vadd.f32 %v304, %v381
      %v424 = vadd.f32 %v324, %v401
      %v425 = vadd.f32 %v344, %v421
      %s426 = scalar_lea.vmem %s1, 12
      %v427 = vld [vmem:[%s426] sm:$0x7]
      %428 = vrot.lane.b32.xlu0 %v199, 110
      %v429 = vpop.permute.xlu0 %428
      %430 = vrot.lane.b32.xlu0 %v200, 110
      %v431 = vpop.permute.xlu0 %430
      %432 = vrot.lane.b32.xlu0 %v201, 110
      %v433 = vpop.permute.xlu0 %432
      %vm434 = vcmask 900096
      %v435 = vsel %vm434, %v429, %v431
      %v436 = vsel %vm434, %v431, %v433
      %v441 = vsel %vm219, %v427, 0
      %443 = vmatpush.msra.mxu0 0.0
      %444 = vmatpush.msra.mxu0 0.0
      %445 = vmatpush.msra.mxu0 0.0
      %446 = vmatpush.msra.mxu0 0.0
      %447 = vmatpush.msra.mxu0 0.0
      %448 = vmatpush.msra.mxu0 0.0
      %449 = vmatpush.msra.mxu0 0.0
      %450 = vmatpush.msra.mxu0 0.0
      %451 = vmatpush.msra.mxu0 0.0
      %452 = vmatpush.msra.mxu0 0.0
      %453 = vmatpush.msra.mxu0 0.0
      %454 = vmatpush.msra.mxu0 0.0
      %455 = vmatpush.msra.mxu0 0.0
      %456 = vmatpush.msra.mxu0 0.0
      %457 = vmatpush.msra.mxu0 0.0
      %458 = vmatpush.msra.mxu0 %v435
      %459 = vmatmul.f32.gmra.mxu0 %v441
      %v460 = vpop.f32.mrf.mxu0
      %v461 = vadd.f32 0.0, %v460
      %462 = vdwg.mxu0
      %463 = vmatpush.msra.mxu0 0.0
      %464 = vmatpush.msra.mxu0 0.0
      %465 = vmatpush.msra.mxu0 0.0
      %466 = vmatpush.msra.mxu0 0.0
      %467 = vmatpush.msra.mxu0 0.0
      %468 = vmatpush.msra.mxu0 0.0
      %469 = vmatpush.msra.mxu0 0.0
      %470 = vmatpush.msra.mxu0 0.0
      %471 = vmatpush.msra.mxu0 0.0
      %472 = vmatpush.msra.mxu0 0.0
      %473 = vmatpush.msra.mxu0 0.0
      %474 = vmatpush.msra.mxu0 0.0
      %475 = vmatpush.msra.mxu0 0.0
      %476 = vmatpush.msra.mxu0 0.0
      %477 = vmatpush.msra.mxu0 0.0
      %478 = vmatpush.msra.mxu0 %v436
      %479 = vmatmul.f32.gmra.mxu0 %v441
      %v480 = vpop.f32.mrf.mxu0
      %v481 = vadd.f32 0.0, %v480
      %482 = vdwg.mxu0
      %483 = vmatpush.msra.mxu0 0.0
      %484 = vmatpush.msra.mxu0 0.0
      %485 = vmatpush.msra.mxu0 0.0
      %486 = vmatpush.msra.mxu0 0.0
      %487 = vmatpush.msra.mxu0 0.0
      %488 = vmatpush.msra.mxu0 0.0
      %489 = vmatpush.msra.mxu0 0.0
      %490 = vmatpush.msra.mxu0 0.0
      %491 = vmatpush.msra.mxu0 0.0
      %492 = vmatpush.msra.mxu0 0.0
      %493 = vmatpush.msra.mxu0 0.0
      %494 = vmatpush.msra.mxu0 0.0
      %495 = vmatpush.msra.mxu0 0.0
      %496 = vmatpush.msra.mxu0 0.0
      %497 = vmatpush.msra.mxu0 0.0
      %498 = vmatpush.msra.mxu0 %v433
      %499 = vmatmul.f32.gmra.mxu0 %v441
      %v500 = vpop.f32.mrf.mxu0
      %v501 = vadd.f32 0.0, %v500
      %502 = vdwg.mxu0
      %v503 = vadd.f32 %v423, %v461
      %v504 = vadd.f32 %v424, %v481
      %v505 = vadd.f32 %v425, %v501
      %s506 = scalar_lea.vmem %s1, 16
      %v507 = vld [vmem:[%s506] sm:$0x7]
      %508 = vrot.lane.b32.xlu0 %v199, 109
      %v509 = vpop.permute.xlu0 %508
      %510 = vrot.lane.b32.xlu0 %v200, 109
      %v511 = vpop.permute.xlu0 %510
      %512 = vrot.lane.b32.xlu0 %v201, 109
      %v513 = vpop.permute.xlu0 %512
      %vm514 = vcmask 891904
      %v515 = vsel %vm514, %v509, %v511
      %v516 = vsel %vm514, %v511, %v513
      %v521 = vsel %vm219, %v507, 0
      %523 = vmatpush.msra.mxu0 0.0
      %524 = vmatpush.msra.mxu0 0.0
      %525 = vmatpush.msra.mxu0 0.0
      %526 = vmatpush.msra.mxu0 0.0
      %527 = vmatpush.msra.mxu0 0.0
      %528 = vmatpush.msra.mxu0 0.0
      %529 = vmatpush.msra.mxu0 0.0
      %530 = vmatpush.msra.mxu0 0.0
      %531 = vmatpush.msra.mxu0 0.0
      %532 = vmatpush.msra.mxu0 0.0
      %533 = vmatpush.msra.mxu0 0.0
      %534 = vmatpush.msra.mxu0 0.0
      %535 = vmatpush.msra.mxu0 0.0
      %536 = vmatpush.msra.mxu0 0.0
      %537 = vmatpush.msra.mxu0 0.0
      %538 = vmatpush.msra.mxu0 %v515
      %539 = vmatmul.f32.gmra.mxu0 %v521
      %v540 = vpop.f32.mrf.mxu0
      %v541 = vadd.f32 0.0, %v540
      %542 = vdwg.mxu0
      %543 = vmatpush.msra.mxu0 0.0
      %544 = vmatpush.msra.mxu0 0.0
      %545 = vmatpush.msra.mxu0 0.0
      %546 = vmatpush.msra.mxu0 0.0
      %547 = vmatpush.msra.mxu0 0.0
      %548 = vmatpush.msra.mxu0 0.0
      %549 = vmatpush.msra.mxu0 0.0
      %550 = vmatpush.msra.mxu0 0.0
      %551 = vmatpush.msra.mxu0 0.0
      %552 = vmatpush.msra.mxu0 0.0
      %553 = vmatpush.msra.mxu0 0.0
      %554 = vmatpush.msra.mxu0 0.0
      %555 = vmatpush.msra.mxu0 0.0
      %556 = vmatpush.msra.mxu0 0.0
      %557 = vmatpush.msra.mxu0 0.0
      %558 = vmatpush.msra.mxu0 %v516
      %559 = vmatmul.f32.gmra.mxu0 %v521
      %v560 = vpop.f32.mrf.mxu0
      %v561 = vadd.f32 0.0, %v560
      %562 = vdwg.mxu0
      %563 = vmatpush.msra.mxu0 0.0
      %564 = vmatpush.msra.mxu0 0.0
      %565 = vmatpush.msra.mxu0 0.0
      %566 = vmatpush.msra.mxu0 0.0
      %567 = vmatpush.msra.mxu0 0.0
      %568 = vmatpush.msra.mxu0 0.0
      %569 = vmatpush.msra.mxu0 0.0
      %570 = vmatpush.msra.mxu0 0.0
      %571 = vmatpush.msra.mxu0 0.0
      %572 = vmatpush.msra.mxu0 0.0
      %573 = vmatpush.msra.mxu0 0.0
      %574 = vmatpush.msra.mxu0 0.0
      %575 = vmatpush.msra.mxu0 0.0
      %576 = vmatpush.msra.mxu0 0.0
      %577 = vmatpush.msra.mxu0 0.0
      %578 = vmatpush.msra.mxu0 %v513
      %579 = vmatmul.f32.gmra.mxu0 %v521
      %v580 = vpop.f32.mrf.mxu0
      %v581 = vadd.f32 0.0, %v580
      %582 = vdwg.mxu0
      %v583 = vadd.f32 %v503, %v541
      %v584 = vadd.f32 %v504, %v561
      %v585 = vadd.f32 %v505, %v581
      %s586 = scalar_lea.vmem %s1, 20
      %v587 = vld [vmem:[%s586] sm:$0x7]
      %588 = vrot.lane.b32.xlu0 %v199, 108
      %v589 = vpop.permute.xlu0 %588
      %590 = vrot.lane.b32.xlu0 %v200, 108
      %v591 = vpop.permute.xlu0 %590
      %592 = vrot.lane.b32.xlu0 %v201, 108
      %v593 = vpop.permute.xlu0 %592
      %vm594 = vcmask 883712
      %v595 = vsel %vm594, %v589, %v591
      %v596 = vsel %vm594, %v591, %v593
      %v601 = vsel %vm219, %v587, 0
      %603 = vmatpush.msra.mxu0 0.0
      %604 = vmatpush.msra.mxu0 0.0
      %605 = vmatpush.msra.mxu0 0.0
      %606 = vmatpush.msra.mxu0 0.0
      %607 = vmatpush.msra.mxu0 0.0
      %608 = vmatpush.msra.mxu0 0.0
      %609 = vmatpush.msra.mxu0 0.0
      %610 = vmatpush.msra.mxu0 0.0
      %611 = vmatpush.msra.mxu0 0.0
      %612 = vmatpush.msra.mxu0 0.0
      %613 = vmatpush.msra.mxu0 0.0
      %614 = vmatpush.msra.mxu0 0.0
      %615 = vmatpush.msra.mxu0 0.0
      %616 = vmatpush.msra.mxu0 0.0
      %617 = vmatpush.msra.mxu0 0.0
      %618 = vmatpush.msra.mxu0 %v595
      %619 = vmatmul.f32.gmra.mxu0 %v601
      %v620 = vpop.f32.mrf.mxu0
      %v621 = vadd.f32 0.0, %v620
      %622 = vdwg.mxu0
      %623 = vmatpush.msra.mxu0 0.0
      %624 = vmatpush.msra.mxu0 0.0
      %625 = vmatpush.msra.mxu0 0.0
      %626 = vmatpush.msra.mxu0 0.0
      %627 = vmatpush.msra.mxu0 0.0
      %628 = vmatpush.msra.mxu0 0.0
      %629 = vmatpush.msra.mxu0 0.0
      %630 = vmatpush.msra.mxu0 0.0
      %631 = vmatpush.msra.mxu0 0.0
      %632 = vmatpush.msra.mxu0 0.0
      %633 = vmatpush.msra.mxu0 0.0
      %634 = vmatpush.msra.mxu0 0.0
      %635 = vmatpush.msra.mxu0 0.0
      %636 = vmatpush.msra.mxu0 0.0
      %637 = vmatpush.msra.mxu0 0.0
      %638 = vmatpush.msra.mxu0 %v596
      %639 = vmatmul.f32.gmra.mxu0 %v601
      %v640 = vpop.f32.mrf.mxu0
      %v641 = vadd.f32 0.0, %v640
      %642 = vdwg.mxu0
      %643 = vmatpush.msra.mxu0 0.0
      %644 = vmatpush.msra.mxu0 0.0
      %645 = vmatpush.msra.mxu0 0.0
      %646 = vmatpush.msra.mxu0 0.0
      %647 = vmatpush.msra.mxu0 0.0
      %648 = vmatpush.msra.mxu0 0.0
      %649 = vmatpush.msra.mxu0 0.0
      %650 = vmatpush.msra.mxu0 0.0
      %651 = vmatpush.msra.mxu0 0.0
      %652 = vmatpush.msra.mxu0 0.0
      %653 = vmatpush.msra.mxu0 0.0
      %654 = vmatpush.msra.mxu0 0.0
      %655 = vmatpush.msra.mxu0 0.0
      %656 = vmatpush.msra.mxu0 0.0
      %657 = vmatpush.msra.mxu0 0.0
      %658 = vmatpush.msra.mxu0 %v593
      %659 = vmatmul.f32.gmra.mxu0 %v601
      %v660 = vpop.f32.mrf.mxu0
      %v661 = vadd.f32 0.0, %v660
      %662 = vdwg.mxu0
      %v663 = vadd.f32 %v583, %v621
      %v664 = vadd.f32 %v584, %v641
      %v665 = vadd.f32 %v585, %v661
      %s666 = scalar_lea.vmem %s1, 24
      %v667 = vld [vmem:[%s666] sm:$0x7]
      %668 = vrot.lane.b32.xlu0 %v199, 92
      %v669 = vpop.permute.xlu0 %668
      %670 = vrot.lane.b32.xlu0 %v200, 92
      %v671 = vpop.permute.xlu0 %670
      %672 = vrot.lane.b32.xlu0 %v201, 92
      %v673 = vpop.permute.xlu0 %672
      %vm674 = vcmask 752640
      %v675 = vsel %vm674, %v669, %v671
      %v676 = vsel %vm674, %v671, %v673
      %v681 = vsel %vm219, %v667, 0
      %683 = vmatpush.msra.mxu0 0.0
      %684 = vmatpush.msra.mxu0 0.0
      %685 = vmatpush.msra.mxu0 0.0
      %686 = vmatpush.msra.mxu0 0.0
      %687 = vmatpush.msra.mxu0 0.0
      %688 = vmatpush.msra.mxu0 0.0
      %689 = vmatpush.msra.mxu0 0.0
      %690 = vmatpush.msra.mxu0 0.0
      %691 = vmatpush.msra.mxu0 0.0
      %692 = vmatpush.msra.mxu0 0.0
      %693 = vmatpush.msra.mxu0 0.0
      %694 = vmatpush.msra.mxu0 0.0
      %695 = vmatpush.msra.mxu0 0.0
      %696 = vmatpush.msra.mxu0 0.0
      %697 = vmatpush.msra.mxu0 0.0
      %698 = vmatpush.msra.mxu0 %v675
      %699 = vmatmul.f32.gmra.mxu0 %v681
      %v700 = vpop.f32.mrf.mxu0
      %v701 = vadd.f32 0.0, %v700
      %702 = vdwg.mxu0
      %703 = vmatpush.msra.mxu0 0.0
      %704 = vmatpush.msra.mxu0 0.0
      %705 = vmatpush.msra.mxu0 0.0
      %706 = vmatpush.msra.mxu0 0.0
      %707 = vmatpush.msra.mxu0 0.0
      %708 = vmatpush.msra.mxu0 0.0
      %709 = vmatpush.msra.mxu0 0.0
      %710 = vmatpush.msra.mxu0 0.0
      %711 = vmatpush.msra.mxu0 0.0
      %712 = vmatpush.msra.mxu0 0.0
      %713 = vmatpush.msra.mxu0 0.0
      %714 = vmatpush.msra.mxu0 0.0
      %715 = vmatpush.msra.mxu0 0.0
      %716 = vmatpush.msra.mxu0 0.0
      %717 = vmatpush.msra.mxu0 0.0
      %718 = vmatpush.msra.mxu0 %v676
      %719 = vmatmul.f32.gmra.mxu0 %v681
      %v720 = vpop.f32.mrf.mxu0
      %v721 = vadd.f32 0.0, %v720
      %722 = vdwg.mxu0
      %723 = vmatpush.msra.mxu0 0.0
      %724 = vmatpush.msra.mxu0 0.0
      %725 = vmatpush.msra.mxu0 0.0
      %726 = vmatpush.msra.mxu0 0.0
      %727 = vmatpush.msra.mxu0 0.0
      %728 = vmatpush.msra.mxu0 0.0
      %729 = vmatpush.msra.mxu0 0.0
      %730 = vmatpush.msra.mxu0 0.0
      %731 = vmatpush.msra.mxu0 0.0
      %732 = vmatpush.msra.mxu0 0.0
      %733 = vmatpush.msra.mxu0 0.0
      %734 = vmatpush.msra.mxu0 0.0
      %735 = vmatpush.msra.mxu0 0.0
      %736 = vmatpush.msra.mxu0 0.0
      %737 = vmatpush.msra.mxu0 0.0
      %738 = vmatpush.msra.mxu0 %v673
      %739 = vmatmul.f32.gmra.mxu0 %v681
      %v740 = vpop.f32.mrf.mxu0
      %v741 = vadd.f32 0.0, %v740
      %742 = vdwg.mxu0
      %v743 = vadd.f32 %v663, %v701
      %v744 = vadd.f32 %v664, %v721
      %v745 = vadd.f32 %v665, %v741
      %s746 = scalar_lea.vmem %s1, 28
      %v747 = vld [vmem:[%s746] sm:$0x7]
      %748 = vrot.lane.b32.xlu0 %v199, 91
      %v749 = vpop.permute.xlu0 %748
      %750 = vrot.lane.b32.xlu0 %v200, 91
      %v751 = vpop.permute.xlu0 %750
      %752 = vrot.lane.b32.xlu0 %v201, 91
      %v753 = vpop.permute.xlu0 %752
      %vm754 = vcmask 744448
      %v755 = vsel %vm754, %v749, %v751
      %v756 = vsel %vm754, %v751, %v753
      %v761 = vsel %vm219, %v747, 0
      %763 = vmatpush.msra.mxu0 0.0
      %764 = vmatpush.msra.mxu0 0.0
      %765 = vmatpush.msra.mxu0 0.0
      %766 = vmatpush.msra.mxu0 0.0
      %767 = vmatpush.msra.mxu0 0.0
      %768 = vmatpush.msra.mxu0 0.0
      %769 = vmatpush.msra.mxu0 0.0
      %770 = vmatpush.msra.mxu0 0.0
      %771 = vmatpush.msra.mxu0 0.0
      %772 = vmatpush.msra.mxu0 0.0
      %773 = vmatpush.msra.mxu0 0.0
      %774 = vmatpush.msra.mxu0 0.0
      %775 = vmatpush.msra.mxu0 0.0
      %776 = vmatpush.msra.mxu0 0.0
      %777 = vmatpush.msra.mxu0 0.0
      %778 = vmatpush.msra.mxu0 %v755
      %779 = vmatmul.f32.gmra.mxu0 %v761
      %v780 = vpop.f32.mrf.mxu0
      %v781 = vadd.f32 0.0, %v780
      %782 = vdwg.mxu0
      %783 = vmatpush.msra.mxu0 0.0
      %784 = vmatpush.msra.mxu0 0.0
      %785 = vmatpush.msra.mxu0 0.0
      %786 = vmatpush.msra.mxu0 0.0
      %787 = vmatpush.msra.mxu0 0.0
      %788 = vmatpush.msra.mxu0 0.0
      %789 = vmatpush.msra.mxu0 0.0
      %790 = vmatpush.msra.mxu0 0.0
      %791 = vmatpush.msra.mxu0 0.0
      %792 = vmatpush.msra.mxu0 0.0
      %793 = vmatpush.msra.mxu0 0.0
      %794 = vmatpush.msra.mxu0 0.0
      %795 = vmatpush.msra.mxu0 0.0
      %796 = vmatpush.msra.mxu0 0.0
      %797 = vmatpush.msra.mxu0 0.0
      %798 = vmatpush.msra.mxu0 %v756
      %799 = vmatmul.f32.gmra.mxu0 %v761
      %v800 = vpop.f32.mrf.mxu0
      %v801 = vadd.f32 0.0, %v800
      %802 = vdwg.mxu0
      %803 = vmatpush.msra.mxu0 0.0
      %804 = vmatpush.msra.mxu0 0.0
      %805 = vmatpush.msra.mxu0 0.0
      %806 = vmatpush.msra.mxu0 0.0
      %807 = vmatpush.msra.mxu0 0.0
      %808 = vmatpush.msra.mxu0 0.0
      %809 = vmatpush.msra.mxu0 0.0
      %810 = vmatpush.msra.mxu0 0.0
      %811 = vmatpush.msra.mxu0 0.0
      %812 = vmatpush.msra.mxu0 0.0
      %813 = vmatpush.msra.mxu0 0.0
      %814 = vmatpush.msra.mxu0 0.0
      %815 = vmatpush.msra.mxu0 0.0
      %816 = vmatpush.msra.mxu0 0.0
      %817 = vmatpush.msra.mxu0 0.0
      %818 = vmatpush.msra.mxu0 %v753
      %819 = vmatmul.f32.gmra.mxu0 %v761
      %v820 = vpop.f32.mrf.mxu0
      %v821 = vadd.f32 0.0, %v820
      %822 = vdwg.mxu0
      %v823 = vadd.f32 %v743, %v781
      %v824 = vadd.f32 %v744, %v801
      %v825 = vadd.f32 %v745, %v821
      %s826 = scalar_lea.vmem %s1, 32
      %v827 = vld [vmem:[%s826] sm:$0x7]
      %828 = vrot.lane.b32.xlu0 %v199, 90
      %v829 = vpop.permute.xlu0 %828
      %830 = vrot.lane.b32.xlu0 %v200, 90
      %v831 = vpop.permute.xlu0 %830
      %832 = vrot.lane.b32.xlu0 %v201, 90
      %v833 = vpop.permute.xlu0 %832
      %vm834 = vcmask 736256
      %v835 = vsel %vm834, %v829, %v831
      %v836 = vsel %vm834, %v831, %v833
      %v841 = vsel %vm219, %v827, 0
      %843 = vmatpush.msra.mxu0 0.0
      %844 = vmatpush.msra.mxu0 0.0
      %845 = vmatpush.msra.mxu0 0.0
      %846 = vmatpush.msra.mxu0 0.0
      %847 = vmatpush.msra.mxu0 0.0
      %848 = vmatpush.msra.mxu0 0.0
      %849 = vmatpush.msra.mxu0 0.0
      %850 = vmatpush.msra.mxu0 0.0
      %851 = vmatpush.msra.mxu0 0.0
      %852 = vmatpush.msra.mxu0 0.0
      %853 = vmatpush.msra.mxu0 0.0
      %854 = vmatpush.msra.mxu0 0.0
      %855 = vmatpush.msra.mxu0 0.0
      %856 = vmatpush.msra.mxu0 0.0
      %857 = vmatpush.msra.mxu0 0.0
      %858 = vmatpush.msra.mxu0 %v835
      %859 = vmatmul.f32.gmra.mxu0 %v841
      %v860 = vpop.f32.mrf.mxu0
      %v861 = vadd.f32 0.0, %v860
      %862 = vdwg.mxu0
      %863 = vmatpush.msra.mxu0 0.0
      %864 = vmatpush.msra.mxu0 0.0
      %865 = vmatpush.msra.mxu0 0.0
      %866 = vmatpush.msra.mxu0 0.0
      %867 = vmatpush.msra.mxu0 0.0
      %868 = vmatpush.msra.mxu0 0.0
      %869 = vmatpush.msra.mxu0 0.0
      %870 = vmatpush.msra.mxu0 0.0
      %871 = vmatpush.msra.mxu0 0.0
      %872 = vmatpush.msra.mxu0 0.0
      %873 = vmatpush.msra.mxu0 0.0
      %874 = vmatpush.msra.mxu0 0.0
      %875 = vmatpush.msra.mxu0 0.0
      %876 = vmatpush.msra.mxu0 0.0
      %877 = vmatpush.msra.mxu0 0.0
      %878 = vmatpush.msra.mxu0 %v836
      %879 = vmatmul.f32.gmra.mxu0 %v841
      %v880 = vpop.f32.mrf.mxu0
      %v881 = vadd.f32 0.0, %v880
      %882 = vdwg.mxu0
      %883 = vmatpush.msra.mxu0 0.0
      %884 = vmatpush.msra.mxu0 0.0
      %885 = vmatpush.msra.mxu0 0.0
      %886 = vmatpush.msra.mxu0 0.0
      %887 = vmatpush.msra.mxu0 0.0
      %888 = vmatpush.msra.mxu0 0.0
      %889 = vmatpush.msra.mxu0 0.0
      %890 = vmatpush.msra.mxu0 0.0
      %891 = vmatpush.msra.mxu0 0.0
      %892 = vmatpush.msra.mxu0 0.0
      %893 = vmatpush.msra.mxu0 0.0
      %894 = vmatpush.msra.mxu0 0.0
      %895 = vmatpush.msra.mxu0 0.0
      %896 = vmatpush.msra.mxu0 0.0
      %897 = vmatpush.msra.mxu0 0.0
      %898 = vmatpush.msra.mxu0 %v833
      %899 = vmatmul.f32.gmra.mxu0 %v841
      %v900 = vpop.f32.mrf.mxu0
      %v901 = vadd.f32 0.0, %v900
      %902 = vdwg.mxu0
      %v903 = vadd.f32 %v823, %v861
      %v904 = vadd.f32 %v824, %v881
      %v905 = vadd.f32 %v825, %v901
      %v906 = vld [vmem:[%s2] sm:$0x7]
      %908 = vset.pattern.permute.xlu0 0
      %909 = vperm.xlu0 %908, %v906
      %v910 = vpop.permute.xlu0 %909
      %v912 = vadd.f32 %v903, %v910
      %v913 = vadd.f32 %v904, %v910
      %v914 = vadd.f32 %v905, %v910
      %v915 = vtanh.pop %v912
      %v916 = vtanh.pop %v913
      %v917 = vtanh.pop %v914
      %v918 = vld [vmem:[%s3] sm:$0x7]
      %v920 = vperm.slane %v918, 0
      %v921 = vperm.slane %v918, 1
      %v922 = vperm.slane %v918, 2
      %v926 = vmul.f32 %v915, %v920
      %v927 = vmul.f32 %v916, %v921
      %v928 = vmul.f32 %v917, %v922
      %929 = vst [vmem:[%s197] sm:$0x77] 0.0
      %vm930 = vcmask 698368
      %931 = vst.msk [vmem:[%s197 + $0x8] sm:$0x7] %vm930, 0.0
      %v935 = vrot.slane %v927, 4
      %vm936 = vcmask 1043456
      %v937 = vsel %vm936, %v926, %v935
      %938 = vrot.lane.b32.xlu0 %v937, 19
      %v939 = vpop.permute.xlu0 %938
      %940 = vrot.lane.b32.xlu0 %v928, 19
      %v941 = vpop.permute.xlu0 %940
      %v942 = vrot.slane %v939, 4
      %vm943 = vcmask 154624
      %v944 = vsel %vm943, %v942, %v939
      %v945 = vsel %vm943, %v942, %v941
      %vm948 = vcmask 1042584
      %vm949 = vcmask 1046532
      %vm950 = vmor %vm949, %vm948
      %951 = vst.msk [vmem:[%s197] sm:$0x77] %vm950, %v944
      %vm952 = vcmask 411648
      %953 = vst.msk [vmem:[%s197 + $0x8] sm:$0x7] %vm952, %v945
      %p954 = scmp.lt.s32.totalorder %s15, 1
      %s955 = scalar_select %p954, %s15, 1
      %s956 = smul.addr %s955, 3
      %s957 = smul.addr %s956, 4
      %s958 = scalar_lea.vmem %s4, %s957
      // Predicated region
      $region37: #{autoencoder_forward.13} parent=35 // pred_check
        %p959 = pneg %p122
      $region38: #{autoencoder_forward.13} parent=35 // pred_check_branch
        %961 = sbr.rel (%p959) target = $region40
      $region39: #{autoencoder_forward.13} parent=35 // pred_region
        _
      $region40: #{autoencoder_forward.13} parent=35 // pred_fallthru
        _
    $region36: #{autoencoder_forward.13} parent=5 // pred_fallthru
      _
    %p962 = scmp.le.s32.totalorder 2, %s10
    // Predicated region
    $region41: #{autoencoder_forward.13} parent=5 // pred_check
      %p963 = pneg %p962
    $region42: #{autoencoder_forward.13} parent=5 // pred_check_branch
      %965 = sbr.rel (%p963) target = $region44
    $region43: #{autoencoder_forward.13} parent=5 // pred_region
      %s966 = ssub.s32 %s10, 2
      // Predicated region
      $region45: #{autoencoder_forward.13} parent=43 // pred_check
        %p967 = pneg %p128
      $region46: #{autoencoder_forward.13} parent=43 // pred_check_branch
        %969 = sbr.rel (%p967) target = $region48
      $region47: #{autoencoder_forward.13} parent=43 // pred_region
        %p970 = scmp.lt.s32.totalorder %s16, 1
        %s971 = scalar_select %p970, %s16, 1
        %s972 = smul.addr %s971, 3
        %s973 = smul.addr %s972, 4
        %s974 = scalar_lea.vmem %s4, %s973
      $region48: #{autoencoder_forward.13} parent=43 // pred_fallthru
        _
    $region44: #{autoencoder_forward.13} parent=5 // pred_fallthru
      _
  $region6: #{autoencoder_forward.13} parent=0 // loop_footer
    %s14 = sadd.s32 1, %s10
  $region7: #{autoencoder_forward.13} parent=0 // loop_footer_branch
    %9 = sbr.rel target = $region3
  $region8: #{autoencoder_forward.13} parent=0 // loop_exit
    _

</llo_original>
